<compile_context>
chip_gen: v5e
topology: v5e:2x2
jax: 0.10.0
libtpu: 0.0.40
codegen_flags: <defaults>
</compile_context>

<pallas_src>
import functools

import jax
import jax.numpy as jnp
from jax.experimental import pallas as pl
from jax.experimental.pallas import tpu as pltpu

_LANE = 128


def _round_up(x, m):
    return (x + m - 1) // m * m


@functools.lru_cache(maxsize=1)
def _vmem_limit_bytes():
    """3/4 of physical VMEM (96 MiB on v5e/v6e, 48 MiB on v7x)."""
    cap = None
    try:
        cap = int(getattr(pltpu.get_tpu_info(), "vmem_capacity_bytes", 0)) or None
    except Exception:
        cap = None
    if cap is None:
        kind = ""
        try:
            kind = jax.devices()[0].device_kind.lower()
        except Exception:
            pass
        cap = (64 << 20) if "v7" in kind else (128 << 20)
    return int(cap * 3 // 4)


def _pick_linear_tile(n_pad, fin_p, fout_p):
    budget = int(_vmem_limit_bytes() * 0.85)
    fixed = 2 * (fin_p * fout_p * 2 + fout_p * 4)          # resident weight + bias
    for tm in (512, 256, 128):
        if n_pad % tm:
            continue
        per_step = 2 * tm * (fin_p * 2 + fout_p * 2) + tm * fout_p * 4
        if fixed + per_step <= budget:
            return tm
    return 128


def _pick_attn_tile(n_pad, d_pad, num_heads, use_res_attn, use_resval, write_attn):
    budget = int(_vmem_limit_bytes() * 0.85)
    resident = 2 * (num_heads * n_pad * d_pad * 2          # feat (bf16, resident)
                    + num_heads * n_pad * 4                # el   (f32, resident)
                    + num_heads * d_pad * 4)               # bias
    for tm in (512, 256, 128):
        if n_pad % tm:
            continue
        stream = 2 * (tm * n_pad                            # ids (int8)
                      + num_heads * tm * 4                  # er
                      + tm * d_pad * 4                      # out (<= f32)
                      + (tm * n_pad * 2 if use_res_attn else 0)
                      + (tm * n_pad * 2 if write_attn else 0)
                      + (tm * d_pad * 2 if use_resval else 0))
        temps = 5 * tm * n_pad * 4 + n_pad * d_pad * 2      # f32 body temps + feat slice
        if resident + stream + temps <= budget:
            return tm
    raise ValueError(
        "hyperGAT attention working set does not fit VMEM even at TM=128 "
        f"(N_pad={n_pad}, D_pad={d_pad}, H={num_heads}). "
        "TODO(synk): online-softmax src-split variant needed for this size.")


# ----------------------------------------------------------------------------
# Weight / bias layout helpers (XLA-side, weight-sized, O(Fin*Fout))
# ----------------------------------------------------------------------------
def _expand_in(w, h_prev, d_prev, d_pad_prev):
    """Insert zero rows so w accepts the lane-padded flat input layout."""
    fin, fout = w.shape
    w3 = w.reshape(h_prev, d_prev, fout)
    w3 = jnp.pad(w3, ((0, 0), (0, d_pad_prev - d_prev), (0, 0)))
    return w3.reshape(h_prev * d_pad_prev, fout)


def _prep_w_flat(w, h_prev, d_prev, d_pad_prev, h, d, d_pad):
    wi = _expand_in(w, h_prev, d_prev, d_pad_prev)          # [Fin_p, h*d]
    w3 = wi.reshape(-1, h, d)
    w3 = jnp.pad(w3, ((0, 0), (0, 0), (0, d_pad - d)))
    return w3.reshape(-1, h * d_pad).astype(jnp.bfloat16)


def _prep_w_heads(w, h_prev, d_prev, d_pad_prev, h, d, d_pad):
    wi = _expand_in(w, h_prev, d_prev, d_pad_prev)          # [Fin_p, h*d]
    w3 = wi.reshape(-1, h, d).transpose(1, 0, 2)            # [h, Fin_p, d]
    w3 = jnp.pad(w3, ((0, 0), (0, 0), (0, d_pad - d)))
    return w3.astype(jnp.bfloat16)


def _prep_b_flat(b, h, d, d_pad):
    b2 = jnp.pad(b.reshape(h, d), ((0, 0), (0, d_pad - d)))
    return b2.reshape(1, h * d_pad).astype(jnp.float32)


def _prep_b_heads(b, h, d, d_pad):
    b2 = jnp.pad(b.reshape(h, d), ((0, 0), (0, d_pad - d)))
    return b2.reshape(h, 1, d_pad).astype(jnp.float32)


def _repack_flat(x_flat, h_prev, d_prev, h_new, d_new):
    """Re-block a padded flat activation [N, H_prev*D_pad_prev] to (h_new, d_new)."""
    if (h_prev, d_prev) == (h_new, d_new):
        return x_flat
    n_pad = x_flat.shape[0]
    d_pad_prev = x_flat.shape[1] // h_prev
    d_pad_new = _round_up(d_new, _LANE)
    x = x_flat.reshape(n_pad, h_prev, d_pad_prev)[:, :, :d_prev]
    x = x.reshape(n_pad, h_new, d_new)
    x = jnp.pad(x, ((0, 0), (0, 0), (0, d_pad_new - d_new)))
    return x.reshape(n_pad, h_new * d_pad_new)


# ----------------------------------------------------------------------------
# Linear kernels (bf16 MXU operands, f32 accumulate, resident weights)
# ----------------------------------------------------------------------------
def _linear_flat_kernel(x_ref, w_ref, b_ref, o_ref):
    acc = jnp.dot(x_ref[...], w_ref[...], preferred_element_type=jnp.float32)
    o_ref[...] = (acc + b_ref[...]).astype(o_ref.dtype)


def linear_flat(x, w, b, *, out_dtype=jnp.bfloat16):
    """x:[N_pad,Fin_p] @ w:[Fin_p,Fout_p] + b -> [N_pad,Fout_p] (default bf16)."""
    n_pad, fin_p = x.shape
    fout_p = w.shape[1]
    tile_m = _pick_linear_tile(n_pad, fin_p, fout_p)
    return pl.pallas_call(
        _linear_flat_kernel,
        grid=(n_pad // tile_m,),
        in_specs=[pl.BlockSpec((tile_m, fin_p), lambda i: (i, 0)),
                  pl.BlockSpec((fin_p, fout_p), lambda i: (0, 0)),
                  pl.BlockSpec((1, fout_p), lambda i: (0, 0))],
        out_specs=pl.BlockSpec((tile_m, fout_p), lambda i: (i, 0)),
        out_shape=jax.ShapeDtypeStruct((n_pad, fout_p), out_dtype),
        compiler_params=pltpu.CompilerParams(
            dimension_semantics=("parallel",),
            vmem_limit_bytes=_vmem_limit_bytes()),
    )(x.astype(jnp.bfloat16), w, b)


def _make_linear_heads_kernel(num_heads):
    def kernel(x_ref, w_ref, b_ref, o_ref):
        x = x_ref[...]
        for hh in range(num_heads):                          # static unrolled
            acc = jnp.dot(x, w_ref[hh], preferred_element_type=jnp.float32)
            o_ref[hh] = (acc + b_ref[hh]).astype(o_ref.dtype)
    return kernel


def linear_heads(x, w_h, b_h):
    """x:[N_pad,Fin_p], w_h:[H,Fin_p,D_pad] -> head-major bf16 [H,N_pad,D_pad]."""
    n_pad, fin_p = x.shape
    num_heads, _, d_pad = w_h.shape
    tile_m = _pick_linear_tile(n_pad, fin_p, num_heads * d_pad)
    return pl.pallas_call(
        _make_linear_heads_kernel(num_heads),
        grid=(n_pad // tile_m,),
        in_specs=[pl.BlockSpec((tile_m, fin_p), lambda i: (i, 0)),
                  pl.BlockSpec((num_heads, fin_p, d_pad), lambda i: (0, 0, 0)),
                  pl.BlockSpec((num_heads, 1, d_pad), lambda i: (0, 0, 0))],
        out_specs=pl.BlockSpec((num_heads, tile_m, d_pad), lambda i: (0, i, 0)),
        out_shape=jax.ShapeDtypeStruct((num_heads, n_pad, d_pad), jnp.bfloat16),
        compiler_params=pltpu.CompilerParams(
            dimension_semantics=("parallel",),
            vmem_limit_bytes=_vmem_limit_bytes()),
    )(x.astype(jnp.bfloat16), w_h, b_h)


# ----------------------------------------------------------------------------
# Fused attention + aggregation + epilogue kernel
#   grid = (dst_tile, head), head innermost; ids fetched once per dst tile,
#   src features / el / bias fully resident; etype table in SMEM scalars.
# ----------------------------------------------------------------------------
def _make_attn_kernel(num_etypes, negative_slope, alpha,
                      use_res_attn, use_resval, write_attn, apply_act):
    def kernel(*refs):
        it = iter(refs)
        etab_ref = next(it)      # SMEM (H, num_etypes) f32 per-head etype scores
        el_ref = next(it)        # (H, 1, N)      f32  src scores   (resident)
        er_ref = next(it)        # (H, TM, 1)     f32  dst scores
        ids_ref = next(it)       # (TM, N)        int8 etype id, -1 => no edge
        feat_ref = next(it)      # (H, N, D_pad)  bf16 src features (resident)
        res_ref = next(it) if use_res_attn else None    # (1, TM, N) bf16
        resval_ref = next(it) if use_resval else None   # (TM, D_pad) bf16
        bias_ref = next(it)      # (H, 1, D_pad)  f32
        attn_ref = next(it) if write_attn else None     # (1, TM, N) bf16
        out_ref = next(it)       # (TM, D_pad)

        h = pl.program_id(1)

        el = el_ref[h]                                  # (1, N)
        er = er_ref[h]                                  # (TM, 1)
        ids = ids_ref[...].astype(jnp.int32)            # (TM, N)
        edge = ids >= 0

        # per-edge-type scores via chained select from SMEM scalars
        ee = jnp.zeros(ids.shape, jnp.float32) + etab_ref[h, num_etypes - 1]
        for t in range(num_etypes - 2, -1, -1):
            ee = jnp.where(ids == t, etab_ref[h, t], ee)

        s = er + el + ee                                # e_ij = er[i]+el[j]+ee_ij
        s = jnp.where(s > 0, s, negative_slope * s)     # leaky relu
        s = jnp.where(edge, s, -1e30)                   # mask non-edges

        m = jnp.max(s, axis=1, keepdims=True)           # edge softmax over src
        p = jnp.where(edge, jnp.exp(s - m), 0.0)
        # rows with >=1 edge have sum >= exp(0) = 1; empty (padded) rows -> 1
        denom = jnp.maximum(jnp.sum(p, axis=1, keepdims=True), 1.0)

        if write_attn or use_res_attn:
            a = p * pl.reciprocal(denom, approx=True)   # EUP slot
            if use_res_attn:                            # residual attention blend
                a = a * (1.0 - alpha) + res_ref[0].astype(jnp.float32) * alpha
            if write_attn:
                attn_ref[0] = a.astype(attn_ref.dtype)
            out = jnp.dot(a.astype(jnp.bfloat16), feat_ref[h],
                          preferred_element_type=jnp.float32)
        else:
            # last layer: fold normalisation into the (TM, D) epilogue
            out = jnp.dot(p.astype(jnp.bfloat16), feat_ref[h],
                          preferred_element_type=jnp.float32)
            out = out * pl.reciprocal(denom, approx=True)

        if use_resval:
            out = out + resval_ref[...].astype(jnp.float32)   # node residual
        out = out + bias_ref[h]                               # bias
        if apply_act:                                         # ELU
            out = jnp.where(out > 0, out, jnp.exp(jnp.minimum(out, 0.0)) - 1.0)
        out_ref[...] = out.astype(out_ref.dtype)

    return kernel


def gat_attention(etab, el_h, er_h, ids8, feat_h, bias_h, res_attn, resval, *,
                  num_etypes, negative_slope, alpha, write_attn, apply_act,
                  out_dtype=jnp.bfloat16):
    """Edge-softmax attention, aggregation and fused epilogue.

    etab:[H,E] f32 (SMEM)  el_h:[H,1,N]  er_h:[H,N,1]  ids8:[N,N] int8
    feat_h:[H,N,D_pad] bf16  bias_h:[H,1,D_pad]
    res_attn:[H,N,N] bf16 or None   resval:[N,H*D_pad] bf16 or None
      -> (attn:[H,N,N] bf16 or None, out:[N,H*D_pad])
    """
    num_heads, n_pad, d_pad = feat_h.shape
    use_res_attn = res_attn is not None
    use_resval = resval is not None
    tile_m = _pick_attn_tile(n_pad, d_pad, num_heads,
                             use_res_attn, use_resval, write_attn)
    grid = (n_pad // tile_m, num_heads)

    kernel = _make_attn_kernel(int(num_etypes), float(negative_slope),
                               float(alpha), use_res_attn, use_resval,
                               write_attn, apply_act)

    in_specs = [
        pl.BlockSpec((num_heads, 1, n_pad), lambda i, j, e: (0, 0, 0)),       # el
        pl.BlockSpec((num_heads, tile_m, 1), lambda i, j, e: (0, i, 0)),      # er
        pl.BlockSpec((tile_m, n_pad), lambda i, j, e: (i, 0)),                # ids8
        pl.BlockSpec((num_heads, n_pad, d_pad), lambda i, j, e: (0, 0, 0)),   # feat
    ]
    inputs = [el_h, er_h, ids8, feat_h]
    if use_res_attn:
        in_specs.append(pl.BlockSpec((1, tile_m, n_pad), lambda i, j, e: (j, i, 0)))
        inputs.append(res_attn)
    if use_resval:
        in_specs.append(pl.BlockSpec((tile_m, d_pad), lambda i, j, e: (i, j)))
        inputs.append(resval)
    in_specs.append(pl.BlockSpec((num_heads, 1, d_pad), lambda i, j, e: (0, 0, 0)))
    inputs.append(bias_h)

    out_spec = pl.BlockSpec((tile_m, d_pad), lambda i, j, e: (i, j))
    out_shape = jax.ShapeDtypeStruct((n_pad, num_heads * d_pad), out_dtype)
    if write_attn:
        out_specs = [pl.BlockSpec((1, tile_m, n_pad), lambda i, j, e: (j, i, 0)),
                     out_spec]
        out_shapes = [jax.ShapeDtypeStruct((num_heads, n_pad, n_pad), jnp.bfloat16),
                      out_shape]
    else:
        out_specs = out_spec
        out_shapes = out_shape

    result = pl.pallas_call(
        kernel,
        grid_spec=pltpu.PrefetchScalarGridSpec(
            num_scalar_prefetch=1, grid=grid,
            in_specs=in_specs, out_specs=out_specs),
        out_shape=out_shapes,
        compiler_params=pltpu.CompilerParams(
            dimension_semantics=("parallel", "arbitrary"),
            vmem_limit_bytes=_vmem_limit_bytes()),
    )(etab, *inputs)

    if write_attn:
        attn, out = result
        return attn, out
    return None, result


# ----------------------------------------------------------------------------
# hyperGATConv layer (Euclidean path) built on the kernels above
# ----------------------------------------------------------------------------
def hyper_gat_conv(p, x_flat, x_block, ids8, res_attn, *, num_heads, out_feats,
                   negative_slope, alpha, residual, apply_act, write_attn,
                   out_dtype=jnp.bfloat16):
    h, d = num_heads, out_feats
    d_pad = _round_up(d, _LANE)
    h_prev, d_prev = x_block
    d_pad_prev = x_flat.shape[1] // h_prev
    num_etypes, edge_dim = p["edge_emb"].shape

    # node feature transform -> head-major, lane-padded bf16 (Pallas matmul)
    w_h = _prep_w_heads(p["w_fc"], h_prev, d_prev, d_pad_prev, h, d, d_pad)
    b_h = _prep_b_heads(p["b_fc"], h, d, d_pad)
    feat_h = linear_heads(x_flat, w_h, b_h)                  # [h, N_pad, d_pad]

    # attention score vectors (tiny O(N*H*D) work; stays in XLA, bf16 reads)
    attn_l = jnp.pad(p["attn_l"][0], ((0, 0), (0, d_pad - d))).astype(jnp.bfloat16)
    attn_r = jnp.pad(p["attn_r"][0], ((0, 0), (0, d_pad - d))).astype(jnp.bfloat16)
    el = jnp.einsum("hnd,hd->hn", feat_h, attn_l,
                    preferred_element_type=jnp.float32)
    er = jnp.einsum("hnd,hd->hn", feat_h, attn_r,
                    preferred_element_type=jnp.float32)
    el_h = el[:, None, :]                                    # [h, 1, N_pad]
    er_h = er[:, :, None]                                    # [h, N_pad, 1]

    # per-edge-type attention score table -> SMEM scalars (h x num_etypes)
    e_proj = (p["edge_emb"] @ p["w_e"]).reshape(num_etypes, h, edge_dim)
    etab = jnp.sum(e_proj * p["attn_e"], axis=-1).T.astype(jnp.float32)

    bias_h = _prep_b_heads(p["bias"], h, d, d_pad)

    resval = None
    if residual:
        if p.get("w_res") is not None:
            w_res = _prep_w_flat(p["w_res"], h_prev, d_prev, d_pad_prev, h, d, d_pad)
            resval = linear_flat(x_flat, w_res,
                                 jnp.zeros((1, h * d_pad), jnp.float32))
        else:
            resval = _repack_flat(x_flat, h_prev, d_prev, h, d)   # identity

    attn, out = gat_attention(
        etab, el_h, er_h, ids8, feat_h, bias_h, res_attn, resval,
        num_etypes=num_etypes, negative_slope=negative_slope, alpha=alpha,
        write_attn=write_attn, apply_act=apply_act, out_dtype=out_dtype)
    # out is already the flattened [N_pad, h*d_pad] layer output (flatten(1))
    return out, attn


# ----------------------------------------------------------------------------
# Full hyperGAT model
# ----------------------------------------------------------------------------
def hyper_gat_forward(params, layer_cfgs, x, adj, etype_ids, *,
                      negative_slope, alpha):
    n, in_dim = x.shape
    n_pad = _round_up(n, _LANE)
    pad_n = n_pad - n

    # merged edge-structure stream: int8 etype id for edges, -1 for non-edges
    ids8 = jnp.where(adj > 0, etype_ids, -1).astype(jnp.int8)
    ids8 = jnp.pad(ids8, ((0, pad_n), (0, pad_n)), constant_values=-1)

    in_pad = _round_up(in_dim, _LANE)
    xp = jnp.pad(x, ((0, pad_n), (0, in_pad - in_dim)))

    # initial nn.Linear(in_dim, num_hidden)
    num_hidden = params["fc_w"].shape[1]
    hid_pad = _round_up(num_hidden, _LANE)
    w0 = _prep_w_flat(params["fc_w"], 1, in_dim, in_pad, 1, num_hidden, hid_pad)
    b0 = _prep_b_flat(params["fc_b"], 1, num_hidden, hid_pad)
    cur = linear_flat(xp, w0, b0)                            # [N_pad, hid_pad] bf16
    cur_block = (1, num_hidden)

    res_attn = None
    num_layers = len(layer_cfgs) - 1
    for l in range(num_layers):
        cfg = layer_cfgs[l]
        cur, res_attn = hyper_gat_conv(
            params["layers"][l], cur, cur_block, ids8, res_attn,
            num_heads=cfg["heads"], out_feats=cfg["out"],
            negative_slope=negative_slope, alpha=alpha,
            residual=cfg["residual"], apply_act=True, write_attn=True)
        cur_block = (cfg["heads"], cfg["out"])               # already flatten(1)

    cfg = layer_cfgs[-1]
    logits_flat, _ = hyper_gat_conv(
        params["layers"][-1], cur, cur_block, ids8, None,
        num_heads=cfg["heads"], out_feats=cfg["out"],
        negative_slope=negative_slope, alpha=alpha,
        residual=cfg["residual"], apply_act=False, write_attn=False,
        out_dtype=jnp.float32)
    d_pad = _round_up(cfg["out"], _LANE)
    logits = logits_flat.reshape(n_pad, cfg["heads"], d_pad)[:n, :, :cfg["out"]]
    return jnp.mean(logits, axis=1)                          # logits.mean(1)


# ----------------------------------------------------------------------------
# Deterministic parameter init (mirrors the PyTorch module construction)
# ----------------------------------------------------------------------------
def _xavier_normal(key, shape, gain=1.0):
    fan_in, fan_out = shape[0], shape[1]
    std = gain * (2.0 / (fan_in + fan_out)) ** 0.5
    return std * jax.random.normal(key, shape, jnp.float32)


def init_params(key, *, in_dim, num_hidden, num_classes, num_layers, heads,
                edge_dim, num_etypes, residual):
    keys = iter(jax.random.split(key, 128))
    params = {
        "fc_w": _xavier_normal(next(keys), (in_dim, num_hidden), gain=1.414),
        "fc_b": jnp.zeros((num_hidden,), jnp.float32),
        "layers": [],
    }
    layer_cfgs = []
    for l in range(num_layers + 1):
        if l == 0:
            fin, fout, h, res = num_hidden, num_hidden, heads[0], False
        elif l < num_layers:
            fin, fout, h, res = num_hidden * heads[l - 1], num_hidden, heads[l], residual
        else:
            fin, fout, h, res = num_hidden * heads[-2], num_classes, heads[-1], residual
        p = {
            "w_fc": _xavier_normal(next(keys), (fin, h * fout), gain=1.414),
            "b_fc": jnp.zeros((h * fout,), jnp.float32),
            "attn_l": 0.1 * jax.random.normal(next(keys), (1, h, fout), jnp.float32),
            "attn_r": 0.1 * jax.random.normal(next(keys), (1, h, fout), jnp.float32),
            "attn_e": 0.1 * jax.random.normal(next(keys), (1, h, edge_dim), jnp.float32),
            "edge_emb": 0.1 * jax.random.normal(next(keys), (num_etypes, edge_dim), jnp.float32),
            "w_e": _xavier_normal(next(keys), (edge_dim, h * edge_dim), gain=1.414),
            "bias": jnp.zeros((1, h, fout), jnp.float32),
            "w_res": (_xavier_normal(next(keys), (fin, h * fout))
                      if (res and fin != h * fout) else None),
        }
        params["layers"].append(p)
        layer_cfgs.append({"heads": h, "out": fout, "residual": res})
    return params, layer_cfgs


# ----------------------------------------------------------------------------
if __name__ == "__main__":
    # small shapes consistent with the module
    N, IN_DIM = 16, 12
    NUM_HIDDEN, NUM_CLASSES = 16, 5
    NUM_LAYERS = 2
    HEADS = [2, 2, 1]
    EDGE_DIM, NUM_ETYPES = 8, 3
    NEG_SLOPE, ALPHA, RESIDUAL = 0.2, 0.05, True

    key = jax.random.PRNGKey(0)
    k_param, k_x, k_adj, k_et = jax.random.split(key, 4)

    params, layer_cfgs = init_params(
        k_param, in_dim=IN_DIM, num_hidden=NUM_HIDDEN, num_classes=NUM_CLASSES,
        num_layers=NUM_LAYERS, heads=HEADS, edge_dim=EDGE_DIM,
        num_etypes=NUM_ETYPES, residual=RESIDUAL)

    x = jax.random.normal(k_x, (N, IN_DIM), jnp.float32)
    adj = (jax.random.uniform(k_adj, (N, N)) < 0.3).astype(jnp.float32)
    adj = jnp.maximum(adj, jnp.eye(N, dtype=jnp.float32))        # self loops
    etype_ids = jax.random.randint(k_et, (N, N), 0, NUM_ETYPES)

    fwd = jax.jit(lambda x_, a_, e_: hyper_gat_forward(
        params, layer_cfgs, x_, a_, e_,
        negative_slope=NEG_SLOPE, alpha=ALPHA))
    logits = fwd(x, adj, etype_ids)
    jax.block_until_ready(logits)
    assert logits.shape == (N, NUM_CLASSES)
    assert bool(jnp.all(jnp.isfinite(logits)))
    print("KERNEL_OK")
</pallas_src>

<mosaic_0001>
module attributes {stable_mosaic.version = 11 : i64} {
  func.func @_linear_flat_kernel(%arg0: i32, %arg1: memref<128x128xbf16, #tpu.memory_space<vmem>>, %arg2: memref<128x128xbf16, #tpu.memory_space<vmem>>, %arg3: memref<1x128xf32, #tpu.memory_space<vmem>>, %arg4: memref<128x128xbf16, #tpu.memory_space<vmem>>) attributes {dimension_semantics = [#tpu.dimension_semantics<parallel>], iteration_bounds = array<i64: 1>, scalar_prefetch = 0 : i64, scratch_operands = 0 : i64, tpu.core_type = #tpu.core_type<tc>, window_params = [{transform_indices = @transform_0, window_bounds = array<i64: 128, 128>}, {pipeline_mode = #tpu.pipeline_mode<synchronous>, transform_indices = @transform_1, window_bounds = array<i64: 128, 128>}, {pipeline_mode = #tpu.pipeline_mode<synchronous>, transform_indices = @transform_2, window_bounds = array<i64: 1, 128>}, {transform_indices = @transform_3, window_bounds = array<i64: 128, 128>}]} {
    %c0 = arith.constant 0 : index
    %c0_0 = arith.constant 0 : index
    %0 = vector.load %arg1[%c0, %c0_0] : memref<128x128xbf16, #tpu.memory_space<vmem>>, vector<128x128xbf16>
    %c0_1 = arith.constant 0 : index
    %c0_2 = arith.constant 0 : index
    %1 = vector.load %arg2[%c0_1, %c0_2] : memref<128x128xbf16, #tpu.memory_space<vmem>>, vector<128x128xbf16>
    %cst = arith.constant dense<0.000000e+00> : vector<128x128xf32>
    %2 = tpu.matmul %0, %1, %cst {dimension_numbers = #tpu.dot_dimension_numbers<[1], [0], [0], [1], [0, 0, 1, 1], [], []>} : vector<128x128xbf16>, vector<128x128xbf16>, vector<128x128xf32> -> vector<128x128xf32>
    %c0_3 = arith.constant 0 : index
    %c0_4 = arith.constant 0 : index
    %3 = vector.load %arg3[%c0_3, %c0_4] : memref<1x128xf32, #tpu.memory_space<vmem>>, vector<1x128xf32>
    %4 = vector.broadcast %3 : vector<1x128xf32> to vector<128x128xf32>
    %5 = arith.addf %2, %4 : vector<128x128xf32>
    %6 = arith.truncf %5 : vector<128x128xf32> to vector<128x128xbf16>
    %c0_5 = arith.constant 0 : index
    %c0_6 = arith.constant 0 : index
    %7 = vector.load %arg4[%c0_5, %c0_6] : memref<128x128xbf16, #tpu.memory_space<vmem>>, vector<128x128xbf16>
    tpu.vector_store %arg4[%c0_5, %c0_6], %6 {strides = array<i32>} : memref<128x128xbf16, #tpu.memory_space<vmem>>, vector<128x128xbf16>,
    return
  }
  func.func @transform_0(%arg0: i32) -> (i32, i32) {
    %c0_i32 = arith.constant 0 : i32
    %c0_i32_0 = arith.constant 0 : i32
    return %arg0, %c0_i32 : i32, i32
  }
  func.func @transform_1(%arg0: i32) -> (i32, i32) {
    %c0_i32 = arith.constant 0 : i32
    %c0_i32_0 = arith.constant 0 : i32
    %c0_i32_1 = arith.constant 0 : i32
    return %c0_i32, %c0_i32_0 : i32, i32
  }
  func.func @transform_2(%arg0: i32) -> (i32, i32) {
    %c0_i32 = arith.constant 0 : i32
    %c0_i32_0 = arith.constant 0 : i32
    %c0_i32_1 = arith.constant 0 : i32
    return %c0_i32, %c0_i32_0 : i32, i32
  }
  func.func @transform_3(%arg0: i32) -> (i32, i32) {
    %c0_i32 = arith.constant 0 : i32
    %c0_i32_0 = arith.constant 0 : i32
    return %arg0, %c0_i32 : i32, i32
  }
}

module attributes {stable_mosaic.version = 11 : i64} {
  func.func @kernel(%arg0: i32, %arg1: memref<128x128xbf16, #tpu.memory_space<vmem>>, %arg2: memref<2x128x128xbf16, #tpu.memory_space<vmem>>, %arg3: memref<2x1x128xf32, #tpu.memory_space<vmem>>, %arg4: memref<2x128x128xbf16, #tpu.memory_space<vmem>>) attributes {dimension_semantics = [#tpu.dimension_semantics<parallel>], iteration_bounds = array<i64: 1>, scalar_prefetch = 0 : i64, scratch_operands = 0 : i64, tpu.core_type = #tpu.core_type<tc>, window_params = [{transform_indices = @transform_0, window_bounds = array<i64: 128, 128>}, {pipeline_mode = #tpu.pipeline_mode<synchronous>, transform_indices = @transform_1, window_bounds = array<i64: 2, 128, 128>}, {pipeline_mode = #tpu.pipeline_mode<synchronous>, transform_indices = @transform_2, window_bounds = array<i64: 2, 1, 128>}, {transform_indices = @transform_3, window_bounds = array<i64: 2, 128, 128>}]} {
    %c0 = arith.constant 0 : index
    %c0_0 = arith.constant 0 : index
    %0 = vector.load %arg1[%c0, %c0_0] : memref<128x128xbf16, #tpu.memory_space<vmem>>, vector<128x128xbf16>
    %c0_1 = arith.constant 0 : index
    %c0_2 = arith.constant 0 : index
    %c0_3 = arith.constant 0 : index
    %1 = vector.load %arg2[%c0_1, %c0_2, %c0_3] : memref<2x128x128xbf16, #tpu.memory_space<vmem>>, vector<1x128x128xbf16>
    %2 = vector.shape_cast %1 : vector<1x128x128xbf16> to vector<128x128xbf16>
    %cst = arith.constant dense<0.000000e+00> : vector<128x128xf32>
    %3 = tpu.matmul %0, %2, %cst {dimension_numbers = #tpu.dot_dimension_numbers<[1], [0], [0], [1], [0, 0, 1, 1], [], []>} : vector<128x128xbf16>, vector<128x128xbf16>, vector<128x128xf32> -> vector<128x128xf32>
    %c0_4 = arith.constant 0 : index
    %c0_5 = arith.constant 0 : index
    %c0_6 = arith.constant 0 : index
    %4 = vector.load %arg3[%c0_4, %c0_5, %c0_6] : memref<2x1x128xf32, #tpu.memory_space<vmem>>, vector<1x1x128xf32>
    %5 = vector.shape_cast %4 : vector<1x1x128xf32> to vector<1x128xf32>
    %6 = vector.broadcast %5 : vector<1x128xf32> to vector<128x128xf32>
    %7 = arith.addf %3, %6 : vector<128x128xf32>
    %8 = arith.truncf %7 : vector<128x128xf32> to vector<128x128xbf16>
    %c0_7 = arith.constant 0 : index
    %c0_8 = arith.constant 0 : index
    %c0_9 = arith.constant 0 : index
    %9 = vector.load %arg4[%c0_7, %c0_8, %c0_9] : memref<2x128x128xbf16, #tpu.memory_space<vmem>>, vector<1x128x128xbf16>
    %10 = vector.shape_cast %9 : vector<1x128x128xbf16> to vector<128x128xbf16>
    %11 = vector.shape_cast %8 : vector<128x128xbf16> to vector<1x128x128xbf16>
    tpu.vector_store %arg4[%c0_7, %c0_8, %c0_9], %11 {strides = array<i32>} : memref<2x128x128xbf16, #tpu.memory_space<vmem>>, vector<1x128x128xbf16>,
    %c1 = arith.constant 1 : index
    %c0_10 = arith.constant 0 : index
    %c0_11 = arith.constant 0 : index
    %12 = vector.load %arg2[%c1, %c0_10, %c0_11] : memref<2x128x128xbf16, #tpu.memory_space<vmem>>, vector<1x128x128xbf16>
    %13 = vector.shape_cast %12 : vector<1x128x128xbf16> to vector<128x128xbf16>
    %cst_12 = arith.constant dense<0.000000e+00> : vector<128x128xf32>
    %14 = tpu.matmul %0, %13, %cst_12 {dimension_numbers = #tpu.dot_dimension_numbers<[1], [0], [0], [1], [0, 0, 1, 1], [], []>} : vector<128x128xbf16>, vector<128x128xbf16>, vector<128x128xf32> -> vector<128x128xf32>
    %c1_13 = arith.constant 1 : index
    %c0_14 = arith.constant 0 : index
    %c0_15 = arith.constant 0 : index
    %15 = vector.load %arg3[%c1_13, %c0_14, %c0_15] : memref<2x1x128xf32, #tpu.memory_space<vmem>>, vector<1x1x128xf32>
    %16 = vector.shape_cast %15 : vector<1x1x128xf32> to vector<1x128xf32>
    %17 = vector.broadcast %16 : vector<1x128xf32> to vector<128x128xf32>
    %18 = arith.addf %14, %17 : vector<128x128xf32>
    %19 = arith.truncf %18 : vector<128x128xf32> to vector<128x128xbf16>
    %c1_16 = arith.constant 1 : index
    %c0_17 = arith.constant 0 : index
    %c0_18 = arith.constant 0 : index
    %20 = vector.load %arg4[%c1_16, %c0_17, %c0_18] : memref<2x128x128xbf16, #tpu.memory_space<vmem>>, vector<1x128x128xbf16>
    %21 = vector.shape_cast %20 : vector<1x128x128xbf16> to vector<128x128xbf16>
    %22 = vector.shape_cast %19 : vector<128x128xbf16> to vector<1x128x128xbf16>
    tpu.vector_store %arg4[%c1_16, %c0_17, %c0_18], %22 {strides = array<i32>} : memref<2x128x128xbf16, #tpu.memory_space<vmem>>, vector<1x128x128xbf16>,
    return
  }
  func.func @transform_0(%arg0: i32) -> (i32, i32) {
    %c0_i32 = arith.constant 0 : i32
    %c0_i32_0 = arith.constant 0 : i32
    return %arg0, %c0_i32 : i32, i32
  }
  func.func @transform_1(%arg0: i32) -> (i32, i32, i32) {
    %c0_i32 = arith.constant 0 : i32
    %c0_i32_0 = arith.constant 0 : i32
    %c0_i32_1 = arith.constant 0 : i32
    %c0_i32_2 = arith.constant 0 : i32
    return %c0_i32, %c0_i32_0, %c0_i32_1 : i32, i32, i32
  }
  func.func @transform_2(%arg0: i32) -> (i32, i32, i32) {
    %c0_i32 = arith.constant 0 : i32
    %c0_i32_0 = arith.constant 0 : i32
    %c0_i32_1 = arith.constant 0 : i32
    %c0_i32_2 = arith.constant 0 : i32
    return %c0_i32, %c0_i32_0, %c0_i32_1 : i32, i32, i32
  }
  func.func @transform_3(%arg0: i32) -> (i32, i32, i32) {
    %c0_i32 = arith.constant 0 : i32
    %c0_i32_0 = arith.constant 0 : i32
    %c0_i32_1 = arith.constant 0 : i32
    return %c0_i32, %arg0, %c0_i32_0 : i32, i32, i32
  }
}

module attributes {stable_mosaic.version = 11 : i64} {
  func.func @kernel(%arg0: i32, %arg1: memref<128x256xbf16, #tpu.memory_space<vmem>>, %arg2: memref<2x256x128xbf16, #tpu.memory_space<vmem>>, %arg3: memref<2x1x128xf32, #tpu.memory_space<vmem>>, %arg4: memref<2x128x128xbf16, #tpu.memory_space<vmem>>) attributes {dimension_semantics = [#tpu.dimension_semantics<parallel>], iteration_bounds = array<i64: 1>, scalar_prefetch = 0 : i64, scratch_operands = 0 : i64, tpu.core_type = #tpu.core_type<tc>, window_params = [{transform_indices = @transform_0, window_bounds = array<i64: 128, 256>}, {pipeline_mode = #tpu.pipeline_mode<synchronous>, transform_indices = @transform_1, window_bounds = array<i64: 2, 256, 128>}, {pipeline_mode = #tpu.pipeline_mode<synchronous>, transform_indices = @transform_2, window_bounds = array<i64: 2, 1, 128>}, {transform_indices = @transform_3, window_bounds = array<i64: 2, 128, 128>}]} {
    %c0 = arith.constant 0 : index
    %c0_0 = arith.constant 0 : index
    %0 = vector.load %arg1[%c0, %c0_0] : memref<128x256xbf16, #tpu.memory_space<vmem>>, vector<128x256xbf16>
    %c0_1 = arith.constant 0 : index
    %c0_2 = arith.constant 0 : index
    %c0_3 = arith.constant 0 : index
    %1 = vector.load %arg2[%c0_1, %c0_2, %c0_3] : memref<2x256x128xbf16, #tpu.memory_space<vmem>>, vector<1x256x128xbf16>
    %2 = vector.shape_cast %1 : vector<1x256x128xbf16> to vector<256x128xbf16>
    %cst = arith.constant dense<0.000000e+00> : vector<128x128xf32>
    %3 = tpu.matmul %0, %2, %cst {dimension_numbers = #tpu.dot_dimension_numbers<[1], [0], [0], [1], [0, 0, 1, 1], [], []>} : vector<128x256xbf16>, vector<256x128xbf16>, vector<128x128xf32> -> vector<128x128xf32>
    %c0_4 = arith.constant 0 : index
    %c0_5 = arith.constant 0 : index
    %c0_6 = arith.constant 0 : index
    %4 = vector.load %arg3[%c0_4, %c0_5, %c0_6] : memref<2x1x128xf32, #tpu.memory_space<vmem>>, vector<1x1x128xf32>
    %5 = vector.shape_cast %4 : vector<1x1x128xf32> to vector<1x128xf32>
    %6 = vector.broadcast %5 : vector<1x128xf32> to vector<128x128xf32>
    %7 = arith.addf %3, %6 : vector<128x128xf32>
    %8 = arith.truncf %7 : vector<128x128xf32> to vector<128x128xbf16>
    %c0_7 = arith.constant 0 : index
    %c0_8 = arith.constant 0 : index
    %c0_9 = arith.constant 0 : index
    %9 = vector.load %arg4[%c0_7, %c0_8, %c0_9] : memref<2x128x128xbf16, #tpu.memory_space<vmem>>, vector<1x128x128xbf16>
    %10 = vector.shape_cast %9 : vector<1x128x128xbf16> to vector<128x128xbf16>
    %11 = vector.shape_cast %8 : vector<128x128xbf16> to vector<1x128x128xbf16>
    tpu.vector_store %arg4[%c0_7, %c0_8, %c0_9], %11 {strides = array<i32>} : memref<2x128x128xbf16, #tpu.memory_space<vmem>>, vector<1x128x128xbf16>,
    %c1 = arith.constant 1 : index
    %c0_10 = arith.constant 0 : index
    %c0_11 = arith.constant 0 : index
    %12 = vector.load %arg2[%c1, %c0_10, %c0_11] : memref<2x256x128xbf16, #tpu.memory_space<vmem>>, vector<1x256x128xbf16>
    %13 = vector.shape_cast %12 : vector<1x256x128xbf16> to vector<256x128xbf16>
    %cst_12 = arith.constant dense<0.000000e+00> : vector<128x128xf32>
    %14 = tpu.matmul %0, %13, %cst_12 {dimension_numbers = #tpu.dot_dimension_numbers<[1], [0], [0], [1], [0, 0, 1, 1], [], []>} : vector<128x256xbf16>, vector<256x128xbf16>, vector<128x128xf32> -> vector<128x128xf32>
    %c1_13 = arith.constant 1 : index
    %c0_14 = arith.constant 0 : index
    %c0_15 = arith.constant 0 : index
    %15 = vector.load %arg3[%c1_13, %c0_14, %c0_15] : memref<2x1x128xf32, #tpu.memory_space<vmem>>, vector<1x1x128xf32>
    %16 = vector.shape_cast %15 : vector<1x1x128xf32> to vector<1x128xf32>
    %17 = vector.broadcast %16 : vector<1x128xf32> to vector<128x128xf32>
    %18 = arith.addf %14, %17 : vector<128x128xf32>
    %19 = arith.truncf %18 : vector<128x128xf32> to vector<128x128xbf16>
    %c1_16 = arith.constant 1 : index
    %c0_17 = arith.constant 0 : index
    %c0_18 = arith.constant 0 : index
    %20 = vector.load %arg4[%c1_16, %c0_17, %c0_18] : memref<2x128x128xbf16, #tpu.memory_space<vmem>>, vector<1x128x128xbf16>
    %21 = vector.shape_cast %20 : vector<1x128x128xbf16> to vector<128x128xbf16>
    %22 = vector.shape_cast %19 : vector<128x128xbf16> to vector<1x128x128xbf16>
    tpu.vector_store %arg4[%c1_16, %c0_17, %c0_18], %22 {strides = array<i32>} : memref<2x128x128xbf16, #tpu.memory_space<vmem>>, vector<1x128x128xbf16>,
    return
  }
  func.func @transform_0(%arg0: i32) -> (i32, i32) {
    %c0_i32 = arith.constant 0 : i32
    %c0_i32_0 = arith.constant 0 : i32
    return %arg0, %c0_i32 : i32, i32
  }
  func.func @transform_1(%arg0: i32) -> (i32, i32, i32) {
    %c0_i32 = arith.constant 0 : i32
    %c0_i32_0 = arith.constant 0 : i32
    %c0_i32_1 = arith.constant 0 : i32
    %c0_i32_2 = arith.constant 0 : i32
    return %c0_i32, %c0_i32_0, %c0_i32_1 : i32, i32, i32
  }
  func.func @transform_2(%arg0: i32) -> (i32, i32, i32) {
    %c0_i32 = arith.constant 0 : i32
    %c0_i32_0 = arith.constant 0 : i32
    %c0_i32_1 = arith.constant 0 : i32
    %c0_i32_2 = arith.constant 0 : i32
    return %c0_i32, %c0_i32_0, %c0_i32_1 : i32, i32, i32
  }
  func.func @transform_3(%arg0: i32) -> (i32, i32, i32) {
    %c0_i32 = arith.constant 0 : i32
    %c0_i32_0 = arith.constant 0 : i32
    %c0_i32_1 = arith.constant 0 : i32
    return %c0_i32, %arg0, %c0_i32_0 : i32, i32, i32
  }
}

module attributes {stable_mosaic.version = 11 : i64} {
  func.func @kernel(%arg0: i32, %arg1: i32, %arg2: memref<2x3xf32, #tpu.memory_space<smem>>, %arg3: memref<2x1x128xf32, #tpu.memory_space<vmem>>, %arg4: memref<2x128x1xf32, #tpu.memory_space<vmem>>, %arg5: memref<128x128xi8, #tpu.memory_space<vmem>>, %arg6: memref<2x128x128xbf16, #tpu.memory_space<vmem>>, %arg7: memref<2x1x128xf32, #tpu.memory_space<vmem>>, %arg8: memref<1x128x128xbf16, #tpu.memory_space<vmem>>, %arg9: memref<128x128xbf16, #tpu.memory_space<vmem>>) attributes {dimension_semantics = [#tpu.dimension_semantics<parallel>, #tpu.dimension_semantics<arbitrary>], iteration_bounds = array<i64: 1, 2>, scalar_prefetch = 1 : i64, scratch_operands = 0 : i64, tpu.core_type = #tpu.core_type<tc>, window_params = [{pipeline_mode = #tpu.pipeline_mode<synchronous>, transform_indices = @transform_0, window_bounds = array<i64: 2, 1, 128>}, {transform_indices = @transform_1, window_bounds = array<i64: 2, 128, 1>}, {transform_indices = @transform_2, window_bounds = array<i64: 128, 128>}, {pipeline_mode = #tpu.pipeline_mode<synchronous>, transform_indices = @transform_3, window_bounds = array<i64: 2, 128, 128>}, {pipeline_mode = #tpu.pipeline_mode<synchronous>, transform_indices = @transform_4, window_bounds = array<i64: 2, 1, 128>}, {transform_indices = @transform_5, window_bounds = array<i64: 1, 128, 128>}, {transform_indices = @transform_6, window_bounds = array<i64: 128, 128>}]} {
    %0 = arith.index_cast %arg1 : i32 to index
    %c0 = arith.constant 0 : index
    %c0_0 = arith.constant 0 : index
    %1 = vector.load %arg3[%0, %c0, %c0_0] : memref<2x1x128xf32, #tpu.memory_space<vmem>>, vector<1x1x128xf32>
    %2 = vector.shape_cast %1 : vector<1x1x128xf32> to vector<1x128xf32>
    %3 = arith.index_cast %arg1 : i32 to index
    %c0_1 = arith.constant 0 : index
    %c0_2 = arith.constant 0 : index
    %4 = vector.load %arg4[%3, %c0_1, %c0_2] : memref<2x128x1xf32, #tpu.memory_space<vmem>>, vector<1x128x1xf32>
    %5 = vector.shape_cast %4 : vector<1x128x1xf32> to vector<128x1xf32>
    %c0_3 = arith.constant 0 : index
    %c0_4 = arith.constant 0 : index
    %6 = vector.load %arg5[%c0_3, %c0_4] : memref<128x128xi8, #tpu.memory_space<vmem>>, vector<128x128xi8>
    %7 = arith.extsi %6 : vector<128x128xi8> to vector<128x128xi32>
    %c0_i32 = arith.constant 0 : i32
    %8 = vector.broadcast %c0_i32 : i32 to vector<128x128xi32>
    %9 = arith.cmpi sge, %7, %8 : vector<128x128xi32>
    %cst = arith.constant 0.000000e+00 : f32
    %10 = vector.broadcast %cst : f32 to vector<128x128xf32>
    %11 = arith.index_cast %arg1 : i32 to index
    %c2 = arith.constant 2 : index
    %12 = memref.load %arg2[%11, %c2] : memref<2x3xf32, #tpu.memory_space<smem>>
    %13 = vector.broadcast %12 : f32 to vector<128x128xf32>
    %14 = arith.addf %10, %13 : vector<128x128xf32>
    %c1_i32 = arith.constant 1 : i32
    %15 = vector.broadcast %c1_i32 : i32 to vector<128x128xi32>
    %16 = arith.cmpi eq, %7, %15 : vector<128x128xi32>
    %17 = arith.index_cast %arg1 : i32 to index
    %c1 = arith.constant 1 : index
    %18 = memref.load %arg2[%17, %c1] : memref<2x3xf32, #tpu.memory_space<smem>>
    %19 = vector.broadcast %18 : f32 to vector<128x128xf32>
    %20 = arith.select %16, %19, %14 : vector<128x128xi1>, vector<128x128xf32>
    %c0_i32_5 = arith.constant 0 : i32
    %21 = vector.broadcast %c0_i32_5 : i32 to vector<128x128xi32>
    %22 = arith.cmpi eq, %7, %21 : vector<128x128xi32>
    %23 = arith.index_cast %arg1 : i32 to index
    %c0_6 = arith.constant 0 : index
    %24 = memref.load %arg2[%23, %c0_6] : memref<2x3xf32, #tpu.memory_space<smem>>
    %25 = vector.broadcast %24 : f32 to vector<128x128xf32>
    %26 = arith.select %22, %25, %20 : vector<128x128xi1>, vector<128x128xf32>
    %27 = vector.broadcast %5 : vector<128x1xf32> to vector<128x128xf32>
    %28 = vector.broadcast %2 : vector<1x128xf32> to vector<128x128xf32>
    %29 = arith.addf %27, %28 : vector<128x128xf32>
    %30 = arith.addf %29, %26 : vector<128x128xf32>
    %cst_7 = arith.constant 0.000000e+00 : f32
    %31 = vector.broadcast %cst_7 : f32 to vector<128x128xf32>
    %32 = arith.cmpf ogt, %30, %31 : vector<128x128xf32>
    %cst_8 = arith.constant 2.000000e-01 : f32
    %33 = vector.broadcast %cst_8 : f32 to vector<128x128xf32>
    %34 = arith.mulf %33, %30 : vector<128x128xf32>
    %35 = arith.select %32, %30, %34 : vector<128x128xi1>, vector<128x128xf32>
    %cst_9 = arith.constant -1.000000e+30 : f32
    %36 = vector.broadcast %cst_9 : f32 to vector<128x128xf32>
    %37 = arith.select %9, %35, %36 : vector<128x128xi1>, vector<128x128xf32>
    %cst_10 = arith.constant dense<0xFF800000> : vector<128xf32>
    %38 = vector.multi_reduction <maximumf>, %37, %cst_10 [1] : vector<128x128xf32> to vector<128xf32>
    %39 = vector.shape_cast %38 : vector<128xf32> to vector<128x1xf32>
    %40 = vector.broadcast %39 : vector<128x1xf32> to vector<128x128xf32>
    %41 = arith.subf %37, %40 : vector<128x128xf32>
    %42 = math.exp %41 : vector<128x128xf32>
    %cst_11 = arith.constant 0.000000e+00 : f32
    %43 = vector.broadcast %cst_11 : f32 to vector<128x128xf32>
    %44 = arith.select %9, %42, %43 : vector<128x128xi1>, vector<128x128xf32>
    %cst_12 = arith.constant dense<0.000000e+00> : vector<128xf32>
    %45 = vector.multi_reduction <add>, %44, %cst_12 [1] : vector<128x128xf32> to vector<128xf32>
    %46 = vector.shape_cast %45 : vector<128xf32> to vector<128x1xf32>
    %cst_13 = arith.constant 1.000000e+00 : f32
    %47 = vector.broadcast %cst_13 : f32 to vector<128x1xf32>
    %48 = arith.maximumf %46, %47 : vector<128x1xf32>
    %49 = tpu.reciprocal %48 {approx = true} : vector<128x1xf32> -> vector<128x1xf32>
    %50 = vector.broadcast %49 : vector<128x1xf32> to vector<128x128xf32>
    %51 = arith.mulf %44, %50 : vector<128x128xf32>
    %52 = arith.truncf %51 : vector<128x128xf32> to vector<128x128xbf16>
    %c0_14 = arith.constant 0 : index
    %c0_15 = arith.constant 0 : index
    %c0_16 = arith.constant 0 : index
    %53 = vector.load %arg8[%c0_14, %c0_15, %c0_16] : memref<1x128x128xbf16, #tpu.memory_space<vmem>>, vector<1x128x128xbf16>
    %54 = vector.shape_cast %53 : vector<1x128x128xbf16> to vector<128x128xbf16>
    %55 = vector.shape_cast %52 : vector<128x128xbf16> to vector<1x128x128xbf16>
    tpu.vector_store %arg8[%c0_14, %c0_15, %c0_16], %55 {strides = array<i32>} : memref<1x128x128xbf16, #tpu.memory_space<vmem>>, vector<1x128x128xbf16>,
    %56 = arith.truncf %51 : vector<128x128xf32> to vector<128x128xbf16>
    %57 = arith.index_cast %arg1 : i32 to index
    %c0_17 = arith.constant 0 : index
    %c0_18 = arith.constant 0 : index
    %58 = vector.load %arg6[%57, %c0_17, %c0_18] : memref<2x128x128xbf16, #tpu.memory_space<vmem>>, vector<1x128x128xbf16>
    %59 = vector.shape_cast %58 : vector<1x128x128xbf16> to vector<128x128xbf16>
    %cst_19 = arith.constant dense<0.000000e+00> : vector<128x128xf32>
    %60 = tpu.matmul %56, %59, %cst_19 {dimension_numbers = #tpu.dot_dimension_numbers<[1], [0], [0], [1], [0, 0, 1, 1], [], []>} : vector<128x128xbf16>, vector<128x128xbf16>, vector<128x128xf32> -> vector<128x128xf32>
    %61 = arith.index_cast %arg1 : i32 to index
    %c0_20 = arith.constant 0 : index
    %c0_21 = arith.constant 0 : index
    %62 = vector.load %arg7[%61, %c0_20, %c0_21] : memref<2x1x128xf32, #tpu.memory_space<vmem>>, vector<1x1x128xf32>
    %63 = vector.shape_cast %62 : vector<1x1x128xf32> to vector<1x128xf32>
    %64 = vector.broadcast %63 : vector<1x128xf32> to vector<128x128xf32>
    %65 = arith.addf %60, %64 : vector<128x128xf32>
    %cst_22 = arith.constant 0.000000e+00 : f32
    %66 = vector.broadcast %cst_22 : f32 to vector<128x128xf32>
    %67 = arith.cmpf ogt, %65, %66 : vector<128x128xf32>
    %cst_23 = arith.constant 0.000000e+00 : f32
    %68 = vector.broadcast %cst_23 : f32 to vector<128x128xf32>
    %69 = arith.minimumf %65, %68 : vector<128x128xf32>
    %70 = math.exp %69 : vector<128x128xf32>
    %cst_24 = arith.constant 1.000000e+00 : f32
    %71 = vector.broadcast %cst_24 : f32 to vector<128x128xf32>
    %72 = arith.subf %70, %71 : vector<128x128xf32>
    %73 = arith.select %67, %65, %72 : vector<128x128xi1>, vector<128x128xf32>
    %74 = arith.truncf %73 : vector<128x128xf32> to vector<128x128xbf16>
    %c0_25 = arith.constant 0 : index
    %c0_26 = arith.constant 0 : index
    %75 = vector.load %arg9[%c0_25, %c0_26] : memref<128x128xbf16, #tpu.memory_space<vmem>>, vector<128x128xbf16>
    tpu.vector_store %arg9[%c0_25, %c0_26], %74 {strides = array<i32>} : memref<128x128xbf16, #tpu.memory_space<vmem>>, vector<128x128xbf16>,
    return
  }
  func.func @transform_0(%arg0: i32, %arg1: i32, %arg2: memref<2x3xf32, #tpu.memory_space<smem>>) -> (i32, i32, i32) {
    %c0_i32 = arith.constant 0 : i32
    %c0_i32_0 = arith.constant 0 : i32
    %c0_i32_1 = arith.constant 0 : i32
    %c0_i32_2 = arith.constant 0 : i32
    return %c0_i32, %c0_i32_0, %c0_i32_1 : i32, i32, i32
  }
  func.func @transform_1(%arg0: i32, %arg1: i32, %arg2: memref<2x3xf32, #tpu.memory_space<smem>>) -> (i32, i32, i32) {
    %c0_i32 = arith.constant 0 : i32
    %c0_i32_0 = arith.constant 0 : i32
    %c0_i32_1 = arith.constant 0 : i32
    return %c0_i32, %arg0, %c0_i32_0 : i32, i32, i32
  }
  func.func @transform_2(%arg0: i32, %arg1: i32, %arg2: memref<2x3xf32, #tpu.memory_space<smem>>) -> (i32, i32) {
    %c0_i32 = arith.constant 0 : i32
    %c0_i32_0 = arith.constant 0 : i32
    return %arg0, %c0_i32 : i32, i32
  }
  func.func @transform_3(%arg0: i32, %arg1: i32, %arg2: memref<2x3xf32, #tpu.memory_space<smem>>) -> (i32, i32, i32) {
    %c0_i32 = arith.constant 0 : i32
    %c0_i32_0 = arith.constant 0 : i32
    %c0_i32_1 = arith.constant 0 : i32
    %c0_i32_2 = arith.constant 0 : i32
    return %c0_i32, %c0_i32_0, %c0_i32_1 : i32, i32, i32
  }
  func.func @transform_4(%arg0: i32, %arg1: i32, %arg2: memref<2x3xf32, #tpu.memory_space<smem>>) -> (i32, i32, i32) {
    %c0_i32 = arith.constant 0 : i32
    %c0_i32_0 = arith.constant 0 : i32
    %c0_i32_1 = arith.constant 0 : i32
    %c0_i32_2 = arith.constant 0 : i32
    return %c0_i32, %c0_i32_0, %c0_i32_1 : i32, i32, i32
  }
  func.func @transform_5(%arg0: i32, %arg1: i32, %arg2: memref<2x3xf32, #tpu.memory_space<smem>>) -> (i32, i32, i32) {
    %c0_i32 = arith.constant 0 : i32
    %c0_i32_0 = arith.constant 0 : i32
    return %arg1, %arg0, %c0_i32 : i32, i32, i32
  }
  func.func @transform_6(%arg0: i32, %arg1: i32, %arg2: memref<2x3xf32, #tpu.memory_space<smem>>) -> (i32, i32) {
    %c0_i32 = arith.constant 0 : i32
    return %arg0, %arg1 : i32, i32
  }
}

module attributes {stable_mosaic.version = 11 : i64} {
  func.func @kernel(%arg0: i32, %arg1: i32, %arg2: memref<2x3xf32, #tpu.memory_space<smem>>, %arg3: memref<2x1x128xf32, #tpu.memory_space<vmem>>, %arg4: memref<2x128x1xf32, #tpu.memory_space<vmem>>, %arg5: memref<128x128xi8, #tpu.memory_space<vmem>>, %arg6: memref<2x128x128xbf16, #tpu.memory_space<vmem>>, %arg7: memref<1x128x128xbf16, #tpu.memory_space<vmem>>, %arg8: memref<128x128xbf16, #tpu.memory_space<vmem>>, %arg9: memref<2x1x128xf32, #tpu.memory_space<vmem>>, %arg10: memref<1x128x128xbf16, #tpu.memory_space<vmem>>, %arg11: memref<128x128xbf16, #tpu.memory_space<vmem>>) attributes {dimension_semantics = [#tpu.dimension_semantics<parallel>, #tpu.dimension_semantics<arbitrary>], iteration_bounds = array<i64: 1, 2>, scalar_prefetch = 1 : i64, scratch_operands = 0 : i64, tpu.core_type = #tpu.core_type<tc>, window_params = [{pipeline_mode = #tpu.pipeline_mode<synchronous>, transform_indices = @transform_0, window_bounds = array<i64: 2, 1, 128>}, {transform_indices = @transform_1, window_bounds = array<i64: 2, 128, 1>}, {transform_indices = @transform_2, window_bounds = array<i64: 128, 128>}, {pipeline_mode = #tpu.pipeline_mode<synchronous>, transform_indices = @transform_3, window_bounds = array<i64: 2, 128, 128>}, {transform_indices = @transform_4, window_bounds = array<i64: 1, 128, 128>}, {transform_indices = @transform_5, window_bounds = array<i64: 128, 128>}, {pipeline_mode = #tpu.pipeline_mode<synchronous>, transform_indices = @transform_6, window_bounds = array<i64: 2, 1, 128>}, {transform_indices = @transform_7, window_bounds = array<i64: 1, 128, 128>}, {transform_indices = @transform_8, window_bounds = array<i64: 128, 128>}]} {
    %0 = arith.index_cast %arg1 : i32 to index
    %c0 = arith.constant 0 : index
    %c0_0 = arith.constant 0 : index
    %1 = vector.load %arg3[%0, %c0, %c0_0] : memref<2x1x128xf32, #tpu.memory_space<vmem>>, vector<1x1x128xf32>
    %2 = vector.shape_cast %1 : vector<1x1x128xf32> to vector<1x128xf32>
    %3 = arith.index_cast %arg1 : i32 to index
    %c0_1 = arith.constant 0 : index
    %c0_2 = arith.constant 0 : index
    %4 = vector.load %arg4[%3, %c0_1, %c0_2] : memref<2x128x1xf32, #tpu.memory_space<vmem>>, vector<1x128x1xf32>
    %5 = vector.shape_cast %4 : vector<1x128x1xf32> to vector<128x1xf32>
    %c0_3 = arith.constant 0 : index
    %c0_4 = arith.constant 0 : index
    %6 = vector.load %arg5[%c0_3, %c0_4] : memref<128x128xi8, #tpu.memory_space<vmem>>, vector<128x128xi8>
    %7 = arith.extsi %6 : vector<128x128xi8> to vector<128x128xi32>
    %c0_i32 = arith.constant 0 : i32
    %8 = vector.broadcast %c0_i32 : i32 to vector<128x128xi32>
    %9 = arith.cmpi sge, %7, %8 : vector<128x128xi32>
    %cst = arith.constant 0.000000e+00 : f32
    %10 = vector.broadcast %cst : f32 to vector<128x128xf32>
    %11 = arith.index_cast %arg1 : i32 to index
    %c2 = arith.constant 2 : index
    %12 = memref.load %arg2[%11, %c2] : memref<2x3xf32, #tpu.memory_space<smem>>
    %13 = vector.broadcast %12 : f32 to vector<128x128xf32>
    %14 = arith.addf %10, %13 : vector<128x128xf32>
    %c1_i32 = arith.constant 1 : i32
    %15 = vector.broadcast %c1_i32 : i32 to vector<128x128xi32>
    %16 = arith.cmpi eq, %7, %15 : vector<128x128xi32>
    %17 = arith.index_cast %arg1 : i32 to index
    %c1 = arith.constant 1 : index
    %18 = memref.load %arg2[%17, %c1] : memref<2x3xf32, #tpu.memory_space<smem>>
    %19 = vector.broadcast %18 : f32 to vector<128x128xf32>
    %20 = arith.select %16, %19, %14 : vector<128x128xi1>, vector<128x128xf32>
    %c0_i32_5 = arith.constant 0 : i32
    %21 = vector.broadcast %c0_i32_5 : i32 to vector<128x128xi32>
    %22 = arith.cmpi eq, %7, %21 : vector<128x128xi32>
    %23 = arith.index_cast %arg1 : i32 to index
    %c0_6 = arith.constant 0 : index
    %24 = memref.load %arg2[%23, %c0_6] : memref<2x3xf32, #tpu.memory_space<smem>>
    %25 = vector.broadcast %24 : f32 to vector<128x128xf32>
    %26 = arith.select %22, %25, %20 : vector<128x128xi1>, vector<128x128xf32>
    %27 = vector.broadcast %5 : vector<128x1xf32> to vector<128x128xf32>
    %28 = vector.broadcast %2 : vector<1x128xf32> to vector<128x128xf32>
    %29 = arith.addf %27, %28 : vector<128x128xf32>
    %30 = arith.addf %29, %26 : vector<128x128xf32>
    %cst_7 = arith.constant 0.000000e+00 : f32
    %31 = vector.broadcast %cst_7 : f32 to vector<128x128xf32>
    %32 = arith.cmpf ogt, %30, %31 : vector<128x128xf32>
    %cst_8 = arith.constant 2.000000e-01 : f32
    %33 = vector.broadcast %cst_8 : f32 to vector<128x128xf32>
    %34 = arith.mulf %33, %30 : vector<128x128xf32>
    %35 = arith.select %32, %30, %34 : vector<128x128xi1>, vector<128x128xf32>
    %cst_9 = arith.constant -1.000000e+30 : f32
    %36 = vector.broadcast %cst_9 : f32 to vector<128x128xf32>
    %37 = arith.select %9, %35, %36 : vector<128x128xi1>, vector<128x128xf32>
    %cst_10 = arith.constant dense<0xFF800000> : vector<128xf32>
    %38 = vector.multi_reduction <maximumf>, %37, %cst_10 [1] : vector<128x128xf32> to vector<128xf32>
    %39 = vector.shape_cast %38 : vector<128xf32> to vector<128x1xf32>
    %40 = vector.broadcast %39 : vector<128x1xf32> to vector<128x128xf32>
    %41 = arith.subf %37, %40 : vector<128x128xf32>
    %42 = math.exp %41 : vector<128x128xf32>
    %cst_11 = arith.constant 0.000000e+00 : f32
    %43 = vector.broadcast %cst_11 : f32 to vector<128x128xf32>
    %44 = arith.select %9, %42, %43 : vector<128x128xi1>, vector<128x128xf32>
    %cst_12 = arith.constant dense<0.000000e+00> : vector<128xf32>
    %45 = vector.multi_reduction <add>, %44, %cst_12 [1] : vector<128x128xf32> to vector<128xf32>
    %46 = vector.shape_cast %45 : vector<128xf32> to vector<128x1xf32>
    %cst_13 = arith.constant 1.000000e+00 : f32
    %47 = vector.broadcast %cst_13 : f32 to vector<128x1xf32>
    %48 = arith.maximumf %46, %47 : vector<128x1xf32>
    %49 = tpu.reciprocal %48 {approx = true} : vector<128x1xf32> -> vector<128x1xf32>
    %50 = vector.broadcast %49 : vector<128x1xf32> to vector<128x128xf32>
    %51 = arith.mulf %44, %50 : vector<128x128xf32>
    %cst_14 = arith.constant 0.949999988 : f32
    %52 = vector.broadcast %cst_14 : f32 to vector<128x128xf32>
    %53 = arith.mulf %51, %52 : vector<128x128xf32>
    %c0_15 = arith.constant 0 : index
    %c0_16 = arith.constant 0 : index
    %c0_17 = arith.constant 0 : index
    %54 = vector.load %arg7[%c0_15, %c0_16, %c0_17] : memref<1x128x128xbf16, #tpu.memory_space<vmem>>, vector<1x128x128xbf16>
    %55 = vector.shape_cast %54 : vector<1x128x128xbf16> to vector<128x128xbf16>
    %56 = arith.extf %55 : vector<128x128xbf16> to vector<128x128xf32>
    %cst_18 = arith.constant 5.000000e-02 : f32
    %57 = vector.broadcast %cst_18 : f32 to vector<128x128xf32>
    %58 = arith.mulf %56, %57 : vector<128x128xf32>
    %59 = arith.addf %53, %58 : vector<128x128xf32>
    %60 = arith.truncf %59 : vector<128x128xf32> to vector<128x128xbf16>
    %c0_19 = arith.constant 0 : index
    %c0_20 = arith.constant 0 : index
    %c0_21 = arith.constant 0 : index
    %61 = vector.load %arg10[%c0_19, %c0_20, %c0_21] : memref<1x128x128xbf16, #tpu.memory_space<vmem>>, vector<1x128x128xbf16>
    %62 = vector.shape_cast %61 : vector<1x128x128xbf16> to vector<128x128xbf16>
    %63 = vector.shape_cast %60 : vector<128x128xbf16> to vector<1x128x128xbf16>
    tpu.vector_store %arg10[%c0_19, %c0_20, %c0_21], %63 {strides = array<i32>} : memref<1x128x128xbf16, #tpu.memory_space<vmem>>, vector<1x128x128xbf16>,
    %64 = arith.truncf %59 : vector<128x128xf32> to vector<128x128xbf16>
    %65 = arith.index_cast %arg1 : i32 to index
    %c0_22 = arith.constant 0 : index
    %c0_23 = arith.constant 0 : index
    %66 = vector.load %arg6[%65, %c0_22, %c0_23] : memref<2x128x128xbf16, #tpu.memory_space<vmem>>, vector<1x128x128xbf16>
    %67 = vector.shape_cast %66 : vector<1x128x128xbf16> to vector<128x128xbf16>
    %cst_24 = arith.constant dense<0.000000e+00> : vector<128x128xf32>
    %68 = tpu.matmul %64, %67, %cst_24 {dimension_numbers = #tpu.dot_dimension_numbers<[1], [0], [0], [1], [0, 0, 1, 1], [], []>} : vector<128x128xbf16>, vector<128x128xbf16>, vector<128x128xf32> -> vector<128x128xf32>
    %c0_25 = arith.constant 0 : index
    %c0_26 = arith.constant 0 : index
    %69 = vector.load %arg8[%c0_25, %c0_26] : memref<128x128xbf16, #tpu.memory_space<vmem>>, vector<128x128xbf16>
    %70 = arith.extf %69 : vector<128x128xbf16> to vector<128x128xf32>
    %71 = arith.addf %68, %70 : vector<128x128xf32>
    %72 = arith.index_cast %arg1 : i32 to index
    %c0_27 = arith.constant 0 : index
    %c0_28 = arith.constant 0 : index
    %73 = vector.load %arg9[%72, %c0_27, %c0_28] : memref<2x1x128xf32, #tpu.memory_space<vmem>>, vector<1x1x128xf32>
    %74 = vector.shape_cast %73 : vector<1x1x128xf32> to vector<1x128xf32>
    %75 = vector.broadcast %74 : vector<1x128xf32> to vector<128x128xf32>
    %76 = arith.addf %71, %75 : vector<128x128xf32>
    %cst_29 = arith.constant 0.000000e+00 : f32
    %77 = vector.broadcast %cst_29 : f32 to vector<128x128xf32>
    %78 = arith.cmpf ogt, %76, %77 : vector<128x128xf32>
    %cst_30 = arith.constant 0.000000e+00 : f32
    %79 = vector.broadcast %cst_30 : f32 to vector<128x128xf32>
    %80 = arith.minimumf %76, %79 : vector<128x128xf32>
    %81 = math.exp %80 : vector<128x128xf32>
    %cst_31 = arith.constant 1.000000e+00 : f32
    %82 = vector.broadcast %cst_31 : f32 to vector<128x128xf32>
    %83 = arith.subf %81, %82 : vector<128x128xf32>
    %84 = arith.select %78, %76, %83 : vector<128x128xi1>, vector<128x128xf32>
    %85 = arith.truncf %84 : vector<128x128xf32> to vector<128x128xbf16>
    %c0_32 = arith.constant 0 : index
    %c0_33 = arith.constant 0 : index
    %86 = vector.load %arg11[%c0_32, %c0_33] : memref<128x128xbf16, #tpu.memory_space<vmem>>, vector<128x128xbf16>
    tpu.vector_store %arg11[%c0_32, %c0_33], %85 {strides = array<i32>} : memref<128x128xbf16, #tpu.memory_space<vmem>>, vector<128x128xbf16>,
    return
  }
  func.func @transform_0(%arg0: i32, %arg1: i32, %arg2: memref<2x3xf32, #tpu.memory_space<smem>>) -> (i32, i32, i32) {
    %c0_i32 = arith.constant 0 : i32
    %c0_i32_0 = arith.constant 0 : i32
    %c0_i32_1 = arith.constant 0 : i32
    %c0_i32_2 = arith.constant 0 : i32
    return %c0_i32, %c0_i32_0, %c0_i32_1 : i32, i32, i32
  }
  func.func @transform_1(%arg0: i32, %arg1: i32, %arg2: memref<2x3xf32, #tpu.memory_space<smem>>) -> (i32, i32, i32) {
    %c0_i32 = arith.constant 0 : i32
    %c0_i32_0 = arith.constant 0 : i32
    %c0_i32_1 = arith.constant 0 : i32
    return %c0_i32, %arg0, %c0_i32_0 : i32, i32, i32
  }
  func.func @transform_2(%arg0: i32, %arg1: i32, %arg2: memref<2x3xf32, #tpu.memory_space<smem>>) -> (i32, i32) {
    %c0_i32 = arith.constant 0 : i32
    %c0_i32_0 = arith.constant 0 : i32
    return %arg0, %c0_i32 : i32, i32
  }
  func.func @transform_3(%arg0: i32, %arg1: i32, %arg2: memref<2x3xf32, #tpu.memory_space<smem>>) -> (i32, i32, i32) {
    %c0_i32 = arith.constant 0 : i32
    %c0_i32_0 = arith.constant 0 : i32
    %c0_i32_1 = arith.constant 0 : i32
    %c0_i32_2 = arith.constant 0 : i32
    return %c0_i32, %c0_i32_0, %c0_i32_1 : i32, i32, i32
  }
  func.func @transform_4(%arg0: i32, %arg1: i32, %arg2: memref<2x3xf32, #tpu.memory_space<smem>>) -> (i32, i32, i32) {
    %c0_i32 = arith.constant 0 : i32
    %c0_i32_0 = arith.constant 0 : i32
    return %arg1, %arg0, %c0_i32 : i32, i32, i32
  }
  func.func @transform_5(%arg0: i32, %arg1: i32, %arg2: memref<2x3xf32, #tpu.memory_space<smem>>) -> (i32, i32) {
    %c0_i32 = arith.constant 0 : i32
    return %arg0, %arg1 : i32, i32
  }
  func.func @transform_6(%arg0: i32, %arg1: i32, %arg2: memref<2x3xf32, #tpu.memory_space<smem>>) -> (i32, i32, i32) {
    %c0_i32 = arith.constant 0 : i32
    %c0_i32_0 = arith.constant 0 : i32
    %c0_i32_1 = arith.constant 0 : i32
    %c0_i32_2 = arith.constant 0 : i32
    return %c0_i32, %c0_i32_0, %c0_i32_1 : i32, i32, i32
  }
  func.func @transform_7(%arg0: i32, %arg1: i32, %arg2: memref<2x3xf32, #tpu.memory_space<smem>>) -> (i32, i32, i32) {
    %c0_i32 = arith.constant 0 : i32
    %c0_i32_0 = arith.constant 0 : i32
    return %arg1, %arg0, %c0_i32 : i32, i32, i32
  }
  func.func @transform_8(%arg0: i32, %arg1: i32, %arg2: memref<2x3xf32, #tpu.memory_space<smem>>) -> (i32, i32) {
    %c0_i32 = arith.constant 0 : i32
    return %arg0, %arg1 : i32, i32
  }
}

module attributes {stable_mosaic.version = 11 : i64} {
  func.func @kernel(%arg0: i32, %arg1: memref<128x256xbf16, #tpu.memory_space<vmem>>, %arg2: memref<1x256x128xbf16, #tpu.memory_space<vmem>>, %arg3: memref<1x1x128xf32, #tpu.memory_space<vmem>>, %arg4: memref<1x128x128xbf16, #tpu.memory_space<vmem>>) attributes {dimension_semantics = [#tpu.dimension_semantics<parallel>], iteration_bounds = array<i64: 1>, scalar_prefetch = 0 : i64, scratch_operands = 0 : i64, tpu.core_type = #tpu.core_type<tc>, window_params = [{transform_indices = @transform_0, window_bounds = array<i64: 128, 256>}, {pipeline_mode = #tpu.pipeline_mode<synchronous>, transform_indices = @transform_1, window_bounds = array<i64: 1, 256, 128>}, {pipeline_mode = #tpu.pipeline_mode<synchronous>, transform_indices = @transform_2, window_bounds = array<i64: 1, 1, 128>}, {transform_indices = @transform_3, window_bounds = array<i64: 1, 128, 128>}]} {
    %c0 = arith.constant 0 : index
    %c0_0 = arith.constant 0 : index
    %0 = vector.load %arg1[%c0, %c0_0] : memref<128x256xbf16, #tpu.memory_space<vmem>>, vector<128x256xbf16>
    %c0_1 = arith.constant 0 : index
    %c0_2 = arith.constant 0 : index
    %c0_3 = arith.constant 0 : index
    %1 = vector.load %arg2[%c0_1, %c0_2, %c0_3] : memref<1x256x128xbf16, #tpu.memory_space<vmem>>, vector<1x256x128xbf16>
    %2 = vector.shape_cast %1 : vector<1x256x128xbf16> to vector<256x128xbf16>
    %cst = arith.constant dense<0.000000e+00> : vector<128x128xf32>
    %3 = tpu.matmul %0, %2, %cst {dimension_numbers = #tpu.dot_dimension_numbers<[1], [0], [0], [1], [0, 0, 1, 1], [], []>} : vector<128x256xbf16>, vector<256x128xbf16>, vector<128x128xf32> -> vector<128x128xf32>
    %c0_4 = arith.constant 0 : index
    %c0_5 = arith.constant 0 : index
    %c0_6 = arith.constant 0 : index
    %4 = vector.load %arg3[%c0_4, %c0_5, %c0_6] : memref<1x1x128xf32, #tpu.memory_space<vmem>>, vector<1x1x128xf32>
    %5 = vector.shape_cast %4 : vector<1x1x128xf32> to vector<1x128xf32>
    %6 = vector.broadcast %5 : vector<1x128xf32> to vector<128x128xf32>
    %7 = arith.addf %3, %6 : vector<128x128xf32>
    %8 = arith.truncf %7 : vector<128x128xf32> to vector<128x128xbf16>
    %c0_7 = arith.constant 0 : index
    %c0_8 = arith.constant 0 : index
    %c0_9 = arith.constant 0 : index
    %9 = vector.load %arg4[%c0_7, %c0_8, %c0_9] : memref<1x128x128xbf16, #tpu.memory_space<vmem>>, vector<1x128x128xbf16>
    %10 = vector.shape_cast %9 : vector<1x128x128xbf16> to vector<128x128xbf16>
    %11 = vector.shape_cast %8 : vector<128x128xbf16> to vector<1x128x128xbf16>
    tpu.vector_store %arg4[%c0_7, %c0_8, %c0_9], %11 {strides = array<i32>} : memref<1x128x128xbf16, #tpu.memory_space<vmem>>, vector<1x128x128xbf16>,
    return
  }
  func.func @transform_0(%arg0: i32) -> (i32, i32) {
    %c0_i32 = arith.constant 0 : i32
    %c0_i32_0 = arith.constant 0 : i32
    return %arg0, %c0_i32 : i32, i32
  }
  func.func @transform_1(%arg0: i32) -> (i32, i32, i32) {
    %c0_i32 = arith.constant 0 : i32
    %c0_i32_0 = arith.constant 0 : i32
    %c0_i32_1 = arith.constant 0 : i32
    %c0_i32_2 = arith.constant 0 : i32
    return %c0_i32, %c0_i32_0, %c0_i32_1 : i32, i32, i32
  }
  func.func @transform_2(%arg0: i32) -> (i32, i32, i32) {
    %c0_i32 = arith.constant 0 : i32
    %c0_i32_0 = arith.constant 0 : i32
    %c0_i32_1 = arith.constant 0 : i32
    %c0_i32_2 = arith.constant 0 : i32
    return %c0_i32, %c0_i32_0, %c0_i32_1 : i32, i32, i32
  }
  func.func @transform_3(%arg0: i32) -> (i32, i32, i32) {
    %c0_i32 = arith.constant 0 : i32
    %c0_i32_0 = arith.constant 0 : i32
    %c0_i32_1 = arith.constant 0 : i32
    return %c0_i32, %arg0, %c0_i32_0 : i32, i32, i32
  }
}

module attributes {stable_mosaic.version = 11 : i64} {
  func.func @_linear_flat_kernel(%arg0: i32, %arg1: memref<128x256xbf16, #tpu.memory_space<vmem>>, %arg2: memref<256x128xbf16, #tpu.memory_space<vmem>>, %arg3: memref<1x128xf32, #tpu.memory_space<vmem>>, %arg4: memref<128x128xbf16, #tpu.memory_space<vmem>>) attributes {dimension_semantics = [#tpu.dimension_semantics<parallel>], iteration_bounds = array<i64: 1>, scalar_prefetch = 0 : i64, scratch_operands = 0 : i64, tpu.core_type = #tpu.core_type<tc>, window_params = [{transform_indices = @transform_0, window_bounds = array<i64: 128, 256>}, {pipeline_mode = #tpu.pipeline_mode<synchronous>, transform_indices = @transform_1, window_bounds = array<i64: 256, 128>}, {pipeline_mode = #tpu.pipeline_mode<synchronous>, transform_indices = @transform_2, window_bounds = array<i64: 1, 128>}, {transform_indices = @transform_3, window_bounds = array<i64: 128, 128>}]} {
    %c0 = arith.constant 0 : index
    %c0_0 = arith.constant 0 : index
    %0 = vector.load %arg1[%c0, %c0_0] : memref<128x256xbf16, #tpu.memory_space<vmem>>, vector<128x256xbf16>
    %c0_1 = arith.constant 0 : index
    %c0_2 = arith.constant 0 : index
    %1 = vector.load %arg2[%c0_1, %c0_2] : memref<256x128xbf16, #tpu.memory_space<vmem>>, vector<256x128xbf16>
    %cst = arith.constant dense<0.000000e+00> : vector<128x128xf32>
    %2 = tpu.matmul %0, %1, %cst {dimension_numbers = #tpu.dot_dimension_numbers<[1], [0], [0], [1], [0, 0, 1, 1], [], []>} : vector<128x256xbf16>, vector<256x128xbf16>, vector<128x128xf32> -> vector<128x128xf32>
    %c0_3 = arith.constant 0 : index
    %c0_4 = arith.constant 0 : index
    %3 = vector.load %arg3[%c0_3, %c0_4] : memref<1x128xf32, #tpu.memory_space<vmem>>, vector<1x128xf32>
    %4 = vector.broadcast %3 : vector<1x128xf32> to vector<128x128xf32>
    %5 = arith.addf %2, %4 : vector<128x128xf32>
    %6 = arith.truncf %5 : vector<128x128xf32> to vector<128x128xbf16>
    %c0_5 = arith.constant 0 : index
    %c0_6 = arith.constant 0 : index
    %7 = vector.load %arg4[%c0_5, %c0_6] : memref<128x128xbf16, #tpu.memory_space<vmem>>, vector<128x128xbf16>
    tpu.vector_store %arg4[%c0_5, %c0_6], %6 {strides = array<i32>} : memref<128x128xbf16, #tpu.memory_space<vmem>>, vector<128x128xbf16>,
    return
  }
  func.func @transform_0(%arg0: i32) -> (i32, i32) {
    %c0_i32 = arith.constant 0 : i32
    %c0_i32_0 = arith.constant 0 : i32
    return %arg0, %c0_i32 : i32, i32
  }
  func.func @transform_1(%arg0: i32) -> (i32, i32) {
    %c0_i32 = arith.constant 0 : i32
    %c0_i32_0 = arith.constant 0 : i32
    %c0_i32_1 = arith.constant 0 : i32
    return %c0_i32, %c0_i32_0 : i32, i32
  }
  func.func @transform_2(%arg0: i32) -> (i32, i32) {
    %c0_i32 = arith.constant 0 : i32
    %c0_i32_0 = arith.constant 0 : i32
    %c0_i32_1 = arith.constant 0 : i32
    return %c0_i32, %c0_i32_0 : i32, i32
  }
  func.func @transform_3(%arg0: i32) -> (i32, i32) {
    %c0_i32 = arith.constant 0 : i32
    %c0_i32_0 = arith.constant 0 : i32
    return %arg0, %c0_i32 : i32, i32
  }
}

module attributes {stable_mosaic.version = 11 : i64} {
  func.func @kernel(%arg0: i32, %arg1: i32, %arg2: memref<1x3xf32, #tpu.memory_space<smem>>, %arg3: memref<1x1x128xf32, #tpu.memory_space<vmem>>, %arg4: memref<1x128x1xf32, #tpu.memory_space<vmem>>, %arg5: memref<128x128xi8, #tpu.memory_space<vmem>>, %arg6: memref<1x128x128xbf16, #tpu.memory_space<vmem>>, %arg7: memref<128x128xbf16, #tpu.memory_space<vmem>>, %arg8: memref<1x1x128xf32, #tpu.memory_space<vmem>>, %arg9: memref<128x128xf32, #tpu.memory_space<vmem>>) attributes {dimension_semantics = [#tpu.dimension_semantics<parallel>, #tpu.dimension_semantics<arbitrary>], iteration_bounds = array<i64: 1, 1>, scalar_prefetch = 1 : i64, scratch_operands = 0 : i64, tpu.core_type = #tpu.core_type<tc>, window_params = [{pipeline_mode = #tpu.pipeline_mode<synchronous>, transform_indices = @transform_0, window_bounds = array<i64: 1, 1, 128>}, {transform_indices = @transform_1, window_bounds = array<i64: 1, 128, 1>}, {transform_indices = @transform_2, window_bounds = array<i64: 128, 128>}, {pipeline_mode = #tpu.pipeline_mode<synchronous>, transform_indices = @transform_3, window_bounds = array<i64: 1, 128, 128>}, {transform_indices = @transform_4, window_bounds = array<i64: 128, 128>}, {pipeline_mode = #tpu.pipeline_mode<synchronous>, transform_indices = @transform_5, window_bounds = array<i64: 1, 1, 128>}, {transform_indices = @transform_6, window_bounds = array<i64: 128, 128>}]} {
    %0 = arith.index_cast %arg1 : i32 to index
    %c0 = arith.constant 0 : index
    %c0_0 = arith.constant 0 : index
    %1 = vector.load %arg3[%0, %c0, %c0_0] : memref<1x1x128xf32, #tpu.memory_space<vmem>>, vector<1x1x128xf32>
    %2 = vector.shape_cast %1 : vector<1x1x128xf32> to vector<1x128xf32>
    %3 = arith.index_cast %arg1 : i32 to index
    %c0_1 = arith.constant 0 : index
    %c0_2 = arith.constant 0 : index
    %4 = vector.load %arg4[%3, %c0_1, %c0_2] : memref<1x128x1xf32, #tpu.memory_space<vmem>>, vector<1x128x1xf32>
    %5 = vector.shape_cast %4 : vector<1x128x1xf32> to vector<128x1xf32>
    %c0_3 = arith.constant 0 : index
    %c0_4 = arith.constant 0 : index
    %6 = vector.load %arg5[%c0_3, %c0_4] : memref<128x128xi8, #tpu.memory_space<vmem>>, vector<128x128xi8>
    %7 = arith.extsi %6 : vector<128x128xi8> to vector<128x128xi32>
    %c0_i32 = arith.constant 0 : i32
    %8 = vector.broadcast %c0_i32 : i32 to vector<128x128xi32>
    %9 = arith.cmpi sge, %7, %8 : vector<128x128xi32>
    %cst = arith.constant 0.000000e+00 : f32
    %10 = vector.broadcast %cst : f32 to vector<128x128xf32>
    %11 = arith.index_cast %arg1 : i32 to index
    %c2 = arith.constant 2 : index
    %12 = memref.load %arg2[%11, %c2] : memref<1x3xf32, #tpu.memory_space<smem>>
    %13 = vector.broadcast %12 : f32 to vector<128x128xf32>
    %14 = arith.addf %10, %13 : vector<128x128xf32>
    %c1_i32 = arith.constant 1 : i32
    %15 = vector.broadcast %c1_i32 : i32 to vector<128x128xi32>
    %16 = arith.cmpi eq, %7, %15 : vector<128x128xi32>
    %17 = arith.index_cast %arg1 : i32 to index
    %c1 = arith.constant 1 : index
    %18 = memref.load %arg2[%17, %c1] : memref<1x3xf32, #tpu.memory_space<smem>>
    %19 = vector.broadcast %18 : f32 to vector<128x128xf32>
    %20 = arith.select %16, %19, %14 : vector<128x128xi1>, vector<128x128xf32>
    %c0_i32_5 = arith.constant 0 : i32
    %21 = vector.broadcast %c0_i32_5 : i32 to vector<128x128xi32>
    %22 = arith.cmpi eq, %7, %21 : vector<128x128xi32>
    %23 = arith.index_cast %arg1 : i32 to index
    %c0_6 = arith.constant 0 : index
    %24 = memref.load %arg2[%23, %c0_6] : memref<1x3xf32, #tpu.memory_space<smem>>
    %25 = vector.broadcast %24 : f32 to vector<128x128xf32>
    %26 = arith.select %22, %25, %20 : vector<128x128xi1>, vector<128x128xf32>
    %27 = vector.broadcast %5 : vector<128x1xf32> to vector<128x128xf32>
    %28 = vector.broadcast %2 : vector<1x128xf32> to vector<128x128xf32>
    %29 = arith.addf %27, %28 : vector<128x128xf32>
    %30 = arith.addf %29, %26 : vector<128x128xf32>
    %cst_7 = arith.constant 0.000000e+00 : f32
    %31 = vector.broadcast %cst_7 : f32 to vector<128x128xf32>
    %32 = arith.cmpf ogt, %30, %31 : vector<128x128xf32>
    %cst_8 = arith.constant 2.000000e-01 : f32
    %33 = vector.broadcast %cst_8 : f32 to vector<128x128xf32>
    %34 = arith.mulf %33, %30 : vector<128x128xf32>
    %35 = arith.select %32, %30, %34 : vector<128x128xi1>, vector<128x128xf32>
    %cst_9 = arith.constant -1.000000e+30 : f32
    %36 = vector.broadcast %cst_9 : f32 to vector<128x128xf32>
    %37 = arith.select %9, %35, %36 : vector<128x128xi1>, vector<128x128xf32>
    %cst_10 = arith.constant dense<0xFF800000> : vector<128xf32>
    %38 = vector.multi_reduction <maximumf>, %37, %cst_10 [1] : vector<128x128xf32> to vector<128xf32>
    %39 = vector.shape_cast %38 : vector<128xf32> to vector<128x1xf32>
    %40 = vector.broadcast %39 : vector<128x1xf32> to vector<128x128xf32>
    %41 = arith.subf %37, %40 : vector<128x128xf32>
    %42 = math.exp %41 : vector<128x128xf32>
    %cst_11 = arith.constant 0.000000e+00 : f32
    %43 = vector.broadcast %cst_11 : f32 to vector<128x128xf32>
    %44 = arith.select %9, %42, %43 : vector<128x128xi1>, vector<128x128xf32>
    %cst_12 = arith.constant dense<0.000000e+00> : vector<128xf32>
    %45 = vector.multi_reduction <add>, %44, %cst_12 [1] : vector<128x128xf32> to vector<128xf32>
    %46 = vector.shape_cast %45 : vector<128xf32> to vector<128x1xf32>
    %cst_13 = arith.constant 1.000000e+00 : f32
    %47 = vector.broadcast %cst_13 : f32 to vector<128x1xf32>
    %48 = arith.maximumf %46, %47 : vector<128x1xf32>
    %49 = arith.truncf %44 : vector<128x128xf32> to vector<128x128xbf16>
    %50 = arith.index_cast %arg1 : i32 to index
    %c0_14 = arith.constant 0 : index
    %c0_15 = arith.constant 0 : index
    %51 = vector.load %arg6[%50, %c0_14, %c0_15] : memref<1x128x128xbf16, #tpu.memory_space<vmem>>, vector<1x128x128xbf16>
    %52 = vector.shape_cast %51 : vector<1x128x128xbf16> to vector<128x128xbf16>
    %cst_16 = arith.constant dense<0.000000e+00> : vector<128x128xf32>
    %53 = tpu.matmul %49, %52, %cst_16 {dimension_numbers = #tpu.dot_dimension_numbers<[1], [0], [0], [1], [0, 0, 1, 1], [], []>} : vector<128x128xbf16>, vector<128x128xbf16>, vector<128x128xf32> -> vector<128x128xf32>
    %54 = tpu.reciprocal %48 {approx = true} : vector<128x1xf32> -> vector<128x1xf32>
    %55 = vector.broadcast %54 : vector<128x1xf32> to vector<128x128xf32>
    %56 = arith.mulf %53, %55 : vector<128x128xf32>
    %c0_17 = arith.constant 0 : index
    %c0_18 = arith.constant 0 : index
    %57 = vector.load %arg7[%c0_17, %c0_18] : memref<128x128xbf16, #tpu.memory_space<vmem>>, vector<128x128xbf16>
    %58 = arith.extf %57 : vector<128x128xbf16> to vector<128x128xf32>
    %59 = arith.addf %56, %58 : vector<128x128xf32>
    %60 = arith.index_cast %arg1 : i32 to index
    %c0_19 = arith.constant 0 : index
    %c0_20 = arith.constant 0 : index
    %61 = vector.load %arg8[%60, %c0_19, %c0_20] : memref<1x1x128xf32, #tpu.memory_space<vmem>>, vector<1x1x128xf32>
    %62 = vector.shape_cast %61 : vector<1x1x128xf32> to vector<1x128xf32>
    %63 = vector.broadcast %62 : vector<1x128xf32> to vector<128x128xf32>
    %64 = arith.addf %59, %63 : vector<128x128xf32>
    %c0_21 = arith.constant 0 : index
    %c0_22 = arith.constant 0 : index
    %65 = vector.load %arg9[%c0_21, %c0_22] : memref<128x128xf32, #tpu.memory_space<vmem>>, vector<128x128xf32>
    tpu.vector_store %arg9[%c0_21, %c0_22], %64 {strides = array<i32>} : memref<128x128xf32, #tpu.memory_space<vmem>>, vector<128x128xf32>,
    return
  }
  func.func @transform_0(%arg0: i32, %arg1: i32, %arg2: memref<1x3xf32, #tpu.memory_space<smem>>) -> (i32, i32, i32) {
    %c0_i32 = arith.constant 0 : i32
    %c0_i32_0 = arith.constant 0 : i32
    %c0_i32_1 = arith.constant 0 : i32
    %c0_i32_2 = arith.constant 0 : i32
    return %c0_i32, %c0_i32_0, %c0_i32_1 : i32, i32, i32
  }
  func.func @transform_1(%arg0: i32, %arg1: i32, %arg2: memref<1x3xf32, #tpu.memory_space<smem>>) -> (i32, i32, i32) {
    %c0_i32 = arith.constant 0 : i32
    %c0_i32_0 = arith.constant 0 : i32
    %c0_i32_1 = arith.constant 0 : i32
    return %c0_i32, %arg0, %c0_i32_0 : i32, i32, i32
  }
  func.func @transform_2(%arg0: i32, %arg1: i32, %arg2: memref<1x3xf32, #tpu.memory_space<smem>>) -> (i32, i32) {
    %c0_i32 = arith.constant 0 : i32
    %c0_i32_0 = arith.constant 0 : i32
    return %arg0, %c0_i32 : i32, i32
  }
  func.func @transform_3(%arg0: i32, %arg1: i32, %arg2: memref<1x3xf32, #tpu.memory_space<smem>>) -> (i32, i32, i32) {
    %c0_i32 = arith.constant 0 : i32
    %c0_i32_0 = arith.constant 0 : i32
    %c0_i32_1 = arith.constant 0 : i32
    %c0_i32_2 = arith.constant 0 : i32
    return %c0_i32, %c0_i32_0, %c0_i32_1 : i32, i32, i32
  }
  func.func @transform_4(%arg0: i32, %arg1: i32, %arg2: memref<1x3xf32, #tpu.memory_space<smem>>) -> (i32, i32) {
    %c0_i32 = arith.constant 0 : i32
    return %arg0, %arg1 : i32, i32
  }
  func.func @transform_5(%arg0: i32, %arg1: i32, %arg2: memref<1x3xf32, #tpu.memory_space<smem>>) -> (i32, i32, i32) {
    %c0_i32 = arith.constant 0 : i32
    %c0_i32_0 = arith.constant 0 : i32
    %c0_i32_1 = arith.constant 0 : i32
    %c0_i32_2 = arith.constant 0 : i32
    return %c0_i32, %c0_i32_0, %c0_i32_1 : i32, i32, i32
  }
  func.func @transform_6(%arg0: i32, %arg1: i32, %arg2: memref<1x3xf32, #tpu.memory_space<smem>>) -> (i32, i32) {
    %c0_i32 = arith.constant 0 : i32
    return %arg0, %arg1 : i32, i32
  }
}

</mosaic_0001>

<llo_original>
// kernel: _lambda_.9
$region0: #{_lambda_.9}
  #allocation0 [shape = 'u32[]', space=smem, size = 0x4, offset = 0x4, fixed_abs, tag = 'smem constant byte address 0x4 - core index']
  #allocation1 [shape = 'u32[72,128]{1,0:T(1,128)}', space=vmem, size = 0x9000, scoped, tag = 'internal scratch']
  %s0 = inlined_call_operand.vmem [shape: bf16[128,128], index: 0, kind: input, shape index: {}]
  %s1 = inlined_call_operand.hbm [shape: bf16[2,128,128], index: 1, kind: input, shape index: {}]
  %s2 = inlined_call_operand.vmem [shape: f32[2,1,128], index: 2, kind: input, shape index: {}]
  %s3 = inlined_call_operand.vmem [shape: bf16[2,128,128], index: 3, kind: output, shape index: {}]
  %s4 = sld [smem:[#allocation0]]
  $region26: #{_lambda_.9} parent=0
    _
  %s6 = ssub.s32 1, %s4
  %s7 = scalar_select 0, %s6, %s4
  $region1: #{_lambda_.9} parent=0
    #allocation2 [shape = 'u8[65536]{0}', space=vmem, size = 0x10000, scoped, tag = 'input window, operand 1, single buffered']
    #allocation3 [shape = 's32[1]{0}', space=sflag, size = 0x4, scoped, tag = 'scoped memory for _lambda_.9']
    %8 = vsyncpa [#allocation3], 0
    // Predicated region
    $region2: #{_lambda_.9} parent=1 // pred_check
      _
    $region3: #{_lambda_.9} parent=1 // pred_check_branch
      %10 = sbr.rel (0) target = $region5
    $region4: #{_lambda_.9} parent=1 // pred_region
      _
    $region5: #{_lambda_.9} parent=1 // pred_fallthru
      _
    // Predicated region
    $region6: #{_lambda_.9} parent=1 // pred_check
      _
    $region7: #{_lambda_.9} parent=1 // pred_check_branch
      %12 = sbr.rel (0) target = $region9
    $region8: #{_lambda_.9} parent=1 // pred_region
      %14 = vsyncadd [#allocation3], 0
      %s15 = sshll.u32 %s1, 4
      %s16 = int_to_ptr.hbm [resolvable:$true] %s15
      %s17 = sshll.u32 [#allocation2], 4
      %s18 = int_to_ptr.vmem [resolvable:$true] %s17
      %23 = dma.hbm_to_vmem [thread:$0]  %s16, 2048, %s18, [#allocation3], 64, 64, 4
    $region9: #{_lambda_.9} parent=1 // pred_fallthru
      _
    // Predicated region
    $region10: #{_lambda_.9} parent=1 // pred_check
      _
    $region11: #{_lambda_.9} parent=1 // pred_check_branch
      %25 = sbr.rel (0) target = $region13
    $region12: #{_lambda_.9} parent=1 // pred_region
      _
    $region13: #{_lambda_.9} parent=1 // pred_fallthru
      _
    // Predicated region
    $region14: #{_lambda_.9} parent=1 // pred_check
      _
    $region15: #{_lambda_.9} parent=1 // pred_check_branch
      %27 = sbr.rel (0) target = $region17
    $region16: #{_lambda_.9} parent=1 // pred_region
      %29 = dma.done [#allocation3], 2048
    $region17: #{_lambda_.9} parent=1 // pred_fallthru
      _
    %v30 = vld [vmem:[%s0] sm:$0xf]
    %v31 = vld [vmem:[%s0 + $0x4] sm:$0xf]
    %v32 = vld [vmem:[%s0 + $0x8] sm:$0xf]
    %v33 = vld [vmem:[%s0 + $0xc] sm:$0xf]
    %v34 = vld [vmem:[%s0 + $0x10] sm:$0xf]
    %v35 = vld [vmem:[%s0 + $0x14] sm:$0xf]
    %v36 = vld [vmem:[%s0 + $0x18] sm:$0xf]
    %v37 = vld [vmem:[%s0 + $0x1c] sm:$0xf]
    %v38 = vld [vmem:[%s0 + $0x20] sm:$0xf]
    %v39 = vld [vmem:[%s0 + $0x24] sm:$0xf]
    %v40 = vld [vmem:[%s0 + $0x28] sm:$0xf]
    %v41 = vld [vmem:[%s0 + $0x2c] sm:$0xf]
    %v42 = vld [vmem:[%s0 + $0x30] sm:$0xf]
    %v43 = vld [vmem:[%s0 + $0x34] sm:$0xf]
    %v44 = vld [vmem:[%s0 + $0x38] sm:$0xf]
    %v45 = vld [vmem:[%s0 + $0x3c] sm:$0xf]
    %v46 = vld [vmem:[#allocation2] sm:$0xf]
    %v47 = vld [vmem:[#allocation2 + $0x4] sm:$0xf]
    %v48 = vld [vmem:[#allocation2 + $0x8] sm:$0xf]
    %v49 = vld [vmem:[#allocation2 + $0xc] sm:$0xf]
    %v50 = vld [vmem:[#allocation2 + $0x10] sm:$0xf]
    %v51 = vld [vmem:[#allocation2 + $0x14] sm:$0xf]
    %v52 = vld [vmem:[#allocation2 + $0x18] sm:$0xf]
    %v53 = vld [vmem:[#allocation2 + $0x1c] sm:$0xf]
    %v54 = vld [vmem:[#allocation2 + $0x20] sm:$0xf]
    %v55 = vld [vmem:[#allocation2 + $0x24] sm:$0xf]
    %v56 = vld [vmem:[#allocation2 + $0x28] sm:$0xf]
    %v57 = vld [vmem:[#allocation2 + $0x2c] sm:$0xf]
    %v58 = vld [vmem:[#allocation2 + $0x30] sm:$0xf]
    %v59 = vld [vmem:[#allocation2 + $0x34] sm:$0xf]
    %v60 = vld [vmem:[#allocation2 + $0x38] sm:$0xf]
    %v61 = vld [vmem:[#allocation2 + $0x3c] sm:$0xf]
    %v62 = vld [vmem:[%s2] sm:$0x1]
    %v64 = vperm.slane %v62, 0
    %v82 = vunpack.c.l.b16 %v30
    %v83 = vunpack.c.l.b16 %v31
    %v84 = vunpack.c.l.b16 %v32
    %v85 = vunpack.c.l.b16 %v33
    %v86 = vunpack.c.l.b16 %v34
    %v87 = vunpack.c.l.b16 %v35
    %v88 = vunpack.c.l.b16 %v36
    %v89 = vunpack.c.l.b16 %v37
    %v90 = vunpack.c.l.b16 %v38
    %v91 = vunpack.c.l.b16 %v39
    %v92 = vunpack.c.l.b16 %v40
    %v93 = vunpack.c.l.b16 %v41
    %v94 = vunpack.c.l.b16 %v42
    %v95 = vunpack.c.l.b16 %v43
    %v96 = vunpack.c.l.b16 %v44
    %v97 = vunpack.c.l.b16 %v45
    %v98 = vpack.c.b16 %v83, %v82
    %v99 = vpack.c.b16 %v85, %v84
    %v100 = vpack.c.b16 %v87, %v86
    %v101 = vpack.c.b16 %v89, %v88
    %v102 = vpack.c.b16 %v91, %v90
    %v103 = vpack.c.b16 %v93, %v92
    %v104 = vpack.c.b16 %v95, %v94
    %v105 = vpack.c.b16 %v97, %v96
    %v130 = vunpack.c.l.b16 %v46
    %v131 = vunpack.c.l.b16 %v47
    %v132 = vunpack.c.l.b16 %v48
    %v133 = vunpack.c.l.b16 %v49
    %v134 = vunpack.c.l.b16 %v50
    %v135 = vunpack.c.l.b16 %v51
    %v136 = vunpack.c.l.b16 %v52
    %v137 = vunpack.c.l.b16 %v53
    %v138 = vunpack.c.l.b16 %v54
    %v139 = vunpack.c.l.b16 %v55
    %v140 = vunpack.c.l.b16 %v56
    %v141 = vunpack.c.l.b16 %v57
    %v142 = vunpack.c.l.b16 %v58
    %v143 = vunpack.c.l.b16 %v59
    %v144 = vunpack.c.l.b16 %v60
    %v145 = vunpack.c.l.b16 %v61
    %v146 = vpack.c.b16 %v131, %v130
    %v147 = vpack.c.b16 %v133, %v132
    %v148 = vpack.c.b16 %v135, %v134
    %v149 = vpack.c.b16 %v137, %v136
    %v150 = vpack.c.b16 %v139, %v138
    %v151 = vpack.c.b16 %v141, %v140
    %v152 = vpack.c.b16 %v143, %v142
    %v153 = vpack.c.b16 %v145, %v144
    %162 = vmatpush.bf16.msra.mxu0 %v153
    %163 = vmatpush.bf16.msra.mxu0 %v152
    %164 = vmatpush.bf16.msra.mxu0 %v151
    %165 = vmatpush.bf16.msra.mxu0 %v150
    %166 = vmatpush.bf16.msra.mxu0 %v149
    %167 = vmatpush.bf16.msra.mxu0 %v148
    %168 = vmatpush.bf16.msra.mxu0 %v147
    %169 = vmatpush.bf16.msra.mxu0 %v146
    %170 = vmatmul.bf16.gmra.mxu0 %v98
    %v171 = vpop.f32.mrf.mxu0
    %v172 = vadd.f32 %v64, %v171
    %v173 = vpop.f32.mrf.mxu0
    %v174 = vadd.f32 %v64, %v173
    %175 = vmatmul.bf16.gmra.mxu0 %v99
    %v176 = vpop.f32.mrf.mxu0
    %v177 = vadd.f32 %v64, %v176
    %v178 = vpop.f32.mrf.mxu0
    %v179 = vadd.f32 %v64, %v178
    %180 = vmatmul.bf16.gmra.mxu0 %v100
    %v181 = vpop.f32.mrf.mxu0
    %v182 = vadd.f32 %v64, %v181
    %v183 = vpop.f32.mrf.mxu0
    %v184 = vadd.f32 %v64, %v183
    %185 = vmatmul.bf16.gmra.mxu0 %v101
    %v186 = vpop.f32.mrf.mxu0
    %v187 = vadd.f32 %v64, %v186
    %v188 = vpop.f32.mrf.mxu0
    %v189 = vadd.f32 %v64, %v188
    %190 = vmatmul.bf16.gmra.mxu0 %v102
    %v191 = vpop.f32.mrf.mxu0
    %v192 = vadd.f32 %v64, %v191
    %v193 = vpop.f32.mrf.mxu0
    %v194 = vadd.f32 %v64, %v193
    %195 = vmatmul.bf16.gmra.mxu0 %v103
    %v196 = vpop.f32.mrf.mxu0
    %v197 = vadd.f32 %v64, %v196
    %v198 = vpop.f32.mrf.mxu0
    %v199 = vadd.f32 %v64, %v198
    %200 = vmatmul.bf16.gmra.mxu0 %v104
    %v201 = vpop.f32.mrf.mxu0
    %v202 = vadd.f32 %v64, %v201
    %v203 = vpop.f32.mrf.mxu0
    %v204 = vadd.f32 %v64, %v203
    %205 = vmatmul.bf16.gmra.mxu0 %v105
    %v206 = vpop.f32.mrf.mxu0
    %v207 = vadd.f32 %v64, %v206
    %v208 = vpop.f32.mrf.mxu0
    %v209 = vadd.f32 %v64, %v208
    %210 = vdwg.mxu0
    %v211 = vpack.c.bf16 %v172, %v172
    %v212 = vpack.c.bf16 %v174, %v174
    %v213 = vpack.c.bf16 %v177, %v177
    %v214 = vpack.c.bf16 %v179, %v179
    %v215 = vpack.c.bf16 %v182, %v182
    %v216 = vpack.c.bf16 %v184, %v184
    %v217 = vpack.c.bf16 %v187, %v187
    %v218 = vpack.c.bf16 %v189, %v189
    %v219 = vpack.c.bf16 %v192, %v192
    %v220 = vpack.c.bf16 %v194, %v194
    %v221 = vpack.c.bf16 %v197, %v197
    %v222 = vpack.c.bf16 %v199, %v199
    %v223 = vpack.c.bf16 %v202, %v202
    %v224 = vpack.c.bf16 %v204, %v204
    %v225 = vpack.c.bf16 %v207, %v207
    %v226 = vpack.c.bf16 %v209, %v209
    %227 = vst [vmem:[%s3] sm:$0xf] %v211
    %228 = vst [vmem:[%s3 + $0x4] sm:$0xf] %v212
    %229 = vst [vmem:[%s3 + $0x8] sm:$0xf] %v213
    %230 = vst [vmem:[%s3 + $0xc] sm:$0xf] %v214
    %231 = vst [vmem:[%s3 + $0x10] sm:$0xf] %v215
    %232 = vst [vmem:[%s3 + $0x14] sm:$0xf] %v216
    %233 = vst [vmem:[%s3 + $0x18] sm:$0xf] %v217
    %234 = vst [vmem:[%s3 + $0x1c] sm:$0xf] %v218
    %235 = vst [vmem:[%s3 + $0x20] sm:$0xf] %v219
    %236 = vst [vmem:[%s3 + $0x24] sm:$0xf] %v220
    %237 = vst [vmem:[%s3 + $0x28] sm:$0xf] %v221
    %238 = vst [vmem:[%s3 + $0x2c] sm:$0xf] %v222
    %239 = vst [vmem:[%s3 + $0x30] sm:$0xf] %v223
    %240 = vst [vmem:[%s3 + $0x34] sm:$0xf] %v224
    %241 = vst [vmem:[%s3 + $0x38] sm:$0xf] %v225
    %242 = vst [vmem:[%s3 + $0x3c] sm:$0xf] %v226
    %s243 = scalar_lea.vmem [#allocation2], 64
    %v244 = vld [vmem:[%s243] sm:$0xf]
    %v245 = vld [vmem:[%s243 + $0x4] sm:$0xf]
    %v246 = vld [vmem:[%s243 + $0x8] sm:$0xf]
    %v247 = vld [vmem:[%s243 + $0xc] sm:$0xf]
    %v248 = vld [vmem:[%s243 + $0x10] sm:$0xf]
    %v249 = vld [vmem:[%s243 + $0x14] sm:$0xf]
    %v250 = vld [vmem:[%s243 + $0x18] sm:$0xf]
    %v251 = vld [vmem:[%s243 + $0x1c] sm:$0xf]
    %v252 = vld [vmem:[%s243 + $0x20] sm:$0xf]
    %v253 = vld [vmem:[%s243 + $0x24] sm:$0xf]
    %v254 = vld [vmem:[%s243 + $0x28] sm:$0xf]
    %v255 = vld [vmem:[%s243 + $0x2c] sm:$0xf]
    %v256 = vld [vmem:[%s243 + $0x30] sm:$0xf]
    %v257 = vld [vmem:[%s243 + $0x34] sm:$0xf]
    %v258 = vld [vmem:[%s243 + $0x38] sm:$0xf]
    %v259 = vld [vmem:[%s243 + $0x3c] sm:$0xf]
    %s260 = scalar_lea.vmem %s2, 1
    %v261 = vld [vmem:[%s260] sm:$0x1]
    %v263 = vperm.slane %v261, 0
    %v281 = vunpack.c.l.b16 %v244
    %v282 = vunpack.c.l.b16 %v245
    %v283 = vunpack.c.l.b16 %v246
    %v284 = vunpack.c.l.b16 %v247
    %v285 = vunpack.c.l.b16 %v248
    %v286 = vunpack.c.l.b16 %v249
    %v287 = vunpack.c.l.b16 %v250
    %v288 = vunpack.c.l.b16 %v251
    %v289 = vunpack.c.l.b16 %v252
    %v290 = vunpack.c.l.b16 %v253
    %v291 = vunpack.c.l.b16 %v254
    %v292 = vunpack.c.l.b16 %v255
    %v293 = vunpack.c.l.b16 %v256
    %v294 = vunpack.c.l.b16 %v257
    %v295 = vunpack.c.l.b16 %v258
    %v296 = vunpack.c.l.b16 %v259
    %v297 = vpack.c.b16 %v282, %v281
    %v298 = vpack.c.b16 %v284, %v283
    %v299 = vpack.c.b16 %v286, %v285
    %v300 = vpack.c.b16 %v288, %v287
    %v301 = vpack.c.b16 %v290, %v289
    %v302 = vpack.c.b16 %v292, %v291
    %v303 = vpack.c.b16 %v294, %v293
    %v304 = vpack.c.b16 %v296, %v295
    %313 = vmatpush.bf16.msra.mxu0 %v304
    %314 = vmatpush.bf16.msra.mxu0 %v303
    %315 = vmatpush.bf16.msra.mxu0 %v302
    %316 = vmatpush.bf16.msra.mxu0 %v301
    %317 = vmatpush.bf16.msra.mxu0 %v300
    %318 = vmatpush.bf16.msra.mxu0 %v299
    %319 = vmatpush.bf16.msra.mxu0 %v298
    %320 = vmatpush.bf16.msra.mxu0 %v297
    %321 = vmatmul.bf16.gmra.mxu0 %v98
    %v322 = vpop.f32.mrf.mxu0
    %v323 = vadd.f32 %v263, %v322
    %v324 = vpop.f32.mrf.mxu0
    %v325 = vadd.f32 %v263, %v324
    %326 = vmatmul.bf16.gmra.mxu0 %v99
    %v327 = vpop.f32.mrf.mxu0
    %v328 = vadd.f32 %v263, %v327
    %v329 = vpop.f32.mrf.mxu0
    %v330 = vadd.f32 %v263, %v329
    %331 = vmatmul.bf16.gmra.mxu0 %v100
    %v332 = vpop.f32.mrf.mxu0
    %v333 = vadd.f32 %v263, %v332
    %v334 = vpop.f32.mrf.mxu0
    %v335 = vadd.f32 %v263, %v334
    %336 = vmatmul.bf16.gmra.mxu0 %v101
    %v337 = vpop.f32.mrf.mxu0
    %v338 = vadd.f32 %v263, %v337
    %v339 = vpop.f32.mrf.mxu0
    %v340 = vadd.f32 %v263, %v339
    %341 = vmatmul.bf16.gmra.mxu0 %v102
    %v342 = vpop.f32.mrf.mxu0
    %v343 = vadd.f32 %v263, %v342
    %v344 = vpop.f32.mrf.mxu0
    %v345 = vadd.f32 %v263, %v344
    %346 = vmatmul.bf16.gmra.mxu0 %v103
    %v347 = vpop.f32.mrf.mxu0
    %v348 = vadd.f32 %v263, %v347
    %v349 = vpop.f32.mrf.mxu0
    %v350 = vadd.f32 %v263, %v349
    %351 = vmatmul.bf16.gmra.mxu0 %v104
    %v352 = vpop.f32.mrf.mxu0
    %v353 = vadd.f32 %v263, %v352
    %v354 = vpop.f32.mrf.mxu0
    %v355 = vadd.f32 %v263, %v354
    %356 = vmatmul.bf16.gmra.mxu0 %v105
    %v357 = vpop.f32.mrf.mxu0
    %v358 = vadd.f32 %v263, %v357
    %v359 = vpop.f32.mrf.mxu0
    %v360 = vadd.f32 %v263, %v359
    %361 = vdwg.mxu0
    %v362 = vpack.c.bf16 %v323, %v323
    %v363 = vpack.c.bf16 %v325, %v325
    %v364 = vpack.c.bf16 %v328, %v328
    %v365 = vpack.c.bf16 %v330, %v330
    %v366 = vpack.c.bf16 %v333, %v333
    %v367 = vpack.c.bf16 %v335, %v335
    %v368 = vpack.c.bf16 %v338, %v338
    %v369 = vpack.c.bf16 %v340, %v340
    %v370 = vpack.c.bf16 %v343, %v343
    %v371 = vpack.c.bf16 %v345, %v345
    %v372 = vpack.c.bf16 %v348, %v348
    %v373 = vpack.c.bf16 %v350, %v350
    %v374 = vpack.c.bf16 %v353, %v353
    %v375 = vpack.c.bf16 %v355, %v355
    %v376 = vpack.c.bf16 %v358, %v358
    %v377 = vpack.c.bf16 %v360, %v360
    %s378 = scalar_lea.vmem %s3, 64
    %379 = vst [vmem:[%s378] sm:$0xf] %v362
    %380 = vst [vmem:[%s378 + $0x4] sm:$0xf] %v363
    %381 = vst [vmem:[%s378 + $0x8] sm:$0xf] %v364
    %382 = vst [vmem:[%s378 + $0xc] sm:$0xf] %v365
    %383 = vst [vmem:[%s378 + $0x10] sm:$0xf] %v366
    %384 = vst [vmem:[%s378 + $0x14] sm:$0xf] %v367
    %385 = vst [vmem:[%s378 + $0x18] sm:$0xf] %v368
    %386 = vst [vmem:[%s378 + $0x1c] sm:$0xf] %v369
    %387 = vst [vmem:[%s378 + $0x20] sm:$0xf] %v370
    %388 = vst [vmem:[%s378 + $0x24] sm:$0xf] %v371
    %389 = vst [vmem:[%s378 + $0x28] sm:$0xf] %v372
    %390 = vst [vmem:[%s378 + $0x2c] sm:$0xf] %v373
    %391 = vst [vmem:[%s378 + $0x30] sm:$0xf] %v374
    %392 = vst [vmem:[%s378 + $0x34] sm:$0xf] %v375
    %393 = vst [vmem:[%s378 + $0x38] sm:$0xf] %v376
    %394 = vst [vmem:[%s378 + $0x3c] sm:$0xf] %v377
    // Predicated region
    $region18: #{_lambda_.9} parent=1 // pred_check
      _
    $region19: #{_lambda_.9} parent=1 // pred_check_branch
      %396 = sbr.rel (0) target = $region21
    $region20: #{_lambda_.9} parent=1 // pred_region
      _
    $region21: #{_lambda_.9} parent=1 // pred_fallthru
      _
    // Predicated region
    $region22: #{_lambda_.9} parent=1 // pred_check
      _
    $region23: #{_lambda_.9} parent=1 // pred_check_branch
      %398 = sbr.rel (0) target = $region25
    $region24: #{_lambda_.9} parent=1 // pred_region
      _
    $region25: #{_lambda_.9} parent=1 // pred_fallthru
      _
    %399 = vsyncpa [#allocation3], 1

// kernel: _lambda_.8
$region0: #{_lambda_.8}
  #allocation0 [shape = 'u32[]', space=smem, size = 0x4, offset = 0x4, fixed_abs, tag = 'smem constant byte address 0x4 - core index']
  #allocation1 [shape = 'u32[72,128]{1,0:T(1,128)}', space=vmem, size = 0x9000, scoped, tag = 'internal scratch']
  %s0 = inlined_call_operand.vmem [shape: bf16[128,128], index: 0, kind: input, shape index: {}]
  %s1 = inlined_call_operand.vmem [shape: bf16[128,128], index: 1, kind: input, shape index: {}]
  %s2 = inlined_call_operand.vmem [shape: f32[1,128], index: 2, kind: input, shape index: {}]
  %s3 = inlined_call_operand.vmem [shape: bf16[128,128], index: 3, kind: output, shape index: {}]
  %s4 = sld [smem:[#allocation0]]
  $region22: #{_lambda_.8} parent=0
    _
  %s6 = ssub.s32 1, %s4
  %s7 = scalar_select 0, %s6, %s4
  // Predicated region
  $region2: #{_lambda_.8} parent=0 // pred_check
    _
  $region3: #{_lambda_.8} parent=0 // pred_check_branch
    %9 = sbr.rel (0) target = $region5
  $region4: #{_lambda_.8} parent=0 // pred_region
    _
  $region5: #{_lambda_.8} parent=0 // pred_fallthru
    _
  // Predicated region
  $region6: #{_lambda_.8} parent=0 // pred_check
    _
  $region7: #{_lambda_.8} parent=0 // pred_check_branch
    %11 = sbr.rel (0) target = $region9
  $region8: #{_lambda_.8} parent=0 // pred_region
    _
  $region9: #{_lambda_.8} parent=0 // pred_fallthru
    _
  // Predicated region
  $region10: #{_lambda_.8} parent=0 // pred_check
    _
  $region11: #{_lambda_.8} parent=0 // pred_check_branch
    %13 = sbr.rel (0) target = $region13
  $region12: #{_lambda_.8} parent=0 // pred_region
    _
  $region13: #{_lambda_.8} parent=0 // pred_fallthru
    _
  %v14 = vld [vmem:[%s0] sm:$0xf]
  %v15 = vld [vmem:[%s0 + $0x4] sm:$0xf]
  %v16 = vld [vmem:[%s0 + $0x8] sm:$0xf]
  %v17 = vld [vmem:[%s0 + $0xc] sm:$0xf]
  %v18 = vld [vmem:[%s0 + $0x10] sm:$0xf]
  %v19 = vld [vmem:[%s0 + $0x14] sm:$0xf]
  %v20 = vld [vmem:[%s0 + $0x18] sm:$0xf]
  %v21 = vld [vmem:[%s0 + $0x1c] sm:$0xf]
  %v22 = vld [vmem:[%s0 + $0x20] sm:$0xf]
  %v23 = vld [vmem:[%s0 + $0x24] sm:$0xf]
  %v24 = vld [vmem:[%s0 + $0x28] sm:$0xf]
  %v25 = vld [vmem:[%s0 + $0x2c] sm:$0xf]
  %v26 = vld [vmem:[%s0 + $0x30] sm:$0xf]
  %v27 = vld [vmem:[%s0 + $0x34] sm:$0xf]
  %v28 = vld [vmem:[%s0 + $0x38] sm:$0xf]
  %v29 = vld [vmem:[%s0 + $0x3c] sm:$0xf]
  %v30 = vld [vmem:[%s1] sm:$0xf]
  %v31 = vld [vmem:[%s1 + $0x4] sm:$0xf]
  %v32 = vld [vmem:[%s1 + $0x8] sm:$0xf]
  %v33 = vld [vmem:[%s1 + $0xc] sm:$0xf]
  %v34 = vld [vmem:[%s1 + $0x10] sm:$0xf]
  %v35 = vld [vmem:[%s1 + $0x14] sm:$0xf]
  %v36 = vld [vmem:[%s1 + $0x18] sm:$0xf]
  %v37 = vld [vmem:[%s1 + $0x1c] sm:$0xf]
  %v38 = vld [vmem:[%s1 + $0x20] sm:$0xf]
  %v39 = vld [vmem:[%s1 + $0x24] sm:$0xf]
  %v40 = vld [vmem:[%s1 + $0x28] sm:$0xf]
  %v41 = vld [vmem:[%s1 + $0x2c] sm:$0xf]
  %v42 = vld [vmem:[%s1 + $0x30] sm:$0xf]
  %v43 = vld [vmem:[%s1 + $0x34] sm:$0xf]
  %v44 = vld [vmem:[%s1 + $0x38] sm:$0xf]
  %v45 = vld [vmem:[%s1 + $0x3c] sm:$0xf]
  %v46 = vld [vmem:[%s2] sm:$0x1]
  %v48 = vperm.slane %v46, 0
  %v66 = vunpack.c.l.b16 %v14
  %v67 = vunpack.c.l.b16 %v15
  %v68 = vunpack.c.l.b16 %v16
  %v69 = vunpack.c.l.b16 %v17
  %v70 = vunpack.c.l.b16 %v18
  %v71 = vunpack.c.l.b16 %v19
  %v72 = vunpack.c.l.b16 %v20
  %v73 = vunpack.c.l.b16 %v21
  %v74 = vunpack.c.l.b16 %v22
  %v75 = vunpack.c.l.b16 %v23
  %v76 = vunpack.c.l.b16 %v24
  %v77 = vunpack.c.l.b16 %v25
  %v78 = vunpack.c.l.b16 %v26
  %v79 = vunpack.c.l.b16 %v27
  %v80 = vunpack.c.l.b16 %v28
  %v81 = vunpack.c.l.b16 %v29
  %v82 = vpack.c.b16 %v67, %v66
  %v83 = vpack.c.b16 %v69, %v68
  %v84 = vpack.c.b16 %v71, %v70
  %v85 = vpack.c.b16 %v73, %v72
  %v86 = vpack.c.b16 %v75, %v74
  %v87 = vpack.c.b16 %v77, %v76
  %v88 = vpack.c.b16 %v79, %v78
  %v89 = vpack.c.b16 %v81, %v80
  %v114 = vunpack.c.l.b16 %v30
  %v115 = vunpack.c.l.b16 %v31
  %v116 = vunpack.c.l.b16 %v32
  %v117 = vunpack.c.l.b16 %v33
  %v118 = vunpack.c.l.b16 %v34
  %v119 = vunpack.c.l.b16 %v35
  %v120 = vunpack.c.l.b16 %v36
  %v121 = vunpack.c.l.b16 %v37
  %v122 = vunpack.c.l.b16 %v38
  %v123 = vunpack.c.l.b16 %v39
  %v124 = vunpack.c.l.b16 %v40
  %v125 = vunpack.c.l.b16 %v41
  %v126 = vunpack.c.l.b16 %v42
  %v127 = vunpack.c.l.b16 %v43
  %v128 = vunpack.c.l.b16 %v44
  %v129 = vunpack.c.l.b16 %v45
  %v130 = vpack.c.b16 %v115, %v114
  %v131 = vpack.c.b16 %v117, %v116
  %v132 = vpack.c.b16 %v119, %v118
  %v133 = vpack.c.b16 %v121, %v120
  %v134 = vpack.c.b16 %v123, %v122
  %v135 = vpack.c.b16 %v125, %v124
  %v136 = vpack.c.b16 %v127, %v126
  %v137 = vpack.c.b16 %v129, %v128
  %146 = vmatpush.bf16.msra.mxu0 %v137
  %147 = vmatpush.bf16.msra.mxu0 %v136
  %148 = vmatpush.bf16.msra.mxu0 %v135
  %149 = vmatpush.bf16.msra.mxu0 %v134
  %150 = vmatpush.bf16.msra.mxu0 %v133
  %151 = vmatpush.bf16.msra.mxu0 %v132
  %152 = vmatpush.bf16.msra.mxu0 %v131
  %153 = vmatpush.bf16.msra.mxu0 %v130
  %154 = vmatmul.bf16.gmra.mxu0 %v82
  %v155 = vpop.f32.mrf.mxu0
  %v156 = vadd.f32 %v48, %v155
  %v157 = vpop.f32.mrf.mxu0
  %v158 = vadd.f32 %v48, %v157
  %159 = vmatmul.bf16.gmra.mxu0 %v83
  %v160 = vpop.f32.mrf.mxu0
  %v161 = vadd.f32 %v48, %v160
  %v162 = vpop.f32.mrf.mxu0
  %v163 = vadd.f32 %v48, %v162
  %164 = vmatmul.bf16.gmra.mxu0 %v84
  %v165 = vpop.f32.mrf.mxu0
  %v166 = vadd.f32 %v48, %v165
  %v167 = vpop.f32.mrf.mxu0
  %v168 = vadd.f32 %v48, %v167
  %169 = vmatmul.bf16.gmra.mxu0 %v85
  %v170 = vpop.f32.mrf.mxu0
  %v171 = vadd.f32 %v48, %v170
  %v172 = vpop.f32.mrf.mxu0
  %v173 = vadd.f32 %v48, %v172
  %174 = vmatmul.bf16.gmra.mxu0 %v86
  %v175 = vpop.f32.mrf.mxu0
  %v176 = vadd.f32 %v48, %v175
  %v177 = vpop.f32.mrf.mxu0
  %v178 = vadd.f32 %v48, %v177
  %179 = vmatmul.bf16.gmra.mxu0 %v87
  %v180 = vpop.f32.mrf.mxu0
  %v181 = vadd.f32 %v48, %v180
  %v182 = vpop.f32.mrf.mxu0
  %v183 = vadd.f32 %v48, %v182
  %184 = vmatmul.bf16.gmra.mxu0 %v88
  %v185 = vpop.f32.mrf.mxu0
  %v186 = vadd.f32 %v48, %v185
  %v187 = vpop.f32.mrf.mxu0
  %v188 = vadd.f32 %v48, %v187
  %189 = vmatmul.bf16.gmra.mxu0 %v89
  %v190 = vpop.f32.mrf.mxu0
  %v191 = vadd.f32 %v48, %v190
  %v192 = vpop.f32.mrf.mxu0
  %v193 = vadd.f32 %v48, %v192
  %194 = vdwg.mxu0
  %v195 = vpack.c.bf16 %v156, %v156
  %v196 = vpack.c.bf16 %v158, %v158
  %v197 = vpack.c.bf16 %v161, %v161
  %v198 = vpack.c.bf16 %v163, %v163
  %v199 = vpack.c.bf16 %v166, %v166
  %v200 = vpack.c.bf16 %v168, %v168
  %v201 = vpack.c.bf16 %v171, %v171
  %v202 = vpack.c.bf16 %v173, %v173
  %v203 = vpack.c.bf16 %v176, %v176
  %v204 = vpack.c.bf16 %v178, %v178
  %v205 = vpack.c.bf16 %v181, %v181
  %v206 = vpack.c.bf16 %v183, %v183
  %v207 = vpack.c.bf16 %v186, %v186
  %v208 = vpack.c.bf16 %v188, %v188
  %v209 = vpack.c.bf16 %v191, %v191
  %v210 = vpack.c.bf16 %v193, %v193
  %211 = vst [vmem:[%s3] sm:$0xf] %v195
  %212 = vst [vmem:[%s3 + $0x4] sm:$0xf] %v196
  %213 = vst [vmem:[%s3 + $0x8] sm:$0xf] %v197
  %214 = vst [vmem:[%s3 + $0xc] sm:$0xf] %v198
  %215 = vst [vmem:[%s3 + $0x10] sm:$0xf] %v199
  %216 = vst [vmem:[%s3 + $0x14] sm:$0xf] %v200
  %217 = vst [vmem:[%s3 + $0x18] sm:$0xf] %v201
  %218 = vst [vmem:[%s3 + $0x1c] sm:$0xf] %v202
  %219 = vst [vmem:[%s3 + $0x20] sm:$0xf] %v203
  %220 = vst [vmem:[%s3 + $0x24] sm:$0xf] %v204
  %221 = vst [vmem:[%s3 + $0x28] sm:$0xf] %v205
  %222 = vst [vmem:[%s3 + $0x2c] sm:$0xf] %v206
  %223 = vst [vmem:[%s3 + $0x30] sm:$0xf] %v207
  %224 = vst [vmem:[%s3 + $0x34] sm:$0xf] %v208
  %225 = vst [vmem:[%s3 + $0x38] sm:$0xf] %v209
  %226 = vst [vmem:[%s3 + $0x3c] sm:$0xf] %v210
  // Predicated region
  $region14: #{_lambda_.8} parent=0 // pred_check
    _
  $region15: #{_lambda_.8} parent=0 // pred_check_branch
    %228 = sbr.rel (0) target = $region17
  $region16: #{_lambda_.8} parent=0 // pred_region
    _
  $region17: #{_lambda_.8} parent=0 // pred_fallthru
    _
  // Predicated region
  $region18: #{_lambda_.8} parent=0 // pred_check
    _
  $region19: #{_lambda_.8} parent=0 // pred_check_branch
    %230 = sbr.rel (0) target = $region21
  $region20: #{_lambda_.8} parent=0 // pred_region
    _
  $region21: #{_lambda_.8} parent=0 // pred_fallthru
    _

// kernel: _lambda_.11
$region0: #{_lambda_.11}
  #allocation0 [shape = 'u32[]', space=smem, size = 0x4, offset = 0x4, fixed_abs, tag = 'smem constant byte address 0x4 - core index']
  #allocation1 [shape = 'u32[72,128]{1,0:T(1,128)}', space=vmem, size = 0x9000, scoped, tag = 'internal scratch']
  %s0 = inlined_call_operand.vmem [shape: bf16[128,256], index: 0, kind: input, shape index: {}]
  %s1 = inlined_call_operand.vmem [shape: bf16[2,256,128], index: 1, kind: input, shape index: {}]
  %s2 = inlined_call_operand.vmem [shape: f32[2,1,128], index: 2, kind: input, shape index: {}]
  %s3 = inlined_call_operand.vmem [shape: bf16[2,128,128], index: 3, kind: output, shape index: {}]
  %s4 = sld [smem:[#allocation0]]
  $region22: #{_lambda_.11} parent=0
    _
  %s6 = ssub.s32 1, %s4
  %s7 = scalar_select 0, %s6, %s4
  // Predicated region
  $region2: #{_lambda_.11} parent=0 // pred_check
    _
  $region3: #{_lambda_.11} parent=0 // pred_check_branch
    %9 = sbr.rel (0) target = $region5
  $region4: #{_lambda_.11} parent=0 // pred_region
    _
  $region5: #{_lambda_.11} parent=0 // pred_fallthru
    _
  // Predicated region
  $region6: #{_lambda_.11} parent=0 // pred_check
    _
  $region7: #{_lambda_.11} parent=0 // pred_check_branch
    %11 = sbr.rel (0) target = $region9
  $region8: #{_lambda_.11} parent=0 // pred_region
    _
  $region9: #{_lambda_.11} parent=0 // pred_fallthru
    _
  // Predicated region
  $region10: #{_lambda_.11} parent=0 // pred_check
    _
  $region11: #{_lambda_.11} parent=0 // pred_check_branch
    %13 = sbr.rel (0) target = $region13
  $region12: #{_lambda_.11} parent=0 // pred_region
    _
  $region13: #{_lambda_.11} parent=0 // pred_fallthru
    _
  %v14 = vld [vmem:[%s0] sm:$0xff]
  %v15 = vld [vmem:[%s0 + $0x8] sm:$0xff]
  %v16 = vld [vmem:[%s0 + $0x10] sm:$0xff]
  %v17 = vld [vmem:[%s0 + $0x18] sm:$0xff]
  %v18 = vld [vmem:[%s0 + $0x20] sm:$0xff]
  %v19 = vld [vmem:[%s0 + $0x28] sm:$0xff]
  %v20 = vld [vmem:[%s0 + $0x30] sm:$0xff]
  %v21 = vld [vmem:[%s0 + $0x38] sm:$0xff]
  %v22 = vld [vmem:[%s0 + $0x40] sm:$0xff]
  %v23 = vld [vmem:[%s0 + $0x48] sm:$0xff]
  %v24 = vld [vmem:[%s0 + $0x50] sm:$0xff]
  %v25 = vld [vmem:[%s0 + $0x58] sm:$0xff]
  %v26 = vld [vmem:[%s0 + $0x60] sm:$0xff]
  %v27 = vld [vmem:[%s0 + $0x68] sm:$0xff]
  %v28 = vld [vmem:[%s0 + $0x70] sm:$0xff]
  %v29 = vld [vmem:[%s0 + $0x78] sm:$0xff]
  %v30 = vld [vmem:[%s1] sm:$0xf]
  %v31 = vld [vmem:[%s1 + $0x4] sm:$0xf]
  %v32 = vld [vmem:[%s1 + $0x8] sm:$0xf]
  %v33 = vld [vmem:[%s1 + $0xc] sm:$0xf]
  %v34 = vld [vmem:[%s1 + $0x10] sm:$0xf]
  %v35 = vld [vmem:[%s1 + $0x14] sm:$0xf]
  %v36 = vld [vmem:[%s1 + $0x18] sm:$0xf]
  %v37 = vld [vmem:[%s1 + $0x1c] sm:$0xf]
  %v38 = vld [vmem:[%s1 + $0x20] sm:$0xf]
  %v39 = vld [vmem:[%s1 + $0x24] sm:$0xf]
  %v40 = vld [vmem:[%s1 + $0x28] sm:$0xf]
  %v41 = vld [vmem:[%s1 + $0x2c] sm:$0xf]
  %v42 = vld [vmem:[%s1 + $0x30] sm:$0xf]
  %v43 = vld [vmem:[%s1 + $0x34] sm:$0xf]
  %v44 = vld [vmem:[%s1 + $0x38] sm:$0xf]
  %v45 = vld [vmem:[%s1 + $0x3c] sm:$0xf]
  %v46 = vld [vmem:[%s1 + $0x40] sm:$0xf]
  %v47 = vld [vmem:[%s1 + $0x44] sm:$0xf]
  %v48 = vld [vmem:[%s1 + $0x48] sm:$0xf]
  %v49 = vld [vmem:[%s1 + $0x4c] sm:$0xf]
  %v50 = vld [vmem:[%s1 + $0x50] sm:$0xf]
  %v51 = vld [vmem:[%s1 + $0x54] sm:$0xf]
  %v52 = vld [vmem:[%s1 + $0x58] sm:$0xf]
  %v53 = vld [vmem:[%s1 + $0x5c] sm:$0xf]
  %v54 = vld [vmem:[%s1 + $0x60] sm:$0xf]
  %v55 = vld [vmem:[%s1 + $0x64] sm:$0xf]
  %v56 = vld [vmem:[%s1 + $0x68] sm:$0xf]
  %v57 = vld [vmem:[%s1 + $0x6c] sm:$0xf]
  %v58 = vld [vmem:[%s1 + $0x70] sm:$0xf]
  %v59 = vld [vmem:[%s1 + $0x74] sm:$0xf]
  %v60 = vld [vmem:[%s1 + $0x78] sm:$0xf]
  %v61 = vld [vmem:[%s1 + $0x7c] sm:$0xf]
  %v62 = vld [vmem:[%s2] sm:$0x1]
  %v64 = vperm.slane %v62, 0
  %v82 = vunpack.c.l.b16 %v14
  %v83 = vunpack.c.h.b16 %v14
  %v84 = vunpack.c.l.b16 %v15
  %v85 = vunpack.c.h.b16 %v15
  %v86 = vunpack.c.l.b16 %v16
  %v87 = vunpack.c.h.b16 %v16
  %v88 = vunpack.c.l.b16 %v17
  %v89 = vunpack.c.h.b16 %v17
  %v90 = vunpack.c.l.b16 %v18
  %v91 = vunpack.c.h.b16 %v18
  %v92 = vunpack.c.l.b16 %v19
  %v93 = vunpack.c.h.b16 %v19
  %v94 = vunpack.c.l.b16 %v20
  %v95 = vunpack.c.h.b16 %v20
  %v96 = vunpack.c.l.b16 %v21
  %v97 = vunpack.c.h.b16 %v21
  %v98 = vunpack.c.l.b16 %v22
  %v99 = vunpack.c.h.b16 %v22
  %v100 = vunpack.c.l.b16 %v23
  %v101 = vunpack.c.h.b16 %v23
  %v102 = vunpack.c.l.b16 %v24
  %v103 = vunpack.c.h.b16 %v24
  %v104 = vunpack.c.l.b16 %v25
  %v105 = vunpack.c.h.b16 %v25
  %v106 = vunpack.c.l.b16 %v26
  %v107 = vunpack.c.h.b16 %v26
  %v108 = vunpack.c.l.b16 %v27
  %v109 = vunpack.c.h.b16 %v27
  %v110 = vunpack.c.l.b16 %v28
  %v111 = vunpack.c.h.b16 %v28
  %v112 = vunpack.c.l.b16 %v29
  %v113 = vunpack.c.h.b16 %v29
  %v114 = vpack.c.b16 %v84, %v82
  %v115 = vpack.c.b16 %v85, %v83
  %v116 = vpack.c.b16 %v88, %v86
  %v117 = vpack.c.b16 %v89, %v87
  %v118 = vpack.c.b16 %v92, %v90
  %v119 = vpack.c.b16 %v93, %v91
  %v120 = vpack.c.b16 %v96, %v94
  %v121 = vpack.c.b16 %v97, %v95
  %v122 = vpack.c.b16 %v100, %v98
  %v123 = vpack.c.b16 %v101, %v99
  %v124 = vpack.c.b16 %v104, %v102
  %v125 = vpack.c.b16 %v105, %v103
  %v126 = vpack.c.b16 %v108, %v106
  %v127 = vpack.c.b16 %v109, %v107
  %v128 = vpack.c.b16 %v112, %v110
  %v129 = vpack.c.b16 %v113, %v111
  %v178 = vunpack.c.l.b16 %v30
  %v179 = vunpack.c.l.b16 %v31
  %v180 = vunpack.c.l.b16 %v32
  %v181 = vunpack.c.l.b16 %v33
  %v182 = vunpack.c.l.b16 %v34
  %v183 = vunpack.c.l.b16 %v35
  %v184 = vunpack.c.l.b16 %v36
  %v185 = vunpack.c.l.b16 %v37
  %v186 = vunpack.c.l.b16 %v38
  %v187 = vunpack.c.l.b16 %v39
  %v188 = vunpack.c.l.b16 %v40
  %v189 = vunpack.c.l.b16 %v41
  %v190 = vunpack.c.l.b16 %v42
  %v191 = vunpack.c.l.b16 %v43
  %v192 = vunpack.c.l.b16 %v44
  %v193 = vunpack.c.l.b16 %v45
  %v194 = vunpack.c.l.b16 %v46
  %v195 = vunpack.c.l.b16 %v47
  %v196 = vunpack.c.l.b16 %v48
  %v197 = vunpack.c.l.b16 %v49
  %v198 = vunpack.c.l.b16 %v50
  %v199 = vunpack.c.l.b16 %v51
  %v200 = vunpack.c.l.b16 %v52
  %v201 = vunpack.c.l.b16 %v53
  %v202 = vunpack.c.l.b16 %v54
  %v203 = vunpack.c.l.b16 %v55
  %v204 = vunpack.c.l.b16 %v56
  %v205 = vunpack.c.l.b16 %v57
  %v206 = vunpack.c.l.b16 %v58
  %v207 = vunpack.c.l.b16 %v59
  %v208 = vunpack.c.l.b16 %v60
  %v209 = vunpack.c.l.b16 %v61
  %v210 = vpack.c.b16 %v179, %v178
  %v211 = vpack.c.b16 %v181, %v180
  %v212 = vpack.c.b16 %v183, %v182
  %v213 = vpack.c.b16 %v185, %v184
  %v214 = vpack.c.b16 %v187, %v186
  %v215 = vpack.c.b16 %v189, %v188
  %v216 = vpack.c.b16 %v191, %v190
  %v217 = vpack.c.b16 %v193, %v192
  %v218 = vpack.c.b16 %v195, %v194
  %v219 = vpack.c.b16 %v197, %v196
  %v220 = vpack.c.b16 %v199, %v198
  %v221 = vpack.c.b16 %v201, %v200
  %v222 = vpack.c.b16 %v203, %v202
  %v223 = vpack.c.b16 %v205, %v204
  %v224 = vpack.c.b16 %v207, %v206
  %v225 = vpack.c.b16 %v209, %v208
  %242 = vmatpush.bf16.msra.mxu0 %v217
  %243 = vmatpush.bf16.msra.mxu0 %v216
  %244 = vmatpush.bf16.msra.mxu0 %v215
  %245 = vmatpush.bf16.msra.mxu0 %v214
  %246 = vmatpush.bf16.msra.mxu0 %v213
  %247 = vmatpush.bf16.msra.mxu0 %v212
  %248 = vmatpush.bf16.msra.mxu0 %v211
  %249 = vmatpush.bf16.msra.mxu0 %v210
  %250 = vmatmul.bf16.gmra.mxu0 %v114
  %v251 = vpop.f32.mrf.mxu0
  %v252 = vadd.f32 %v64, %v251
  %v253 = vpop.f32.mrf.mxu0
  %v254 = vadd.f32 %v64, %v253
  %255 = vmatmul.bf16.gmra.mxu0 %v116
  %v256 = vpop.f32.mrf.mxu0
  %v257 = vadd.f32 %v64, %v256
  %v258 = vpop.f32.mrf.mxu0
  %v259 = vadd.f32 %v64, %v258
  %260 = vmatmul.bf16.gmra.mxu0 %v118
  %v261 = vpop.f32.mrf.mxu0
  %v262 = vadd.f32 %v64, %v261
  %v263 = vpop.f32.mrf.mxu0
  %v264 = vadd.f32 %v64, %v263
  %265 = vmatmul.bf16.gmra.mxu0 %v120
  %v266 = vpop.f32.mrf.mxu0
  %v267 = vadd.f32 %v64, %v266
  %v268 = vpop.f32.mrf.mxu0
  %v269 = vadd.f32 %v64, %v268
  %270 = vmatmul.bf16.gmra.mxu0 %v122
  %v271 = vpop.f32.mrf.mxu0
  %v272 = vadd.f32 %v64, %v271
  %v273 = vpop.f32.mrf.mxu0
  %v274 = vadd.f32 %v64, %v273
  %275 = vmatmul.bf16.gmra.mxu0 %v124
  %v276 = vpop.f32.mrf.mxu0
  %v277 = vadd.f32 %v64, %v276
  %v278 = vpop.f32.mrf.mxu0
  %v279 = vadd.f32 %v64, %v278
  %280 = vmatmul.bf16.gmra.mxu0 %v126
  %v281 = vpop.f32.mrf.mxu0
  %v282 = vadd.f32 %v64, %v281
  %v283 = vpop.f32.mrf.mxu0
  %v284 = vadd.f32 %v64, %v283
  %285 = vmatmul.bf16.gmra.mxu0 %v128
  %v286 = vpop.f32.mrf.mxu0
  %v287 = vadd.f32 %v64, %v286
  %v288 = vpop.f32.mrf.mxu0
  %v289 = vadd.f32 %v64, %v288
  %290 = vdwg.mxu0
  %291 = vmatpush.bf16.msra.mxu0 %v225
  %292 = vmatpush.bf16.msra.mxu0 %v224
  %293 = vmatpush.bf16.msra.mxu0 %v223
  %294 = vmatpush.bf16.msra.mxu0 %v222
  %295 = vmatpush.bf16.msra.mxu0 %v221
  %296 = vmatpush.bf16.msra.mxu0 %v220
  %297 = vmatpush.bf16.msra.mxu0 %v219
  %298 = vmatpush.bf16.msra.mxu0 %v218
  %299 = vmatmul.bf16.gmra.mxu0 %v115
  %v300 = vpop.f32.mrf.mxu0
  %v301 = vadd.f32 %v252, %v300
  %v302 = vpop.f32.mrf.mxu0
  %v303 = vadd.f32 %v254, %v302
  %304 = vmatmul.bf16.gmra.mxu0 %v117
  %v305 = vpop.f32.mrf.mxu0
  %v306 = vadd.f32 %v257, %v305
  %v307 = vpop.f32.mrf.mxu0
  %v308 = vadd.f32 %v259, %v307
  %309 = vmatmul.bf16.gmra.mxu0 %v119
  %v310 = vpop.f32.mrf.mxu0
  %v311 = vadd.f32 %v262, %v310
  %v312 = vpop.f32.mrf.mxu0
  %v313 = vadd.f32 %v264, %v312
  %314 = vmatmul.bf16.gmra.mxu0 %v121
  %v315 = vpop.f32.mrf.mxu0
  %v316 = vadd.f32 %v267, %v315
  %v317 = vpop.f32.mrf.mxu0
  %v318 = vadd.f32 %v269, %v317
  %319 = vmatmul.bf16.gmra.mxu0 %v123
  %v320 = vpop.f32.mrf.mxu0
  %v321 = vadd.f32 %v272, %v320
  %v322 = vpop.f32.mrf.mxu0
  %v323 = vadd.f32 %v274, %v322
  %324 = vmatmul.bf16.gmra.mxu0 %v125
  %v325 = vpop.f32.mrf.mxu0
  %v326 = vadd.f32 %v277, %v325
  %v327 = vpop.f32.mrf.mxu0
  %v328 = vadd.f32 %v279, %v327
  %329 = vmatmul.bf16.gmra.mxu0 %v127
  %v330 = vpop.f32.mrf.mxu0
  %v331 = vadd.f32 %v282, %v330
  %v332 = vpop.f32.mrf.mxu0
  %v333 = vadd.f32 %v284, %v332
  %334 = vmatmul.bf16.gmra.mxu0 %v129
  %v335 = vpop.f32.mrf.mxu0
  %v336 = vadd.f32 %v287, %v335
  %v337 = vpop.f32.mrf.mxu0
  %v338 = vadd.f32 %v289, %v337
  %339 = vdwg.mxu0
  %v340 = vpack.c.bf16 %v301, %v301
  %v341 = vpack.c.bf16 %v303, %v303
  %v342 = vpack.c.bf16 %v306, %v306
  %v343 = vpack.c.bf16 %v308, %v308
  %v344 = vpack.c.bf16 %v311, %v311
  %v345 = vpack.c.bf16 %v313, %v313
  %v346 = vpack.c.bf16 %v316, %v316
  %v347 = vpack.c.bf16 %v318, %v318
  %v348 = vpack.c.bf16 %v321, %v321
  %v349 = vpack.c.bf16 %v323, %v323
  %v350 = vpack.c.bf16 %v326, %v326
  %v351 = vpack.c.bf16 %v328, %v328
  %v352 = vpack.c.bf16 %v331, %v331
  %v353 = vpack.c.bf16 %v333, %v333
  %v354 = vpack.c.bf16 %v336, %v336
  %v355 = vpack.c.bf16 %v338, %v338
  %356 = vst [vmem:[%s3] sm:$0xf] %v340
  %357 = vst [vmem:[%s3 + $0x4] sm:$0xf] %v341
  %358 = vst [vmem:[%s3 + $0x8] sm:$0xf] %v342
  %359 = vst [vmem:[%s3 + $0xc] sm:$0xf] %v343
  %360 = vst [vmem:[%s3 + $0x10] sm:$0xf] %v344
  %361 = vst [vmem:[%s3 + $0x14] sm:$0xf] %v345
  %362 = vst [vmem:[%s3 + $0x18] sm:$0xf] %v346
  %363 = vst [vmem:[%s3 + $0x1c] sm:$0xf] %v347
  %364 = vst [vmem:[%s3 + $0x20] sm:$0xf] %v348
  %365 = vst [vmem:[%s3 + $0x24] sm:$0xf] %v349
  %366 = vst [vmem:[%s3 + $0x28] sm:$0xf] %v350
  %367 = vst [vmem:[%s3 + $0x2c] sm:$0xf] %v351
  %368 = vst [vmem:[%s3 + $0x30] sm:$0xf] %v352
  %369 = vst [vmem:[%s3 + $0x34] sm:$0xf] %v353
  %370 = vst [vmem:[%s3 + $0x38] sm:$0xf] %v354
  %371 = vst [vmem:[%s3 + $0x3c] sm:$0xf] %v355
  %s372 = scalar_lea.vmem %s1, 128
  %v373 = vld [vmem:[%s372] sm:$0xf]
  %v374 = vld [vmem:[%s372 + $0x4] sm:$0xf]
  %v375 = vld [vmem:[%s372 + $0x8] sm:$0xf]
  %v376 = vld [vmem:[%s372 + $0xc] sm:$0xf]
  %v377 = vld [vmem:[%s372 + $0x10] sm:$0xf]
  %v378 = vld [vmem:[%s372 + $0x14] sm:$0xf]
  %v379 = vld [vmem:[%s372 + $0x18] sm:$0xf]
  %v380 = vld [vmem:[%s372 + $0x1c] sm:$0xf]
  %v381 = vld [vmem:[%s372 + $0x20] sm:$0xf]
  %v382 = vld [vmem:[%s372 + $0x24] sm:$0xf]
  %v383 = vld [vmem:[%s372 + $0x28] sm:$0xf]
  %v384 = vld [vmem:[%s372 + $0x2c] sm:$0xf]
  %v385 = vld [vmem:[%s372 + $0x30] sm:$0xf]
  %v386 = vld [vmem:[%s372 + $0x34] sm:$0xf]
  %v387 = vld [vmem:[%s372 + $0x38] sm:$0xf]
  %v388 = vld [vmem:[%s372 + $0x3c] sm:$0xf]
  %v389 = vld [vmem:[%s372 + $0x40] sm:$0xf]
  %v390 = vld [vmem:[%s372 + $0x44] sm:$0xf]
  %v391 = vld [vmem:[%s372 + $0x48] sm:$0xf]
  %v392 = vld [vmem:[%s372 + $0x4c] sm:$0xf]
  %v393 = vld [vmem:[%s372 + $0x50] sm:$0xf]
  %v394 = vld [vmem:[%s372 + $0x54] sm:$0xf]
  %v395 = vld [vmem:[%s372 + $0x58] sm:$0xf]
  %v396 = vld [vmem:[%s372 + $0x5c] sm:$0xf]
  %v397 = vld [vmem:[%s372 + $0x60] sm:$0xf]
  %v398 = vld [vmem:[%s372 + $0x64] sm:$0xf]
  %v399 = vld [vmem:[%s372 + $0x68] sm:$0xf]
  %v400 = vld [vmem:[%s372 + $0x6c] sm:$0xf]
  %v401 = vld [vmem:[%s372 + $0x70] sm:$0xf]
  %v402 = vld [vmem:[%s372 + $0x74] sm:$0xf]
  %v403 = vld [vmem:[%s372 + $0x78] sm:$0xf]
  %v404 = vld [vmem:[%s372 + $0x7c] sm:$0xf]
  %s405 = scalar_lea.vmem %s2, 1
  %v406 = vld [vmem:[%s405] sm:$0x1]
  %v408 = vperm.slane %v406, 0
  %v442 = vunpack.c.l.b16 %v373
  %v443 = vunpack.c.l.b16 %v374
  %v444 = vunpack.c.l.b16 %v375
  %v445 = vunpack.c.l.b16 %v376
  %v446 = vunpack.c.l.b16 %v377
  %v447 = vunpack.c.l.b16 %v378
  %v448 = vunpack.c.l.b16 %v379
  %v449 = vunpack.c.l.b16 %v380
  %v450 = vunpack.c.l.b16 %v381
  %v451 = vunpack.c.l.b16 %v382
  %v452 = vunpack.c.l.b16 %v383
  %v453 = vunpack.c.l.b16 %v384
  %v454 = vunpack.c.l.b16 %v385
  %v455 = vunpack.c.l.b16 %v386
  %v456 = vunpack.c.l.b16 %v387
  %v457 = vunpack.c.l.b16 %v388
  %v458 = vunpack.c.l.b16 %v389
  %v459 = vunpack.c.l.b16 %v390
  %v460 = vunpack.c.l.b16 %v391
  %v461 = vunpack.c.l.b16 %v392
  %v462 = vunpack.c.l.b16 %v393
  %v463 = vunpack.c.l.b16 %v394
  %v464 = vunpack.c.l.b16 %v395
  %v465 = vunpack.c.l.b16 %v396
  %v466 = vunpack.c.l.b16 %v397
  %v467 = vunpack.c.l.b16 %v398
  %v468 = vunpack.c.l.b16 %v399
  %v469 = vunpack.c.l.b16 %v400
  %v470 = vunpack.c.l.b16 %v401
  %v471 = vunpack.c.l.b16 %v402
  %v472 = vunpack.c.l.b16 %v403
  %v473 = vunpack.c.l.b16 %v404
  %v474 = vpack.c.b16 %v443, %v442
  %v475 = vpack.c.b16 %v445, %v444
  %v476 = vpack.c.b16 %v447, %v446
  %v477 = vpack.c.b16 %v449, %v448
  %v478 = vpack.c.b16 %v451, %v450
  %v479 = vpack.c.b16 %v453, %v452
  %v480 = vpack.c.b16 %v455, %v454
  %v481 = vpack.c.b16 %v457, %v456
  %v482 = vpack.c.b16 %v459, %v458
  %v483 = vpack.c.b16 %v461, %v460
  %v484 = vpack.c.b16 %v463, %v462
  %v485 = vpack.c.b16 %v465, %v464
  %v486 = vpack.c.b16 %v467, %v466
  %v487 = vpack.c.b16 %v469, %v468
  %v488 = vpack.c.b16 %v471, %v470
  %v489 = vpack.c.b16 %v473, %v472
  %506 = vmatpush.bf16.msra.mxu0 %v481
  %507 = vmatpush.bf16.msra.mxu0 %v480
  %508 = vmatpush.bf16.msra.mxu0 %v479
  %509 = vmatpush.bf16.msra.mxu0 %v478
  %510 = vmatpush.bf16.msra.mxu0 %v477
  %511 = vmatpush.bf16.msra.mxu0 %v476
  %512 = vmatpush.bf16.msra.mxu0 %v475
  %513 = vmatpush.bf16.msra.mxu0 %v474
  %514 = vmatmul.bf16.gmra.mxu0 %v114
  %v515 = vpop.f32.mrf.mxu0
  %v516 = vadd.f32 %v408, %v515
  %v517 = vpop.f32.mrf.mxu0
  %v518 = vadd.f32 %v408, %v517
  %519 = vmatmul.bf16.gmra.mxu0 %v116
  %v520 = vpop.f32.mrf.mxu0
  %v521 = vadd.f32 %v408, %v520
  %v522 = vpop.f32.mrf.mxu0
  %v523 = vadd.f32 %v408, %v522
  %524 = vmatmul.bf16.gmra.mxu0 %v118
  %v525 = vpop.f32.mrf.mxu0
  %v526 = vadd.f32 %v408, %v525
  %v527 = vpop.f32.mrf.mxu0
  %v528 = vadd.f32 %v408, %v527
  %529 = vmatmul.bf16.gmra.mxu0 %v120
  %v530 = vpop.f32.mrf.mxu0
  %v531 = vadd.f32 %v408, %v530
  %v532 = vpop.f32.mrf.mxu0
  %v533 = vadd.f32 %v408, %v532
  %534 = vmatmul.bf16.gmra.mxu0 %v122
  %v535 = vpop.f32.mrf.mxu0
  %v536 = vadd.f32 %v408, %v535
  %v537 = vpop.f32.mrf.mxu0
  %v538 = vadd.f32 %v408, %v537
  %539 = vmatmul.bf16.gmra.mxu0 %v124
  %v540 = vpop.f32.mrf.mxu0
  %v541 = vadd.f32 %v408, %v540
  %v542 = vpop.f32.mrf.mxu0
  %v543 = vadd.f32 %v408, %v542
  %544 = vmatmul.bf16.gmra.mxu0 %v126
  %v545 = vpop.f32.mrf.mxu0
  %v546 = vadd.f32 %v408, %v545
  %v547 = vpop.f32.mrf.mxu0
  %v548 = vadd.f32 %v408, %v547
  %549 = vmatmul.bf16.gmra.mxu0 %v128
  %v550 = vpop.f32.mrf.mxu0
  %v551 = vadd.f32 %v408, %v550
  %v552 = vpop.f32.mrf.mxu0
  %v553 = vadd.f32 %v408, %v552
  %554 = vdwg.mxu0
  %555 = vmatpush.bf16.msra.mxu0 %v489
  %556 = vmatpush.bf16.msra.mxu0 %v488
  %557 = vmatpush.bf16.msra.mxu0 %v487
  %558 = vmatpush.bf16.msra.mxu0 %v486
  %559 = vmatpush.bf16.msra.mxu0 %v485
  %560 = vmatpush.bf16.msra.mxu0 %v484
  %561 = vmatpush.bf16.msra.mxu0 %v483
  %562 = vmatpush.bf16.msra.mxu0 %v482
  %563 = vmatmul.bf16.gmra.mxu0 %v115
  %v564 = vpop.f32.mrf.mxu0
  %v565 = vadd.f32 %v516, %v564
  %v566 = vpop.f32.mrf.mxu0
  %v567 = vadd.f32 %v518, %v566
  %568 = vmatmul.bf16.gmra.mxu0 %v117
  %v569 = vpop.f32.mrf.mxu0
  %v570 = vadd.f32 %v521, %v569
  %v571 = vpop.f32.mrf.mxu0
  %v572 = vadd.f32 %v523, %v571
  %573 = vmatmul.bf16.gmra.mxu0 %v119
  %v574 = vpop.f32.mrf.mxu0
  %v575 = vadd.f32 %v526, %v574
  %v576 = vpop.f32.mrf.mxu0
  %v577 = vadd.f32 %v528, %v576
  %578 = vmatmul.bf16.gmra.mxu0 %v121
  %v579 = vpop.f32.mrf.mxu0
  %v580 = vadd.f32 %v531, %v579
  %v581 = vpop.f32.mrf.mxu0
  %v582 = vadd.f32 %v533, %v581
  %583 = vmatmul.bf16.gmra.mxu0 %v123
  %v584 = vpop.f32.mrf.mxu0
  %v585 = vadd.f32 %v536, %v584
  %v586 = vpop.f32.mrf.mxu0
  %v587 = vadd.f32 %v538, %v586
  %588 = vmatmul.bf16.gmra.mxu0 %v125
  %v589 = vpop.f32.mrf.mxu0
  %v590 = vadd.f32 %v541, %v589
  %v591 = vpop.f32.mrf.mxu0
  %v592 = vadd.f32 %v543, %v591
  %593 = vmatmul.bf16.gmra.mxu0 %v127
  %v594 = vpop.f32.mrf.mxu0
  %v595 = vadd.f32 %v546, %v594
  %v596 = vpop.f32.mrf.mxu0
  %v597 = vadd.f32 %v548, %v596
  %598 = vmatmul.bf16.gmra.mxu0 %v129
  %v599 = vpop.f32.mrf.mxu0
  %v600 = vadd.f32 %v551, %v599
  %v601 = vpop.f32.mrf.mxu0
  %v602 = vadd.f32 %v553, %v601
  %603 = vdwg.mxu0
  %v604 = vpack.c.bf16 %v565, %v565
  %v605 = vpack.c.bf16 %v567, %v567
  %v606 = vpack.c.bf16 %v570, %v570
  %v607 = vpack.c.bf16 %v572, %v572
  %v608 = vpack.c.bf16 %v575, %v575
  %v609 = vpack.c.bf16 %v577, %v577
  %v610 = vpack.c.bf16 %v580, %v580
  %v611 = vpack.c.bf16 %v582, %v582
  %v612 = vpack.c.bf16 %v585, %v585
  %v613 = vpack.c.bf16 %v587, %v587
  %v614 = vpack.c.bf16 %v590, %v590
  %v615 = vpack.c.bf16 %v592, %v592
  %v616 = vpack.c.bf16 %v595, %v595
  %v617 = vpack.c.bf16 %v597, %v597
  %v618 = vpack.c.bf16 %v600, %v600
  %v619 = vpack.c.bf16 %v602, %v602
  %s620 = scalar_lea.vmem %s3, 64
  %621 = vst [vmem:[%s620] sm:$0xf] %v604
  %622 = vst [vmem:[%s620 + $0x4] sm:$0xf] %v605
  %623 = vst [vmem:[%s620 + $0x8] sm:$0xf] %v606
  %624 = vst [vmem:[%s620 + $0xc] sm:$0xf] %v607
  %625 = vst [vmem:[%s620 + $0x10] sm:$0xf] %v608
  %626 = vst [vmem:[%s620 + $0x14] sm:$0xf] %v609
  %627 = vst [vmem:[%s620 + $0x18] sm:$0xf] %v610
  %628 = vst [vmem:[%s620 + $0x1c] sm:$0xf] %v611
  %629 = vst [vmem:[%s620 + $0x20] sm:$0xf] %v612
  %630 = vst [vmem:[%s620 + $0x24] sm:$0xf] %v613
  %631 = vst [vmem:[%s620 + $0x28] sm:$0xf] %v614
  %632 = vst [vmem:[%s620 + $0x2c] sm:$0xf] %v615
  %633 = vst [vmem:[%s620 + $0x30] sm:$0xf] %v616
  %634 = vst [vmem:[%s620 + $0x34] sm:$0xf] %v617
  %635 = vst [vmem:[%s620 + $0x38] sm:$0xf] %v618
  %636 = vst [vmem:[%s620 + $0x3c] sm:$0xf] %v619
  // Predicated region
  $region14: #{_lambda_.11} parent=0 // pred_check
    _
  $region15: #{_lambda_.11} parent=0 // pred_check_branch
    %638 = sbr.rel (0) target = $region17
  $region16: #{_lambda_.11} parent=0 // pred_region
    _
  $region17: #{_lambda_.11} parent=0 // pred_fallthru
    _
  // Predicated region
  $region18: #{_lambda_.11} parent=0 // pred_check
    _
  $region19: #{_lambda_.11} parent=0 // pred_check_branch
    %640 = sbr.rel (0) target = $region21
  $region20: #{_lambda_.11} parent=0 // pred_region
    _
  $region21: #{_lambda_.11} parent=0 // pred_fallthru
    _

// kernel: _lambda_.10
$region0: #{_lambda_.10}
  #allocation0 [shape = 'u32[]', space=smem, size = 0x4, offset = 0x4, fixed_abs, tag = 'smem constant byte address 0x4 - core index']
  #allocation1 [shape = 'u32[72,128]{1,0:T(1,128)}', space=vmem, size = 0x9000, scoped, tag = 'internal scratch']
  #allocation2 [shape = 's32[1]{0}', space=sflag, size = 0x4, scoped, tag = 'scoped memory for _lambda_.10']
  #allocation3 [shape = 'u8[1024]{0}', space=smem, size = 0x400, scoped, tag = 'prefetched SMEM operand 0']
  %s0 = inlined_call_operand.vmem [shape: f32[2,3], index: 0, kind: input, shape index: {}]
  %s1 = inlined_call_operand.vmem [shape: f32[2,1,128], index: 1, kind: input, shape index: {}]
  %s2 = inlined_call_operand.vmem [shape: f32[2,128,1], index: 2, kind: input, shape index: {}]
  %s3 = inlined_call_operand.vmem [shape: s8[128,128], index: 3, kind: input, shape index: {}]
  %s4 = inlined_call_operand.vmem [shape: bf16[2,128,128], index: 4, kind: input, shape index: {}]
  %s5 = inlined_call_operand.vmem [shape: f32[2,1,128], index: 5, kind: input, shape index: {}]
  %s6 = inlined_call_operand.vmem [shape: bf16[2,128,128], index: 6, kind: output, shape index: {0}]
  %s7 = inlined_call_operand.vmem [shape: bf16[128,256], index: 7, kind: output, shape index: {1}]
  %8 = xla_tuple %s6, %s7
  %s9 = sld [smem:[#allocation0]]
  $region98: #{_lambda_.10} parent=0
    _
  %s11 = ssub.s32 1, %s9
  %s12 = scalar_select 0, %s11, %s9
  %s14 = sshll.u32 %s0, 4
  %s15 = int_to_ptr.vmem [resolvable:$true] %s14
  %17 = dma.vmem_to_smem %s15, 32, [#allocation3], [#allocation2]
  %19 = dma.done [#allocation2], 32
  %20 = sfence
  $region1: #{_lambda_.10} parent=0
    #allocation4 [shape = 'u8[65536]{0}', space=vmem, size = 0x10000, scoped, tag = 'output window, operand 1']
    loop: start=0, step=1, limit=4
    $region2: #{_lambda_.10} parent=1 // loop_pre_header
      _
    $region3: #{_lambda_.10} parent=1 // loop_header
      %s22 = sphi 0, %s26
      %p23 = scmp.ge.s32.totalorder %s22, 4
      %s29 = sphi 0, %s41
      %s30 = sphi 0, %s37
      %s31 = sphi 0, %s29
      %s32 = sphi 0, %s30
      %s33 = sphi 0, %s31
      %s34 = sphi 0, %s32
      %s42 = sphi 0, %s42
      %s44 = sphi 0, %s42
      %s45 = sphi 0, %s44
      %s59 = sphi 0, %s45
      %s65 = sphi 0, %s67
      %s68 = sphi 0, %s65
      %s69 = sphi 0, %s68
      %s85 = sphi 0, %s69
      %s91 = sphi 0, %s93
      %s94 = sphi 0, %s91
      %s95 = sphi 0, %s94
      %s111 = sphi 0, %s95
      %s115 = sphi 0, %s115
      %s117 = sphi 0, %s115
      %s118 = sphi 0, %s117
      %s132 = sphi 0, %s118
      %s136 = sphi 0, %s136
      %s138 = sphi 0, %s136
      %s139 = sphi 0, %s138
      %s153 = sphi 0, %s139
      %s161 = sphi 0, %s163
      %s164 = sphi 0, %s161
      %s165 = sphi 0, %s164
      %s181 = sphi 0, %s165
      %s189 = sphi 0, %s191
      %s192 = sphi 0, %s189
      %s193 = sphi 0, %s192
      %s209 = sphi 0, %s193
    $region4: #{_lambda_.10} parent=1 // loop_header_branch
      %25 = sbr.rel (%p23) target = $region8
    $region5: #{_lambda_.10} parent=1 // loop_body
      %s27 = ssub.s32 %s22, 1
      %s28 = ssub.s32 %s22, 2
      %s35 = sadd.s32 1, %s30
      %p36 = scmp.ge.s32.totalorder %s35, 2
      %s37 = scalar_select %p36, 0, %s35
      %s38 = sadd.s32 1, %s29
      %s39 = scalar_select %p36, %s38, %s29
      %p40 = scmp.ge.s32.totalorder %s39, 1
      %s41 = scalar_select %p40, 0, %s39
      %s43 = sadd.s32 %s42, 1
      %p46 = scmp.eq.s32.totalorder %s22, 1
      %p47 = scmp.ne.s32.totalorder %s42, %s44
      %p48 = scmp.eq.s32.totalorder %s22, 0
      %p49 = por %p47, %p48
      %p50 = scmp.ne.s32.totalorder %s42, %s44
      %p51 = scmp.eq.s32.totalorder %s27, 1
      %p52 = por %p50, %p51
      %p53 = scmp.ne.s32.totalorder %s44, %s45
      %p54 = scmp.eq.s32.totalorder %s27, 0
      %p55 = por %p53, %p54
      %p56 = scmp.ne.s32.totalorder %s44, %s45
      %p57 = scmp.eq.s32.totalorder %s28, 1
      %p58 = por %p56, %p57
      %p60 = scmp.ne.s32.totalorder %s45, %s59
      %p61 = scmp.eq.s32.totalorder %s28, 0
      %p62 = por %p60, %p61
      %s63 = ssub.s32 %s29, %s41
      %p64 = scmp.eq.s32.totalorder %s63, 0
      %s66 = sadd.s32 %s65, 1
      %s67 = scalar_select %p64, %s65, %s66
      %p70 = pneg %p64
      %p71 = scmp.eq.s32.totalorder %s22, 1
      %p72 = por %p70, %p71
      %p73 = scmp.ne.s32.totalorder %s65, %s68
      %p74 = scmp.eq.s32.totalorder %s22, 0
      %p75 = por %p73, %p74
      %p76 = scmp.ne.s32.totalorder %s65, %s68
      %p77 = scmp.eq.s32.totalorder %s27, 1
      %p78 = por %p76, %p77
      %p79 = scmp.ne.s32.totalorder %s68, %s69
      %p80 = scmp.eq.s32.totalorder %s27, 0
      %p81 = por %p79, %p80
      %p82 = scmp.ne.s32.totalorder %s68, %s69
      %p83 = scmp.eq.s32.totalorder %s28, 1
      %p84 = por %p82, %p83
      %p86 = scmp.ne.s32.totalorder %s69, %s85
      %p87 = scmp.eq.s32.totalorder %s28, 0
      %p88 = por %p86, %p87
      %s89 = ssub.s32 %s29, %s41
      %p90 = scmp.eq.s32.totalorder %s89, 0
      %s92 = sadd.s32 %s91, 1
      %s93 = scalar_select %p90, %s91, %s92
      %p96 = pneg %p90
      %p97 = scmp.eq.s32.totalorder %s22, 1
      %p98 = por %p96, %p97
      %p99 = scmp.ne.s32.totalorder %s91, %s94
      %p100 = scmp.eq.s32.totalorder %s22, 0
      %p101 = por %p99, %p100
      %p102 = scmp.ne.s32.totalorder %s91, %s94
      %p103 = scmp.eq.s32.totalorder %s27, 1
      %p104 = por %p102, %p103
      %p105 = scmp.ne.s32.totalorder %s94, %s95
      %p106 = scmp.eq.s32.totalorder %s27, 0
      %p107 = por %p105, %p106
      %p108 = scmp.ne.s32.totalorder %s94, %s95
      %p109 = scmp.eq.s32.totalorder %s28, 1
      %p110 = por %p108, %p109
      %p112 = scmp.ne.s32.totalorder %s95, %s111
      %p113 = scmp.eq.s32.totalorder %s28, 0
      %p114 = por %p112, %p113
      %s116 = sadd.s32 %s115, 1
      %p119 = scmp.eq.s32.totalorder %s22, 1
      %p120 = scmp.ne.s32.totalorder %s115, %s117
      %p121 = scmp.eq.s32.totalorder %s22, 0
      %p122 = por %p120, %p121
      %p123 = scmp.ne.s32.totalorder %s115, %s117
      %p124 = scmp.eq.s32.totalorder %s27, 1
      %p125 = por %p123, %p124
      %p126 = scmp.ne.s32.totalorder %s117, %s118
      %p127 = scmp.eq.s32.totalorder %s27, 0
      %p128 = por %p126, %p127
      %p129 = scmp.ne.s32.totalorder %s117, %s118
      %p130 = scmp.eq.s32.totalorder %s28, 1
      %p131 = por %p129, %p130
      %p133 = scmp.ne.s32.totalorder %s118, %s132
      %p134 = scmp.eq.s32.totalorder %s28, 0
      %p135 = por %p133, %p134
      %s137 = sadd.s32 %s136, 1
      %p140 = scmp.eq.s32.totalorder %s22, 1
      %p141 = scmp.ne.s32.totalorder %s136, %s138
      %p142 = scmp.eq.s32.totalorder %s22, 0
      %p143 = por %p141, %p142
      %p144 = scmp.ne.s32.totalorder %s136, %s138
      %p145 = scmp.eq.s32.totalorder %s27, 1
      %p146 = por %p144, %p145
      %p147 = scmp.ne.s32.totalorder %s138, %s139
      %p148 = scmp.eq.s32.totalorder %s27, 0
      %p149 = por %p147, %p148
      %p150 = scmp.ne.s32.totalorder %s138, %s139
      %p151 = scmp.eq.s32.totalorder %s28, 1
      %p152 = por %p150, %p151
      %p154 = scmp.ne.s32.totalorder %s139, %s153
      %p155 = scmp.eq.s32.totalorder %s28, 0
      %p156 = por %p154, %p155
      %s157 = ssub.s32 %s30, %s37
      %s158 = ssub.s32 %s29, %s41
      %s159 = sor.u32 %s157, %s158
      %p160 = scmp.eq.s32.totalorder %s159, 0
      %s162 = sadd.s32 %s161, 1
      %s163 = scalar_select %p160, %s161, %s162
      %p166 = pneg %p160
      %p167 = scmp.eq.s32.totalorder %s22, 1
      %p168 = por %p166, %p167
      %p169 = scmp.ne.s32.totalorder %s161, %s164
      %p170 = scmp.eq.s32.totalorder %s22, 0
      %p171 = por %p169, %p170
      %p172 = scmp.ne.s32.totalorder %s161, %s164
      %p173 = scmp.eq.s32.totalorder %s27, 1
      %p174 = por %p172, %p173
      %p175 = scmp.ne.s32.totalorder %s164, %s165
      %p176 = scmp.eq.s32.totalorder %s27, 0
      %p177 = por %p175, %p176
      %p178 = scmp.ne.s32.totalorder %s164, %s165
      %p179 = scmp.eq.s32.totalorder %s28, 1
      %p180 = por %p178, %p179
      %p182 = scmp.ne.s32.totalorder %s165, %s181
      %p183 = scmp.eq.s32.totalorder %s28, 0
      %p184 = por %p182, %p183
      %s185 = ssub.s32 %s29, %s41
      %s186 = ssub.s32 %s30, %s37
      %s187 = sor.u32 %s185, %s186
      %p188 = scmp.eq.s32.totalorder %s187, 0
      %s190 = sadd.s32 %s189, 1
      %s191 = scalar_select %p188, %s189, %s190
      %p194 = pneg %p188
      %p195 = scmp.eq.s32.totalorder %s22, 1
      %p196 = por %p194, %p195
      %p197 = scmp.ne.s32.totalorder %s189, %s192
      %p198 = scmp.eq.s32.totalorder %s22, 0
      %p199 = por %p197, %p198
      %p200 = scmp.ne.s32.totalorder %s189, %s192
      %p201 = scmp.eq.s32.totalorder %s27, 1
      %p202 = por %p200, %p201
      %p203 = scmp.ne.s32.totalorder %s192, %s193
      %p204 = scmp.eq.s32.totalorder %s27, 0
      %p205 = por %p203, %p204
      %p206 = scmp.ne.s32.totalorder %s192, %s193
      %p207 = scmp.eq.s32.totalorder %s28, 1
      %p208 = por %p206, %p207
      %p210 = scmp.ne.s32.totalorder %s193, %s209
      %p211 = scmp.eq.s32.totalorder %s28, 0
      %p212 = por %p210, %p211
      %p213 = scmp.le.s32.totalorder 1, %s22
      %p214 = scmp.lt.s32.totalorder %s22, 3
      %p215 = pnand %p213, %p214
      %p216 = pneg %p215
      // Predicated region
      $region9: #{_lambda_.10} parent=5 // pred_check
        _
      $region10: #{_lambda_.10} parent=5 // pred_check_branch
        %218 = sbr.rel (%p215) target = $region12
      $region11: #{_lambda_.10} parent=5 // pred_region
        %s219 = ssub.s32 %s22, 1
        // Predicated region
        $region13: #{_lambda_.10} parent=11 // pred_check
          %p220 = pneg %p55
        $region14: #{_lambda_.10} parent=11 // pred_check_branch
          %222 = sbr.rel (%p220) target = $region16
        $region15: #{_lambda_.10} parent=11 // pred_region
          _
        $region16: #{_lambda_.10} parent=11 // pred_fallthru
          _
        // Predicated region
        $region17: #{_lambda_.10} parent=11 // pred_check
          %p223 = pneg %p81
        $region18: #{_lambda_.10} parent=11 // pred_check_branch
          %225 = sbr.rel (%p223) target = $region20
        $region19: #{_lambda_.10} parent=11 // pred_region
          %s226 = smul.u32 16, %s31
          %p227 = scmp.lt.s32.totalorder %s226, 15
          %s228 = scalar_select %p227, %s226, 15
          %s229 = smul.addr %s228, 8
          %s230 = scalar_lea.vmem %s2, %s229
          %s231 = smul.u32 16, %s31
        $region20: #{_lambda_.10} parent=11 // pred_fallthru
          _
        // Predicated region
        $region21: #{_lambda_.10} parent=11 // pred_check
          %p232 = pneg %p107
        $region22: #{_lambda_.10} parent=11 // pred_check_branch
          %234 = sbr.rel (%p232) target = $region24
        $region23: #{_lambda_.10} parent=11 // pred_region
          %s235 = smul.u32 4, %s31
          %p236 = scmp.lt.s32.totalorder %s235, 3
          %s237 = scalar_select %p236, %s235, 3
          %s238 = smul.addr %s237, 8
          %s239 = scalar_lea.vmem %s3, %s238
          %s240 = smul.u32 4, %s31
        $region24: #{_lambda_.10} parent=11 // pred_fallthru
          _
        // Predicated region
        $region25: #{_lambda_.10} parent=11 // pred_check
          %p241 = pneg %p128
        $region26: #{_lambda_.10} parent=11 // pred_check_branch
          %243 = sbr.rel (%p241) target = $region28
        $region27: #{_lambda_.10} parent=11 // pred_region
          _
        $region28: #{_lambda_.10} parent=11 // pred_fallthru
          _
        // Predicated region
        $region29: #{_lambda_.10} parent=11 // pred_check
          %p244 = pneg %p149
        $region30: #{_lambda_.10} parent=11 // pred_check_branch
          %246 = sbr.rel (%p244) target = $region32
        $region31: #{_lambda_.10} parent=11 // pred_region
          _
        $region32: #{_lambda_.10} parent=11 // pred_fallthru
          _
      $region12: #{_lambda_.10} parent=5 // pred_fallthru
        _
      %p247 = scmp.lt.s32.totalorder %s22, 2
      // Predicated region
      $region33: #{_lambda_.10} parent=5 // pred_check
        %p248 = pneg %p247
      $region34: #{_lambda_.10} parent=5 // pred_check_branch
        %250 = sbr.rel (%p248) target = $region36
      $region35: #{_lambda_.10} parent=5 // pred_region
        _
      $region36: #{_lambda_.10} parent=5 // pred_fallthru
        _
      %p251 = scmp.le.s32.totalorder 1, %s22
      %p252 = scmp.lt.s32.totalorder %s22, 3
      %p253 = pnand %p251, %p252
      %p254 = pneg %p253
      // Predicated region
      $region37: #{_lambda_.10} parent=5 // pred_check
        _
      $region38: #{_lambda_.10} parent=5 // pred_check_branch
        %256 = sbr.rel (%p253) target = $region40
      $region39: #{_lambda_.10} parent=5 // pred_region
        %s257 = ssub.s32 %s22, 1
        %p258 = pneg %p55
        %p259 = pneg %p52
        %s260 = smul.u32 16, %s31
        %p261 = scmp.lt.s32.totalorder %s260, 15
        %s262 = scalar_select %p261, %s260, 15
        %s263 = smul.addr %s262, 8
        %s264 = scalar_lea.vmem %s2, %s263
        %p265 = pneg %p81
        %p266 = pneg %p78
        %s267 = smul.u32 4, %s31
        %p268 = scmp.lt.s32.totalorder %s267, 3
        %s269 = scalar_select %p268, %s267, 3
        %s270 = smul.addr %s269, 8
        %s271 = scalar_lea.vmem %s3, %s270
        %p272 = pneg %p107
        %p273 = pneg %p104
        %p274 = pneg %p128
        %p275 = pneg %p125
        %p276 = pneg %p149
        %p277 = pneg %p146
        %p278 = pneg %p177
        %p279 = pneg %p174
        %s280 = smul.u32 16, %s31
        %p281 = scmp.lt.s32.totalorder %s32, 1
        %s282 = scalar_select %p281, %s32, 1
        %p283 = scmp.lt.s32.totalorder %s280, 15
        %s284 = scalar_select %p283, %s280, 15
        %s285 = smul.addr %s282, 16
        %s286 = sadd.s32 %s284, %s285
        %s287 = smul.addr %s286, 4
        %s288 = scalar_lea.vmem %s6, %s287
        %p289 = pneg %p205
        %p290 = pneg %p202
        %s291 = sand.u32 %s192, 1
        %s292 = sand.u32 %s192, 1
        %s293 = smul.addr %s292, 64
        %s294 = scalar_lea.vmem [#allocation4], %s293
        %s295 = smul.u32 16, %s31
        %p296 = scmp.lt.s32.totalorder %s295, 15
        %s297 = scalar_select %p296, %s295, 15
        %s298 = smul.addr %s297, 8
        %s299 = scalar_lea.vmem %s2, %s298
        %s300 = smul.u32 16, %s31
        %s301 = smul.u32 4, %s31
        %p302 = scmp.lt.s32.totalorder %s301, 3
        %s303 = scalar_select %p302, %s301, 3
        %s304 = smul.addr %s303, 8
        %s305 = scalar_lea.vmem %s3, %s304
        %s306 = smul.u32 4, %s31
        %s307 = smul.u32 16, %s31
        %p308 = scmp.lt.s32.totalorder %s32, 1
        %s309 = scalar_select %p308, %s32, 1
        %p310 = scmp.lt.s32.totalorder %s307, 15
        %s311 = scalar_select %p310, %s307, 15
        %s312 = smul.addr %s309, 16
        %s313 = sadd.s32 %s311, %s312
        %s314 = smul.addr %s313, 4
        %s315 = scalar_lea.vmem %s6, %s314
        %s316 = smul.u32 16, %s31
        %s317 = smul.u32 16, %s31
        %s318 = scalar_lea.vmem %s1, %s32
        %v319 = vld [vmem:[%s318] sm:$0x1]
        %s320 = smul.u32 %s32, 128
        %s321 = scalar_lea.vmem %s299, %s320
        %v322 = vld [vmem:[%s321] sm:$0xff]
        %v323 = vld [vmem:[%s321 + $0x8] sm:$0xff]
        %v324 = vld [vmem:[%s321 + $0x10] sm:$0xff]
        %v325 = vld [vmem:[%s321 + $0x18] sm:$0xff]
        %v326 = vld [vmem:[%s321 + $0x20] sm:$0xff]
        %v327 = vld [vmem:[%s321 + $0x28] sm:$0xff]
        %v328 = vld [vmem:[%s321 + $0x30] sm:$0xff]
        %v329 = vld [vmem:[%s321 + $0x38] sm:$0xff]
        %v330 = vld [vmem:[%s321 + $0x40] sm:$0xff]
        %v331 = vld [vmem:[%s321 + $0x48] sm:$0xff]
        %v332 = vld [vmem:[%s321 + $0x50] sm:$0xff]
        %v333 = vld [vmem:[%s321 + $0x58] sm:$0xff]
        %v334 = vld [vmem:[%s321 + $0x60] sm:$0xff]
        %v335 = vld [vmem:[%s321 + $0x68] sm:$0xff]
        %v336 = vld [vmem:[%s321 + $0x70] sm:$0xff]
        %v337 = vld [vmem:[%s321 + $0x78] sm:$0xff]
        %v338 = vld [vmem:[%s305] sm:$0xff]
        %v339 = vld [vmem:[%s305 + $0x8] sm:$0xff]
        %v340 = vld [vmem:[%s305 + $0x10] sm:$0xff]
        %v341 = vld [vmem:[%s305 + $0x18] sm:$0xff]
        %v342 = vunpack.c.0.s8 %v338
        %v343 = vunpack.c.1.s8 %v338
        %v344 = vunpack.c.2.s8 %v338
        %v345 = vunpack.c.3.s8 %v338
        %v346 = vunpack.c.0.s8 %v339
        %v347 = vunpack.c.1.s8 %v339
        %v348 = vunpack.c.2.s8 %v339
        %v349 = vunpack.c.3.s8 %v339
        %v350 = vunpack.c.0.s8 %v340
        %v351 = vunpack.c.1.s8 %v340
        %v352 = vunpack.c.2.s8 %v340
        %v353 = vunpack.c.3.s8 %v340
        %v354 = vunpack.c.0.s8 %v341
        %v355 = vunpack.c.1.s8 %v341
        %v356 = vunpack.c.2.s8 %v341
        %v357 = vunpack.c.3.s8 %v341
        %vm358 = vcmp.ge.s32.totalorder %v342, 0
        %vm359 = vcmp.ge.s32.totalorder %v343, 0
        %vm360 = vcmp.ge.s32.totalorder %v344, 0
        %vm361 = vcmp.ge.s32.totalorder %v345, 0
        %vm362 = vcmp.ge.s32.totalorder %v346, 0
        %vm363 = vcmp.ge.s32.totalorder %v347, 0
        %vm364 = vcmp.ge.s32.totalorder %v348, 0
        %vm365 = vcmp.ge.s32.totalorder %v349, 0
        %vm366 = vcmp.ge.s32.totalorder %v350, 0
        %vm367 = vcmp.ge.s32.totalorder %v351, 0
        %vm368 = vcmp.ge.s32.totalorder %v352, 0
        %vm369 = vcmp.ge.s32.totalorder %v353, 0
        %vm370 = vcmp.ge.s32.totalorder %v354, 0
        %vm371 = vcmp.ge.s32.totalorder %v355, 0
        %vm372 = vcmp.ge.s32.totalorder %v356, 0
        %vm373 = vcmp.ge.s32.totalorder %v357, 0
        %s374 = sadd.s32 %s320, 2
        %s375 = sld [smem:[#allocation3 + %s374]]
        %v376 = vstv %s375
        %v377 = vadd.f32 %v376, 0.0
        %vm378 = vcmp.eq.s32.totalorder %v342, 1
        %vm379 = vcmp.eq.s32.totalorder %v343, 1
        %vm380 = vcmp.eq.s32.totalorder %v344, 1
        %vm381 = vcmp.eq.s32.totalorder %v345, 1
        %vm382 = vcmp.eq.s32.totalorder %v346, 1
        %vm383 = vcmp.eq.s32.totalorder %v347, 1
        %vm384 = vcmp.eq.s32.totalorder %v348, 1
        %vm385 = vcmp.eq.s32.totalorder %v349, 1
        %vm386 = vcmp.eq.s32.totalorder %v350, 1
        %vm387 = vcmp.eq.s32.totalorder %v351, 1
        %vm388 = vcmp.eq.s32.totalorder %v352, 1
        %vm389 = vcmp.eq.s32.totalorder %v353, 1
        %vm390 = vcmp.eq.s32.totalorder %v354, 1
        %vm391 = vcmp.eq.s32.totalorder %v355, 1
        %vm392 = vcmp.eq.s32.totalorder %v356, 1
        %vm393 = vcmp.eq.s32.totalorder %v357, 1
        %s394 = sadd.s32 %s320, 1
        %s395 = sld [smem:[#allocation3 + %s394]]
        %v396 = vstv %s395
        %v397 = vsel %vm378, %v396, %v377
        %v398 = vsel %vm379, %v396, %v377
        %v399 = vsel %vm380, %v396, %v377
        %v400 = vsel %vm381, %v396, %v377
        %v401 = vsel %vm382, %v396, %v377
        %v402 = vsel %vm383, %v396, %v377
        %v403 = vsel %vm384, %v396, %v377
        %v404 = vsel %vm385, %v396, %v377
        %v405 = vsel %vm386, %v396, %v377
        %v406 = vsel %vm387, %v396, %v377
        %v407 = vsel %vm388, %v396, %v377
        %v408 = vsel %vm389, %v396, %v377
        %v409 = vsel %vm390, %v396, %v377
        %v410 = vsel %vm391, %v396, %v377
        %v411 = vsel %vm392, %v396, %v377
        %v412 = vsel %vm393, %v396, %v377
        %vm413 = vcmp.eq.s32.totalorder %v342, 0
        %vm414 = vcmp.eq.s32.totalorder %v343, 0
        %vm415 = vcmp.eq.s32.totalorder %v344, 0
        %vm416 = vcmp.eq.s32.totalorder %v345, 0
        %vm417 = vcmp.eq.s32.totalorder %v346, 0
        %vm418 = vcmp.eq.s32.totalorder %v347, 0
        %vm419 = vcmp.eq.s32.totalorder %v348, 0
        %vm420 = vcmp.eq.s32.totalorder %v349, 0
        %vm421 = vcmp.eq.s32.totalorder %v350, 0
        %vm422 = vcmp.eq.s32.totalorder %v351, 0
        %vm423 = vcmp.eq.s32.totalorder %v352, 0
        %vm424 = vcmp.eq.s32.totalorder %v353, 0
        %vm425 = vcmp.eq.s32.totalorder %v354, 0
        %vm426 = vcmp.eq.s32.totalorder %v355, 0
        %vm427 = vcmp.eq.s32.totalorder %v356, 0
        %vm428 = vcmp.eq.s32.totalorder %v357, 0
        %s429 = sld [smem:[#allocation3 + %s320]]
        %v430 = vstv %s429
        %v431 = vsel %vm413, %v430, %v397
        %v432 = vsel %vm414, %v430, %v398
        %v433 = vsel %vm415, %v430, %v399
        %v434 = vsel %vm416, %v430, %v400
        %v435 = vsel %vm417, %v430, %v401
        %v436 = vsel %vm418, %v430, %v402
        %v437 = vsel %vm419, %v430, %v403
        %v438 = vsel %vm420, %v430, %v404
        %v439 = vsel %vm421, %v430, %v405
        %v440 = vsel %vm422, %v430, %v406
        %v441 = vsel %vm423, %v430, %v407
        %v442 = vsel %vm424, %v430, %v408
        %v443 = vsel %vm425, %v430, %v409
        %v444 = vsel %vm426, %v430, %v410
        %v445 = vsel %vm427, %v430, %v411
        %v446 = vsel %vm428, %v430, %v412
        %448 = vset.pattern.permute.xlu0 0
        %449 = vperm.xlu0 %448, %v322
        %v450 = vpop.permute.xlu0 %449
        %453 = vset.pattern.permute.xlu0 0
        %454 = vperm.xlu0 %453, %v323
        %v455 = vpop.permute.xlu0 %454
        %458 = vset.pattern.permute.xlu0 0
        %459 = vperm.xlu0 %458, %v324
        %v460 = vpop.permute.xlu0 %459
        %463 = vset.pattern.permute.xlu0 0
        %464 = vperm.xlu0 %463, %v325
        %v465 = vpop.permute.xlu0 %464
        %468 = vset.pattern.permute.xlu0 0
        %469 = vperm.xlu0 %468, %v326
        %v470 = vpop.permute.xlu0 %469
        %473 = vset.pattern.permute.xlu0 0
        %474 = vperm.xlu0 %473, %v327
        %v475 = vpop.permute.xlu0 %474
        %478 = vset.pattern.permute.xlu0 0
        %479 = vperm.xlu0 %478, %v328
        %v480 = vpop.permute.xlu0 %479
        %483 = vset.pattern.permute.xlu0 0
        %484 = vperm.xlu0 %483, %v329
        %v485 = vpop.permute.xlu0 %484
        %488 = vset.pattern.permute.xlu0 0
        %489 = vperm.xlu0 %488, %v330
        %v490 = vpop.permute.xlu0 %489
        %493 = vset.pattern.permute.xlu0 0
        %494 = vperm.xlu0 %493, %v331
        %v495 = vpop.permute.xlu0 %494
        %498 = vset.pattern.permute.xlu0 0
        %499 = vperm.xlu0 %498, %v332
        %v500 = vpop.permute.xlu0 %499
        %503 = vset.pattern.permute.xlu0 0
        %504 = vperm.xlu0 %503, %v333
        %v505 = vpop.permute.xlu0 %504
        %508 = vset.pattern.permute.xlu0 0
        %509 = vperm.xlu0 %508, %v334
        %v510 = vpop.permute.xlu0 %509
        %513 = vset.pattern.permute.xlu0 0
        %514 = vperm.xlu0 %513, %v335
        %v515 = vpop.permute.xlu0 %514
        %518 = vset.pattern.permute.xlu0 0
        %519 = vperm.xlu0 %518, %v336
        %v520 = vpop.permute.xlu0 %519
        %523 = vset.pattern.permute.xlu0 0
        %524 = vperm.xlu0 %523, %v337
        %v525 = vpop.permute.xlu0 %524
        %v528 = vperm.slane %v319, 0
        %v530 = vadd.f32 %v450, %v528
        %v531 = vadd.f32 %v455, %v528
        %v532 = vadd.f32 %v460, %v528
        %v533 = vadd.f32 %v465, %v528
        %v534 = vadd.f32 %v470, %v528
        %v535 = vadd.f32 %v475, %v528
        %v536 = vadd.f32 %v480, %v528
        %v537 = vadd.f32 %v485, %v528
        %v538 = vadd.f32 %v490, %v528
        %v539 = vadd.f32 %v495, %v528
        %v540 = vadd.f32 %v500, %v528
        %v541 = vadd.f32 %v505, %v528
        %v542 = vadd.f32 %v510, %v528
        %v543 = vadd.f32 %v515, %v528
        %v544 = vadd.f32 %v520, %v528
        %v545 = vadd.f32 %v525, %v528
        %v546 = vadd.f32 %v530, %v431
        %v547 = vadd.f32 %v531, %v432
        %v548 = vadd.f32 %v532, %v433
        %v549 = vadd.f32 %v533, %v434
        %v550 = vadd.f32 %v534, %v435
        %v551 = vadd.f32 %v535, %v436
        %v552 = vadd.f32 %v536, %v437
        %v553 = vadd.f32 %v537, %v438
        %v554 = vadd.f32 %v538, %v439
        %v555 = vadd.f32 %v539, %v440
        %v556 = vadd.f32 %v540, %v441
        %v557 = vadd.f32 %v541, %v442
        %v558 = vadd.f32 %v542, %v443
        %v559 = vadd.f32 %v543, %v444
        %v560 = vadd.f32 %v544, %v445
        %v561 = vadd.f32 %v545, %v446
        %vm562 = vcmp.gt.f32.partialorder %v546, 0.0
        %vm563 = vcmp.gt.f32.partialorder %v547, 0.0
        %vm564 = vcmp.gt.f32.partialorder %v548, 0.0
        %vm565 = vcmp.gt.f32.partialorder %v549, 0.0
        %vm566 = vcmp.gt.f32.partialorder %v550, 0.0
        %vm567 = vcmp.gt.f32.partialorder %v551, 0.0
        %vm568 = vcmp.gt.f32.partialorder %v552, 0.0
        %vm569 = vcmp.gt.f32.partialorder %v553, 0.0
        %vm570 = vcmp.gt.f32.partialorder %v554, 0.0
        %vm571 = vcmp.gt.f32.partialorder %v555, 0.0
        %vm572 = vcmp.gt.f32.partialorder %v556, 0.0
        %vm573 = vcmp.gt.f32.partialorder %v557, 0.0
        %vm574 = vcmp.gt.f32.partialorder %v558, 0.0
        %vm575 = vcmp.gt.f32.partialorder %v559, 0.0
        %vm576 = vcmp.gt.f32.partialorder %v560, 0.0
        %vm577 = vcmp.gt.f32.partialorder %v561, 0.0
        %v578 = vmul.f32 %v546, 0.2
        %v579 = vmul.f32 %v547, 0.2
        %v580 = vmul.f32 %v548, 0.2
        %v581 = vmul.f32 %v549, 0.2
        %v582 = vmul.f32 %v550, 0.2
        %v583 = vmul.f32 %v551, 0.2
        %v584 = vmul.f32 %v552, 0.2
        %v585 = vmul.f32 %v553, 0.2
        %v586 = vmul.f32 %v554, 0.2
        %v587 = vmul.f32 %v555, 0.2
        %v588 = vmul.f32 %v556, 0.2
        %v589 = vmul.f32 %v557, 0.2
        %v590 = vmul.f32 %v558, 0.2
        %v591 = vmul.f32 %v559, 0.2
        %v592 = vmul.f32 %v560, 0.2
        %v593 = vmul.f32 %v561, 0.2
        %v594 = vsel %vm562, %v546, %v578
        %v595 = vsel %vm563, %v547, %v579
        %v596 = vsel %vm564, %v548, %v580
        %v597 = vsel %vm565, %v549, %v581
        %v598 = vsel %vm566, %v550, %v582
        %v599 = vsel %vm567, %v551, %v583
        %v600 = vsel %vm568, %v552, %v584
        %v601 = vsel %vm569, %v553, %v585
        %v602 = vsel %vm570, %v554, %v586
        %v603 = vsel %vm571, %v555, %v587
        %v604 = vsel %vm572, %v556, %v588
        %v605 = vsel %vm573, %v557, %v589
        %v606 = vsel %vm574, %v558, %v590
        %v607 = vsel %vm575, %v559, %v591
        %v608 = vsel %vm576, %v560, %v592
        %v609 = vsel %vm577, %v561, %v593
        %v610 = vsel %vm358, %v594, -1e+30
        %v611 = vsel %vm359, %v595, -1e+30
        %v612 = vsel %vm360, %v596, -1e+30
        %v613 = vsel %vm361, %v597, -1e+30
        %v614 = vsel %vm362, %v598, -1e+30
        %v615 = vsel %vm363, %v599, -1e+30
        %v616 = vsel %vm364, %v600, -1e+30
        %v617 = vsel %vm365, %v601, -1e+30
        %v618 = vsel %vm366, %v602, -1e+30
        %v619 = vsel %vm367, %v603, -1e+30
        %v620 = vsel %vm368, %v604, -1e+30
        %v621 = vsel %vm369, %v605, -1e+30
        %v622 = vsel %vm370, %v606, -1e+30
        %v623 = vsel %vm371, %v607, -1e+30
        %v624 = vsel %vm372, %v608, -1e+30
        %v625 = vsel %vm373, %v609, -1e+30
        %626 = vmax.xlane.f32.xlu0 %v610
        %v627 = vpop.xlane.xlu0 %626
        %628 = vmax.xlane.f32.xlu0 %v611
        %v629 = vpop.xlane.xlu0 %628
        %630 = vmax.xlane.f32.xlu0 %v612
        %v631 = vpop.xlane.xlu0 %630
        %632 = vmax.xlane.f32.xlu0 %v613
        %v633 = vpop.xlane.xlu0 %632
        %634 = vmax.xlane.f32.xlu0 %v614
        %v635 = vpop.xlane.xlu0 %634
        %636 = vmax.xlane.f32.xlu0 %v615
        %v637 = vpop.xlane.xlu0 %636
        %638 = vmax.xlane.f32.xlu0 %v616
        %v639 = vpop.xlane.xlu0 %638
        %640 = vmax.xlane.f32.xlu0 %v617
        %v641 = vpop.xlane.xlu0 %640
        %642 = vmax.xlane.f32.xlu0 %v618
        %v643 = vpop.xlane.xlu0 %642
        %644 = vmax.xlane.f32.xlu0 %v619
        %v645 = vpop.xlane.xlu0 %644
        %646 = vmax.xlane.f32.xlu0 %v620
        %v647 = vpop.xlane.xlu0 %646
        %648 = vmax.xlane.f32.xlu0 %v621
        %v649 = vpop.xlane.xlu0 %648
        %650 = vmax.xlane.f32.xlu0 %v622
        %v651 = vpop.xlane.xlu0 %650
        %652 = vmax.xlane.f32.xlu0 %v623
        %v653 = vpop.xlane.xlu0 %652
        %654 = vmax.xlane.f32.xlu0 %v624
        %v655 = vpop.xlane.xlu0 %654
        %656 = vmax.xlane.f32.xlu0 %v625
        %v657 = vpop.xlane.xlu0 %656
        %v658 = vsub.f32 %v610, %v627
        %v659 = vsub.f32 %v611, %v629
        %v660 = vsub.f32 %v612, %v631
        %v661 = vsub.f32 %v613, %v633
        %v662 = vsub.f32 %v614, %v635
        %v663 = vsub.f32 %v615, %v637
        %v664 = vsub.f32 %v616, %v639
        %v665 = vsub.f32 %v617, %v641
        %v666 = vsub.f32 %v618, %v643
        %v667 = vsub.f32 %v619, %v645
        %v668 = vsub.f32 %v620, %v647
        %v669 = vsub.f32 %v621, %v649
        %v670 = vsub.f32 %v622, %v651
        %v671 = vsub.f32 %v623, %v653
        %v672 = vsub.f32 %v624, %v655
        %v673 = vsub.f32 %v625, %v657
        %v674 = vmul.f32 %v658, 1.442695
        %v675 = vpow.pop %v674
        %v676 = vmul.f32 %v659, 1.442695
        %v677 = vpow.pop %v676
        %v678 = vmul.f32 %v660, 1.442695
        %v679 = vpow.pop %v678
        %v680 = vmul.f32 %v661, 1.442695
        %v681 = vpow.pop %v680
        %v682 = vmul.f32 %v662, 1.442695
        %v683 = vpow.pop %v682
        %v684 = vmul.f32 %v663, 1.442695
        %v685 = vpow.pop %v684
        %v686 = vmul.f32 %v664, 1.442695
        %v687 = vpow.pop %v686
        %v688 = vmul.f32 %v665, 1.442695
        %v689 = vpow.pop %v688
        %v690 = vmul.f32 %v666, 1.442695
        %v691 = vpow.pop %v690
        %v692 = vmul.f32 %v667, 1.442695
        %v693 = vpow.pop %v692
        %v694 = vmul.f32 %v668, 1.442695
        %v695 = vpow.pop %v694
        %v696 = vmul.f32 %v669, 1.442695
        %v697 = vpow.pop %v696
        %v698 = vmul.f32 %v670, 1.442695
        %v699 = vpow.pop %v698
        %v700 = vmul.f32 %v671, 1.442695
        %v701 = vpow.pop %v700
        %v702 = vmul.f32 %v672, 1.442695
        %v703 = vpow.pop %v702
        %v704 = vmul.f32 %v673, 1.442695
        %v705 = vpow.pop %v704
        %v706 = vsel %vm358, %v675, 0.0
        %v707 = vsel %vm359, %v677, 0.0
        %v708 = vsel %vm360, %v679, 0.0
        %v709 = vsel %vm361, %v681, 0.0
        %v710 = vsel %vm362, %v683, 0.0
        %v711 = vsel %vm363, %v685, 0.0
        %v712 = vsel %vm364, %v687, 0.0
        %v713 = vsel %vm365, %v689, 0.0
        %v714 = vsel %vm366, %v691, 0.0
        %v715 = vsel %vm367, %v693, 0.0
        %v716 = vsel %vm368, %v695, 0.0
        %v717 = vsel %vm369, %v697, 0.0
        %v718 = vsel %vm370, %v699, 0.0
        %v719 = vsel %vm371, %v701, 0.0
        %v720 = vsel %vm372, %v703, 0.0
        %v721 = vsel %vm373, %v705, 0.0
        %722 = vadd.xlane.f32.xlu0 %v706
        %v723 = vpop.xlane.xlu0 %722
        %724 = vadd.xlane.f32.xlu0 %v707
        %v725 = vpop.xlane.xlu0 %724
        %726 = vadd.xlane.f32.xlu0 %v708
        %v727 = vpop.xlane.xlu0 %726
        %728 = vadd.xlane.f32.xlu0 %v709
        %v729 = vpop.xlane.xlu0 %728
        %730 = vadd.xlane.f32.xlu0 %v710
        %v731 = vpop.xlane.xlu0 %730
        %732 = vadd.xlane.f32.xlu0 %v711
        %v733 = vpop.xlane.xlu0 %732
        %734 = vadd.xlane.f32.xlu0 %v712
        %v735 = vpop.xlane.xlu0 %734
        %736 = vadd.xlane.f32.xlu0 %v713
        %v737 = vpop.xlane.xlu0 %736
        %738 = vadd.xlane.f32.xlu0 %v714
        %v739 = vpop.xlane.xlu0 %738
        %740 = vadd.xlane.f32.xlu0 %v715
        %v741 = vpop.xlane.xlu0 %740
        %742 = vadd.xlane.f32.xlu0 %v716
        %v743 = vpop.xlane.xlu0 %742
        %744 = vadd.xlane.f32.xlu0 %v717
        %v745 = vpop.xlane.xlu0 %744
        %746 = vadd.xlane.f32.xlu0 %v718
        %v747 = vpop.xlane.xlu0 %746
        %748 = vadd.xlane.f32.xlu0 %v719
        %v749 = vpop.xlane.xlu0 %748
        %750 = vadd.xlane.f32.xlu0 %v720
        %v751 = vpop.xlane.xlu0 %750
        %752 = vadd.xlane.f32.xlu0 %v721
        %v753 = vpop.xlane.xlu0 %752
        %v754 = vmax.f32 %v723, 1.0
        %v755 = vmax.f32 %v725, 1.0
        %v756 = vmax.f32 %v727, 1.0
        %v757 = vmax.f32 %v729, 1.0
        %v758 = vmax.f32 %v731, 1.0
        %v759 = vmax.f32 %v733, 1.0
        %v760 = vmax.f32 %v735, 1.0
        %v761 = vmax.f32 %v737, 1.0
        %v762 = vmax.f32 %v739, 1.0
        %v763 = vmax.f32 %v741, 1.0
        %v764 = vmax.f32 %v743, 1.0
        %v765 = vmax.f32 %v745, 1.0
        %v766 = vmax.f32 %v747, 1.0
        %v767 = vmax.f32 %v749, 1.0
        %v768 = vmax.f32 %v751, 1.0
        %v769 = vmax.f32 %v753, 1.0
        %v770 = vrcp.pop %v754
        %v771 = vrcp.pop %v755
        %v772 = vrcp.pop %v756
        %v773 = vrcp.pop %v757
        %v774 = vrcp.pop %v758
        %v775 = vrcp.pop %v759
        %v776 = vrcp.pop %v760
        %v777 = vrcp.pop %v761
        %v778 = vrcp.pop %v762
        %v779 = vrcp.pop %v763
        %v780 = vrcp.pop %v764
        %v781 = vrcp.pop %v765
        %v782 = vrcp.pop %v766
        %v783 = vrcp.pop %v767
        %v784 = vrcp.pop %v768
        %v785 = vrcp.pop %v769
        %v786 = vmul.f32 %v706, %v770
        %v787 = vmul.f32 %v707, %v771
        %v788 = vmul.f32 %v708, %v772
        %v789 = vmul.f32 %v709, %v773
        %v790 = vmul.f32 %v710, %v774
        %v791 = vmul.f32 %v711, %v775
        %v792 = vmul.f32 %v712, %v776
        %v793 = vmul.f32 %v713, %v777
        %v794 = vmul.f32 %v714, %v778
        %v795 = vmul.f32 %v715, %v779
        %v796 = vmul.f32 %v716, %v780
        %v797 = vmul.f32 %v717, %v781
        %v798 = vmul.f32 %v718, %v782
        %v799 = vmul.f32 %v719, %v783
        %v800 = vmul.f32 %v720, %v784
        %v801 = vmul.f32 %v721, %v785
        %v802 = vpack.c.bf16 %v786, %v786
        %v803 = vpack.c.bf16 %v787, %v787
        %v804 = vpack.c.bf16 %v788, %v788
        %v805 = vpack.c.bf16 %v789, %v789
        %v806 = vpack.c.bf16 %v790, %v790
        %v807 = vpack.c.bf16 %v791, %v791
        %v808 = vpack.c.bf16 %v792, %v792
        %v809 = vpack.c.bf16 %v793, %v793
        %v810 = vpack.c.bf16 %v794, %v794
        %v811 = vpack.c.bf16 %v795, %v795
        %v812 = vpack.c.bf16 %v796, %v796
        %v813 = vpack.c.bf16 %v797, %v797
        %v814 = vpack.c.bf16 %v798, %v798
        %v815 = vpack.c.bf16 %v799, %v799
        %v816 = vpack.c.bf16 %v800, %v800
        %v817 = vpack.c.bf16 %v801, %v801
        %818 = vst [vmem:[%s315] sm:$0xf] %v802
        %819 = vst [vmem:[%s315 + $0x4] sm:$0xf] %v803
        %820 = vst [vmem:[%s315 + $0x8] sm:$0xf] %v804
        %821 = vst [vmem:[%s315 + $0xc] sm:$0xf] %v805
        %822 = vst [vmem:[%s315 + $0x10] sm:$0xf] %v806
        %823 = vst [vmem:[%s315 + $0x14] sm:$0xf] %v807
        %824 = vst [vmem:[%s315 + $0x18] sm:$0xf] %v808
        %825 = vst [vmem:[%s315 + $0x1c] sm:$0xf] %v809
        %826 = vst [vmem:[%s315 + $0x20] sm:$0xf] %v810
        %827 = vst [vmem:[%s315 + $0x24] sm:$0xf] %v811
        %828 = vst [vmem:[%s315 + $0x28] sm:$0xf] %v812
        %829 = vst [vmem:[%s315 + $0x2c] sm:$0xf] %v813
        %830 = vst [vmem:[%s315 + $0x30] sm:$0xf] %v814
        %831 = vst [vmem:[%s315 + $0x34] sm:$0xf] %v815
        %832 = vst [vmem:[%s315 + $0x38] sm:$0xf] %v816
        %833 = vst [vmem:[%s315 + $0x3c] sm:$0xf] %v817
        %s834 = smul.u32 %s32, 16
        %s835 = smul.addr %s834, 4
        %s836 = scalar_lea.vmem %s4, %s835
        %v837 = vld [vmem:[%s836] sm:$0xf]
        %v838 = vld [vmem:[%s836 + $0x4] sm:$0xf]
        %v839 = vld [vmem:[%s836 + $0x8] sm:$0xf]
        %v840 = vld [vmem:[%s836 + $0xc] sm:$0xf]
        %v841 = vld [vmem:[%s836 + $0x10] sm:$0xf]
        %v842 = vld [vmem:[%s836 + $0x14] sm:$0xf]
        %v843 = vld [vmem:[%s836 + $0x18] sm:$0xf]
        %v844 = vld [vmem:[%s836 + $0x1c] sm:$0xf]
        %v845 = vld [vmem:[%s836 + $0x20] sm:$0xf]
        %v846 = vld [vmem:[%s836 + $0x24] sm:$0xf]
        %v847 = vld [vmem:[%s836 + $0x28] sm:$0xf]
        %v848 = vld [vmem:[%s836 + $0x2c] sm:$0xf]
        %v849 = vld [vmem:[%s836 + $0x30] sm:$0xf]
        %v850 = vld [vmem:[%s836 + $0x34] sm:$0xf]
        %v851 = vld [vmem:[%s836 + $0x38] sm:$0xf]
        %v852 = vld [vmem:[%s836 + $0x3c] sm:$0xf]
        %s853 = scalar_lea.vmem %s5, %s32
        %v854 = vld [vmem:[%s853] sm:$0x1]
        %v856 = vperm.slane %v854, 0
        %v874 = vunpack.c.l.b16 %v802
        %v875 = vunpack.c.l.b16 %v803
        %v876 = vunpack.c.l.b16 %v804
        %v877 = vunpack.c.l.b16 %v805
        %v878 = vunpack.c.l.b16 %v806
        %v879 = vunpack.c.l.b16 %v807
        %v880 = vunpack.c.l.b16 %v808
        %v881 = vunpack.c.l.b16 %v809
        %v882 = vunpack.c.l.b16 %v810
        %v883 = vunpack.c.l.b16 %v811
        %v884 = vunpack.c.l.b16 %v812
        %v885 = vunpack.c.l.b16 %v813
        %v886 = vunpack.c.l.b16 %v814
        %v887 = vunpack.c.l.b16 %v815
        %v888 = vunpack.c.l.b16 %v816
        %v889 = vunpack.c.l.b16 %v817
        %v890 = vpack.c.b16 %v875, %v874
        %v891 = vpack.c.b16 %v877, %v876
        %v892 = vpack.c.b16 %v879, %v878
        %v893 = vpack.c.b16 %v881, %v880
        %v894 = vpack.c.b16 %v883, %v882
        %v895 = vpack.c.b16 %v885, %v884
        %v896 = vpack.c.b16 %v887, %v886
        %v897 = vpack.c.b16 %v889, %v888
        %v922 = vunpack.c.l.b16 %v837
        %v923 = vunpack.c.l.b16 %v838
        %v924 = vunpack.c.l.b16 %v839
        %v925 = vunpack.c.l.b16 %v840
        %v926 = vunpack.c.l.b16 %v841
        %v927 = vunpack.c.l.b16 %v842
        %v928 = vunpack.c.l.b16 %v843
        %v929 = vunpack.c.l.b16 %v844
        %v930 = vunpack.c.l.b16 %v845
        %v931 = vunpack.c.l.b16 %v846
        %v932 = vunpack.c.l.b16 %v847
        %v933 = vunpack.c.l.b16 %v848
        %v934 = vunpack.c.l.b16 %v849
        %v935 = vunpack.c.l.b16 %v850
        %v936 = vunpack.c.l.b16 %v851
        %v937 = vunpack.c.l.b16 %v852
        %v938 = vpack.c.b16 %v923, %v922
        %v939 = vpack.c.b16 %v925, %v924
        %v940 = vpack.c.b16 %v927, %v926
        %v941 = vpack.c.b16 %v929, %v928
        %v942 = vpack.c.b16 %v931, %v930
        %v943 = vpack.c.b16 %v933, %v932
        %v944 = vpack.c.b16 %v935, %v934
        %v945 = vpack.c.b16 %v937, %v936
        %954 = vmatpush.bf16.msra.mxu0 %v945
        %955 = vmatpush.bf16.msra.mxu0 %v944
        %956 = vmatpush.bf16.msra.mxu0 %v943
        %957 = vmatpush.bf16.msra.mxu0 %v942
        %958 = vmatpush.bf16.msra.mxu0 %v941
        %959 = vmatpush.bf16.msra.mxu0 %v940
        %960 = vmatpush.bf16.msra.mxu0 %v939
        %961 = vmatpush.bf16.msra.mxu0 %v938
        %962 = vmatmul.bf16.gmra.mxu0 %v890
        %v963 = vpop.f32.mrf.mxu0
        %v964 = vadd.f32 %v856, %v963
        %v965 = vpop.f32.mrf.mxu0
        %v966 = vadd.f32 %v856, %v965
        %967 = vmatmul.bf16.gmra.mxu0 %v891
        %v968 = vpop.f32.mrf.mxu0
        %v969 = vadd.f32 %v856, %v968
        %v970 = vpop.f32.mrf.mxu0
        %v971 = vadd.f32 %v856, %v970
        %972 = vmatmul.bf16.gmra.mxu0 %v892
        %v973 = vpop.f32.mrf.mxu0
        %v974 = vadd.f32 %v856, %v973
        %v975 = vpop.f32.mrf.mxu0
        %v976 = vadd.f32 %v856, %v975
        %977 = vmatmul.bf16.gmra.mxu0 %v893
        %v978 = vpop.f32.mrf.mxu0
        %v979 = vadd.f32 %v856, %v978
        %v980 = vpop.f32.mrf.mxu0
        %v981 = vadd.f32 %v856, %v980
        %982 = vmatmul.bf16.gmra.mxu0 %v894
        %v983 = vpop.f32.mrf.mxu0
        %v984 = vadd.f32 %v856, %v983
        %v985 = vpop.f32.mrf.mxu0
        %v986 = vadd.f32 %v856, %v985
        %987 = vmatmul.bf16.gmra.mxu0 %v895
        %v988 = vpop.f32.mrf.mxu0
        %v989 = vadd.f32 %v856, %v988
        %v990 = vpop.f32.mrf.mxu0
        %v991 = vadd.f32 %v856, %v990
        %992 = vmatmul.bf16.gmra.mxu0 %v896
        %v993 = vpop.f32.mrf.mxu0
        %v994 = vadd.f32 %v856, %v993
        %v995 = vpop.f32.mrf.mxu0
        %v996 = vadd.f32 %v856, %v995
        %997 = vmatmul.bf16.gmra.mxu0 %v897
        %v998 = vpop.f32.mrf.mxu0
        %v999 = vadd.f32 %v856, %v998
        %v1000 = vpop.f32.mrf.mxu0
        %v1001 = vadd.f32 %v856, %v1000
        %1002 = vdwg.mxu0
        %vm1003 = vcmp.gt.f32.partialorder %v964, 0.0
        %vm1004 = vcmp.gt.f32.partialorder %v966, 0.0
        %vm1005 = vcmp.gt.f32.partialorder %v969, 0.0
        %vm1006 = vcmp.gt.f32.partialorder %v971, 0.0
        %vm1007 = vcmp.gt.f32.partialorder %v974, 0.0
        %vm1008 = vcmp.gt.f32.partialorder %v976, 0.0
        %vm1009 = vcmp.gt.f32.partialorder %v979, 0.0
        %vm1010 = vcmp.gt.f32.partialorder %v981, 0.0
        %vm1011 = vcmp.gt.f32.partialorder %v984, 0.0
        %vm1012 = vcmp.gt.f32.partialorder %v986, 0.0
        %vm1013 = vcmp.gt.f32.partialorder %v989, 0.0
        %vm1014 = vcmp.gt.f32.partialorder %v991, 0.0
        %vm1015 = vcmp.gt.f32.partialorder %v994, 0.0
        %vm1016 = vcmp.gt.f32.partialorder %v996, 0.0
        %vm1017 = vcmp.gt.f32.partialorder %v999, 0.0
        %vm1018 = vcmp.gt.f32.partialorder %v1001, 0.0
        %v1019 = vmin.f32 %v964, 0.0
        %v1020 = vmin.f32 %v966, 0.0
        %v1021 = vmin.f32 %v969, 0.0
        %v1022 = vmin.f32 %v971, 0.0
        %v1023 = vmin.f32 %v974, 0.0
        %v1024 = vmin.f32 %v976, 0.0
        %v1025 = vmin.f32 %v979, 0.0
        %v1026 = vmin.f32 %v981, 0.0
        %v1027 = vmin.f32 %v984, 0.0
        %v1028 = vmin.f32 %v986, 0.0
        %v1029 = vmin.f32 %v989, 0.0
        %v1030 = vmin.f32 %v991, 0.0
        %v1031 = vmin.f32 %v994, 0.0
        %v1032 = vmin.f32 %v996, 0.0
        %v1033 = vmin.f32 %v999, 0.0
        %v1034 = vmin.f32 %v1001, 0.0
        %v1035 = vmul.f32 %v1019, 1.442695
        %v1036 = vpow.pop %v1035
        %v1037 = vmul.f32 %v1020, 1.442695
        %v1038 = vpow.pop %v1037
        %v1039 = vmul.f32 %v1021, 1.442695
        %v1040 = vpow.pop %v1039
        %v1041 = vmul.f32 %v1022, 1.442695
        %v1042 = vpow.pop %v1041
        %v1043 = vmul.f32 %v1023, 1.442695
        %v1044 = vpow.pop %v1043
        %v1045 = vmul.f32 %v1024, 1.442695
        %v1046 = vpow.pop %v1045
        %v1047 = vmul.f32 %v1025, 1.442695
        %v1048 = vpow.pop %v1047
        %v1049 = vmul.f32 %v1026, 1.442695
        %v1050 = vpow.pop %v1049
        %v1051 = vmul.f32 %v1027, 1.442695
        %v1052 = vpow.pop %v1051
        %v1053 = vmul.f32 %v1028, 1.442695
        %v1054 = vpow.pop %v1053
        %v1055 = vmul.f32 %v1029, 1.442695
        %v1056 = vpow.pop %v1055
        %v1057 = vmul.f32 %v1030, 1.442695
        %v1058 = vpow.pop %v1057
        %v1059 = vmul.f32 %v1031, 1.442695
        %v1060 = vpow.pop %v1059
        %v1061 = vmul.f32 %v1032, 1.442695
        %v1062 = vpow.pop %v1061
        %v1063 = vmul.f32 %v1033, 1.442695
        %v1064 = vpow.pop %v1063
        %v1065 = vmul.f32 %v1034, 1.442695
        %v1066 = vpow.pop %v1065
        %v1067 = vsub.f32 %v1036, 1.0
        %v1068 = vsub.f32 %v1038, 1.0
        %v1069 = vsub.f32 %v1040, 1.0
        %v1070 = vsub.f32 %v1042, 1.0
        %v1071 = vsub.f32 %v1044, 1.0
        %v1072 = vsub.f32 %v1046, 1.0
        %v1073 = vsub.f32 %v1048, 1.0
        %v1074 = vsub.f32 %v1050, 1.0
        %v1075 = vsub.f32 %v1052, 1.0
        %v1076 = vsub.f32 %v1054, 1.0
        %v1077 = vsub.f32 %v1056, 1.0
        %v1078 = vsub.f32 %v1058, 1.0
        %v1079 = vsub.f32 %v1060, 1.0
        %v1080 = vsub.f32 %v1062, 1.0
        %v1081 = vsub.f32 %v1064, 1.0
        %v1082 = vsub.f32 %v1066, 1.0
        %v1083 = vsel %vm1003, %v964, %v1067
        %v1084 = vsel %vm1004, %v966, %v1068
        %v1085 = vsel %vm1005, %v969, %v1069
        %v1086 = vsel %vm1006, %v971, %v1070
        %v1087 = vsel %vm1007, %v974, %v1071
        %v1088 = vsel %vm1008, %v976, %v1072
        %v1089 = vsel %vm1009, %v979, %v1073
        %v1090 = vsel %vm1010, %v981, %v1074
        %v1091 = vsel %vm1011, %v984, %v1075
        %v1092 = vsel %vm1012, %v986, %v1076
        %v1093 = vsel %vm1013, %v989, %v1077
        %v1094 = vsel %vm1014, %v991, %v1078
        %v1095 = vsel %vm1015, %v994, %v1079
        %v1096 = vsel %vm1016, %v996, %v1080
        %v1097 = vsel %vm1017, %v999, %v1081
        %v1098 = vsel %vm1018, %v1001, %v1082
        %v1099 = vpack.c.bf16 %v1083, %v1083
        %v1100 = vpack.c.bf16 %v1084, %v1084
        %v1101 = vpack.c.bf16 %v1085, %v1085
        %v1102 = vpack.c.bf16 %v1086, %v1086
        %v1103 = vpack.c.bf16 %v1087, %v1087
        %v1104 = vpack.c.bf16 %v1088, %v1088
        %v1105 = vpack.c.bf16 %v1089, %v1089
        %v1106 = vpack.c.bf16 %v1090, %v1090
        %v1107 = vpack.c.bf16 %v1091, %v1091
        %v1108 = vpack.c.bf16 %v1092, %v1092
        %v1109 = vpack.c.bf16 %v1093, %v1093
        %v1110 = vpack.c.bf16 %v1094, %v1094
        %v1111 = vpack.c.bf16 %v1095, %v1095
        %v1112 = vpack.c.bf16 %v1096, %v1096
        %v1113 = vpack.c.bf16 %v1097, %v1097
        %v1114 = vpack.c.bf16 %v1098, %v1098
        %1115 = vst [vmem:[%s294] sm:$0xf] %v1099
        %1116 = vst [vmem:[%s294 + $0x4] sm:$0xf] %v1100
        %1117 = vst [vmem:[%s294 + $0x8] sm:$0xf] %v1101
        %1118 = vst [vmem:[%s294 + $0xc] sm:$0xf] %v1102
        %1119 = vst [vmem:[%s294 + $0x10] sm:$0xf] %v1103
        %1120 = vst [vmem:[%s294 + $0x14] sm:$0xf] %v1104
        %1121 = vst [vmem:[%s294 + $0x18] sm:$0xf] %v1105
        %1122 = vst [vmem:[%s294 + $0x1c] sm:$0xf] %v1106
        %1123 = vst [vmem:[%s294 + $0x20] sm:$0xf] %v1107
        %1124 = vst [vmem:[%s294 + $0x24] sm:$0xf] %v1108
        %1125 = vst [vmem:[%s294 + $0x28] sm:$0xf] %v1109
        %1126 = vst [vmem:[%s294 + $0x2c] sm:$0xf] %v1110
        %1127 = vst [vmem:[%s294 + $0x30] sm:$0xf] %v1111
        %1128 = vst [vmem:[%s294 + $0x34] sm:$0xf] %v1112
        %1129 = vst [vmem:[%s294 + $0x38] sm:$0xf] %v1113
        %1130 = vst [vmem:[%s294 + $0x3c] sm:$0xf] %v1114
        %s1131 = smul.u32 16, %s31
        %p1132 = scmp.lt.s32.totalorder %s32, 1
        %s1133 = scalar_select %p1132, %s32, 1
        %p1134 = scmp.lt.s32.totalorder %s1131, 15
        %s1135 = scalar_select %p1134, %s1131, 15
        %s1136 = smul.addr %s1133, 16
        %s1137 = sadd.s32 %s1135, %s1136
        %s1138 = smul.addr %s1137, 4
        %s1139 = scalar_lea.vmem %s6, %s1138
        %s1140 = sand.u32 %s192, 1
        %s1141 = sand.u32 %s192, 1
        %s1142 = smul.addr %s1141, 64
        %s1143 = scalar_lea.vmem [#allocation4], %s1142
        // Predicated region
        $region41: #{_lambda_.10} parent=39 // pred_check
          %p1144 = pneg %p174
        $region42: #{_lambda_.10} parent=39 // pred_check_branch
          %1146 = sbr.rel (%p1144) target = $region44
        $region43: #{_lambda_.10} parent=39 // pred_region
          %s1147 = smul.u32 16, %s31
        $region44: #{_lambda_.10} parent=39 // pred_fallthru
          _
        // Predicated region
        $region45: #{_lambda_.10} parent=39 // pred_check
          %p1148 = pneg %p202
        $region46: #{_lambda_.10} parent=39 // pred_check_branch
          %1150 = sbr.rel (%p1148) target = $region48
        $region47: #{_lambda_.10} parent=39 // pred_region
          %s1151 = smul.u32 16, %s31
          %s1152 = smul.addr %s1151, 2
          %s1153 = sadd.s32 %s32, %s1152
          %s1154 = smul.addr %s1153, 4
          %s1155 = scalar_lea.vmem %s7, %s1154
          // Predicated region
          $region49: #{_lambda_.10} parent=47 // pred_check
            _
          $region50: #{_lambda_.10} parent=47 // pred_check_branch
            %1157 = sbr.rel (0) target = $region52
          $region51: #{_lambda_.10} parent=47 // pred_region
            // Predicated region
            $region53: #{_lambda_.10} parent=51 // pred_check
              _
            $region54: #{_lambda_.10} parent=51 // pred_check_branch
              %1159 = sbr.rel target = $region56
            $region55: #{_lambda_.10} parent=51 // pred_region
              // Predicated region
              $region68: #{_lambda_.10} parent=55 // pred_check
                _
              $region69: #{_lambda_.10} parent=55 // pred_check_branch
                %1205 = sbr.rel (0) target = $region71
              $region70: #{_lambda_.10} parent=55 // pred_region
                loop: start=0, step=1, limit=1
                $region72: #{_lambda_.10} parent=70 // loop_pre_header
                  _
                $region73: #{_lambda_.10} parent=70 // loop_header
                  %s1207 = sphi 0, %s1211
                  %p1208 = scmp.ge.s32.totalorder %s1207, 1
                  %s1212 = sphi %s1143, %s1143
                  %s1213 = sphi %s1155, %s1155
                $region74: #{_lambda_.10} parent=70 // loop_header_branch
                  %1210 = sbr.rel (%p1208) target = $region78
                $region75: #{_lambda_.10} parent=70 // loop_body
                  _
                $region76: #{_lambda_.10} parent=70 // loop_footer
                  %s1211 = sadd.s32 1, %s1207
                $region77: #{_lambda_.10} parent=70 // loop_footer_branch
                  %1206 = sbr.rel target = $region73
                $region78: #{_lambda_.10} parent=70 // loop_exit
                  _
                %s1215 = ssub.s32 16, 1
                loop: start=0, step=1, limit=1
                $region79: #{_lambda_.10} parent=70 // loop_pre_header
                  _
                $region80: #{_lambda_.10} parent=70 // loop_header
                  %s1217 = sphi 0, %s1221
                  %p1218 = scmp.ge.s32.totalorder %s1217, 1
                  %s1222 = sphi %s1143, %s1143
                  %s1223 = sphi %s1155, %s1155
                $region81: #{_lambda_.10} parent=70 // loop_header_branch
                  %1220 = sbr.rel (%p1218) target = $region85
                $region82: #{_lambda_.10} parent=70 // loop_body
                  %v1224 = vld [vmem:[%s1222] sm:%s1215]
                  %1225 = vst [vmem:[%s1223] sm:%s1215] %v1224
                  %v1226 = vld [vmem:[%s1222 + $0x4] sm:%s1215]
                  %1227 = vst [vmem:[%s1223 + $0x8] sm:%s1215] %v1226
                  %v1228 = vld [vmem:[%s1222 + $0x8] sm:%s1215]
                  %1229 = vst [vmem:[%s1223 + $0x10] sm:%s1215] %v1228
                  %v1230 = vld [vmem:[%s1222 + $0xc] sm:%s1215]
                  %1231 = vst [vmem:[%s1223 + $0x18] sm:%s1215] %v1230
                  %v1232 = vld [vmem:[%s1222 + $0x10] sm:%s1215]
                  %1233 = vst [vmem:[%s1223 + $0x20] sm:%s1215] %v1232
                  %v1234 = vld [vmem:[%s1222 + $0x14] sm:%s1215]
                  %1235 = vst [vmem:[%s1223 + $0x28] sm:%s1215] %v1234
                  %v1236 = vld [vmem:[%s1222 + $0x18] sm:%s1215]
                  %1237 = vst [vmem:[%s1223 + $0x30] sm:%s1215] %v1236
                  %v1238 = vld [vmem:[%s1222 + $0x1c] sm:%s1215]
                  %1239 = vst [vmem:[%s1223 + $0x38] sm:%s1215] %v1238
                  %v1240 = vld [vmem:[%s1222 + $0x20] sm:%s1215]
                  %1241 = vst [vmem:[%s1223 + $0x40] sm:%s1215] %v1240
                  %v1242 = vld [vmem:[%s1222 + $0x24] sm:%s1215]
                  %1243 = vst [vmem:[%s1223 + $0x48] sm:%s1215] %v1242
                  %v1244 = vld [vmem:[%s1222 + $0x28] sm:%s1215]
                  %1245 = vst [vmem:[%s1223 + $0x50] sm:%s1215] %v1244
                  %v1246 = vld [vmem:[%s1222 + $0x2c] sm:%s1215]
                  %1247 = vst [vmem:[%s1223 + $0x58] sm:%s1215] %v1246
                  %v1248 = vld [vmem:[%s1222 + $0x30] sm:%s1215]
                  %1249 = vst [vmem:[%s1223 + $0x60] sm:%s1215] %v1248
                  %v1250 = vld [vmem:[%s1222 + $0x34] sm:%s1215]
                  %1251 = vst [vmem:[%s1223 + $0x68] sm:%s1215] %v1250
                  %v1252 = vld [vmem:[%s1222 + $0x38] sm:%s1215]
                  %1253 = vst [vmem:[%s1223 + $0x70] sm:%s1215] %v1252
                  %v1254 = vld [vmem:[%s1222 + $0x3c] sm:%s1215]
                  %1255 = vst [vmem:[%s1223 + $0x78] sm:%s1215] %v1254
                $region83: #{_lambda_.10} parent=70 // loop_footer
                  %s1221 = sadd.s32 1, %s1217
                $region84: #{_lambda_.10} parent=70 // loop_footer_branch
                  %1216 = sbr.rel target = $region80
                $region85: #{_lambda_.10} parent=70 // loop_exit
                  _
              $region71: #{_lambda_.10} parent=55 // pred_fallthru
                _
            $region56: #{_lambda_.10} parent=51 // pred_fallthru
              _
            // Predicated region
            $region57: #{_lambda_.10} parent=51 // pred_check
              _
            $region58: #{_lambda_.10} parent=51 // pred_check_branch
              %1161 = sbr.rel (0) target = $region60
            $region59: #{_lambda_.10} parent=51 // pred_region
              %s1163 = ssub.s32 16, 1
              loop: start=0, step=1, limit=1
              $region61: #{_lambda_.10} parent=59 // loop_pre_header
                _
              $region62: #{_lambda_.10} parent=59 // loop_header
                %s1165 = sphi 0, %s1169
                %p1166 = scmp.ge.s32.totalorder %s1165, 1
                %s1170 = sphi %s1143, %s1143
                %s1171 = sphi %s1155, %s1155
              $region63: #{_lambda_.10} parent=59 // loop_header_branch
                %1168 = sbr.rel (%p1166) target = $region67
              $region64: #{_lambda_.10} parent=59 // loop_body
                %v1172 = vld [vmem:[%s1170] sm:%s1163]
                %1173 = vst [vmem:[%s1171] sm:%s1163] %v1172
                %v1174 = vld [vmem:[%s1170 + $0x4] sm:%s1163]
                %1175 = vst [vmem:[%s1171 + $0x8] sm:%s1163] %v1174
                %v1176 = vld [vmem:[%s1170 + $0x8] sm:%s1163]
                %1177 = vst [vmem:[%s1171 + $0x10] sm:%s1163] %v1176
                %v1178 = vld [vmem:[%s1170 + $0xc] sm:%s1163]
                %1179 = vst [vmem:[%s1171 + $0x18] sm:%s1163] %v1178
                %v1180 = vld [vmem:[%s1170 + $0x10] sm:%s1163]
                %1181 = vst [vmem:[%s1171 + $0x20] sm:%s1163] %v1180
                %v1182 = vld [vmem:[%s1170 + $0x14] sm:%s1163]
                %1183 = vst [vmem:[%s1171 + $0x28] sm:%s1163] %v1182
                %v1184 = vld [vmem:[%s1170 + $0x18] sm:%s1163]
                %1185 = vst [vmem:[%s1171 + $0x30] sm:%s1163] %v1184
                %v1186 = vld [vmem:[%s1170 + $0x1c] sm:%s1163]
                %1187 = vst [vmem:[%s1171 + $0x38] sm:%s1163] %v1186
                %v1188 = vld [vmem:[%s1170 + $0x20] sm:%s1163]
                %1189 = vst [vmem:[%s1171 + $0x40] sm:%s1163] %v1188
                %v1190 = vld [vmem:[%s1170 + $0x24] sm:%s1163]
                %1191 = vst [vmem:[%s1171 + $0x48] sm:%s1163] %v1190
                %v1192 = vld [vmem:[%s1170 + $0x28] sm:%s1163]
                %1193 = vst [vmem:[%s1171 + $0x50] sm:%s1163] %v1192
                %v1194 = vld [vmem:[%s1170 + $0x2c] sm:%s1163]
                %1195 = vst [vmem:[%s1171 + $0x58] sm:%s1163] %v1194
                %v1196 = vld [vmem:[%s1170 + $0x30] sm:%s1163]
                %1197 = vst [vmem:[%s1171 + $0x60] sm:%s1163] %v1196
                %v1198 = vld [vmem:[%s1170 + $0x34] sm:%s1163]
                %1199 = vst [vmem:[%s1171 + $0x68] sm:%s1163] %v1198
                %v1200 = vld [vmem:[%s1170 + $0x38] sm:%s1163]
                %1201 = vst [vmem:[%s1171 + $0x70] sm:%s1163] %v1200
                %v1202 = vld [vmem:[%s1170 + $0x3c] sm:%s1163]
                %1203 = vst [vmem:[%s1171 + $0x78] sm:%s1163] %v1202
              $region65: #{_lambda_.10} parent=59 // loop_footer
                %s1169 = sadd.s32 1, %s1165
              $region66: #{_lambda_.10} parent=59 // loop_footer_branch
                %1164 = sbr.rel target = $region62
              $region67: #{_lambda_.10} parent=59 // loop_exit
                _
            $region60: #{_lambda_.10} parent=51 // pred_fallthru
              _
          $region52: #{_lambda_.10} parent=47 // pred_fallthru
            _
          %1256 = vnop
        $region48: #{_lambda_.10} parent=39 // pred_fallthru
          _
      $region40: #{_lambda_.10} parent=5 // pred_fallthru
        _
      %p1257 = scmp.le.s32.totalorder 2, %s22
      // Predicated region
      $region86: #{_lambda_.10} parent=5 // pred_check
        %p1258 = pneg %p1257
      $region87: #{_lambda_.10} parent=5 // pred_check_branch
        %1260 = sbr.rel (%p1258) target = $region89
      $region88: #{_lambda_.10} parent=5 // pred_region
        %s1261 = ssub.s32 %s22, 2
        // Predicated region
        $region90: #{_lambda_.10} parent=88 // pred_check
          %p1262 = pneg %p180
        $region91: #{_lambda_.10} parent=88 // pred_check_branch
          %1264 = sbr.rel (%p1262) target = $region93
        $region92: #{_lambda_.10} parent=88 // pred_region
          %s1265 = smul.u32 16, %s33
          %p1266 = scmp.lt.s32.totalorder %s34, 1
          %s1267 = scalar_select %p1266, %s34, 1
          %p1268 = scmp.lt.s32.totalorder %s1265, 15
          %s1269 = scalar_select %p1268, %s1265, 15
          %s1270 = smul.addr %s1267, 16
          %s1271 = sadd.s32 %s1269, %s1270
          %s1272 = smul.addr %s1271, 4
          %s1273 = scalar_lea.vmem %s6, %s1272
        $region93: #{_lambda_.10} parent=88 // pred_fallthru
          _
        // Predicated region
        $region94: #{_lambda_.10} parent=88 // pred_check
          %p1274 = pneg %p208
        $region95: #{_lambda_.10} parent=88 // pred_check_branch
          %1276 = sbr.rel (%p1274) target = $region97
        $region96: #{_lambda_.10} parent=88 // pred_region
          %s1277 = sand.u32 %s193, 1
          %s1278 = sand.u32 %s193, 1
          %s1279 = smul.addr %s1278, 64
          %s1280 = scalar_lea.vmem [#allocation4], %s1279
        $region97: #{_lambda_.10} parent=88 // pred_fallthru
          _
      $region89: #{_lambda_.10} parent=5 // pred_fallthru
        _
    $region6: #{_lambda_.10} parent=1 // loop_footer
      %s26 = sadd.s32 1, %s22
    $region7: #{_lambda_.10} parent=1 // loop_footer_branch
      %21 = sbr.rel target = $region3
    $region8: #{_lambda_.10} parent=1 // loop_exit
      _

// kernel: _lambda_.13
$region0: #{_lambda_.13}
  #allocation0 [shape = 'u32[]', space=smem, size = 0x4, offset = 0x4, fixed_abs, tag = 'smem constant byte address 0x4 - core index']
  #allocation1 [shape = 'u32[72,128]{1,0:T(1,128)}', space=vmem, size = 0x9000, scoped, tag = 'internal scratch']
  %s0 = inlined_call_operand.vmem [shape: bf16[128,256], index: 0, kind: input, shape index: {}]
  %s1 = inlined_call_operand.vmem [shape: bf16[1,256,128], index: 1, kind: input, shape index: {}]
  %s2 = inlined_call_operand.vmem [shape: f32[1,1,128], index: 2, kind: input, shape index: {}]
  %s3 = inlined_call_operand.vmem [shape: bf16[1,128,128], index: 3, kind: output, shape index: {}]
  %s4 = sld [smem:[#allocation0]]
  $region22: #{_lambda_.13} parent=0
    _
  %s6 = ssub.s32 1, %s4
  %s7 = scalar_select 0, %s6, %s4
  // Predicated region
  $region2: #{_lambda_.13} parent=0 // pred_check
    _
  $region3: #{_lambda_.13} parent=0 // pred_check_branch
    %9 = sbr.rel (0) target = $region5
  $region4: #{_lambda_.13} parent=0 // pred_region
    _
  $region5: #{_lambda_.13} parent=0 // pred_fallthru
    _
  // Predicated region
  $region6: #{_lambda_.13} parent=0 // pred_check
    _
  $region7: #{_lambda_.13} parent=0 // pred_check_branch
    %11 = sbr.rel (0) target = $region9
  $region8: #{_lambda_.13} parent=0 // pred_region
    _
  $region9: #{_lambda_.13} parent=0 // pred_fallthru
    _
  // Predicated region
  $region10: #{_lambda_.13} parent=0 // pred_check
    _
  $region11: #{_lambda_.13} parent=0 // pred_check_branch
    %13 = sbr.rel (0) target = $region13
  $region12: #{_lambda_.13} parent=0 // pred_region
    _
  $region13: #{_lambda_.13} parent=0 // pred_fallthru
    _
  %v14 = vld [vmem:[%s0] sm:$0xff]
  %v15 = vld [vmem:[%s0 + $0x8] sm:$0xff]
  %v16 = vld [vmem:[%s0 + $0x10] sm:$0xff]
  %v17 = vld [vmem:[%s0 + $0x18] sm:$0xff]
  %v18 = vld [vmem:[%s0 + $0x20] sm:$0xff]
  %v19 = vld [vmem:[%s0 + $0x28] sm:$0xff]
  %v20 = vld [vmem:[%s0 + $0x30] sm:$0xff]
  %v21 = vld [vmem:[%s0 + $0x38] sm:$0xff]
  %v22 = vld [vmem:[%s0 + $0x40] sm:$0xff]
  %v23 = vld [vmem:[%s0 + $0x48] sm:$0xff]
  %v24 = vld [vmem:[%s0 + $0x50] sm:$0xff]
  %v25 = vld [vmem:[%s0 + $0x58] sm:$0xff]
  %v26 = vld [vmem:[%s0 + $0x60] sm:$0xff]
  %v27 = vld [vmem:[%s0 + $0x68] sm:$0xff]
  %v28 = vld [vmem:[%s0 + $0x70] sm:$0xff]
  %v29 = vld [vmem:[%s0 + $0x78] sm:$0xff]
  %v30 = vld [vmem:[%s1] sm:$0xf]
  %v31 = vld [vmem:[%s1 + $0x4] sm:$0xf]
  %v32 = vld [vmem:[%s1 + $0x8] sm:$0xf]
  %v33 = vld [vmem:[%s1 + $0xc] sm:$0xf]
  %v34 = vld [vmem:[%s1 + $0x10] sm:$0xf]
  %v35 = vld [vmem:[%s1 + $0x14] sm:$0xf]
  %v36 = vld [vmem:[%s1 + $0x18] sm:$0xf]
  %v37 = vld [vmem:[%s1 + $0x1c] sm:$0xf]
  %v38 = vld [vmem:[%s1 + $0x20] sm:$0xf]
  %v39 = vld [vmem:[%s1 + $0x24] sm:$0xf]
  %v40 = vld [vmem:[%s1 + $0x28] sm:$0xf]
  %v41 = vld [vmem:[%s1 + $0x2c] sm:$0xf]
  %v42 = vld [vmem:[%s1 + $0x30] sm:$0xf]
  %v43 = vld [vmem:[%s1 + $0x34] sm:$0xf]
  %v44 = vld [vmem:[%s1 + $0x38] sm:$0xf]
  %v45 = vld [vmem:[%s1 + $0x3c] sm:$0xf]
  %v46 = vld [vmem:[%s1 + $0x40] sm:$0xf]
  %v47 = vld [vmem:[%s1 + $0x44] sm:$0xf]
  %v48 = vld [vmem:[%s1 + $0x48] sm:$0xf]
  %v49 = vld [vmem:[%s1 + $0x4c] sm:$0xf]
  %v50 = vld [vmem:[%s1 + $0x50] sm:$0xf]
  %v51 = vld [vmem:[%s1 + $0x54] sm:$0xf]
  %v52 = vld [vmem:[%s1 + $0x58] sm:$0xf]
  %v53 = vld [vmem:[%s1 + $0x5c] sm:$0xf]
  %v54 = vld [vmem:[%s1 + $0x60] sm:$0xf]
  %v55 = vld [vmem:[%s1 + $0x64] sm:$0xf]
  %v56 = vld [vmem:[%s1 + $0x68] sm:$0xf]
  %v57 = vld [vmem:[%s1 + $0x6c] sm:$0xf]
  %v58 = vld [vmem:[%s1 + $0x70] sm:$0xf]
  %v59 = vld [vmem:[%s1 + $0x74] sm:$0xf]
  %v60 = vld [vmem:[%s1 + $0x78] sm:$0xf]
  %v61 = vld [vmem:[%s1 + $0x7c] sm:$0xf]
  %v62 = vld [vmem:[%s2] sm:$0x1]
  %v64 = vperm.slane %v62, 0
  %v82 = vunpack.c.l.b16 %v14
  %v83 = vunpack.c.h.b16 %v14
  %v84 = vunpack.c.l.b16 %v15
  %v85 = vunpack.c.h.b16 %v15
  %v86 = vunpack.c.l.b16 %v16
  %v87 = vunpack.c.h.b16 %v16
  %v88 = vunpack.c.l.b16 %v17
  %v89 = vunpack.c.h.b16 %v17
  %v90 = vunpack.c.l.b16 %v18
  %v91 = vunpack.c.h.b16 %v18
  %v92 = vunpack.c.l.b16 %v19
  %v93 = vunpack.c.h.b16 %v19
  %v94 = vunpack.c.l.b16 %v20
  %v95 = vunpack.c.h.b16 %v20
  %v96 = vunpack.c.l.b16 %v21
  %v97 = vunpack.c.h.b16 %v21
  %v98 = vunpack.c.l.b16 %v22
  %v99 = vunpack.c.h.b16 %v22
  %v100 = vunpack.c.l.b16 %v23
  %v101 = vunpack.c.h.b16 %v23
  %v102 = vunpack.c.l.b16 %v24
  %v103 = vunpack.c.h.b16 %v24
  %v104 = vunpack.c.l.b16 %v25
  %v105 = vunpack.c.h.b16 %v25
  %v106 = vunpack.c.l.b16 %v26
  %v107 = vunpack.c.h.b16 %v26
  %v108 = vunpack.c.l.b16 %v27
  %v109 = vunpack.c.h.b16 %v27
  %v110 = vunpack.c.l.b16 %v28
  %v111 = vunpack.c.h.b16 %v28
  %v112 = vunpack.c.l.b16 %v29
  %v113 = vunpack.c.h.b16 %v29
  %v114 = vpack.c.b16 %v84, %v82
  %v115 = vpack.c.b16 %v85, %v83
  %v116 = vpack.c.b16 %v88, %v86
  %v117 = vpack.c.b16 %v89, %v87
  %v118 = vpack.c.b16 %v92, %v90
  %v119 = vpack.c.b16 %v93, %v91
  %v120 = vpack.c.b16 %v96, %v94
  %v121 = vpack.c.b16 %v97, %v95
  %v122 = vpack.c.b16 %v100, %v98
  %v123 = vpack.c.b16 %v101, %v99
  %v124 = vpack.c.b16 %v104, %v102
  %v125 = vpack.c.b16 %v105, %v103
  %v126 = vpack.c.b16 %v108, %v106
  %v127 = vpack.c.b16 %v109, %v107
  %v128 = vpack.c.b16 %v112, %v110
  %v129 = vpack.c.b16 %v113, %v111
  %v178 = vunpack.c.l.b16 %v30
  %v179 = vunpack.c.l.b16 %v31
  %v180 = vunpack.c.l.b16 %v32
  %v181 = vunpack.c.l.b16 %v33
  %v182 = vunpack.c.l.b16 %v34
  %v183 = vunpack.c.l.b16 %v35
  %v184 = vunpack.c.l.b16 %v36
  %v185 = vunpack.c.l.b16 %v37
  %v186 = vunpack.c.l.b16 %v38
  %v187 = vunpack.c.l.b16 %v39
  %v188 = vunpack.c.l.b16 %v40
  %v189 = vunpack.c.l.b16 %v41
  %v190 = vunpack.c.l.b16 %v42
  %v191 = vunpack.c.l.b16 %v43
  %v192 = vunpack.c.l.b16 %v44
  %v193 = vunpack.c.l.b16 %v45
  %v194 = vunpack.c.l.b16 %v46
  %v195 = vunpack.c.l.b16 %v47
  %v196 = vunpack.c.l.b16 %v48
  %v197 = vunpack.c.l.b16 %v49
  %v198 = vunpack.c.l.b16 %v50
  %v199 = vunpack.c.l.b16 %v51
  %v200 = vunpack.c.l.b16 %v52
  %v201 = vunpack.c.l.b16 %v53
  %v202 = vunpack.c.l.b16 %v54
  %v203 = vunpack.c.l.b16 %v55
  %v204 = vunpack.c.l.b16 %v56
  %v205 = vunpack.c.l.b16 %v57
  %v206 = vunpack.c.l.b16 %v58
  %v207 = vunpack.c.l.b16 %v59
  %v208 = vunpack.c.l.b16 %v60
  %v209 = vunpack.c.l.b16 %v61
  %v210 = vpack.c.b16 %v179, %v178
  %v211 = vpack.c.b16 %v181, %v180
  %v212 = vpack.c.b16 %v183, %v182
  %v213 = vpack.c.b16 %v185, %v184
  %v214 = vpack.c.b16 %v187, %v186
  %v215 = vpack.c.b16 %v189, %v188
  %v216 = vpack.c.b16 %v191, %v190
  %v217 = vpack.c.b16 %v193, %v192
  %v218 = vpack.c.b16 %v195, %v194
  %v219 = vpack.c.b16 %v197, %v196
  %v220 = vpack.c.b16 %v199, %v198
  %v221 = vpack.c.b16 %v201, %v200
  %v222 = vpack.c.b16 %v203, %v202
  %v223 = vpack.c.b16 %v205, %v204
  %v224 = vpack.c.b16 %v207, %v206
  %v225 = vpack.c.b16 %v209, %v208
  %242 = vmatpush.bf16.msra.mxu0 %v217
  %243 = vmatpush.bf16.msra.mxu0 %v216
  %244 = vmatpush.bf16.msra.mxu0 %v215
  %245 = vmatpush.bf16.msra.mxu0 %v214
  %246 = vmatpush.bf16.msra.mxu0 %v213
  %247 = vmatpush.bf16.msra.mxu0 %v212
  %248 = vmatpush.bf16.msra.mxu0 %v211
  %249 = vmatpush.bf16.msra.mxu0 %v210
  %250 = vmatmul.bf16.gmra.mxu0 %v114
  %v251 = vpop.f32.mrf.mxu0
  %v252 = vadd.f32 %v64, %v251
  %v253 = vpop.f32.mrf.mxu0
  %v254 = vadd.f32 %v64, %v253
  %255 = vmatmul.bf16.gmra.mxu0 %v116
  %v256 = vpop.f32.mrf.mxu0
  %v257 = vadd.f32 %v64, %v256
  %v258 = vpop.f32.mrf.mxu0
  %v259 = vadd.f32 %v64, %v258
  %260 = vmatmul.bf16.gmra.mxu0 %v118
  %v261 = vpop.f32.mrf.mxu0
  %v262 = vadd.f32 %v64, %v261
  %v263 = vpop.f32.mrf.mxu0
  %v264 = vadd.f32 %v64, %v263
  %265 = vmatmul.bf16.gmra.mxu0 %v120
  %v266 = vpop.f32.mrf.mxu0
  %v267 = vadd.f32 %v64, %v266
  %v268 = vpop.f32.mrf.mxu0
  %v269 = vadd.f32 %v64, %v268
  %270 = vmatmul.bf16.gmra.mxu0 %v122
  %v271 = vpop.f32.mrf.mxu0
  %v272 = vadd.f32 %v64, %v271
  %v273 = vpop.f32.mrf.mxu0
  %v274 = vadd.f32 %v64, %v273
  %275 = vmatmul.bf16.gmra.mxu0 %v124
  %v276 = vpop.f32.mrf.mxu0
  %v277 = vadd.f32 %v64, %v276
  %v278 = vpop.f32.mrf.mxu0
  %v279 = vadd.f32 %v64, %v278
  %280 = vmatmul.bf16.gmra.mxu0 %v126
  %v281 = vpop.f32.mrf.mxu0
  %v282 = vadd.f32 %v64, %v281
  %v283 = vpop.f32.mrf.mxu0
  %v284 = vadd.f32 %v64, %v283
  %285 = vmatmul.bf16.gmra.mxu0 %v128
  %v286 = vpop.f32.mrf.mxu0
  %v287 = vadd.f32 %v64, %v286
  %v288 = vpop.f32.mrf.mxu0
  %v289 = vadd.f32 %v64, %v288
  %290 = vdwg.mxu0
  %291 = vmatpush.bf16.msra.mxu0 %v225
  %292 = vmatpush.bf16.msra.mxu0 %v224
  %293 = vmatpush.bf16.msra.mxu0 %v223
  %294 = vmatpush.bf16.msra.mxu0 %v222
  %295 = vmatpush.bf16.msra.mxu0 %v221
  %296 = vmatpush.bf16.msra.mxu0 %v220
  %297 = vmatpush.bf16.msra.mxu0 %v219
  %298 = vmatpush.bf16.msra.mxu0 %v218
  %299 = vmatmul.bf16.gmra.mxu0 %v115
  %v300 = vpop.f32.mrf.mxu0
  %v301 = vadd.f32 %v252, %v300
  %v302 = vpop.f32.mrf.mxu0
  %v303 = vadd.f32 %v254, %v302
  %304 = vmatmul.bf16.gmra.mxu0 %v117
  %v305 = vpop.f32.mrf.mxu0
  %v306 = vadd.f32 %v257, %v305
  %v307 = vpop.f32.mrf.mxu0
  %v308 = vadd.f32 %v259, %v307
  %309 = vmatmul.bf16.gmra.mxu0 %v119
  %v310 = vpop.f32.mrf.mxu0
  %v311 = vadd.f32 %v262, %v310
  %v312 = vpop.f32.mrf.mxu0
  %v313 = vadd.f32 %v264, %v312
  %314 = vmatmul.bf16.gmra.mxu0 %v121
  %v315 = vpop.f32.mrf.mxu0
  %v316 = vadd.f32 %v267, %v315
  %v317 = vpop.f32.mrf.mxu0
  %v318 = vadd.f32 %v269, %v317
  %319 = vmatmul.bf16.gmra.mxu0 %v123
  %v320 = vpop.f32.mrf.mxu0
  %v321 = vadd.f32 %v272, %v320
  %v322 = vpop.f32.mrf.mxu0
  %v323 = vadd.f32 %v274, %v322
  %324 = vmatmul.bf16.gmra.mxu0 %v125
  %v325 = vpop.f32.mrf.mxu0
  %v326 = vadd.f32 %v277, %v325
  %v327 = vpop.f32.mrf.mxu0
  %v328 = vadd.f32 %v279, %v327
  %329 = vmatmul.bf16.gmra.mxu0 %v127
  %v330 = vpop.f32.mrf.mxu0
  %v331 = vadd.f32 %v282, %v330
  %v332 = vpop.f32.mrf.mxu0
  %v333 = vadd.f32 %v284, %v332
  %334 = vmatmul.bf16.gmra.mxu0 %v129
  %v335 = vpop.f32.mrf.mxu0
  %v336 = vadd.f32 %v287, %v335
  %v337 = vpop.f32.mrf.mxu0
  %v338 = vadd.f32 %v289, %v337
  %339 = vdwg.mxu0
  %v340 = vpack.c.bf16 %v301, %v301
  %v341 = vpack.c.bf16 %v303, %v303
  %v342 = vpack.c.bf16 %v306, %v306
  %v343 = vpack.c.bf16 %v308, %v308
  %v344 = vpack.c.bf16 %v311, %v311
  %v345 = vpack.c.bf16 %v313, %v313
  %v346 = vpack.c.bf16 %v316, %v316
  %v347 = vpack.c.bf16 %v318, %v318
  %v348 = vpack.c.bf16 %v321, %v321
  %v349 = vpack.c.bf16 %v323, %v323
  %v350 = vpack.c.bf16 %v326, %v326
  %v351 = vpack.c.bf16 %v328, %v328
  %v352 = vpack.c.bf16 %v331, %v331
  %v353 = vpack.c.bf16 %v333, %v333
  %v354 = vpack.c.bf16 %v336, %v336
  %v355 = vpack.c.bf16 %v338, %v338
  %356 = vst [vmem:[%s3] sm:$0xf] %v340
  %357 = vst [vmem:[%s3 + $0x4] sm:$0xf] %v341
  %358 = vst [vmem:[%s3 + $0x8] sm:$0xf] %v342
  %359 = vst [vmem:[%s3 + $0xc] sm:$0xf] %v343
  %360 = vst [vmem:[%s3 + $0x10] sm:$0xf] %v344
  %361 = vst [vmem:[%s3 + $0x14] sm:$0xf] %v345
  %362 = vst [vmem:[%s3 + $0x18] sm:$0xf] %v346
  %363 = vst [vmem:[%s3 + $0x1c] sm:$0xf] %v347
  %364 = vst [vmem:[%s3 + $0x20] sm:$0xf] %v348
  %365 = vst [vmem:[%s3 + $0x24] sm:$0xf] %v349
  %366 = vst [vmem:[%s3 + $0x28] sm:$0xf] %v350
  %367 = vst [vmem:[%s3 + $0x2c] sm:$0xf] %v351
  %368 = vst [vmem:[%s3 + $0x30] sm:$0xf] %v352
  %369 = vst [vmem:[%s3 + $0x34] sm:$0xf] %v353
  %370 = vst [vmem:[%s3 + $0x38] sm:$0xf] %v354
  %371 = vst [vmem:[%s3 + $0x3c] sm:$0xf] %v355
  // Predicated region
  $region14: #{_lambda_.13} parent=0 // pred_check
    _
  $region15: #{_lambda_.13} parent=0 // pred_check_branch
    %373 = sbr.rel (0) target = $region17
  $region16: #{_lambda_.13} parent=0 // pred_region
    _
  $region17: #{_lambda_.13} parent=0 // pred_fallthru
    _
  // Predicated region
  $region18: #{_lambda_.13} parent=0 // pred_check
    _
  $region19: #{_lambda_.13} parent=0 // pred_check_branch
    %375 = sbr.rel (0) target = $region21
  $region20: #{_lambda_.13} parent=0 // pred_region
    _
  $region21: #{_lambda_.13} parent=0 // pred_fallthru
    _

// kernel: _lambda_.12
$region0: #{_lambda_.12}
  #allocation0 [shape = 'u32[]', space=smem, size = 0x4, offset = 0x4, fixed_abs, tag = 'smem constant byte address 0x4 - core index']
  #allocation1 [shape = 'u32[72,128]{1,0:T(1,128)}', space=vmem, size = 0x9000, scoped, tag = 'internal scratch']
  #allocation2 [shape = 's32[1]{0}', space=sflag, size = 0x4, scoped, tag = 'scoped memory for _lambda_.12']
  #allocation3 [shape = 'u8[1024]{0}', space=smem, size = 0x400, scoped, tag = 'prefetched SMEM operand 0']
  %s0 = inlined_call_operand.vmem [shape: f32[2,3], index: 0, kind: input, shape index: {}]
  %s1 = inlined_call_operand.vmem [shape: f32[2,1,128], index: 1, kind: input, shape index: {}]
  %s2 = inlined_call_operand.vmem [shape: f32[2,128,1], index: 2, kind: input, shape index: {}]
  %s3 = inlined_call_operand.vmem [shape: s8[128,128], index: 3, kind: input, shape index: {}]
  %s4 = inlined_call_operand.vmem [shape: bf16[2,128,128], index: 4, kind: input, shape index: {}]
  %s5 = inlined_call_operand.vmem [shape: bf16[2,128,128], index: 5, kind: input, shape index: {}]
  %s6 = inlined_call_operand.vmem [shape: bf16[128,256], index: 6, kind: input, shape index: {}]
  %s7 = inlined_call_operand.vmem [shape: f32[2,1,128], index: 7, kind: input, shape index: {}]
  %s8 = inlined_call_operand.hbm [shape: bf16[2,128,128], index: 8, kind: output, shape index: {0}]
  %s9 = inlined_call_operand.vmem [shape: bf16[128,256], index: 9, kind: output, shape index: {1}]
  %10 = xla_tuple %s8, %s9
  %s11 = sld [smem:[#allocation0]]
  $region147: #{_lambda_.12} parent=0
    _
  %s13 = ssub.s32 1, %s11
  %s14 = scalar_select 0, %s13, %s11
  %s16 = sshll.u32 %s0, 4
  %s17 = int_to_ptr.vmem [resolvable:$true] %s16
  %19 = dma.vmem_to_smem %s17, 32, [#allocation3], [#allocation2]
  %21 = dma.done [#allocation2], 32
  %22 = sfence
  $region1: #{_lambda_.12} parent=0
    #allocation4 [shape = 'u8[65536]{0}', space=vmem, size = 0x10000, scoped, tag = 'input window, operand 6']
    #allocation5 [shape = 'u8[65536]{0}', space=vmem, size = 0x10000, scoped, tag = 'output window, operand 0']
    #allocation6 [shape = 's32[2]{0}', space=sflag, size = 0x8, scoped, tag = 'scoped memory for _lambda_.12']
    #allocation7 [shape = 'u8[65536]{0}', space=vmem, size = 0x10000, scoped, tag = 'output window, operand 1']
    %23 = vsyncpa [#allocation6], 0
    %s24 = scalar_lea.sflag [#allocation6], 1
    %25 = vsyncpa %s24, 0
    loop: start=0, step=1, limit=4
    $region2: #{_lambda_.12} parent=1 // loop_pre_header
      _
    $region3: #{_lambda_.12} parent=1 // loop_header
      %s27 = sphi 0, %s31
      %p28 = scmp.ge.s32.totalorder %s27, 4
      %s34 = sphi 0, %s46
      %s35 = sphi 0, %s42
      %s36 = sphi 0, %s34
      %s37 = sphi 0, %s35
      %s38 = sphi 0, %s36
      %s39 = sphi 0, %s37
      %s47 = sphi 0, %s47
      %s49 = sphi 0, %s47
      %s50 = sphi 0, %s49
      %s64 = sphi 0, %s50
      %s70 = sphi 0, %s72
      %s73 = sphi 0, %s70
      %s74 = sphi 0, %s73
      %s90 = sphi 0, %s74
      %s96 = sphi 0, %s98
      %s99 = sphi 0, %s96
      %s100 = sphi 0, %s99
      %s116 = sphi 0, %s100
      %s120 = sphi 0, %s120
      %s122 = sphi 0, %s120
      %s123 = sphi 0, %s122
      %s137 = sphi 0, %s123
      %s145 = sphi 0, %s147
      %s148 = sphi 0, %s145
      %s149 = sphi 0, %s148
      %s165 = sphi 0, %s149
      %s173 = sphi 0, %s175
      %s176 = sphi 0, %s173
      %s177 = sphi 0, %s176
      %s193 = sphi 0, %s177
      %s197 = sphi 0, %s197
      %s199 = sphi 0, %s197
      %s200 = sphi 0, %s199
      %s214 = sphi 0, %s200
      %s222 = sphi 0, %s224
      %s225 = sphi 0, %s222
      %s226 = sphi 0, %s225
      %s242 = sphi 0, %s226
      %s250 = sphi 0, %s252
      %s253 = sphi 0, %s250
      %s254 = sphi 0, %s253
      %s270 = sphi 0, %s254
    $region4: #{_lambda_.12} parent=1 // loop_header_branch
      %30 = sbr.rel (%p28) target = $region8
    $region5: #{_lambda_.12} parent=1 // loop_body
      %s32 = ssub.s32 %s27, 1
      %s33 = ssub.s32 %s27, 2
      %s40 = sadd.s32 1, %s35
      %p41 = scmp.ge.s32.totalorder %s40, 2
      %s42 = scalar_select %p41, 0, %s40
      %s43 = sadd.s32 1, %s34
      %s44 = scalar_select %p41, %s43, %s34
      %p45 = scmp.ge.s32.totalorder %s44, 1
      %s46 = scalar_select %p45, 0, %s44
      %s48 = sadd.s32 %s47, 1
      %p51 = scmp.eq.s32.totalorder %s27, 1
      %p52 = scmp.ne.s32.totalorder %s47, %s49
      %p53 = scmp.eq.s32.totalorder %s27, 0
      %p54 = por %p52, %p53
      %p55 = scmp.ne.s32.totalorder %s47, %s49
      %p56 = scmp.eq.s32.totalorder %s32, 1
      %p57 = por %p55, %p56
      %p58 = scmp.ne.s32.totalorder %s49, %s50
      %p59 = scmp.eq.s32.totalorder %s32, 0
      %p60 = por %p58, %p59
      %p61 = scmp.ne.s32.totalorder %s49, %s50
      %p62 = scmp.eq.s32.totalorder %s33, 1
      %p63 = por %p61, %p62
      %p65 = scmp.ne.s32.totalorder %s50, %s64
      %p66 = scmp.eq.s32.totalorder %s33, 0
      %p67 = por %p65, %p66
      %s68 = ssub.s32 %s34, %s46
      %p69 = scmp.eq.s32.totalorder %s68, 0
      %s71 = sadd.s32 %s70, 1
      %s72 = scalar_select %p69, %s70, %s71
      %p75 = pneg %p69
      %p76 = scmp.eq.s32.totalorder %s27, 1
      %p77 = por %p75, %p76
      %p78 = scmp.ne.s32.totalorder %s70, %s73
      %p79 = scmp.eq.s32.totalorder %s27, 0
      %p80 = por %p78, %p79
      %p81 = scmp.ne.s32.totalorder %s70, %s73
      %p82 = scmp.eq.s32.totalorder %s32, 1
      %p83 = por %p81, %p82
      %p84 = scmp.ne.s32.totalorder %s73, %s74
      %p85 = scmp.eq.s32.totalorder %s32, 0
      %p86 = por %p84, %p85
      %p87 = scmp.ne.s32.totalorder %s73, %s74
      %p88 = scmp.eq.s32.totalorder %s33, 1
      %p89 = por %p87, %p88
      %p91 = scmp.ne.s32.totalorder %s74, %s90
      %p92 = scmp.eq.s32.totalorder %s33, 0
      %p93 = por %p91, %p92
      %s94 = ssub.s32 %s34, %s46
      %p95 = scmp.eq.s32.totalorder %s94, 0
      %s97 = sadd.s32 %s96, 1
      %s98 = scalar_select %p95, %s96, %s97
      %p101 = pneg %p95
      %p102 = scmp.eq.s32.totalorder %s27, 1
      %p103 = por %p101, %p102
      %p104 = scmp.ne.s32.totalorder %s96, %s99
      %p105 = scmp.eq.s32.totalorder %s27, 0
      %p106 = por %p104, %p105
      %p107 = scmp.ne.s32.totalorder %s96, %s99
      %p108 = scmp.eq.s32.totalorder %s32, 1
      %p109 = por %p107, %p108
      %p110 = scmp.ne.s32.totalorder %s99, %s100
      %p111 = scmp.eq.s32.totalorder %s32, 0
      %p112 = por %p110, %p111
      %p113 = scmp.ne.s32.totalorder %s99, %s100
      %p114 = scmp.eq.s32.totalorder %s33, 1
      %p115 = por %p113, %p114
      %p117 = scmp.ne.s32.totalorder %s100, %s116
      %p118 = scmp.eq.s32.totalorder %s33, 0
      %p119 = por %p117, %p118
      %s121 = sadd.s32 %s120, 1
      %p124 = scmp.eq.s32.totalorder %s27, 1
      %p125 = scmp.ne.s32.totalorder %s120, %s122
      %p126 = scmp.eq.s32.totalorder %s27, 0
      %p127 = por %p125, %p126
      %p128 = scmp.ne.s32.totalorder %s120, %s122
      %p129 = scmp.eq.s32.totalorder %s32, 1
      %p130 = por %p128, %p129
      %p131 = scmp.ne.s32.totalorder %s122, %s123
      %p132 = scmp.eq.s32.totalorder %s32, 0
      %p133 = por %p131, %p132
      %p134 = scmp.ne.s32.totalorder %s122, %s123
      %p135 = scmp.eq.s32.totalorder %s33, 1
      %p136 = por %p134, %p135
      %p138 = scmp.ne.s32.totalorder %s123, %s137
      %p139 = scmp.eq.s32.totalorder %s33, 0
      %p140 = por %p138, %p139
      %s141 = ssub.s32 %s35, %s42
      %s142 = ssub.s32 %s34, %s46
      %s143 = sor.u32 %s141, %s142
      %p144 = scmp.eq.s32.totalorder %s143, 0
      %s146 = sadd.s32 %s145, 1
      %s147 = scalar_select %p144, %s145, %s146
      %p150 = pneg %p144
      %p151 = scmp.eq.s32.totalorder %s27, 1
      %p152 = por %p150, %p151
      %p153 = scmp.ne.s32.totalorder %s145, %s148
      %p154 = scmp.eq.s32.totalorder %s27, 0
      %p155 = por %p153, %p154
      %p156 = scmp.ne.s32.totalorder %s145, %s148
      %p157 = scmp.eq.s32.totalorder %s32, 1
      %p158 = por %p156, %p157
      %p159 = scmp.ne.s32.totalorder %s148, %s149
      %p160 = scmp.eq.s32.totalorder %s32, 0
      %p161 = por %p159, %p160
      %p162 = scmp.ne.s32.totalorder %s148, %s149
      %p163 = scmp.eq.s32.totalorder %s33, 1
      %p164 = por %p162, %p163
      %p166 = scmp.ne.s32.totalorder %s149, %s165
      %p167 = scmp.eq.s32.totalorder %s33, 0
      %p168 = por %p166, %p167
      %s169 = ssub.s32 %s34, %s46
      %s170 = ssub.s32 %s35, %s42
      %s171 = sor.u32 %s169, %s170
      %p172 = scmp.eq.s32.totalorder %s171, 0
      %s174 = sadd.s32 %s173, 1
      %s175 = scalar_select %p172, %s173, %s174
      %p178 = pneg %p172
      %p179 = scmp.eq.s32.totalorder %s27, 1
      %p180 = por %p178, %p179
      %p181 = scmp.ne.s32.totalorder %s173, %s176
      %p182 = scmp.eq.s32.totalorder %s27, 0
      %p183 = por %p181, %p182
      %p184 = scmp.ne.s32.totalorder %s173, %s176
      %p185 = scmp.eq.s32.totalorder %s32, 1
      %p186 = por %p184, %p185
      %p187 = scmp.ne.s32.totalorder %s176, %s177
      %p188 = scmp.eq.s32.totalorder %s32, 0
      %p189 = por %p187, %p188
      %p190 = scmp.ne.s32.totalorder %s176, %s177
      %p191 = scmp.eq.s32.totalorder %s33, 1
      %p192 = por %p190, %p191
      %p194 = scmp.ne.s32.totalorder %s177, %s193
      %p195 = scmp.eq.s32.totalorder %s33, 0
      %p196 = por %p194, %p195
      %s198 = sadd.s32 %s197, 1
      %p201 = scmp.eq.s32.totalorder %s27, 1
      %p202 = scmp.ne.s32.totalorder %s197, %s199
      %p203 = scmp.eq.s32.totalorder %s27, 0
      %p204 = por %p202, %p203
      %p205 = scmp.ne.s32.totalorder %s197, %s199
      %p206 = scmp.eq.s32.totalorder %s32, 1
      %p207 = por %p205, %p206
      %p208 = scmp.ne.s32.totalorder %s199, %s200
      %p209 = scmp.eq.s32.totalorder %s32, 0
      %p210 = por %p208, %p209
      %p211 = scmp.ne.s32.totalorder %s199, %s200
      %p212 = scmp.eq.s32.totalorder %s33, 1
      %p213 = por %p211, %p212
      %p215 = scmp.ne.s32.totalorder %s200, %s214
      %p216 = scmp.eq.s32.totalorder %s33, 0
      %p217 = por %p215, %p216
      %s218 = ssub.s32 %s35, %s42
      %s219 = ssub.s32 %s34, %s46
      %s220 = sor.u32 %s218, %s219
      %p221 = scmp.eq.s32.totalorder %s220, 0
      %s223 = sadd.s32 %s222, 1
      %s224 = scalar_select %p221, %s222, %s223
      %p227 = pneg %p221
      %p228 = scmp.eq.s32.totalorder %s27, 1
      %p229 = por %p227, %p228
      %p230 = scmp.ne.s32.totalorder %s222, %s225
      %p231 = scmp.eq.s32.totalorder %s27, 0
      %p232 = por %p230, %p231
      %p233 = scmp.ne.s32.totalorder %s222, %s225
      %p234 = scmp.eq.s32.totalorder %s32, 1
      %p235 = por %p233, %p234
      %p236 = scmp.ne.s32.totalorder %s225, %s226
      %p237 = scmp.eq.s32.totalorder %s32, 0
      %p238 = por %p236, %p237
      %p239 = scmp.ne.s32.totalorder %s225, %s226
      %p240 = scmp.eq.s32.totalorder %s33, 1
      %p241 = por %p239, %p240
      %p243 = scmp.ne.s32.totalorder %s226, %s242
      %p244 = scmp.eq.s32.totalorder %s33, 0
      %p245 = por %p243, %p244
      %s246 = ssub.s32 %s34, %s46
      %s247 = ssub.s32 %s35, %s42
      %s248 = sor.u32 %s246, %s247
      %p249 = scmp.eq.s32.totalorder %s248, 0
      %s251 = sadd.s32 %s250, 1
      %s252 = scalar_select %p249, %s250, %s251
      %p255 = pneg %p249
      %p256 = scmp.eq.s32.totalorder %s27, 1
      %p257 = por %p255, %p256
      %p258 = scmp.ne.s32.totalorder %s250, %s253
      %p259 = scmp.eq.s32.totalorder %s27, 0
      %p260 = por %p258, %p259
      %p261 = scmp.ne.s32.totalorder %s250, %s253
      %p262 = scmp.eq.s32.totalorder %s32, 1
      %p263 = por %p261, %p262
      %p264 = scmp.ne.s32.totalorder %s253, %s254
      %p265 = scmp.eq.s32.totalorder %s32, 0
      %p266 = por %p264, %p265
      %p267 = scmp.ne.s32.totalorder %s253, %s254
      %p268 = scmp.eq.s32.totalorder %s33, 1
      %p269 = por %p267, %p268
      %p271 = scmp.ne.s32.totalorder %s254, %s270
      %p272 = scmp.eq.s32.totalorder %s33, 0
      %p273 = por %p271, %p272
      %p274 = scmp.le.s32.totalorder 1, %s27
      %p275 = scmp.lt.s32.totalorder %s27, 3
      %p276 = pnand %p274, %p275
      %p277 = pneg %p276
      // Predicated region
      $region9: #{_lambda_.12} parent=5 // pred_check
        _
      $region10: #{_lambda_.12} parent=5 // pred_check_branch
        %279 = sbr.rel (%p276) target = $region12
      $region11: #{_lambda_.12} parent=5 // pred_region
        %s280 = ssub.s32 %s27, 1
        // Predicated region
        $region13: #{_lambda_.12} parent=11 // pred_check
          %p281 = pneg %p60
        $region14: #{_lambda_.12} parent=11 // pred_check_branch
          %283 = sbr.rel (%p281) target = $region16
        $region15: #{_lambda_.12} parent=11 // pred_region
          _
        $region16: #{_lambda_.12} parent=11 // pred_fallthru
          _
        // Predicated region
        $region17: #{_lambda_.12} parent=11 // pred_check
          %p284 = pneg %p86
        $region18: #{_lambda_.12} parent=11 // pred_check_branch
          %286 = sbr.rel (%p284) target = $region20
        $region19: #{_lambda_.12} parent=11 // pred_region
          %s287 = smul.u32 16, %s36
          %p288 = scmp.lt.s32.totalorder %s287, 15
          %s289 = scalar_select %p288, %s287, 15
          %s290 = smul.addr %s289, 8
          %s291 = scalar_lea.vmem %s2, %s290
          %s292 = smul.u32 16, %s36
        $region20: #{_lambda_.12} parent=11 // pred_fallthru
          _
        // Predicated region
        $region21: #{_lambda_.12} parent=11 // pred_check
          %p293 = pneg %p112
        $region22: #{_lambda_.12} parent=11 // pred_check_branch
          %295 = sbr.rel (%p293) target = $region24
        $region23: #{_lambda_.12} parent=11 // pred_region
          %s296 = smul.u32 4, %s36
          %p297 = scmp.lt.s32.totalorder %s296, 3
          %s298 = scalar_select %p297, %s296, 3
          %s299 = smul.addr %s298, 8
          %s300 = scalar_lea.vmem %s3, %s299
          %s301 = smul.u32 4, %s36
        $region24: #{_lambda_.12} parent=11 // pred_fallthru
          _
        // Predicated region
        $region25: #{_lambda_.12} parent=11 // pred_check
          %p302 = pneg %p133
        $region26: #{_lambda_.12} parent=11 // pred_check_branch
          %304 = sbr.rel (%p302) target = $region28
        $region27: #{_lambda_.12} parent=11 // pred_region
          _
        $region28: #{_lambda_.12} parent=11 // pred_fallthru
          _
        // Predicated region
        $region29: #{_lambda_.12} parent=11 // pred_check
          %p305 = pneg %p210
        $region30: #{_lambda_.12} parent=11 // pred_check_branch
          %307 = sbr.rel (%p305) target = $region32
        $region31: #{_lambda_.12} parent=11 // pred_region
          _
        $region32: #{_lambda_.12} parent=11 // pred_fallthru
          _
      $region12: #{_lambda_.12} parent=5 // pred_fallthru
        _
      %p308 = scmp.lt.s32.totalorder %s27, 2
      // Predicated region
      $region33: #{_lambda_.12} parent=5 // pred_check
        %p309 = pneg %p308
      $region34: #{_lambda_.12} parent=5 // pred_check_branch
        %311 = sbr.rel (%p309) target = $region36
      $region35: #{_lambda_.12} parent=5 // pred_region
        // Predicated region
        $region37: #{_lambda_.12} parent=35 // pred_check
          %p312 = pneg %p155
        $region38: #{_lambda_.12} parent=35 // pred_check_branch
          %314 = sbr.rel (%p312) target = $region40
        $region39: #{_lambda_.12} parent=35 // pred_region
          %s315 = smul.u32 16, %s34
          %p316 = scmp.lt.s32.totalorder %s35, 1
          %s317 = scalar_select %p316, %s35, 1
          %p318 = scmp.lt.s32.totalorder %s315, 15
          %s319 = scalar_select %p318, %s315, 15
          %s320 = smul.addr %s317, 16
          %s321 = sadd.s32 %s319, %s320
          %s322 = smul.addr %s321, 4
          %s323 = scalar_lea.vmem %s5, %s322
          %s324 = smul.u32 16, %s34
        $region40: #{_lambda_.12} parent=35 // pred_fallthru
          _
        // Predicated region
        $region41: #{_lambda_.12} parent=35 // pred_check
          %p325 = pneg %p183
        $region42: #{_lambda_.12} parent=35 // pred_check_branch
          %327 = sbr.rel (%p325) target = $region44
        $region43: #{_lambda_.12} parent=35 // pred_region
          %s328 = sand.u32 %s173, 1
          %s329 = sand.u32 %s173, 1
          %s330 = smul.addr %s329, 64
          %s331 = scalar_lea.vmem [#allocation4], %s330
          %s332 = smul.u32 16, %s34
          %s333 = smul.addr %s332, 2
          %s334 = sadd.s32 %s35, %s333
          %s335 = smul.addr %s334, 4
          %s336 = scalar_lea.vmem %s6, %s335
          // Predicated region
          $region45: #{_lambda_.12} parent=43 // pred_check
            _
          $region46: #{_lambda_.12} parent=43 // pred_check_branch
            %338 = sbr.rel (0) target = $region48
          $region47: #{_lambda_.12} parent=43 // pred_region
            // Predicated region
            $region49: #{_lambda_.12} parent=47 // pred_check
              _
            $region50: #{_lambda_.12} parent=47 // pred_check_branch
              %340 = sbr.rel target = $region52
            $region51: #{_lambda_.12} parent=47 // pred_region
              // Predicated region
              $region64: #{_lambda_.12} parent=51 // pred_check
                _
              $region65: #{_lambda_.12} parent=51 // pred_check_branch
                %386 = sbr.rel (0) target = $region67
              $region66: #{_lambda_.12} parent=51 // pred_region
                loop: start=0, step=1, limit=1
                $region68: #{_lambda_.12} parent=66 // loop_pre_header
                  _
                $region69: #{_lambda_.12} parent=66 // loop_header
                  %s388 = sphi 0, %s392
                  %p389 = scmp.ge.s32.totalorder %s388, 1
                  %s393 = sphi %s336, %s336
                  %s394 = sphi %s331, %s331
                $region70: #{_lambda_.12} parent=66 // loop_header_branch
                  %391 = sbr.rel (%p389) target = $region74
                $region71: #{_lambda_.12} parent=66 // loop_body
                  _
                $region72: #{_lambda_.12} parent=66 // loop_footer
                  %s392 = sadd.s32 1, %s388
                $region73: #{_lambda_.12} parent=66 // loop_footer_branch
                  %387 = sbr.rel target = $region69
                $region74: #{_lambda_.12} parent=66 // loop_exit
                  _
                %s396 = ssub.s32 16, 1
                loop: start=0, step=1, limit=1
                $region75: #{_lambda_.12} parent=66 // loop_pre_header
                  _
                $region76: #{_lambda_.12} parent=66 // loop_header
                  %s398 = sphi 0, %s402
                  %p399 = scmp.ge.s32.totalorder %s398, 1
                  %s403 = sphi %s336, %s336
                  %s404 = sphi %s331, %s331
                $region77: #{_lambda_.12} parent=66 // loop_header_branch
                  %401 = sbr.rel (%p399) target = $region81
                $region78: #{_lambda_.12} parent=66 // loop_body
                  %v405 = vld [vmem:[%s403] sm:%s396]
                  %406 = vst [vmem:[%s404] sm:%s396] %v405
                  %v407 = vld [vmem:[%s403 + $0x8] sm:%s396]
                  %408 = vst [vmem:[%s404 + $0x4] sm:%s396] %v407
                  %v409 = vld [vmem:[%s403 + $0x10] sm:%s396]
                  %410 = vst [vmem:[%s404 + $0x8] sm:%s396] %v409
                  %v411 = vld [vmem:[%s403 + $0x18] sm:%s396]
                  %412 = vst [vmem:[%s404 + $0xc] sm:%s396] %v411
                  %v413 = vld [vmem:[%s403 + $0x20] sm:%s396]
                  %414 = vst [vmem:[%s404 + $0x10] sm:%s396] %v413
                  %v415 = vld [vmem:[%s403 + $0x28] sm:%s396]
                  %416 = vst [vmem:[%s404 + $0x14] sm:%s396] %v415
                  %v417 = vld [vmem:[%s403 + $0x30] sm:%s396]
                  %418 = vst [vmem:[%s404 + $0x18] sm:%s396] %v417
                  %v419 = vld [vmem:[%s403 + $0x38] sm:%s396]
                  %420 = vst [vmem:[%s404 + $0x1c] sm:%s396] %v419
                  %v421 = vld [vmem:[%s403 + $0x40] sm:%s396]
                  %422 = vst [vmem:[%s404 + $0x20] sm:%s396] %v421
                  %v423 = vld [vmem:[%s403 + $0x48] sm:%s396]
                  %424 = vst [vmem:[%s404 + $0x24] sm:%s396] %v423
                  %v425 = vld [vmem:[%s403 + $0x50] sm:%s396]
                  %426 = vst [vmem:[%s404 + $0x28] sm:%s396] %v425
                  %v427 = vld [vmem:[%s403 + $0x58] sm:%s396]
                  %428 = vst [vmem:[%s404 + $0x2c] sm:%s396] %v427
                  %v429 = vld [vmem:[%s403 + $0x60] sm:%s396]
                  %430 = vst [vmem:[%s404 + $0x30] sm:%s396] %v429
                  %v431 = vld [vmem:[%s403 + $0x68] sm:%s396]
                  %432 = vst [vmem:[%s404 + $0x34] sm:%s396] %v431
                  %v433 = vld [vmem:[%s403 + $0x70] sm:%s396]
                  %434 = vst [vmem:[%s404 + $0x38] sm:%s396] %v433
                  %v435 = vld [vmem:[%s403 + $0x78] sm:%s396]
                  %436 = vst [vmem:[%s404 + $0x3c] sm:%s396] %v435
                $region79: #{_lambda_.12} parent=66 // loop_footer
                  %s402 = sadd.s32 1, %s398
                $region80: #{_lambda_.12} parent=66 // loop_footer_branch
                  %397 = sbr.rel target = $region76
                $region81: #{_lambda_.12} parent=66 // loop_exit
                  _
              $region67: #{_lambda_.12} parent=51 // pred_fallthru
                _
            $region52: #{_lambda_.12} parent=47 // pred_fallthru
              _
            // Predicated region
            $region53: #{_lambda_.12} parent=47 // pred_check
              _
            $region54: #{_lambda_.12} parent=47 // pred_check_branch
              %342 = sbr.rel (0) target = $region56
            $region55: #{_lambda_.12} parent=47 // pred_region
              %s344 = ssub.s32 16, 1
              loop: start=0, step=1, limit=1
              $region57: #{_lambda_.12} parent=55 // loop_pre_header
                _
              $region58: #{_lambda_.12} parent=55 // loop_header
                %s346 = sphi 0, %s350
                %p347 = scmp.ge.s32.totalorder %s346, 1
                %s351 = sphi %s336, %s336
                %s352 = sphi %s331, %s331
              $region59: #{_lambda_.12} parent=55 // loop_header_branch
                %349 = sbr.rel (%p347) target = $region63
              $region60: #{_lambda_.12} parent=55 // loop_body
                %v353 = vld [vmem:[%s351] sm:%s344]
                %354 = vst [vmem:[%s352] sm:%s344] %v353
                %v355 = vld [vmem:[%s351 + $0x8] sm:%s344]
                %356 = vst [vmem:[%s352 + $0x4] sm:%s344] %v355
                %v357 = vld [vmem:[%s351 + $0x10] sm:%s344]
                %358 = vst [vmem:[%s352 + $0x8] sm:%s344] %v357
                %v359 = vld [vmem:[%s351 + $0x18] sm:%s344]
                %360 = vst [vmem:[%s352 + $0xc] sm:%s344] %v359
                %v361 = vld [vmem:[%s351 + $0x20] sm:%s344]
                %362 = vst [vmem:[%s352 + $0x10] sm:%s344] %v361
                %v363 = vld [vmem:[%s351 + $0x28] sm:%s344]
                %364 = vst [vmem:[%s352 + $0x14] sm:%s344] %v363
                %v365 = vld [vmem:[%s351 + $0x30] sm:%s344]
                %366 = vst [vmem:[%s352 + $0x18] sm:%s344] %v365
                %v367 = vld [vmem:[%s351 + $0x38] sm:%s344]
                %368 = vst [vmem:[%s352 + $0x1c] sm:%s344] %v367
                %v369 = vld [vmem:[%s351 + $0x40] sm:%s344]
                %370 = vst [vmem:[%s352 + $0x20] sm:%s344] %v369
                %v371 = vld [vmem:[%s351 + $0x48] sm:%s344]
                %372 = vst [vmem:[%s352 + $0x24] sm:%s344] %v371
                %v373 = vld [vmem:[%s351 + $0x50] sm:%s344]
                %374 = vst [vmem:[%s352 + $0x28] sm:%s344] %v373
                %v375 = vld [vmem:[%s351 + $0x58] sm:%s344]
                %376 = vst [vmem:[%s352 + $0x2c] sm:%s344] %v375
                %v377 = vld [vmem:[%s351 + $0x60] sm:%s344]
                %378 = vst [vmem:[%s352 + $0x30] sm:%s344] %v377
                %v379 = vld [vmem:[%s351 + $0x68] sm:%s344]
                %380 = vst [vmem:[%s352 + $0x34] sm:%s344] %v379
                %v381 = vld [vmem:[%s351 + $0x70] sm:%s344]
                %382 = vst [vmem:[%s352 + $0x38] sm:%s344] %v381
                %v383 = vld [vmem:[%s351 + $0x78] sm:%s344]
                %384 = vst [vmem:[%s352 + $0x3c] sm:%s344] %v383
              $region61: #{_lambda_.12} parent=55 // loop_footer
                %s350 = sadd.s32 1, %s346
              $region62: #{_lambda_.12} parent=55 // loop_footer_branch
                %345 = sbr.rel target = $region58
              $region63: #{_lambda_.12} parent=55 // loop_exit
                _
            $region56: #{_lambda_.12} parent=47 // pred_fallthru
              _
          $region48: #{_lambda_.12} parent=43 // pred_fallthru
            _
          %437 = vnop
        $region44: #{_lambda_.12} parent=35 // pred_fallthru
          _
      $region36: #{_lambda_.12} parent=5 // pred_fallthru
        _
      %p438 = scmp.le.s32.totalorder 1, %s27
      %p439 = scmp.lt.s32.totalorder %s27, 3
      %p440 = pnand %p438, %p439
      %p441 = pneg %p440
      // Predicated region
      $region82: #{_lambda_.12} parent=5 // pred_check
        _
      $region83: #{_lambda_.12} parent=5 // pred_check_branch
        %443 = sbr.rel (%p440) target = $region85
      $region84: #{_lambda_.12} parent=5 // pred_region
        %s444 = ssub.s32 %s27, 1
        %s445 = sand.u32 %s176, 1
        %s446 = sand.u32 %s176, 1
        %s447 = smul.addr %s446, 64
        %s448 = scalar_lea.vmem [#allocation4], %s447
        // Predicated region
        $region86: #{_lambda_.12} parent=84 // pred_check
          %p449 = pneg %p189
        $region87: #{_lambda_.12} parent=84 // pred_check_branch
          %451 = sbr.rel (%p449) target = $region89
        $region88: #{_lambda_.12} parent=84 // pred_region
          _
        $region89: #{_lambda_.12} parent=84 // pred_fallthru
          _
        %p452 = pneg %p60
        %p453 = pneg %p57
        %s454 = smul.u32 16, %s36
        %p455 = scmp.lt.s32.totalorder %s454, 15
        %s456 = scalar_select %p455, %s454, 15
        %s457 = smul.addr %s456, 8
        %s458 = scalar_lea.vmem %s2, %s457
        %p459 = pneg %p86
        %p460 = pneg %p83
        %s461 = smul.u32 4, %s36
        %p462 = scmp.lt.s32.totalorder %s461, 3
        %s463 = scalar_select %p462, %s461, 3
        %s464 = smul.addr %s463, 8
        %s465 = scalar_lea.vmem %s3, %s464
        %p466 = pneg %p112
        %p467 = pneg %p109
        %p468 = pneg %p133
        %p469 = pneg %p130
        %s470 = smul.u32 16, %s36
        %p471 = scmp.lt.s32.totalorder %s37, 1
        %s472 = scalar_select %p471, %s37, 1
        %p473 = scmp.lt.s32.totalorder %s470, 15
        %s474 = scalar_select %p473, %s470, 15
        %s475 = smul.addr %s472, 16
        %s476 = sadd.s32 %s474, %s475
        %s477 = smul.addr %s476, 4
        %s478 = scalar_lea.vmem %s5, %s477
        %p479 = pneg %p161
        %p480 = pneg %p158
        %s481 = sand.u32 %s176, 1
        %s482 = sand.u32 %s176, 1
        %s483 = smul.addr %s482, 64
        %s484 = scalar_lea.vmem [#allocation4], %s483
        %p485 = pneg %p189
        %p486 = pneg %p186
        %p487 = pneg %p210
        %p488 = pneg %p207
        %p489 = pneg %p238
        %p490 = pneg %p235
        %s491 = sand.u32 %s225, 1
        %s492 = scalar_lea.sflag [#allocation6], %s491
        %s493 = sand.u32 %s225, 1
        %s494 = smul.addr %s493, 64
        %s495 = scalar_lea.vmem [#allocation5], %s494
        %p496 = pneg %p266
        %p497 = pneg %p263
        %s498 = sand.u32 %s253, 1
        %s499 = sand.u32 %s253, 1
        %s500 = smul.addr %s499, 64
        %s501 = scalar_lea.vmem [#allocation7], %s500
        %s502 = smul.u32 16, %s36
        %p503 = scmp.lt.s32.totalorder %s502, 15
        %s504 = scalar_select %p503, %s502, 15
        %s505 = smul.addr %s504, 8
        %s506 = scalar_lea.vmem %s2, %s505
        %s507 = smul.u32 16, %s36
        %s508 = smul.u32 4, %s36
        %p509 = scmp.lt.s32.totalorder %s508, 3
        %s510 = scalar_select %p509, %s508, 3
        %s511 = smul.addr %s510, 8
        %s512 = scalar_lea.vmem %s3, %s511
        %s513 = smul.u32 4, %s36
        %s514 = smul.u32 16, %s36
        %p515 = scmp.lt.s32.totalorder %s37, 1
        %s516 = scalar_select %p515, %s37, 1
        %p517 = scmp.lt.s32.totalorder %s514, 15
        %s518 = scalar_select %p517, %s514, 15
        %s519 = smul.addr %s516, 16
        %s520 = sadd.s32 %s518, %s519
        %s521 = smul.addr %s520, 4
        %s522 = scalar_lea.vmem %s5, %s521
        %s523 = smul.u32 16, %s36
        %s524 = smul.u32 16, %s36
        %s525 = smul.u32 16, %s36
        %s526 = smul.u32 16, %s36
        %s527 = scalar_lea.vmem %s1, %s37
        %v528 = vld [vmem:[%s527] sm:$0x1]
        %s529 = smul.u32 %s37, 128
        %s530 = scalar_lea.vmem %s506, %s529
        %v531 = vld [vmem:[%s530] sm:$0xff]
        %v532 = vld [vmem:[%s530 + $0x8] sm:$0xff]
        %v533 = vld [vmem:[%s530 + $0x10] sm:$0xff]
        %v534 = vld [vmem:[%s530 + $0x18] sm:$0xff]
        %v535 = vld [vmem:[%s530 + $0x20] sm:$0xff]
        %v536 = vld [vmem:[%s530 + $0x28] sm:$0xff]
        %v537 = vld [vmem:[%s530 + $0x30] sm:$0xff]
        %v538 = vld [vmem:[%s530 + $0x38] sm:$0xff]
        %v539 = vld [vmem:[%s530 + $0x40] sm:$0xff]
        %v540 = vld [vmem:[%s530 + $0x48] sm:$0xff]
        %v541 = vld [vmem:[%s530 + $0x50] sm:$0xff]
        %v542 = vld [vmem:[%s530 + $0x58] sm:$0xff]
        %v543 = vld [vmem:[%s530 + $0x60] sm:$0xff]
        %v544 = vld [vmem:[%s530 + $0x68] sm:$0xff]
        %v545 = vld [vmem:[%s530 + $0x70] sm:$0xff]
        %v546 = vld [vmem:[%s530 + $0x78] sm:$0xff]
        %v547 = vld [vmem:[%s512] sm:$0xff]
        %v548 = vld [vmem:[%s512 + $0x8] sm:$0xff]
        %v549 = vld [vmem:[%s512 + $0x10] sm:$0xff]
        %v550 = vld [vmem:[%s512 + $0x18] sm:$0xff]
        %v551 = vunpack.c.0.s8 %v547
        %v552 = vunpack.c.1.s8 %v547
        %v553 = vunpack.c.2.s8 %v547
        %v554 = vunpack.c.3.s8 %v547
        %v555 = vunpack.c.0.s8 %v548
        %v556 = vunpack.c.1.s8 %v548
        %v557 = vunpack.c.2.s8 %v548
        %v558 = vunpack.c.3.s8 %v548
        %v559 = vunpack.c.0.s8 %v549
        %v560 = vunpack.c.1.s8 %v549
        %v561 = vunpack.c.2.s8 %v549
        %v562 = vunpack.c.3.s8 %v549
        %v563 = vunpack.c.0.s8 %v550
        %v564 = vunpack.c.1.s8 %v550
        %v565 = vunpack.c.2.s8 %v550
        %v566 = vunpack.c.3.s8 %v550
        %vm567 = vcmp.ge.s32.totalorder %v551, 0
        %vm568 = vcmp.ge.s32.totalorder %v552, 0
        %vm569 = vcmp.ge.s32.totalorder %v553, 0
        %vm570 = vcmp.ge.s32.totalorder %v554, 0
        %vm571 = vcmp.ge.s32.totalorder %v555, 0
        %vm572 = vcmp.ge.s32.totalorder %v556, 0
        %vm573 = vcmp.ge.s32.totalorder %v557, 0
        %vm574 = vcmp.ge.s32.totalorder %v558, 0
        %vm575 = vcmp.ge.s32.totalorder %v559, 0
        %vm576 = vcmp.ge.s32.totalorder %v560, 0
        %vm577 = vcmp.ge.s32.totalorder %v561, 0
        %vm578 = vcmp.ge.s32.totalorder %v562, 0
        %vm579 = vcmp.ge.s32.totalorder %v563, 0
        %vm580 = vcmp.ge.s32.totalorder %v564, 0
        %vm581 = vcmp.ge.s32.totalorder %v565, 0
        %vm582 = vcmp.ge.s32.totalorder %v566, 0
        %s583 = sadd.s32 %s529, 2
        %s584 = sld [smem:[#allocation3 + %s583]]
        %v585 = vstv %s584
        %v586 = vadd.f32 %v585, 0.0
        %vm587 = vcmp.eq.s32.totalorder %v551, 1
        %vm588 = vcmp.eq.s32.totalorder %v552, 1
        %vm589 = vcmp.eq.s32.totalorder %v553, 1
        %vm590 = vcmp.eq.s32.totalorder %v554, 1
        %vm591 = vcmp.eq.s32.totalorder %v555, 1
        %vm592 = vcmp.eq.s32.totalorder %v556, 1
        %vm593 = vcmp.eq.s32.totalorder %v557, 1
        %vm594 = vcmp.eq.s32.totalorder %v558, 1
        %vm595 = vcmp.eq.s32.totalorder %v559, 1
        %vm596 = vcmp.eq.s32.totalorder %v560, 1
        %vm597 = vcmp.eq.s32.totalorder %v561, 1
        %vm598 = vcmp.eq.s32.totalorder %v562, 1
        %vm599 = vcmp.eq.s32.totalorder %v563, 1
        %vm600 = vcmp.eq.s32.totalorder %v564, 1
        %vm601 = vcmp.eq.s32.totalorder %v565, 1
        %vm602 = vcmp.eq.s32.totalorder %v566, 1
        %s603 = sadd.s32 %s529, 1
        %s604 = sld [smem:[#allocation3 + %s603]]
        %v605 = vstv %s604
        %v606 = vsel %vm587, %v605, %v586
        %v607 = vsel %vm588, %v605, %v586
        %v608 = vsel %vm589, %v605, %v586
        %v609 = vsel %vm590, %v605, %v586
        %v610 = vsel %vm591, %v605, %v586
        %v611 = vsel %vm592, %v605, %v586
        %v612 = vsel %vm593, %v605, %v586
        %v613 = vsel %vm594, %v605, %v586
        %v614 = vsel %vm595, %v605, %v586
        %v615 = vsel %vm596, %v605, %v586
        %v616 = vsel %vm597, %v605, %v586
        %v617 = vsel %vm598, %v605, %v586
        %v618 = vsel %vm599, %v605, %v586
        %v619 = vsel %vm600, %v605, %v586
        %v620 = vsel %vm601, %v605, %v586
        %v621 = vsel %vm602, %v605, %v586
        %vm622 = vcmp.eq.s32.totalorder %v551, 0
        %vm623 = vcmp.eq.s32.totalorder %v552, 0
        %vm624 = vcmp.eq.s32.totalorder %v553, 0
        %vm625 = vcmp.eq.s32.totalorder %v554, 0
        %vm626 = vcmp.eq.s32.totalorder %v555, 0
        %vm627 = vcmp.eq.s32.totalorder %v556, 0
        %vm628 = vcmp.eq.s32.totalorder %v557, 0
        %vm629 = vcmp.eq.s32.totalorder %v558, 0
        %vm630 = vcmp.eq.s32.totalorder %v559, 0
        %vm631 = vcmp.eq.s32.totalorder %v560, 0
        %vm632 = vcmp.eq.s32.totalorder %v561, 0
        %vm633 = vcmp.eq.s32.totalorder %v562, 0
        %vm634 = vcmp.eq.s32.totalorder %v563, 0
        %vm635 = vcmp.eq.s32.totalorder %v564, 0
        %vm636 = vcmp.eq.s32.totalorder %v565, 0
        %vm637 = vcmp.eq.s32.totalorder %v566, 0
        %s638 = sld [smem:[#allocation3 + %s529]]
        %v639 = vstv %s638
        %v640 = vsel %vm622, %v639, %v606
        %v641 = vsel %vm623, %v639, %v607
        %v642 = vsel %vm624, %v639, %v608
        %v643 = vsel %vm625, %v639, %v609
        %v644 = vsel %vm626, %v639, %v610
        %v645 = vsel %vm627, %v639, %v611
        %v646 = vsel %vm628, %v639, %v612
        %v647 = vsel %vm629, %v639, %v613
        %v648 = vsel %vm630, %v639, %v614
        %v649 = vsel %vm631, %v639, %v615
        %v650 = vsel %vm632, %v639, %v616
        %v651 = vsel %vm633, %v639, %v617
        %v652 = vsel %vm634, %v639, %v618
        %v653 = vsel %vm635, %v639, %v619
        %v654 = vsel %vm636, %v639, %v620
        %v655 = vsel %vm637, %v639, %v621
        %657 = vset.pattern.permute.xlu0 0
        %658 = vperm.xlu0 %657, %v531
        %v659 = vpop.permute.xlu0 %658
        %662 = vset.pattern.permute.xlu0 0
        %663 = vperm.xlu0 %662, %v532
        %v664 = vpop.permute.xlu0 %663
        %667 = vset.pattern.permute.xlu0 0
        %668 = vperm.xlu0 %667, %v533
        %v669 = vpop.permute.xlu0 %668
        %672 = vset.pattern.permute.xlu0 0
        %673 = vperm.xlu0 %672, %v534
        %v674 = vpop.permute.xlu0 %673
        %677 = vset.pattern.permute.xlu0 0
        %678 = vperm.xlu0 %677, %v535
        %v679 = vpop.permute.xlu0 %678
        %682 = vset.pattern.permute.xlu0 0
        %683 = vperm.xlu0 %682, %v536
        %v684 = vpop.permute.xlu0 %683
        %687 = vset.pattern.permute.xlu0 0
        %688 = vperm.xlu0 %687, %v537
        %v689 = vpop.permute.xlu0 %688
        %692 = vset.pattern.permute.xlu0 0
        %693 = vperm.xlu0 %692, %v538
        %v694 = vpop.permute.xlu0 %693
        %697 = vset.pattern.permute.xlu0 0
        %698 = vperm.xlu0 %697, %v539
        %v699 = vpop.permute.xlu0 %698
        %702 = vset.pattern.permute.xlu0 0
        %703 = vperm.xlu0 %702, %v540
        %v704 = vpop.permute.xlu0 %703
        %707 = vset.pattern.permute.xlu0 0
        %708 = vperm.xlu0 %707, %v541
        %v709 = vpop.permute.xlu0 %708
        %712 = vset.pattern.permute.xlu0 0
        %713 = vperm.xlu0 %712, %v542
        %v714 = vpop.permute.xlu0 %713
        %717 = vset.pattern.permute.xlu0 0
        %718 = vperm.xlu0 %717, %v543
        %v719 = vpop.permute.xlu0 %718
        %722 = vset.pattern.permute.xlu0 0
        %723 = vperm.xlu0 %722, %v544
        %v724 = vpop.permute.xlu0 %723
        %727 = vset.pattern.permute.xlu0 0
        %728 = vperm.xlu0 %727, %v545
        %v729 = vpop.permute.xlu0 %728
        %732 = vset.pattern.permute.xlu0 0
        %733 = vperm.xlu0 %732, %v546
        %v734 = vpop.permute.xlu0 %733
        %v737 = vperm.slane %v528, 0
        %v739 = vadd.f32 %v659, %v737
        %v740 = vadd.f32 %v664, %v737
        %v741 = vadd.f32 %v669, %v737
        %v742 = vadd.f32 %v674, %v737
        %v743 = vadd.f32 %v679, %v737
        %v744 = vadd.f32 %v684, %v737
        %v745 = vadd.f32 %v689, %v737
        %v746 = vadd.f32 %v694, %v737
        %v747 = vadd.f32 %v699, %v737
        %v748 = vadd.f32 %v704, %v737
        %v749 = vadd.f32 %v709, %v737
        %v750 = vadd.f32 %v714, %v737
        %v751 = vadd.f32 %v719, %v737
        %v752 = vadd.f32 %v724, %v737
        %v753 = vadd.f32 %v729, %v737
        %v754 = vadd.f32 %v734, %v737
        %v755 = vadd.f32 %v739, %v640
        %v756 = vadd.f32 %v740, %v641
        %v757 = vadd.f32 %v741, %v642
        %v758 = vadd.f32 %v742, %v643
        %v759 = vadd.f32 %v743, %v644
        %v760 = vadd.f32 %v744, %v645
        %v761 = vadd.f32 %v745, %v646
        %v762 = vadd.f32 %v746, %v647
        %v763 = vadd.f32 %v747, %v648
        %v764 = vadd.f32 %v748, %v649
        %v765 = vadd.f32 %v749, %v650
        %v766 = vadd.f32 %v750, %v651
        %v767 = vadd.f32 %v751, %v652
        %v768 = vadd.f32 %v752, %v653
        %v769 = vadd.f32 %v753, %v654
        %v770 = vadd.f32 %v754, %v655
        %vm771 = vcmp.gt.f32.partialorder %v755, 0.0
        %vm772 = vcmp.gt.f32.partialorder %v756, 0.0
        %vm773 = vcmp.gt.f32.partialorder %v757, 0.0
        %vm774 = vcmp.gt.f32.partialorder %v758, 0.0
        %vm775 = vcmp.gt.f32.partialorder %v759, 0.0
        %vm776 = vcmp.gt.f32.partialorder %v760, 0.0
        %vm777 = vcmp.gt.f32.partialorder %v761, 0.0
        %vm778 = vcmp.gt.f32.partialorder %v762, 0.0
        %vm779 = vcmp.gt.f32.partialorder %v763, 0.0
        %vm780 = vcmp.gt.f32.partialorder %v764, 0.0
        %vm781 = vcmp.gt.f32.partialorder %v765, 0.0
        %vm782 = vcmp.gt.f32.partialorder %v766, 0.0
        %vm783 = vcmp.gt.f32.partialorder %v767, 0.0
        %vm784 = vcmp.gt.f32.partialorder %v768, 0.0
        %vm785 = vcmp.gt.f32.partialorder %v769, 0.0
        %vm786 = vcmp.gt.f32.partialorder %v770, 0.0
        %v787 = vmul.f32 %v755, 0.2
        %v788 = vmul.f32 %v756, 0.2
        %v789 = vmul.f32 %v757, 0.2
        %v790 = vmul.f32 %v758, 0.2
        %v791 = vmul.f32 %v759, 0.2
        %v792 = vmul.f32 %v760, 0.2
        %v793 = vmul.f32 %v761, 0.2
        %v794 = vmul.f32 %v762, 0.2
        %v795 = vmul.f32 %v763, 0.2
        %v796 = vmul.f32 %v764, 0.2
        %v797 = vmul.f32 %v765, 0.2
        %v798 = vmul.f32 %v766, 0.2
        %v799 = vmul.f32 %v767, 0.2
        %v800 = vmul.f32 %v768, 0.2
        %v801 = vmul.f32 %v769, 0.2
        %v802 = vmul.f32 %v770, 0.2
        %v803 = vsel %vm771, %v755, %v787
        %v804 = vsel %vm772, %v756, %v788
        %v805 = vsel %vm773, %v757, %v789
        %v806 = vsel %vm774, %v758, %v790
        %v807 = vsel %vm775, %v759, %v791
        %v808 = vsel %vm776, %v760, %v792
        %v809 = vsel %vm777, %v761, %v793
        %v810 = vsel %vm778, %v762, %v794
        %v811 = vsel %vm779, %v763, %v795
        %v812 = vsel %vm780, %v764, %v796
        %v813 = vsel %vm781, %v765, %v797
        %v814 = vsel %vm782, %v766, %v798
        %v815 = vsel %vm783, %v767, %v799
        %v816 = vsel %vm784, %v768, %v800
        %v817 = vsel %vm785, %v769, %v801
        %v818 = vsel %vm786, %v770, %v802
        %v819 = vsel %vm567, %v803, -1e+30
        %v820 = vsel %vm568, %v804, -1e+30
        %v821 = vsel %vm569, %v805, -1e+30
        %v822 = vsel %vm570, %v806, -1e+30
        %v823 = vsel %vm571, %v807, -1e+30
        %v824 = vsel %vm572, %v808, -1e+30
        %v825 = vsel %vm573, %v809, -1e+30
        %v826 = vsel %vm574, %v810, -1e+30
        %v827 = vsel %vm575, %v811, -1e+30
        %v828 = vsel %vm576, %v812, -1e+30
        %v829 = vsel %vm577, %v813, -1e+30
        %v830 = vsel %vm578, %v814, -1e+30
        %v831 = vsel %vm579, %v815, -1e+30
        %v832 = vsel %vm580, %v816, -1e+30
        %v833 = vsel %vm581, %v817, -1e+30
        %v834 = vsel %vm582, %v818, -1e+30
        %835 = vmax.xlane.f32.xlu0 %v819
        %v836 = vpop.xlane.xlu0 %835
        %837 = vmax.xlane.f32.xlu0 %v820
        %v838 = vpop.xlane.xlu0 %837
        %839 = vmax.xlane.f32.xlu0 %v821
        %v840 = vpop.xlane.xlu0 %839
        %841 = vmax.xlane.f32.xlu0 %v822
        %v842 = vpop.xlane.xlu0 %841
        %843 = vmax.xlane.f32.xlu0 %v823
        %v844 = vpop.xlane.xlu0 %843
        %845 = vmax.xlane.f32.xlu0 %v824
        %v846 = vpop.xlane.xlu0 %845
        %847 = vmax.xlane.f32.xlu0 %v825
        %v848 = vpop.xlane.xlu0 %847
        %849 = vmax.xlane.f32.xlu0 %v826
        %v850 = vpop.xlane.xlu0 %849
        %851 = vmax.xlane.f32.xlu0 %v827
        %v852 = vpop.xlane.xlu0 %851
        %853 = vmax.xlane.f32.xlu0 %v828
        %v854 = vpop.xlane.xlu0 %853
        %855 = vmax.xlane.f32.xlu0 %v829
        %v856 = vpop.xlane.xlu0 %855
        %857 = vmax.xlane.f32.xlu0 %v830
        %v858 = vpop.xlane.xlu0 %857
        %859 = vmax.xlane.f32.xlu0 %v831
        %v860 = vpop.xlane.xlu0 %859
        %861 = vmax.xlane.f32.xlu0 %v832
        %v862 = vpop.xlane.xlu0 %861
        %863 = vmax.xlane.f32.xlu0 %v833
        %v864 = vpop.xlane.xlu0 %863
        %865 = vmax.xlane.f32.xlu0 %v834
        %v866 = vpop.xlane.xlu0 %865
        %v867 = vsub.f32 %v819, %v836
        %v868 = vsub.f32 %v820, %v838
        %v869 = vsub.f32 %v821, %v840
        %v870 = vsub.f32 %v822, %v842
        %v871 = vsub.f32 %v823, %v844
        %v872 = vsub.f32 %v824, %v846
        %v873 = vsub.f32 %v825, %v848
        %v874 = vsub.f32 %v826, %v850
        %v875 = vsub.f32 %v827, %v852
        %v876 = vsub.f32 %v828, %v854
        %v877 = vsub.f32 %v829, %v856
        %v878 = vsub.f32 %v830, %v858
        %v879 = vsub.f32 %v831, %v860
        %v880 = vsub.f32 %v832, %v862
        %v881 = vsub.f32 %v833, %v864
        %v882 = vsub.f32 %v834, %v866
        %v883 = vmul.f32 %v867, 1.442695
        %v884 = vpow.pop %v883
        %v885 = vmul.f32 %v868, 1.442695
        %v886 = vpow.pop %v885
        %v887 = vmul.f32 %v869, 1.442695
        %v888 = vpow.pop %v887
        %v889 = vmul.f32 %v870, 1.442695
        %v890 = vpow.pop %v889
        %v891 = vmul.f32 %v871, 1.442695
        %v892 = vpow.pop %v891
        %v893 = vmul.f32 %v872, 1.442695
        %v894 = vpow.pop %v893
        %v895 = vmul.f32 %v873, 1.442695
        %v896 = vpow.pop %v895
        %v897 = vmul.f32 %v874, 1.442695
        %v898 = vpow.pop %v897
        %v899 = vmul.f32 %v875, 1.442695
        %v900 = vpow.pop %v899
        %v901 = vmul.f32 %v876, 1.442695
        %v902 = vpow.pop %v901
        %v903 = vmul.f32 %v877, 1.442695
        %v904 = vpow.pop %v903
        %v905 = vmul.f32 %v878, 1.442695
        %v906 = vpow.pop %v905
        %v907 = vmul.f32 %v879, 1.442695
        %v908 = vpow.pop %v907
        %v909 = vmul.f32 %v880, 1.442695
        %v910 = vpow.pop %v909
        %v911 = vmul.f32 %v881, 1.442695
        %v912 = vpow.pop %v911
        %v913 = vmul.f32 %v882, 1.442695
        %v914 = vpow.pop %v913
        %v915 = vsel %vm567, %v884, 0.0
        %v916 = vsel %vm568, %v886, 0.0
        %v917 = vsel %vm569, %v888, 0.0
        %v918 = vsel %vm570, %v890, 0.0
        %v919 = vsel %vm571, %v892, 0.0
        %v920 = vsel %vm572, %v894, 0.0
        %v921 = vsel %vm573, %v896, 0.0
        %v922 = vsel %vm574, %v898, 0.0
        %v923 = vsel %vm575, %v900, 0.0
        %v924 = vsel %vm576, %v902, 0.0
        %v925 = vsel %vm577, %v904, 0.0
        %v926 = vsel %vm578, %v906, 0.0
        %v927 = vsel %vm579, %v908, 0.0
        %v928 = vsel %vm580, %v910, 0.0
        %v929 = vsel %vm581, %v912, 0.0
        %v930 = vsel %vm582, %v914, 0.0
        %931 = vadd.xlane.f32.xlu0 %v915
        %v932 = vpop.xlane.xlu0 %931
        %933 = vadd.xlane.f32.xlu0 %v916
        %v934 = vpop.xlane.xlu0 %933
        %935 = vadd.xlane.f32.xlu0 %v917
        %v936 = vpop.xlane.xlu0 %935
        %937 = vadd.xlane.f32.xlu0 %v918
        %v938 = vpop.xlane.xlu0 %937
        %939 = vadd.xlane.f32.xlu0 %v919
        %v940 = vpop.xlane.xlu0 %939
        %941 = vadd.xlane.f32.xlu0 %v920
        %v942 = vpop.xlane.xlu0 %941
        %943 = vadd.xlane.f32.xlu0 %v921
        %v944 = vpop.xlane.xlu0 %943
        %945 = vadd.xlane.f32.xlu0 %v922
        %v946 = vpop.xlane.xlu0 %945
        %947 = vadd.xlane.f32.xlu0 %v923
        %v948 = vpop.xlane.xlu0 %947
        %949 = vadd.xlane.f32.xlu0 %v924
        %v950 = vpop.xlane.xlu0 %949
        %951 = vadd.xlane.f32.xlu0 %v925
        %v952 = vpop.xlane.xlu0 %951
        %953 = vadd.xlane.f32.xlu0 %v926
        %v954 = vpop.xlane.xlu0 %953
        %955 = vadd.xlane.f32.xlu0 %v927
        %v956 = vpop.xlane.xlu0 %955
        %957 = vadd.xlane.f32.xlu0 %v928
        %v958 = vpop.xlane.xlu0 %957
        %959 = vadd.xlane.f32.xlu0 %v929
        %v960 = vpop.xlane.xlu0 %959
        %961 = vadd.xlane.f32.xlu0 %v930
        %v962 = vpop.xlane.xlu0 %961
        %v963 = vmax.f32 %v932, 1.0
        %v964 = vmax.f32 %v934, 1.0
        %v965 = vmax.f32 %v936, 1.0
        %v966 = vmax.f32 %v938, 1.0
        %v967 = vmax.f32 %v940, 1.0
        %v968 = vmax.f32 %v942, 1.0
        %v969 = vmax.f32 %v944, 1.0
        %v970 = vmax.f32 %v946, 1.0
        %v971 = vmax.f32 %v948, 1.0
        %v972 = vmax.f32 %v950, 1.0
        %v973 = vmax.f32 %v952, 1.0
        %v974 = vmax.f32 %v954, 1.0
        %v975 = vmax.f32 %v956, 1.0
        %v976 = vmax.f32 %v958, 1.0
        %v977 = vmax.f32 %v960, 1.0
        %v978 = vmax.f32 %v962, 1.0
        %v979 = vrcp.pop %v963
        %v980 = vrcp.pop %v964
        %v981 = vrcp.pop %v965
        %v982 = vrcp.pop %v966
        %v983 = vrcp.pop %v967
        %v984 = vrcp.pop %v968
        %v985 = vrcp.pop %v969
        %v986 = vrcp.pop %v970
        %v987 = vrcp.pop %v971
        %v988 = vrcp.pop %v972
        %v989 = vrcp.pop %v973
        %v990 = vrcp.pop %v974
        %v991 = vrcp.pop %v975
        %v992 = vrcp.pop %v976
        %v993 = vrcp.pop %v977
        %v994 = vrcp.pop %v978
        %v995 = vmul.f32 %v915, %v979
        %v996 = vmul.f32 %v916, %v980
        %v997 = vmul.f32 %v917, %v981
        %v998 = vmul.f32 %v918, %v982
        %v999 = vmul.f32 %v919, %v983
        %v1000 = vmul.f32 %v920, %v984
        %v1001 = vmul.f32 %v921, %v985
        %v1002 = vmul.f32 %v922, %v986
        %v1003 = vmul.f32 %v923, %v987
        %v1004 = vmul.f32 %v924, %v988
        %v1005 = vmul.f32 %v925, %v989
        %v1006 = vmul.f32 %v926, %v990
        %v1007 = vmul.f32 %v927, %v991
        %v1008 = vmul.f32 %v928, %v992
        %v1009 = vmul.f32 %v929, %v993
        %v1010 = vmul.f32 %v930, %v994
        %v1011 = vmul.f32 %v995, 0.95
        %v1012 = vmul.f32 %v996, 0.95
        %v1013 = vmul.f32 %v997, 0.95
        %v1014 = vmul.f32 %v998, 0.95
        %v1015 = vmul.f32 %v999, 0.95
        %v1016 = vmul.f32 %v1000, 0.95
        %v1017 = vmul.f32 %v1001, 0.95
        %v1018 = vmul.f32 %v1002, 0.95
        %v1019 = vmul.f32 %v1003, 0.95
        %v1020 = vmul.f32 %v1004, 0.95
        %v1021 = vmul.f32 %v1005, 0.95
        %v1022 = vmul.f32 %v1006, 0.95
        %v1023 = vmul.f32 %v1007, 0.95
        %v1024 = vmul.f32 %v1008, 0.95
        %v1025 = vmul.f32 %v1009, 0.95
        %v1026 = vmul.f32 %v1010, 0.95
        %v1027 = vld [vmem:[%s522] sm:$0xf]
        %v1028 = vld [vmem:[%s522 + $0x4] sm:$0xf]
        %v1029 = vld [vmem:[%s522 + $0x8] sm:$0xf]
        %v1030 = vld [vmem:[%s522 + $0xc] sm:$0xf]
        %v1031 = vld [vmem:[%s522 + $0x10] sm:$0xf]
        %v1032 = vld [vmem:[%s522 + $0x14] sm:$0xf]
        %v1033 = vld [vmem:[%s522 + $0x18] sm:$0xf]
        %v1034 = vld [vmem:[%s522 + $0x1c] sm:$0xf]
        %v1035 = vld [vmem:[%s522 + $0x20] sm:$0xf]
        %v1036 = vld [vmem:[%s522 + $0x24] sm:$0xf]
        %v1037 = vld [vmem:[%s522 + $0x28] sm:$0xf]
        %v1038 = vld [vmem:[%s522 + $0x2c] sm:$0xf]
        %v1039 = vld [vmem:[%s522 + $0x30] sm:$0xf]
        %v1040 = vld [vmem:[%s522 + $0x34] sm:$0xf]
        %v1041 = vld [vmem:[%s522 + $0x38] sm:$0xf]
        %v1042 = vld [vmem:[%s522 + $0x3c] sm:$0xf]
        %v1043 = vunpack.c.l.bf16 %v1027
        %v1044 = vunpack.c.l.bf16 %v1028
        %v1045 = vunpack.c.l.bf16 %v1029
        %v1046 = vunpack.c.l.bf16 %v1030
        %v1047 = vunpack.c.l.bf16 %v1031
        %v1048 = vunpack.c.l.bf16 %v1032
        %v1049 = vunpack.c.l.bf16 %v1033
        %v1050 = vunpack.c.l.bf16 %v1034
        %v1051 = vunpack.c.l.bf16 %v1035
        %v1052 = vunpack.c.l.bf16 %v1036
        %v1053 = vunpack.c.l.bf16 %v1037
        %v1054 = vunpack.c.l.bf16 %v1038
        %v1055 = vunpack.c.l.bf16 %v1039
        %v1056 = vunpack.c.l.bf16 %v1040
        %v1057 = vunpack.c.l.bf16 %v1041
        %v1058 = vunpack.c.l.bf16 %v1042
        %v1059 = vmul.f32 %v1043, 0.05
        %v1060 = vmul.f32 %v1044, 0.05
        %v1061 = vmul.f32 %v1045, 0.05
        %v1062 = vmul.f32 %v1046, 0.05
        %v1063 = vmul.f32 %v1047, 0.05
        %v1064 = vmul.f32 %v1048, 0.05
        %v1065 = vmul.f32 %v1049, 0.05
        %v1066 = vmul.f32 %v1050, 0.05
        %v1067 = vmul.f32 %v1051, 0.05
        %v1068 = vmul.f32 %v1052, 0.05
        %v1069 = vmul.f32 %v1053, 0.05
        %v1070 = vmul.f32 %v1054, 0.05
        %v1071 = vmul.f32 %v1055, 0.05
        %v1072 = vmul.f32 %v1056, 0.05
        %v1073 = vmul.f32 %v1057, 0.05
        %v1074 = vmul.f32 %v1058, 0.05
        %v1075 = vadd.f32 %v1011, %v1059
        %v1076 = vadd.f32 %v1012, %v1060
        %v1077 = vadd.f32 %v1013, %v1061
        %v1078 = vadd.f32 %v1014, %v1062
        %v1079 = vadd.f32 %v1015, %v1063
        %v1080 = vadd.f32 %v1016, %v1064
        %v1081 = vadd.f32 %v1017, %v1065
        %v1082 = vadd.f32 %v1018, %v1066
        %v1083 = vadd.f32 %v1019, %v1067
        %v1084 = vadd.f32 %v1020, %v1068
        %v1085 = vadd.f32 %v1021, %v1069
        %v1086 = vadd.f32 %v1022, %v1070
        %v1087 = vadd.f32 %v1023, %v1071
        %v1088 = vadd.f32 %v1024, %v1072
        %v1089 = vadd.f32 %v1025, %v1073
        %v1090 = vadd.f32 %v1026, %v1074
        %v1091 = vpack.c.bf16 %v1075, %v1075
        %v1092 = vpack.c.bf16 %v1076, %v1076
        %v1093 = vpack.c.bf16 %v1077, %v1077
        %v1094 = vpack.c.bf16 %v1078, %v1078
        %v1095 = vpack.c.bf16 %v1079, %v1079
        %v1096 = vpack.c.bf16 %v1080, %v1080
        %v1097 = vpack.c.bf16 %v1081, %v1081
        %v1098 = vpack.c.bf16 %v1082, %v1082
        %v1099 = vpack.c.bf16 %v1083, %v1083
        %v1100 = vpack.c.bf16 %v1084, %v1084
        %v1101 = vpack.c.bf16 %v1085, %v1085
        %v1102 = vpack.c.bf16 %v1086, %v1086
        %v1103 = vpack.c.bf16 %v1087, %v1087
        %v1104 = vpack.c.bf16 %v1088, %v1088
        %v1105 = vpack.c.bf16 %v1089, %v1089
        %v1106 = vpack.c.bf16 %v1090, %v1090
        %1107 = vst [vmem:[%s495] sm:$0xf] %v1091
        %1108 = vst [vmem:[%s495 + $0x4] sm:$0xf] %v1092
        %1109 = vst [vmem:[%s495 + $0x8] sm:$0xf] %v1093
        %1110 = vst [vmem:[%s495 + $0xc] sm:$0xf] %v1094
        %1111 = vst [vmem:[%s495 + $0x10] sm:$0xf] %v1095
        %1112 = vst [vmem:[%s495 + $0x14] sm:$0xf] %v1096
        %1113 = vst [vmem:[%s495 + $0x18] sm:$0xf] %v1097
        %1114 = vst [vmem:[%s495 + $0x1c] sm:$0xf] %v1098
        %1115 = vst [vmem:[%s495 + $0x20] sm:$0xf] %v1099
        %1116 = vst [vmem:[%s495 + $0x24] sm:$0xf] %v1100
        %1117 = vst [vmem:[%s495 + $0x28] sm:$0xf] %v1101
        %1118 = vst [vmem:[%s495 + $0x2c] sm:$0xf] %v1102
        %1119 = vst [vmem:[%s495 + $0x30] sm:$0xf] %v1103
        %1120 = vst [vmem:[%s495 + $0x34] sm:$0xf] %v1104
        %1121 = vst [vmem:[%s495 + $0x38] sm:$0xf] %v1105
        %1122 = vst [vmem:[%s495 + $0x3c] sm:$0xf] %v1106
        %s1123 = smul.u32 %s37, 16
        %s1124 = smul.addr %s1123, 4
        %s1125 = scalar_lea.vmem %s4, %s1124
        %v1126 = vld [vmem:[%s1125] sm:$0xf]
        %v1127 = vld [vmem:[%s1125 + $0x4] sm:$0xf]
        %v1128 = vld [vmem:[%s1125 + $0x8] sm:$0xf]
        %v1129 = vld [vmem:[%s1125 + $0xc] sm:$0xf]
        %v1130 = vld [vmem:[%s1125 + $0x10] sm:$0xf]
        %v1131 = vld [vmem:[%s1125 + $0x14] sm:$0xf]
        %v1132 = vld [vmem:[%s1125 + $0x18] sm:$0xf]
        %v1133 = vld [vmem:[%s1125 + $0x1c] sm:$0xf]
        %v1134 = vld [vmem:[%s1125 + $0x20] sm:$0xf]
        %v1135 = vld [vmem:[%s1125 + $0x24] sm:$0xf]
        %v1136 = vld [vmem:[%s1125 + $0x28] sm:$0xf]
        %v1137 = vld [vmem:[%s1125 + $0x2c] sm:$0xf]
        %v1138 = vld [vmem:[%s1125 + $0x30] sm:$0xf]
        %v1139 = vld [vmem:[%s1125 + $0x34] sm:$0xf]
        %v1140 = vld [vmem:[%s1125 + $0x38] sm:$0xf]
        %v1141 = vld [vmem:[%s1125 + $0x3c] sm:$0xf]
        %v1142 = vld [vmem:[%s448] sm:$0xf]
        %v1143 = vld [vmem:[%s448 + $0x4] sm:$0xf]
        %v1144 = vld [vmem:[%s448 + $0x8] sm:$0xf]
        %v1145 = vld [vmem:[%s448 + $0xc] sm:$0xf]
        %v1146 = vld [vmem:[%s448 + $0x10] sm:$0xf]
        %v1147 = vld [vmem:[%s448 + $0x14] sm:$0xf]
        %v1148 = vld [vmem:[%s448 + $0x18] sm:$0xf]
        %v1149 = vld [vmem:[%s448 + $0x1c] sm:$0xf]
        %v1150 = vld [vmem:[%s448 + $0x20] sm:$0xf]
        %v1151 = vld [vmem:[%s448 + $0x24] sm:$0xf]
        %v1152 = vld [vmem:[%s448 + $0x28] sm:$0xf]
        %v1153 = vld [vmem:[%s448 + $0x2c] sm:$0xf]
        %v1154 = vld [vmem:[%s448 + $0x30] sm:$0xf]
        %v1155 = vld [vmem:[%s448 + $0x34] sm:$0xf]
        %v1156 = vld [vmem:[%s448 + $0x38] sm:$0xf]
        %v1157 = vld [vmem:[%s448 + $0x3c] sm:$0xf]
        %v1158 = vunpack.c.l.bf16 %v1142
        %v1159 = vunpack.c.l.bf16 %v1143
        %v1160 = vunpack.c.l.bf16 %v1144
        %v1161 = vunpack.c.l.bf16 %v1145
        %v1162 = vunpack.c.l.bf16 %v1146
        %v1163 = vunpack.c.l.bf16 %v1147
        %v1164 = vunpack.c.l.bf16 %v1148
        %v1165 = vunpack.c.l.bf16 %v1149
        %v1166 = vunpack.c.l.bf16 %v1150
        %v1167 = vunpack.c.l.bf16 %v1151
        %v1168 = vunpack.c.l.bf16 %v1152
        %v1169 = vunpack.c.l.bf16 %v1153
        %v1170 = vunpack.c.l.bf16 %v1154
        %v1171 = vunpack.c.l.bf16 %v1155
        %v1172 = vunpack.c.l.bf16 %v1156
        %v1173 = vunpack.c.l.bf16 %v1157
        %v1190 = vunpack.c.l.b16 %v1091
        %v1191 = vunpack.c.l.b16 %v1092
        %v1192 = vunpack.c.l.b16 %v1093
        %v1193 = vunpack.c.l.b16 %v1094
        %v1194 = vunpack.c.l.b16 %v1095
        %v1195 = vunpack.c.l.b16 %v1096
        %v1196 = vunpack.c.l.b16 %v1097
        %v1197 = vunpack.c.l.b16 %v1098
        %v1198 = vunpack.c.l.b16 %v1099
        %v1199 = vunpack.c.l.b16 %v1100
        %v1200 = vunpack.c.l.b16 %v1101
        %v1201 = vunpack.c.l.b16 %v1102
        %v1202 = vunpack.c.l.b16 %v1103
        %v1203 = vunpack.c.l.b16 %v1104
        %v1204 = vunpack.c.l.b16 %v1105
        %v1205 = vunpack.c.l.b16 %v1106
        %v1206 = vpack.c.b16 %v1191, %v1190
        %v1207 = vpack.c.b16 %v1193, %v1192
        %v1208 = vpack.c.b16 %v1195, %v1194
        %v1209 = vpack.c.b16 %v1197, %v1196
        %v1210 = vpack.c.b16 %v1199, %v1198
        %v1211 = vpack.c.b16 %v1201, %v1200
        %v1212 = vpack.c.b16 %v1203, %v1202
        %v1213 = vpack.c.b16 %v1205, %v1204
        %v1238 = vunpack.c.l.b16 %v1126
        %v1239 = vunpack.c.l.b16 %v1127
        %v1240 = vunpack.c.l.b16 %v1128
        %v1241 = vunpack.c.l.b16 %v1129
        %v1242 = vunpack.c.l.b16 %v1130
        %v1243 = vunpack.c.l.b16 %v1131
        %v1244 = vunpack.c.l.b16 %v1132
        %v1245 = vunpack.c.l.b16 %v1133
        %v1246 = vunpack.c.l.b16 %v1134
        %v1247 = vunpack.c.l.b16 %v1135
        %v1248 = vunpack.c.l.b16 %v1136
        %v1249 = vunpack.c.l.b16 %v1137
        %v1250 = vunpack.c.l.b16 %v1138
        %v1251 = vunpack.c.l.b16 %v1139
        %v1252 = vunpack.c.l.b16 %v1140
        %v1253 = vunpack.c.l.b16 %v1141
        %v1254 = vpack.c.b16 %v1239, %v1238
        %v1255 = vpack.c.b16 %v1241, %v1240
        %v1256 = vpack.c.b16 %v1243, %v1242
        %v1257 = vpack.c.b16 %v1245, %v1244
        %v1258 = vpack.c.b16 %v1247, %v1246
        %v1259 = vpack.c.b16 %v1249, %v1248
        %v1260 = vpack.c.b16 %v1251, %v1250
        %v1261 = vpack.c.b16 %v1253, %v1252
        %1270 = vmatpush.bf16.msra.mxu0 %v1261
        %1271 = vmatpush.bf16.msra.mxu0 %v1260
        %1272 = vmatpush.bf16.msra.mxu0 %v1259
        %1273 = vmatpush.bf16.msra.mxu0 %v1258
        %1274 = vmatpush.bf16.msra.mxu0 %v1257
        %1275 = vmatpush.bf16.msra.mxu0 %v1256
        %1276 = vmatpush.bf16.msra.mxu0 %v1255
        %1277 = vmatpush.bf16.msra.mxu0 %v1254
        %1278 = vmatmul.bf16.gmra.mxu0 %v1206
        %v1279 = vpop.f32.mrf.mxu0
        %v1280 = vadd.f32 %v1158, %v1279
        %v1281 = vpop.f32.mrf.mxu0
        %v1282 = vadd.f32 %v1159, %v1281
        %1283 = vmatmul.bf16.gmra.mxu0 %v1207
        %v1284 = vpop.f32.mrf.mxu0
        %v1285 = vadd.f32 %v1160, %v1284
        %v1286 = vpop.f32.mrf.mxu0
        %v1287 = vadd.f32 %v1161, %v1286
        %1288 = vmatmul.bf16.gmra.mxu0 %v1208
        %v1289 = vpop.f32.mrf.mxu0
        %v1290 = vadd.f32 %v1162, %v1289
        %v1291 = vpop.f32.mrf.mxu0
        %v1292 = vadd.f32 %v1163, %v1291
        %1293 = vmatmul.bf16.gmra.mxu0 %v1209
        %v1294 = vpop.f32.mrf.mxu0
        %v1295 = vadd.f32 %v1164, %v1294
        %v1296 = vpop.f32.mrf.mxu0
        %v1297 = vadd.f32 %v1165, %v1296
        %1298 = vmatmul.bf16.gmra.mxu0 %v1210
        %v1299 = vpop.f32.mrf.mxu0
        %v1300 = vadd.f32 %v1166, %v1299
        %v1301 = vpop.f32.mrf.mxu0
        %v1302 = vadd.f32 %v1167, %v1301
        %1303 = vmatmul.bf16.gmra.mxu0 %v1211
        %v1304 = vpop.f32.mrf.mxu0
        %v1305 = vadd.f32 %v1168, %v1304
        %v1306 = vpop.f32.mrf.mxu0
        %v1307 = vadd.f32 %v1169, %v1306
        %1308 = vmatmul.bf16.gmra.mxu0 %v1212
        %v1309 = vpop.f32.mrf.mxu0
        %v1310 = vadd.f32 %v1170, %v1309
        %v1311 = vpop.f32.mrf.mxu0
        %v1312 = vadd.f32 %v1171, %v1311
        %1313 = vmatmul.bf16.gmra.mxu0 %v1213
        %v1314 = vpop.f32.mrf.mxu0
        %v1315 = vadd.f32 %v1172, %v1314
        %v1316 = vpop.f32.mrf.mxu0
        %v1317 = vadd.f32 %v1173, %v1316
        %1318 = vdwg.mxu0
        %s1319 = scalar_lea.vmem %s7, %s37
        %v1320 = vld [vmem:[%s1319] sm:$0x1]
        %v1322 = vperm.slane %v1320, 0
        %v1324 = vadd.f32 %v1280, %v1322
        %v1325 = vadd.f32 %v1282, %v1322
        %v1326 = vadd.f32 %v1285, %v1322
        %v1327 = vadd.f32 %v1287, %v1322
        %v1328 = vadd.f32 %v1290, %v1322
        %v1329 = vadd.f32 %v1292, %v1322
        %v1330 = vadd.f32 %v1295, %v1322
        %v1331 = vadd.f32 %v1297, %v1322
        %v1332 = vadd.f32 %v1300, %v1322
        %v1333 = vadd.f32 %v1302, %v1322
        %v1334 = vadd.f32 %v1305, %v1322
        %v1335 = vadd.f32 %v1307, %v1322
        %v1336 = vadd.f32 %v1310, %v1322
        %v1337 = vadd.f32 %v1312, %v1322
        %v1338 = vadd.f32 %v1315, %v1322
        %v1339 = vadd.f32 %v1317, %v1322
        %vm1340 = vcmp.gt.f32.partialorder %v1324, 0.0
        %vm1341 = vcmp.gt.f32.partialorder %v1325, 0.0
        %vm1342 = vcmp.gt.f32.partialorder %v1326, 0.0
        %vm1343 = vcmp.gt.f32.partialorder %v1327, 0.0
        %vm1344 = vcmp.gt.f32.partialorder %v1328, 0.0
        %vm1345 = vcmp.gt.f32.partialorder %v1329, 0.0
        %vm1346 = vcmp.gt.f32.partialorder %v1330, 0.0
        %vm1347 = vcmp.gt.f32.partialorder %v1331, 0.0
        %vm1348 = vcmp.gt.f32.partialorder %v1332, 0.0
        %vm1349 = vcmp.gt.f32.partialorder %v1333, 0.0
        %vm1350 = vcmp.gt.f32.partialorder %v1334, 0.0
        %vm1351 = vcmp.gt.f32.partialorder %v1335, 0.0
        %vm1352 = vcmp.gt.f32.partialorder %v1336, 0.0
        %vm1353 = vcmp.gt.f32.partialorder %v1337, 0.0
        %vm1354 = vcmp.gt.f32.partialorder %v1338, 0.0
        %vm1355 = vcmp.gt.f32.partialorder %v1339, 0.0
        %v1356 = vmin.f32 %v1324, 0.0
        %v1357 = vmin.f32 %v1325, 0.0
        %v1358 = vmin.f32 %v1326, 0.0
        %v1359 = vmin.f32 %v1327, 0.0
        %v1360 = vmin.f32 %v1328, 0.0
        %v1361 = vmin.f32 %v1329, 0.0
        %v1362 = vmin.f32 %v1330, 0.0
        %v1363 = vmin.f32 %v1331, 0.0
        %v1364 = vmin.f32 %v1332, 0.0
        %v1365 = vmin.f32 %v1333, 0.0
        %v1366 = vmin.f32 %v1334, 0.0
        %v1367 = vmin.f32 %v1335, 0.0
        %v1368 = vmin.f32 %v1336, 0.0
        %v1369 = vmin.f32 %v1337, 0.0
        %v1370 = vmin.f32 %v1338, 0.0
        %v1371 = vmin.f32 %v1339, 0.0
        %v1372 = vmul.f32 %v1356, 1.442695
        %v1373 = vpow.pop %v1372
        %v1374 = vmul.f32 %v1357, 1.442695
        %v1375 = vpow.pop %v1374
        %v1376 = vmul.f32 %v1358, 1.442695
        %v1377 = vpow.pop %v1376
        %v1378 = vmul.f32 %v1359, 1.442695
        %v1379 = vpow.pop %v1378
        %v1380 = vmul.f32 %v1360, 1.442695
        %v1381 = vpow.pop %v1380
        %v1382 = vmul.f32 %v1361, 1.442695
        %v1383 = vpow.pop %v1382
        %v1384 = vmul.f32 %v1362, 1.442695
        %v1385 = vpow.pop %v1384
        %v1386 = vmul.f32 %v1363, 1.442695
        %v1387 = vpow.pop %v1386
        %v1388 = vmul.f32 %v1364, 1.442695
        %v1389 = vpow.pop %v1388
        %v1390 = vmul.f32 %v1365, 1.442695
        %v1391 = vpow.pop %v1390
        %v1392 = vmul.f32 %v1366, 1.442695
        %v1393 = vpow.pop %v1392
        %v1394 = vmul.f32 %v1367, 1.442695
        %v1395 = vpow.pop %v1394
        %v1396 = vmul.f32 %v1368, 1.442695
        %v1397 = vpow.pop %v1396
        %v1398 = vmul.f32 %v1369, 1.442695
        %v1399 = vpow.pop %v1398
        %v1400 = vmul.f32 %v1370, 1.442695
        %v1401 = vpow.pop %v1400
        %v1402 = vmul.f32 %v1371, 1.442695
        %v1403 = vpow.pop %v1402
        %v1404 = vsub.f32 %v1373, 1.0
        %v1405 = vsub.f32 %v1375, 1.0
        %v1406 = vsub.f32 %v1377, 1.0
        %v1407 = vsub.f32 %v1379, 1.0
        %v1408 = vsub.f32 %v1381, 1.0
        %v1409 = vsub.f32 %v1383, 1.0
        %v1410 = vsub.f32 %v1385, 1.0
        %v1411 = vsub.f32 %v1387, 1.0
        %v1412 = vsub.f32 %v1389, 1.0
        %v1413 = vsub.f32 %v1391, 1.0
        %v1414 = vsub.f32 %v1393, 1.0
        %v1415 = vsub.f32 %v1395, 1.0
        %v1416 = vsub.f32 %v1397, 1.0
        %v1417 = vsub.f32 %v1399, 1.0
        %v1418 = vsub.f32 %v1401, 1.0
        %v1419 = vsub.f32 %v1403, 1.0
        %v1420 = vsel %vm1340, %v1324, %v1404
        %v1421 = vsel %vm1341, %v1325, %v1405
        %v1422 = vsel %vm1342, %v1326, %v1406
        %v1423 = vsel %vm1343, %v1327, %v1407
        %v1424 = vsel %vm1344, %v1328, %v1408
        %v1425 = vsel %vm1345, %v1329, %v1409
        %v1426 = vsel %vm1346, %v1330, %v1410
        %v1427 = vsel %vm1347, %v1331, %v1411
        %v1428 = vsel %vm1348, %v1332, %v1412
        %v1429 = vsel %vm1349, %v1333, %v1413
        %v1430 = vsel %vm1350, %v1334, %v1414
        %v1431 = vsel %vm1351, %v1335, %v1415
        %v1432 = vsel %vm1352, %v1336, %v1416
        %v1433 = vsel %vm1353, %v1337, %v1417
        %v1434 = vsel %vm1354, %v1338, %v1418
        %v1435 = vsel %vm1355, %v1339, %v1419
        %v1436 = vpack.c.bf16 %v1420, %v1420
        %v1437 = vpack.c.bf16 %v1421, %v1421
        %v1438 = vpack.c.bf16 %v1422, %v1422
        %v1439 = vpack.c.bf16 %v1423, %v1423
        %v1440 = vpack.c.bf16 %v1424, %v1424
        %v1441 = vpack.c.bf16 %v1425, %v1425
        %v1442 = vpack.c.bf16 %v1426, %v1426
        %v1443 = vpack.c.bf16 %v1427, %v1427
        %v1444 = vpack.c.bf16 %v1428, %v1428
        %v1445 = vpack.c.bf16 %v1429, %v1429
        %v1446 = vpack.c.bf16 %v1430, %v1430
        %v1447 = vpack.c.bf16 %v1431, %v1431
        %v1448 = vpack.c.bf16 %v1432, %v1432
        %v1449 = vpack.c.bf16 %v1433, %v1433
        %v1450 = vpack.c.bf16 %v1434, %v1434
        %v1451 = vpack.c.bf16 %v1435, %v1435
        %1452 = vst [vmem:[%s501] sm:$0xf] %v1436
        %1453 = vst [vmem:[%s501 + $0x4] sm:$0xf] %v1437
        %1454 = vst [vmem:[%s501 + $0x8] sm:$0xf] %v1438
        %1455 = vst [vmem:[%s501 + $0xc] sm:$0xf] %v1439
        %1456 = vst [vmem:[%s501 + $0x10] sm:$0xf] %v1440
        %1457 = vst [vmem:[%s501 + $0x14] sm:$0xf] %v1441
        %1458 = vst [vmem:[%s501 + $0x18] sm:$0xf] %v1442
        %1459 = vst [vmem:[%s501 + $0x1c] sm:$0xf] %v1443
        %1460 = vst [vmem:[%s501 + $0x20] sm:$0xf] %v1444
        %1461 = vst [vmem:[%s501 + $0x24] sm:$0xf] %v1445
        %1462 = vst [vmem:[%s501 + $0x28] sm:$0xf] %v1446
        %1463 = vst [vmem:[%s501 + $0x2c] sm:$0xf] %v1447
        %1464 = vst [vmem:[%s501 + $0x30] sm:$0xf] %v1448
        %1465 = vst [vmem:[%s501 + $0x34] sm:$0xf] %v1449
        %1466 = vst [vmem:[%s501 + $0x38] sm:$0xf] %v1450
        %1467 = vst [vmem:[%s501 + $0x3c] sm:$0xf] %v1451
        %s1468 = sand.u32 %s225, 1
        %s1469 = scalar_lea.sflag [#allocation6], %s1468
        %s1470 = sand.u32 %s225, 1
        %s1471 = smul.addr %s1470, 64
        %s1472 = scalar_lea.vmem [#allocation5], %s1471
        %s1473 = sand.u32 %s253, 1
        %s1474 = sand.u32 %s253, 1
        %s1475 = smul.addr %s1474, 64
        %s1476 = scalar_lea.vmem [#allocation7], %s1475
        // Predicated region
        $region90: #{_lambda_.12} parent=84 // pred_check
          %p1477 = pneg %p235
        $region91: #{_lambda_.12} parent=84 // pred_check_branch
          %1479 = sbr.rel (%p1477) target = $region93
        $region92: #{_lambda_.12} parent=84 // pred_region
          %s1480 = smul.u32 16, %s36
          %1482 = vsyncadd %s1469, 0
          %s1483 = smul.addr %s37, 16
          %s1484 = sadd.s32 %s1480, %s1483
          %s1485 = smul.addr %s1484, 4
          %s1486 = scalar_lea.hbm %s8, %s1485
          %s1487 = sshll.u32 %s1472, 4
          %s1488 = int_to_ptr.vmem [resolvable:$true] %s1487
          %s1489 = sshll.u32 %s1486, 4
          %s1490 = int_to_ptr.hbm [resolvable:$true] %s1489
          %1495 = dma.vmem_to_hbm [thread:$0]  %s1488, 1024, %s1490, %s1469, 64, 64, 4
        $region93: #{_lambda_.12} parent=84 // pred_fallthru
          _
        // Predicated region
        $region94: #{_lambda_.12} parent=84 // pred_check
          %p1496 = pneg %p263
        $region95: #{_lambda_.12} parent=84 // pred_check_branch
          %1498 = sbr.rel (%p1496) target = $region97
        $region96: #{_lambda_.12} parent=84 // pred_region
          %s1499 = smul.u32 16, %s36
          %s1500 = smul.addr %s1499, 2
          %s1501 = sadd.s32 %s37, %s1500
          %s1502 = smul.addr %s1501, 4
          %s1503 = scalar_lea.vmem %s9, %s1502
          // Predicated region
          $region98: #{_lambda_.12} parent=96 // pred_check
            _
          $region99: #{_lambda_.12} parent=96 // pred_check_branch
            %1505 = sbr.rel (0) target = $region101
          $region100: #{_lambda_.12} parent=96 // pred_region
            // Predicated region
            $region102: #{_lambda_.12} parent=100 // pred_check
              _
            $region103: #{_lambda_.12} parent=100 // pred_check_branch
              %1507 = sbr.rel target = $region105
            $region104: #{_lambda_.12} parent=100 // pred_region
              // Predicated region
              $region117: #{_lambda_.12} parent=104 // pred_check
                _
              $region118: #{_lambda_.12} parent=104 // pred_check_branch
                %1553 = sbr.rel (0) target = $region120
              $region119: #{_lambda_.12} parent=104 // pred_region
                loop: start=0, step=1, limit=1
                $region121: #{_lambda_.12} parent=119 // loop_pre_header
                  _
                $region122: #{_lambda_.12} parent=119 // loop_header
                  %s1555 = sphi 0, %s1559
                  %p1556 = scmp.ge.s32.totalorder %s1555, 1
                  %s1560 = sphi %s1476, %s1476
                  %s1561 = sphi %s1503, %s1503
                $region123: #{_lambda_.12} parent=119 // loop_header_branch
                  %1558 = sbr.rel (%p1556) target = $region127
                $region124: #{_lambda_.12} parent=119 // loop_body
                  _
                $region125: #{_lambda_.12} parent=119 // loop_footer
                  %s1559 = sadd.s32 1, %s1555
                $region126: #{_lambda_.12} parent=119 // loop_footer_branch
                  %1554 = sbr.rel target = $region122
                $region127: #{_lambda_.12} parent=119 // loop_exit
                  _
                %s1563 = ssub.s32 16, 1
                loop: start=0, step=1, limit=1
                $region128: #{_lambda_.12} parent=119 // loop_pre_header
                  _
                $region129: #{_lambda_.12} parent=119 // loop_header
                  %s1565 = sphi 0, %s1569
                  %p1566 = scmp.ge.s32.totalorder %s1565, 1
                  %s1570 = sphi %s1476, %s1476
                  %s1571 = sphi %s1503, %s1503
                $region130: #{_lambda_.12} parent=119 // loop_header_branch
                  %1568 = sbr.rel (%p1566) target = $region134
                $region131: #{_lambda_.12} parent=119 // loop_body
                  %v1572 = vld [vmem:[%s1570] sm:%s1563]
                  %1573 = vst [vmem:[%s1571] sm:%s1563] %v1572
                  %v1574 = vld [vmem:[%s1570 + $0x4] sm:%s1563]
                  %1575 = vst [vmem:[%s1571 + $0x8] sm:%s1563] %v1574
                  %v1576 = vld [vmem:[%s1570 + $0x8] sm:%s1563]
                  %1577 = vst [vmem:[%s1571 + $0x10] sm:%s1563] %v1576
                  %v1578 = vld [vmem:[%s1570 + $0xc] sm:%s1563]
                  %1579 = vst [vmem:[%s1571 + $0x18] sm:%s1563] %v1578
                  %v1580 = vld [vmem:[%s1570 + $0x10] sm:%s1563]
                  %1581 = vst [vmem:[%s1571 + $0x20] sm:%s1563] %v1580
                  %v1582 = vld [vmem:[%s1570 + $0x14] sm:%s1563]
                  %1583 = vst [vmem:[%s1571 + $0x28] sm:%s1563] %v1582
                  %v1584 = vld [vmem:[%s1570 + $0x18] sm:%s1563]
                  %1585 = vst [vmem:[%s1571 + $0x30] sm:%s1563] %v1584
                  %v1586 = vld [vmem:[%s1570 + $0x1c] sm:%s1563]
                  %1587 = vst [vmem:[%s1571 + $0x38] sm:%s1563] %v1586
                  %v1588 = vld [vmem:[%s1570 + $0x20] sm:%s1563]
                  %1589 = vst [vmem:[%s1571 + $0x40] sm:%s1563] %v1588
                  %v1590 = vld [vmem:[%s1570 + $0x24] sm:%s1563]
                  %1591 = vst [vmem:[%s1571 + $0x48] sm:%s1563] %v1590
                  %v1592 = vld [vmem:[%s1570 + $0x28] sm:%s1563]
                  %1593 = vst [vmem:[%s1571 + $0x50] sm:%s1563] %v1592
                  %v1594 = vld [vmem:[%s1570 + $0x2c] sm:%s1563]
                  %1595 = vst [vmem:[%s1571 + $0x58] sm:%s1563] %v1594
                  %v1596 = vld [vmem:[%s1570 + $0x30] sm:%s1563]
                  %1597 = vst [vmem:[%s1571 + $0x60] sm:%s1563] %v1596
                  %v1598 = vld [vmem:[%s1570 + $0x34] sm:%s1563]
                  %1599 = vst [vmem:[%s1571 + $0x68] sm:%s1563] %v1598
                  %v1600 = vld [vmem:[%s1570 + $0x38] sm:%s1563]
                  %1601 = vst [vmem:[%s1571 + $0x70] sm:%s1563] %v1600
                  %v1602 = vld [vmem:[%s1570 + $0x3c] sm:%s1563]
                  %1603 = vst [vmem:[%s1571 + $0x78] sm:%s1563] %v1602
                $region132: #{_lambda_.12} parent=119 // loop_footer
                  %s1569 = sadd.s32 1, %s1565
                $region133: #{_lambda_.12} parent=119 // loop_footer_branch
                  %1564 = sbr.rel target = $region129
                $region134: #{_lambda_.12} parent=119 // loop_exit
                  _
              $region120: #{_lambda_.12} parent=104 // pred_fallthru
                _
            $region105: #{_lambda_.12} parent=100 // pred_fallthru
              _
            // Predicated region
            $region106: #{_lambda_.12} parent=100 // pred_check
              _
            $region107: #{_lambda_.12} parent=100 // pred_check_branch
              %1509 = sbr.rel (0) target = $region109
            $region108: #{_lambda_.12} parent=100 // pred_region
              %s1511 = ssub.s32 16, 1
              loop: start=0, step=1, limit=1
              $region110: #{_lambda_.12} parent=108 // loop_pre_header
                _
              $region111: #{_lambda_.12} parent=108 // loop_header
                %s1513 = sphi 0, %s1517
                %p1514 = scmp.ge.s32.totalorder %s1513, 1
                %s1518 = sphi %s1476, %s1476
                %s1519 = sphi %s1503, %s1503
              $region112: #{_lambda_.12} parent=108 // loop_header_branch
                %1516 = sbr.rel (%p1514) target = $region116
              $region113: #{_lambda_.12} parent=108 // loop_body
                %v1520 = vld [vmem:[%s1518] sm:%s1511]
                %1521 = vst [vmem:[%s1519] sm:%s1511] %v1520
                %v1522 = vld [vmem:[%s1518 + $0x4] sm:%s1511]
                %1523 = vst [vmem:[%s1519 + $0x8] sm:%s1511] %v1522
                %v1524 = vld [vmem:[%s1518 + $0x8] sm:%s1511]
                %1525 = vst [vmem:[%s1519 + $0x10] sm:%s1511] %v1524
                %v1526 = vld [vmem:[%s1518 + $0xc] sm:%s1511]
                %1527 = vst [vmem:[%s1519 + $0x18] sm:%s1511] %v1526
                %v1528 = vld [vmem:[%s1518 + $0x10] sm:%s1511]
                %1529 = vst [vmem:[%s1519 + $0x20] sm:%s1511] %v1528
                %v1530 = vld [vmem:[%s1518 + $0x14] sm:%s1511]
                %1531 = vst [vmem:[%s1519 + $0x28] sm:%s1511] %v1530
                %v1532 = vld [vmem:[%s1518 + $0x18] sm:%s1511]
                %1533 = vst [vmem:[%s1519 + $0x30] sm:%s1511] %v1532
                %v1534 = vld [vmem:[%s1518 + $0x1c] sm:%s1511]
                %1535 = vst [vmem:[%s1519 + $0x38] sm:%s1511] %v1534
                %v1536 = vld [vmem:[%s1518 + $0x20] sm:%s1511]
                %1537 = vst [vmem:[%s1519 + $0x40] sm:%s1511] %v1536
                %v1538 = vld [vmem:[%s1518 + $0x24] sm:%s1511]
                %1539 = vst [vmem:[%s1519 + $0x48] sm:%s1511] %v1538
                %v1540 = vld [vmem:[%s1518 + $0x28] sm:%s1511]
                %1541 = vst [vmem:[%s1519 + $0x50] sm:%s1511] %v1540
                %v1542 = vld [vmem:[%s1518 + $0x2c] sm:%s1511]
                %1543 = vst [vmem:[%s1519 + $0x58] sm:%s1511] %v1542
                %v1544 = vld [vmem:[%s1518 + $0x30] sm:%s1511]
                %1545 = vst [vmem:[%s1519 + $0x60] sm:%s1511] %v1544
                %v1546 = vld [vmem:[%s1518 + $0x34] sm:%s1511]
                %1547 = vst [vmem:[%s1519 + $0x68] sm:%s1511] %v1546
                %v1548 = vld [vmem:[%s1518 + $0x38] sm:%s1511]
                %1549 = vst [vmem:[%s1519 + $0x70] sm:%s1511] %v1548
                %v1550 = vld [vmem:[%s1518 + $0x3c] sm:%s1511]
                %1551 = vst [vmem:[%s1519 + $0x78] sm:%s1511] %v1550
              $region114: #{_lambda_.12} parent=108 // loop_footer
                %s1517 = sadd.s32 1, %s1513
              $region115: #{_lambda_.12} parent=108 // loop_footer_branch
                %1512 = sbr.rel target = $region111
              $region116: #{_lambda_.12} parent=108 // loop_exit
                _
            $region109: #{_lambda_.12} parent=100 // pred_fallthru
              _
          $region101: #{_lambda_.12} parent=96 // pred_fallthru
            _
          %1604 = vnop
        $region97: #{_lambda_.12} parent=84 // pred_fallthru
          _
      $region85: #{_lambda_.12} parent=5 // pred_fallthru
        _
      %p1605 = scmp.le.s32.totalorder 2, %s27
      // Predicated region
      $region135: #{_lambda_.12} parent=5 // pred_check
        %p1606 = pneg %p1605
      $region136: #{_lambda_.12} parent=5 // pred_check_branch
        %1608 = sbr.rel (%p1606) target = $region138
      $region137: #{_lambda_.12} parent=5 // pred_region
        %s1609 = ssub.s32 %s27, 2
        // Predicated region
        $region139: #{_lambda_.12} parent=137 // pred_check
          %p1610 = pneg %p241
        $region140: #{_lambda_.12} parent=137 // pred_check_branch
          %1612 = sbr.rel (%p1610) target = $region142
        $region141: #{_lambda_.12} parent=137 // pred_region
          %s1613 = sand.u32 %s226, 1
          %s1614 = scalar_lea.sflag [#allocation6], %s1613
          %s1615 = sand.u32 %s226, 1
          %s1616 = smul.addr %s1615, 64
          %s1617 = scalar_lea.vmem [#allocation5], %s1616
          %1619 = dma.done %s1614, 1024
        $region142: #{_lambda_.12} parent=137 // pred_fallthru
          _
        // Predicated region
        $region143: #{_lambda_.12} parent=137 // pred_check
          %p1620 = pneg %p269
        $region144: #{_lambda_.12} parent=137 // pred_check_branch
          %1622 = sbr.rel (%p1620) target = $region146
        $region145: #{_lambda_.12} parent=137 // pred_region
          %s1623 = sand.u32 %s254, 1
          %s1624 = sand.u32 %s254, 1
          %s1625 = smul.addr %s1624, 64
          %s1626 = scalar_lea.vmem [#allocation7], %s1625
        $region146: #{_lambda_.12} parent=137 // pred_fallthru
          _
      $region138: #{_lambda_.12} parent=5 // pred_fallthru
        _
    $region6: #{_lambda_.12} parent=1 // loop_footer
      %s31 = sadd.s32 1, %s27
    $region7: #{_lambda_.12} parent=1 // loop_footer_branch
      %26 = sbr.rel target = $region3
    $region8: #{_lambda_.12} parent=1 // loop_exit
      _
    %1627 = vsyncpa [#allocation6], 1
    %s1628 = scalar_lea.sflag [#allocation6], 1
    %1629 = vsyncpa %s1628, 1

// kernel: _lambda_.14
$region0: #{_lambda_.14}
  #allocation0 [shape = 'u32[]', space=smem, size = 0x4, offset = 0x4, fixed_abs, tag = 'smem constant byte address 0x4 - core index']
  #allocation1 [shape = 'u32[72,128]{1,0:T(1,128)}', space=vmem, size = 0x9000, scoped, tag = 'internal scratch']
  %s0 = inlined_call_operand.vmem [shape: bf16[128,256], index: 0, kind: input, shape index: {}]
  %s1 = inlined_call_operand.vmem [shape: bf16[256,128], index: 1, kind: input, shape index: {}]
  %s2 = inlined_call_operand.vmem [shape: f32[1,128], index: 2, kind: input, shape index: {}]
  %s3 = inlined_call_operand.vmem [shape: bf16[128,128], index: 3, kind: output, shape index: {}]
  %s4 = sld [smem:[#allocation0]]
  $region22: #{_lambda_.14} parent=0
    _
  %s6 = ssub.s32 1, %s4
  %s7 = scalar_select 0, %s6, %s4
  // Predicated region
  $region2: #{_lambda_.14} parent=0 // pred_check
    _
  $region3: #{_lambda_.14} parent=0 // pred_check_branch
    %9 = sbr.rel (0) target = $region5
  $region4: #{_lambda_.14} parent=0 // pred_region
    _
  $region5: #{_lambda_.14} parent=0 // pred_fallthru
    _
  // Predicated region
  $region6: #{_lambda_.14} parent=0 // pred_check
    _
  $region7: #{_lambda_.14} parent=0 // pred_check_branch
    %11 = sbr.rel (0) target = $region9
  $region8: #{_lambda_.14} parent=0 // pred_region
    _
  $region9: #{_lambda_.14} parent=0 // pred_fallthru
    _
  // Predicated region
  $region10: #{_lambda_.14} parent=0 // pred_check
    _
  $region11: #{_lambda_.14} parent=0 // pred_check_branch
    %13 = sbr.rel (0) target = $region13
  $region12: #{_lambda_.14} parent=0 // pred_region
    _
  $region13: #{_lambda_.14} parent=0 // pred_fallthru
    _
  %v14 = vld [vmem:[%s0] sm:$0xff]
  %v15 = vld [vmem:[%s0 + $0x8] sm:$0xff]
  %v16 = vld [vmem:[%s0 + $0x10] sm:$0xff]
  %v17 = vld [vmem:[%s0 + $0x18] sm:$0xff]
  %v18 = vld [vmem:[%s0 + $0x20] sm:$0xff]
  %v19 = vld [vmem:[%s0 + $0x28] sm:$0xff]
  %v20 = vld [vmem:[%s0 + $0x30] sm:$0xff]
  %v21 = vld [vmem:[%s0 + $0x38] sm:$0xff]
  %v22 = vld [vmem:[%s0 + $0x40] sm:$0xff]
  %v23 = vld [vmem:[%s0 + $0x48] sm:$0xff]
  %v24 = vld [vmem:[%s0 + $0x50] sm:$0xff]
  %v25 = vld [vmem:[%s0 + $0x58] sm:$0xff]
  %v26 = vld [vmem:[%s0 + $0x60] sm:$0xff]
  %v27 = vld [vmem:[%s0 + $0x68] sm:$0xff]
  %v28 = vld [vmem:[%s0 + $0x70] sm:$0xff]
  %v29 = vld [vmem:[%s0 + $0x78] sm:$0xff]
  %v30 = vld [vmem:[%s1] sm:$0xf]
  %v31 = vld [vmem:[%s1 + $0x4] sm:$0xf]
  %v32 = vld [vmem:[%s1 + $0x8] sm:$0xf]
  %v33 = vld [vmem:[%s1 + $0xc] sm:$0xf]
  %v34 = vld [vmem:[%s1 + $0x10] sm:$0xf]
  %v35 = vld [vmem:[%s1 + $0x14] sm:$0xf]
  %v36 = vld [vmem:[%s1 + $0x18] sm:$0xf]
  %v37 = vld [vmem:[%s1 + $0x1c] sm:$0xf]
  %v38 = vld [vmem:[%s1 + $0x20] sm:$0xf]
  %v39 = vld [vmem:[%s1 + $0x24] sm:$0xf]
  %v40 = vld [vmem:[%s1 + $0x28] sm:$0xf]
  %v41 = vld [vmem:[%s1 + $0x2c] sm:$0xf]
  %v42 = vld [vmem:[%s1 + $0x30] sm:$0xf]
  %v43 = vld [vmem:[%s1 + $0x34] sm:$0xf]
  %v44 = vld [vmem:[%s1 + $0x38] sm:$0xf]
  %v45 = vld [vmem:[%s1 + $0x3c] sm:$0xf]
  %v46 = vld [vmem:[%s1 + $0x40] sm:$0xf]
  %v47 = vld [vmem:[%s1 + $0x44] sm:$0xf]
  %v48 = vld [vmem:[%s1 + $0x48] sm:$0xf]
  %v49 = vld [vmem:[%s1 + $0x4c] sm:$0xf]
  %v50 = vld [vmem:[%s1 + $0x50] sm:$0xf]
  %v51 = vld [vmem:[%s1 + $0x54] sm:$0xf]
  %v52 = vld [vmem:[%s1 + $0x58] sm:$0xf]
  %v53 = vld [vmem:[%s1 + $0x5c] sm:$0xf]
  %v54 = vld [vmem:[%s1 + $0x60] sm:$0xf]
  %v55 = vld [vmem:[%s1 + $0x64] sm:$0xf]
  %v56 = vld [vmem:[%s1 + $0x68] sm:$0xf]
  %v57 = vld [vmem:[%s1 + $0x6c] sm:$0xf]
  %v58 = vld [vmem:[%s1 + $0x70] sm:$0xf]
  %v59 = vld [vmem:[%s1 + $0x74] sm:$0xf]
  %v60 = vld [vmem:[%s1 + $0x78] sm:$0xf]
  %v61 = vld [vmem:[%s1 + $0x7c] sm:$0xf]
  %v62 = vld [vmem:[%s2] sm:$0x1]
  %v64 = vperm.slane %v62, 0
  %v82 = vunpack.c.l.b16 %v14
  %v83 = vunpack.c.h.b16 %v14
  %v84 = vunpack.c.l.b16 %v15
  %v85 = vunpack.c.h.b16 %v15
  %v86 = vunpack.c.l.b16 %v16
  %v87 = vunpack.c.h.b16 %v16
  %v88 = vunpack.c.l.b16 %v17
  %v89 = vunpack.c.h.b16 %v17
  %v90 = vunpack.c.l.b16 %v18
  %v91 = vunpack.c.h.b16 %v18
  %v92 = vunpack.c.l.b16 %v19
  %v93 = vunpack.c.h.b16 %v19
  %v94 = vunpack.c.l.b16 %v20
  %v95 = vunpack.c.h.b16 %v20
  %v96 = vunpack.c.l.b16 %v21
  %v97 = vunpack.c.h.b16 %v21
  %v98 = vunpack.c.l.b16 %v22
  %v99 = vunpack.c.h.b16 %v22
  %v100 = vunpack.c.l.b16 %v23
  %v101 = vunpack.c.h.b16 %v23
  %v102 = vunpack.c.l.b16 %v24
  %v103 = vunpack.c.h.b16 %v24
  %v104 = vunpack.c.l.b16 %v25
  %v105 = vunpack.c.h.b16 %v25
  %v106 = vunpack.c.l.b16 %v26
  %v107 = vunpack.c.h.b16 %v26
  %v108 = vunpack.c.l.b16 %v27
  %v109 = vunpack.c.h.b16 %v27
  %v110 = vunpack.c.l.b16 %v28
  %v111 = vunpack.c.h.b16 %v28
  %v112 = vunpack.c.l.b16 %v29
  %v113 = vunpack.c.h.b16 %v29
  %v114 = vpack.c.b16 %v84, %v82
  %v115 = vpack.c.b16 %v85, %v83
  %v116 = vpack.c.b16 %v88, %v86
  %v117 = vpack.c.b16 %v89, %v87
  %v118 = vpack.c.b16 %v92, %v90
  %v119 = vpack.c.b16 %v93, %v91
  %v120 = vpack.c.b16 %v96, %v94
  %v121 = vpack.c.b16 %v97, %v95
  %v122 = vpack.c.b16 %v100, %v98
  %v123 = vpack.c.b16 %v101, %v99
  %v124 = vpack.c.b16 %v104, %v102
  %v125 = vpack.c.b16 %v105, %v103
  %v126 = vpack.c.b16 %v108, %v106
  %v127 = vpack.c.b16 %v109, %v107
  %v128 = vpack.c.b16 %v112, %v110
  %v129 = vpack.c.b16 %v113, %v111
  %v178 = vunpack.c.l.b16 %v30
  %v179 = vunpack.c.l.b16 %v31
  %v180 = vunpack.c.l.b16 %v32
  %v181 = vunpack.c.l.b16 %v33
  %v182 = vunpack.c.l.b16 %v34
  %v183 = vunpack.c.l.b16 %v35
  %v184 = vunpack.c.l.b16 %v36
  %v185 = vunpack.c.l.b16 %v37
  %v186 = vunpack.c.l.b16 %v38
  %v187 = vunpack.c.l.b16 %v39
  %v188 = vunpack.c.l.b16 %v40
  %v189 = vunpack.c.l.b16 %v41
  %v190 = vunpack.c.l.b16 %v42
  %v191 = vunpack.c.l.b16 %v43
  %v192 = vunpack.c.l.b16 %v44
  %v193 = vunpack.c.l.b16 %v45
  %v194 = vunpack.c.l.b16 %v46
  %v195 = vunpack.c.l.b16 %v47
  %v196 = vunpack.c.l.b16 %v48
  %v197 = vunpack.c.l.b16 %v49
  %v198 = vunpack.c.l.b16 %v50
  %v199 = vunpack.c.l.b16 %v51
  %v200 = vunpack.c.l.b16 %v52
  %v201 = vunpack.c.l.b16 %v53
  %v202 = vunpack.c.l.b16 %v54
  %v203 = vunpack.c.l.b16 %v55
  %v204 = vunpack.c.l.b16 %v56
  %v205 = vunpack.c.l.b16 %v57
  %v206 = vunpack.c.l.b16 %v58
  %v207 = vunpack.c.l.b16 %v59
  %v208 = vunpack.c.l.b16 %v60
  %v209 = vunpack.c.l.b16 %v61
  %v210 = vpack.c.b16 %v179, %v178
  %v211 = vpack.c.b16 %v181, %v180
  %v212 = vpack.c.b16 %v183, %v182
  %v213 = vpack.c.b16 %v185, %v184
  %v214 = vpack.c.b16 %v187, %v186
  %v215 = vpack.c.b16 %v189, %v188
  %v216 = vpack.c.b16 %v191, %v190
  %v217 = vpack.c.b16 %v193, %v192
  %v218 = vpack.c.b16 %v195, %v194
  %v219 = vpack.c.b16 %v197, %v196
  %v220 = vpack.c.b16 %v199, %v198
  %v221 = vpack.c.b16 %v201, %v200
  %v222 = vpack.c.b16 %v203, %v202
  %v223 = vpack.c.b16 %v205, %v204
  %v224 = vpack.c.b16 %v207, %v206
  %v225 = vpack.c.b16 %v209, %v208
  %242 = vmatpush.bf16.msra.mxu0 %v217
  %243 = vmatpush.bf16.msra.mxu0 %v216
  %244 = vmatpush.bf16.msra.mxu0 %v215
  %245 = vmatpush.bf16.msra.mxu0 %v214
  %246 = vmatpush.bf16.msra.mxu0 %v213
  %247 = vmatpush.bf16.msra.mxu0 %v212
  %248 = vmatpush.bf16.msra.mxu0 %v211
  %249 = vmatpush.bf16.msra.mxu0 %v210
  %250 = vmatmul.bf16.gmra.mxu0 %v114
  %v251 = vpop.f32.mrf.mxu0
  %v252 = vadd.f32 %v64, %v251
  %v253 = vpop.f32.mrf.mxu0
  %v254 = vadd.f32 %v64, %v253
  %255 = vmatmul.bf16.gmra.mxu0 %v116
  %v256 = vpop.f32.mrf.mxu0
  %v257 = vadd.f32 %v64, %v256
  %v258 = vpop.f32.mrf.mxu0
  %v259 = vadd.f32 %v64, %v258
  %260 = vmatmul.bf16.gmra.mxu0 %v118
  %v261 = vpop.f32.mrf.mxu0
  %v262 = vadd.f32 %v64, %v261
  %v263 = vpop.f32.mrf.mxu0
  %v264 = vadd.f32 %v64, %v263
  %265 = vmatmul.bf16.gmra.mxu0 %v120
  %v266 = vpop.f32.mrf.mxu0
  %v267 = vadd.f32 %v64, %v266
  %v268 = vpop.f32.mrf.mxu0
  %v269 = vadd.f32 %v64, %v268
  %270 = vmatmul.bf16.gmra.mxu0 %v122
  %v271 = vpop.f32.mrf.mxu0
  %v272 = vadd.f32 %v64, %v271
  %v273 = vpop.f32.mrf.mxu0
  %v274 = vadd.f32 %v64, %v273
  %275 = vmatmul.bf16.gmra.mxu0 %v124
  %v276 = vpop.f32.mrf.mxu0
  %v277 = vadd.f32 %v64, %v276
  %v278 = vpop.f32.mrf.mxu0
  %v279 = vadd.f32 %v64, %v278
  %280 = vmatmul.bf16.gmra.mxu0 %v126
  %v281 = vpop.f32.mrf.mxu0
  %v282 = vadd.f32 %v64, %v281
  %v283 = vpop.f32.mrf.mxu0
  %v284 = vadd.f32 %v64, %v283
  %285 = vmatmul.bf16.gmra.mxu0 %v128
  %v286 = vpop.f32.mrf.mxu0
  %v287 = vadd.f32 %v64, %v286
  %v288 = vpop.f32.mrf.mxu0
  %v289 = vadd.f32 %v64, %v288
  %290 = vdwg.mxu0
  %291 = vmatpush.bf16.msra.mxu0 %v225
  %292 = vmatpush.bf16.msra.mxu0 %v224
  %293 = vmatpush.bf16.msra.mxu0 %v223
  %294 = vmatpush.bf16.msra.mxu0 %v222
  %295 = vmatpush.bf16.msra.mxu0 %v221
  %296 = vmatpush.bf16.msra.mxu0 %v220
  %297 = vmatpush.bf16.msra.mxu0 %v219
  %298 = vmatpush.bf16.msra.mxu0 %v218
  %299 = vmatmul.bf16.gmra.mxu0 %v115
  %v300 = vpop.f32.mrf.mxu0
  %v301 = vadd.f32 %v252, %v300
  %v302 = vpop.f32.mrf.mxu0
  %v303 = vadd.f32 %v254, %v302
  %304 = vmatmul.bf16.gmra.mxu0 %v117
  %v305 = vpop.f32.mrf.mxu0
  %v306 = vadd.f32 %v257, %v305
  %v307 = vpop.f32.mrf.mxu0
  %v308 = vadd.f32 %v259, %v307
  %309 = vmatmul.bf16.gmra.mxu0 %v119
  %v310 = vpop.f32.mrf.mxu0
  %v311 = vadd.f32 %v262, %v310
  %v312 = vpop.f32.mrf.mxu0
  %v313 = vadd.f32 %v264, %v312
  %314 = vmatmul.bf16.gmra.mxu0 %v121
  %v315 = vpop.f32.mrf.mxu0
  %v316 = vadd.f32 %v267, %v315
  %v317 = vpop.f32.mrf.mxu0
  %v318 = vadd.f32 %v269, %v317
  %319 = vmatmul.bf16.gmra.mxu0 %v123
  %v320 = vpop.f32.mrf.mxu0
  %v321 = vadd.f32 %v272, %v320
  %v322 = vpop.f32.mrf.mxu0
  %v323 = vadd.f32 %v274, %v322
  %324 = vmatmul.bf16.gmra.mxu0 %v125
  %v325 = vpop.f32.mrf.mxu0
  %v326 = vadd.f32 %v277, %v325
  %v327 = vpop.f32.mrf.mxu0
  %v328 = vadd.f32 %v279, %v327
  %329 = vmatmul.bf16.gmra.mxu0 %v127
  %v330 = vpop.f32.mrf.mxu0
  %v331 = vadd.f32 %v282, %v330
  %v332 = vpop.f32.mrf.mxu0
  %v333 = vadd.f32 %v284, %v332
  %334 = vmatmul.bf16.gmra.mxu0 %v129
  %v335 = vpop.f32.mrf.mxu0
  %v336 = vadd.f32 %v287, %v335
  %v337 = vpop.f32.mrf.mxu0
  %v338 = vadd.f32 %v289, %v337
  %339 = vdwg.mxu0
  %v340 = vpack.c.bf16 %v301, %v301
  %v341 = vpack.c.bf16 %v303, %v303
  %v342 = vpack.c.bf16 %v306, %v306
  %v343 = vpack.c.bf16 %v308, %v308
  %v344 = vpack.c.bf16 %v311, %v311
  %v345 = vpack.c.bf16 %v313, %v313
  %v346 = vpack.c.bf16 %v316, %v316
  %v347 = vpack.c.bf16 %v318, %v318
  %v348 = vpack.c.bf16 %v321, %v321
  %v349 = vpack.c.bf16 %v323, %v323
  %v350 = vpack.c.bf16 %v326, %v326
  %v351 = vpack.c.bf16 %v328, %v328
  %v352 = vpack.c.bf16 %v331, %v331
  %v353 = vpack.c.bf16 %v333, %v333
  %v354 = vpack.c.bf16 %v336, %v336
  %v355 = vpack.c.bf16 %v338, %v338
  %356 = vst [vmem:[%s3] sm:$0xf] %v340
  %357 = vst [vmem:[%s3 + $0x4] sm:$0xf] %v341
  %358 = vst [vmem:[%s3 + $0x8] sm:$0xf] %v342
  %359 = vst [vmem:[%s3 + $0xc] sm:$0xf] %v343
  %360 = vst [vmem:[%s3 + $0x10] sm:$0xf] %v344
  %361 = vst [vmem:[%s3 + $0x14] sm:$0xf] %v345
  %362 = vst [vmem:[%s3 + $0x18] sm:$0xf] %v346
  %363 = vst [vmem:[%s3 + $0x1c] sm:$0xf] %v347
  %364 = vst [vmem:[%s3 + $0x20] sm:$0xf] %v348
  %365 = vst [vmem:[%s3 + $0x24] sm:$0xf] %v349
  %366 = vst [vmem:[%s3 + $0x28] sm:$0xf] %v350
  %367 = vst [vmem:[%s3 + $0x2c] sm:$0xf] %v351
  %368 = vst [vmem:[%s3 + $0x30] sm:$0xf] %v352
  %369 = vst [vmem:[%s3 + $0x34] sm:$0xf] %v353
  %370 = vst [vmem:[%s3 + $0x38] sm:$0xf] %v354
  %371 = vst [vmem:[%s3 + $0x3c] sm:$0xf] %v355
  // Predicated region
  $region14: #{_lambda_.14} parent=0 // pred_check
    _
  $region15: #{_lambda_.14} parent=0 // pred_check_branch
    %373 = sbr.rel (0) target = $region17
  $region16: #{_lambda_.14} parent=0 // pred_region
    _
  $region17: #{_lambda_.14} parent=0 // pred_fallthru
    _
  // Predicated region
  $region18: #{_lambda_.14} parent=0 // pred_check
    _
  $region19: #{_lambda_.14} parent=0 // pred_check_branch
    %375 = sbr.rel (0) target = $region21
  $region20: #{_lambda_.14} parent=0 // pred_region
    _
  $region21: #{_lambda_.14} parent=0 // pred_fallthru
    _

// kernel: _lambda_.15
$region0: #{_lambda_.15}
  #allocation0 [shape = 'u32[]', space=smem, size = 0x4, offset = 0x4, fixed_abs, tag = 'smem constant byte address 0x4 - core index']
  #allocation1 [shape = 'u32[72,128]{1,0:T(1,128)}', space=vmem, size = 0x9000, scoped, tag = 'internal scratch']
  #allocation2 [shape = 's32[1]{0}', space=sflag, size = 0x4, scoped, tag = 'scoped memory for _lambda_.15']
  #allocation3 [shape = 'u8[512]{0}', space=smem, size = 0x200, scoped, tag = 'prefetched SMEM operand 0']
  %s0 = inlined_call_operand.vmem [shape: f32[1,3], index: 0, kind: input, shape index: {}]
  %s1 = inlined_call_operand.vmem [shape: f32[1,1,128], index: 1, kind: input, shape index: {}]
  %s2 = inlined_call_operand.vmem [shape: f32[1,128,1], index: 2, kind: input, shape index: {}]
  %s3 = inlined_call_operand.vmem [shape: s8[128,128], index: 3, kind: input, shape index: {}]
  %s4 = inlined_call_operand.vmem [shape: bf16[1,128,128], index: 4, kind: input, shape index: {}]
  %s5 = inlined_call_operand.vmem [shape: bf16[128,128], index: 5, kind: input, shape index: {}]
  %s6 = inlined_call_operand.vmem [shape: f32[1,1,128], index: 6, kind: input, shape index: {}]
  %s7 = inlined_call_operand.vmem [shape: f32[128,128], index: 7, kind: output, shape index: {}]
  %s8 = sld [smem:[#allocation0]]
  $region34: #{_lambda_.15} parent=0
    _
  %s10 = ssub.s32 1, %s8
  %s11 = scalar_select 0, %s10, %s8
  %s13 = sshll.u32 %s0, 4
  %s14 = int_to_ptr.vmem [resolvable:$true] %s13
  %16 = dma.vmem_to_smem %s14, 16, [#allocation3], [#allocation2]
  %18 = dma.done [#allocation2], 16
  %19 = sfence
  // Predicated region
  $region2: #{_lambda_.15} parent=0 // pred_check
    _
  $region3: #{_lambda_.15} parent=0 // pred_check_branch
    %21 = sbr.rel (0) target = $region5
  $region4: #{_lambda_.15} parent=0 // pred_region
    _
  $region5: #{_lambda_.15} parent=0 // pred_fallthru
    _
  // Predicated region
  $region6: #{_lambda_.15} parent=0 // pred_check
    _
  $region7: #{_lambda_.15} parent=0 // pred_check_branch
    %23 = sbr.rel (0) target = $region9
  $region8: #{_lambda_.15} parent=0 // pred_region
    _
  $region9: #{_lambda_.15} parent=0 // pred_fallthru
    _
  // Predicated region
  $region10: #{_lambda_.15} parent=0 // pred_check
    _
  $region11: #{_lambda_.15} parent=0 // pred_check_branch
    %25 = sbr.rel (0) target = $region13
  $region12: #{_lambda_.15} parent=0 // pred_region
    _
  $region13: #{_lambda_.15} parent=0 // pred_fallthru
    _
  // Predicated region
  $region14: #{_lambda_.15} parent=0 // pred_check
    _
  $region15: #{_lambda_.15} parent=0 // pred_check_branch
    %27 = sbr.rel (0) target = $region17
  $region16: #{_lambda_.15} parent=0 // pred_region
    _
  $region17: #{_lambda_.15} parent=0 // pred_fallthru
    _
  // Predicated region
  $region18: #{_lambda_.15} parent=0 // pred_check
    _
  $region19: #{_lambda_.15} parent=0 // pred_check_branch
    %29 = sbr.rel (0) target = $region21
  $region20: #{_lambda_.15} parent=0 // pred_region
    _
  $region21: #{_lambda_.15} parent=0 // pred_fallthru
    _
  // Predicated region
  $region22: #{_lambda_.15} parent=0 // pred_check
    _
  $region23: #{_lambda_.15} parent=0 // pred_check_branch
    %31 = sbr.rel (0) target = $region25
  $region24: #{_lambda_.15} parent=0 // pred_region
    _
  $region25: #{_lambda_.15} parent=0 // pred_fallthru
    _
  %v32 = vld [vmem:[%s1] sm:$0x1]
  %s33 = smul.u32 0, 128
  %s34 = scalar_lea.vmem %s2, %s33
  %v35 = vld [vmem:[%s34] sm:$0xff]
  %v36 = vld [vmem:[%s34 + $0x8] sm:$0xff]
  %v37 = vld [vmem:[%s34 + $0x10] sm:$0xff]
  %v38 = vld [vmem:[%s34 + $0x18] sm:$0xff]
  %v39 = vld [vmem:[%s34 + $0x20] sm:$0xff]
  %v40 = vld [vmem:[%s34 + $0x28] sm:$0xff]
  %v41 = vld [vmem:[%s34 + $0x30] sm:$0xff]
  %v42 = vld [vmem:[%s34 + $0x38] sm:$0xff]
  %v43 = vld [vmem:[%s34 + $0x40] sm:$0xff]
  %v44 = vld [vmem:[%s34 + $0x48] sm:$0xff]
  %v45 = vld [vmem:[%s34 + $0x50] sm:$0xff]
  %v46 = vld [vmem:[%s34 + $0x58] sm:$0xff]
  %v47 = vld [vmem:[%s34 + $0x60] sm:$0xff]
  %v48 = vld [vmem:[%s34 + $0x68] sm:$0xff]
  %v49 = vld [vmem:[%s34 + $0x70] sm:$0xff]
  %v50 = vld [vmem:[%s34 + $0x78] sm:$0xff]
  %v51 = vld [vmem:[%s3] sm:$0xff]
  %v52 = vld [vmem:[%s3 + $0x8] sm:$0xff]
  %v53 = vld [vmem:[%s3 + $0x10] sm:$0xff]
  %v54 = vld [vmem:[%s3 + $0x18] sm:$0xff]
  %v55 = vunpack.c.0.s8 %v51
  %v56 = vunpack.c.1.s8 %v51
  %v57 = vunpack.c.2.s8 %v51
  %v58 = vunpack.c.3.s8 %v51
  %v59 = vunpack.c.0.s8 %v52
  %v60 = vunpack.c.1.s8 %v52
  %v61 = vunpack.c.2.s8 %v52
  %v62 = vunpack.c.3.s8 %v52
  %v63 = vunpack.c.0.s8 %v53
  %v64 = vunpack.c.1.s8 %v53
  %v65 = vunpack.c.2.s8 %v53
  %v66 = vunpack.c.3.s8 %v53
  %v67 = vunpack.c.0.s8 %v54
  %v68 = vunpack.c.1.s8 %v54
  %v69 = vunpack.c.2.s8 %v54
  %v70 = vunpack.c.3.s8 %v54
  %vm71 = vcmp.ge.s32.totalorder %v55, 0
  %vm72 = vcmp.ge.s32.totalorder %v56, 0
  %vm73 = vcmp.ge.s32.totalorder %v57, 0
  %vm74 = vcmp.ge.s32.totalorder %v58, 0
  %vm75 = vcmp.ge.s32.totalorder %v59, 0
  %vm76 = vcmp.ge.s32.totalorder %v60, 0
  %vm77 = vcmp.ge.s32.totalorder %v61, 0
  %vm78 = vcmp.ge.s32.totalorder %v62, 0
  %vm79 = vcmp.ge.s32.totalorder %v63, 0
  %vm80 = vcmp.ge.s32.totalorder %v64, 0
  %vm81 = vcmp.ge.s32.totalorder %v65, 0
  %vm82 = vcmp.ge.s32.totalorder %v66, 0
  %vm83 = vcmp.ge.s32.totalorder %v67, 0
  %vm84 = vcmp.ge.s32.totalorder %v68, 0
  %vm85 = vcmp.ge.s32.totalorder %v69, 0
  %vm86 = vcmp.ge.s32.totalorder %v70, 0
  %s87 = sadd.s32 %s33, 2
  %s88 = sld [smem:[#allocation3 + %s87]]
  %v89 = vstv %s88
  %v90 = vadd.f32 %v89, 0.0
  %vm91 = vcmp.eq.s32.totalorder %v55, 1
  %vm92 = vcmp.eq.s32.totalorder %v56, 1
  %vm93 = vcmp.eq.s32.totalorder %v57, 1
  %vm94 = vcmp.eq.s32.totalorder %v58, 1
  %vm95 = vcmp.eq.s32.totalorder %v59, 1
  %vm96 = vcmp.eq.s32.totalorder %v60, 1
  %vm97 = vcmp.eq.s32.totalorder %v61, 1
  %vm98 = vcmp.eq.s32.totalorder %v62, 1
  %vm99 = vcmp.eq.s32.totalorder %v63, 1
  %vm100 = vcmp.eq.s32.totalorder %v64, 1
  %vm101 = vcmp.eq.s32.totalorder %v65, 1
  %vm102 = vcmp.eq.s32.totalorder %v66, 1
  %vm103 = vcmp.eq.s32.totalorder %v67, 1
  %vm104 = vcmp.eq.s32.totalorder %v68, 1
  %vm105 = vcmp.eq.s32.totalorder %v69, 1
  %vm106 = vcmp.eq.s32.totalorder %v70, 1
  %s107 = sadd.s32 %s33, 1
  %s108 = sld [smem:[#allocation3 + %s107]]
  %v109 = vstv %s108
  %v110 = vsel %vm91, %v109, %v90
  %v111 = vsel %vm92, %v109, %v90
  %v112 = vsel %vm93, %v109, %v90
  %v113 = vsel %vm94, %v109, %v90
  %v114 = vsel %vm95, %v109, %v90
  %v115 = vsel %vm96, %v109, %v90
  %v116 = vsel %vm97, %v109, %v90
  %v117 = vsel %vm98, %v109, %v90
  %v118 = vsel %vm99, %v109, %v90
  %v119 = vsel %vm100, %v109, %v90
  %v120 = vsel %vm101, %v109, %v90
  %v121 = vsel %vm102, %v109, %v90
  %v122 = vsel %vm103, %v109, %v90
  %v123 = vsel %vm104, %v109, %v90
  %v124 = vsel %vm105, %v109, %v90
  %v125 = vsel %vm106, %v109, %v90
  %vm126 = vcmp.eq.s32.totalorder %v55, 0
  %vm127 = vcmp.eq.s32.totalorder %v56, 0
  %vm128 = vcmp.eq.s32.totalorder %v57, 0
  %vm129 = vcmp.eq.s32.totalorder %v58, 0
  %vm130 = vcmp.eq.s32.totalorder %v59, 0
  %vm131 = vcmp.eq.s32.totalorder %v60, 0
  %vm132 = vcmp.eq.s32.totalorder %v61, 0
  %vm133 = vcmp.eq.s32.totalorder %v62, 0
  %vm134 = vcmp.eq.s32.totalorder %v63, 0
  %vm135 = vcmp.eq.s32.totalorder %v64, 0
  %vm136 = vcmp.eq.s32.totalorder %v65, 0
  %vm137 = vcmp.eq.s32.totalorder %v66, 0
  %vm138 = vcmp.eq.s32.totalorder %v67, 0
  %vm139 = vcmp.eq.s32.totalorder %v68, 0
  %vm140 = vcmp.eq.s32.totalorder %v69, 0
  %vm141 = vcmp.eq.s32.totalorder %v70, 0
  %s142 = sld [smem:[#allocation3 + %s33]]
  %v143 = vstv %s142
  %v144 = vsel %vm126, %v143, %v110
  %v145 = vsel %vm127, %v143, %v111
  %v146 = vsel %vm128, %v143, %v112
  %v147 = vsel %vm129, %v143, %v113
  %v148 = vsel %vm130, %v143, %v114
  %v149 = vsel %vm131, %v143, %v115
  %v150 = vsel %vm132, %v143, %v116
  %v151 = vsel %vm133, %v143, %v117
  %v152 = vsel %vm134, %v143, %v118
  %v153 = vsel %vm135, %v143, %v119
  %v154 = vsel %vm136, %v143, %v120
  %v155 = vsel %vm137, %v143, %v121
  %v156 = vsel %vm138, %v143, %v122
  %v157 = vsel %vm139, %v143, %v123
  %v158 = vsel %vm140, %v143, %v124
  %v159 = vsel %vm141, %v143, %v125
  %161 = vset.pattern.permute.xlu0 0
  %162 = vperm.xlu0 %161, %v35
  %v163 = vpop.permute.xlu0 %162
  %166 = vset.pattern.permute.xlu0 0
  %167 = vperm.xlu0 %166, %v36
  %v168 = vpop.permute.xlu0 %167
  %171 = vset.pattern.permute.xlu0 0
  %172 = vperm.xlu0 %171, %v37
  %v173 = vpop.permute.xlu0 %172
  %176 = vset.pattern.permute.xlu0 0
  %177 = vperm.xlu0 %176, %v38
  %v178 = vpop.permute.xlu0 %177
  %181 = vset.pattern.permute.xlu0 0
  %182 = vperm.xlu0 %181, %v39
  %v183 = vpop.permute.xlu0 %182
  %186 = vset.pattern.permute.xlu0 0
  %187 = vperm.xlu0 %186, %v40
  %v188 = vpop.permute.xlu0 %187
  %191 = vset.pattern.permute.xlu0 0
  %192 = vperm.xlu0 %191, %v41
  %v193 = vpop.permute.xlu0 %192
  %196 = vset.pattern.permute.xlu0 0
  %197 = vperm.xlu0 %196, %v42
  %v198 = vpop.permute.xlu0 %197
  %201 = vset.pattern.permute.xlu0 0
  %202 = vperm.xlu0 %201, %v43
  %v203 = vpop.permute.xlu0 %202
  %206 = vset.pattern.permute.xlu0 0
  %207 = vperm.xlu0 %206, %v44
  %v208 = vpop.permute.xlu0 %207
  %211 = vset.pattern.permute.xlu0 0
  %212 = vperm.xlu0 %211, %v45
  %v213 = vpop.permute.xlu0 %212
  %216 = vset.pattern.permute.xlu0 0
  %217 = vperm.xlu0 %216, %v46
  %v218 = vpop.permute.xlu0 %217
  %221 = vset.pattern.permute.xlu0 0
  %222 = vperm.xlu0 %221, %v47
  %v223 = vpop.permute.xlu0 %222
  %226 = vset.pattern.permute.xlu0 0
  %227 = vperm.xlu0 %226, %v48
  %v228 = vpop.permute.xlu0 %227
  %231 = vset.pattern.permute.xlu0 0
  %232 = vperm.xlu0 %231, %v49
  %v233 = vpop.permute.xlu0 %232
  %236 = vset.pattern.permute.xlu0 0
  %237 = vperm.xlu0 %236, %v50
  %v238 = vpop.permute.xlu0 %237
  %v241 = vperm.slane %v32, 0
  %v243 = vadd.f32 %v163, %v241
  %v244 = vadd.f32 %v168, %v241
  %v245 = vadd.f32 %v173, %v241
  %v246 = vadd.f32 %v178, %v241
  %v247 = vadd.f32 %v183, %v241
  %v248 = vadd.f32 %v188, %v241
  %v249 = vadd.f32 %v193, %v241
  %v250 = vadd.f32 %v198, %v241
  %v251 = vadd.f32 %v203, %v241
  %v252 = vadd.f32 %v208, %v241
  %v253 = vadd.f32 %v213, %v241
  %v254 = vadd.f32 %v218, %v241
  %v255 = vadd.f32 %v223, %v241
  %v256 = vadd.f32 %v228, %v241
  %v257 = vadd.f32 %v233, %v241
  %v258 = vadd.f32 %v238, %v241
  %v259 = vadd.f32 %v243, %v144
  %v260 = vadd.f32 %v244, %v145
  %v261 = vadd.f32 %v245, %v146
  %v262 = vadd.f32 %v246, %v147
  %v263 = vadd.f32 %v247, %v148
  %v264 = vadd.f32 %v248, %v149
  %v265 = vadd.f32 %v249, %v150
  %v266 = vadd.f32 %v250, %v151
  %v267 = vadd.f32 %v251, %v152
  %v268 = vadd.f32 %v252, %v153
  %v269 = vadd.f32 %v253, %v154
  %v270 = vadd.f32 %v254, %v155
  %v271 = vadd.f32 %v255, %v156
  %v272 = vadd.f32 %v256, %v157
  %v273 = vadd.f32 %v257, %v158
  %v274 = vadd.f32 %v258, %v159
  %vm275 = vcmp.gt.f32.partialorder %v259, 0.0
  %vm276 = vcmp.gt.f32.partialorder %v260, 0.0
  %vm277 = vcmp.gt.f32.partialorder %v261, 0.0
  %vm278 = vcmp.gt.f32.partialorder %v262, 0.0
  %vm279 = vcmp.gt.f32.partialorder %v263, 0.0
  %vm280 = vcmp.gt.f32.partialorder %v264, 0.0
  %vm281 = vcmp.gt.f32.partialorder %v265, 0.0
  %vm282 = vcmp.gt.f32.partialorder %v266, 0.0
  %vm283 = vcmp.gt.f32.partialorder %v267, 0.0
  %vm284 = vcmp.gt.f32.partialorder %v268, 0.0
  %vm285 = vcmp.gt.f32.partialorder %v269, 0.0
  %vm286 = vcmp.gt.f32.partialorder %v270, 0.0
  %vm287 = vcmp.gt.f32.partialorder %v271, 0.0
  %vm288 = vcmp.gt.f32.partialorder %v272, 0.0
  %vm289 = vcmp.gt.f32.partialorder %v273, 0.0
  %vm290 = vcmp.gt.f32.partialorder %v274, 0.0
  %v291 = vmul.f32 %v259, 0.2
  %v292 = vmul.f32 %v260, 0.2
  %v293 = vmul.f32 %v261, 0.2
  %v294 = vmul.f32 %v262, 0.2
  %v295 = vmul.f32 %v263, 0.2
  %v296 = vmul.f32 %v264, 0.2
  %v297 = vmul.f32 %v265, 0.2
  %v298 = vmul.f32 %v266, 0.2
  %v299 = vmul.f32 %v267, 0.2
  %v300 = vmul.f32 %v268, 0.2
  %v301 = vmul.f32 %v269, 0.2
  %v302 = vmul.f32 %v270, 0.2
  %v303 = vmul.f32 %v271, 0.2
  %v304 = vmul.f32 %v272, 0.2
  %v305 = vmul.f32 %v273, 0.2
  %v306 = vmul.f32 %v274, 0.2
  %v307 = vsel %vm275, %v259, %v291
  %v308 = vsel %vm276, %v260, %v292
  %v309 = vsel %vm277, %v261, %v293
  %v310 = vsel %vm278, %v262, %v294
  %v311 = vsel %vm279, %v263, %v295
  %v312 = vsel %vm280, %v264, %v296
  %v313 = vsel %vm281, %v265, %v297
  %v314 = vsel %vm282, %v266, %v298
  %v315 = vsel %vm283, %v267, %v299
  %v316 = vsel %vm284, %v268, %v300
  %v317 = vsel %vm285, %v269, %v301
  %v318 = vsel %vm286, %v270, %v302
  %v319 = vsel %vm287, %v271, %v303
  %v320 = vsel %vm288, %v272, %v304
  %v321 = vsel %vm289, %v273, %v305
  %v322 = vsel %vm290, %v274, %v306
  %v323 = vsel %vm71, %v307, -1e+30
  %v324 = vsel %vm72, %v308, -1e+30
  %v325 = vsel %vm73, %v309, -1e+30
  %v326 = vsel %vm74, %v310, -1e+30
  %v327 = vsel %vm75, %v311, -1e+30
  %v328 = vsel %vm76, %v312, -1e+30
  %v329 = vsel %vm77, %v313, -1e+30
  %v330 = vsel %vm78, %v314, -1e+30
  %v331 = vsel %vm79, %v315, -1e+30
  %v332 = vsel %vm80, %v316, -1e+30
  %v333 = vsel %vm81, %v317, -1e+30
  %v334 = vsel %vm82, %v318, -1e+30
  %v335 = vsel %vm83, %v319, -1e+30
  %v336 = vsel %vm84, %v320, -1e+30
  %v337 = vsel %vm85, %v321, -1e+30
  %v338 = vsel %vm86, %v322, -1e+30
  %339 = vmax.xlane.f32.xlu0 %v323
  %v340 = vpop.xlane.xlu0 %339
  %341 = vmax.xlane.f32.xlu0 %v324
  %v342 = vpop.xlane.xlu0 %341
  %343 = vmax.xlane.f32.xlu0 %v325
  %v344 = vpop.xlane.xlu0 %343
  %345 = vmax.xlane.f32.xlu0 %v326
  %v346 = vpop.xlane.xlu0 %345
  %347 = vmax.xlane.f32.xlu0 %v327
  %v348 = vpop.xlane.xlu0 %347
  %349 = vmax.xlane.f32.xlu0 %v328
  %v350 = vpop.xlane.xlu0 %349
  %351 = vmax.xlane.f32.xlu0 %v329
  %v352 = vpop.xlane.xlu0 %351
  %353 = vmax.xlane.f32.xlu0 %v330
  %v354 = vpop.xlane.xlu0 %353
  %355 = vmax.xlane.f32.xlu0 %v331
  %v356 = vpop.xlane.xlu0 %355
  %357 = vmax.xlane.f32.xlu0 %v332
  %v358 = vpop.xlane.xlu0 %357
  %359 = vmax.xlane.f32.xlu0 %v333
  %v360 = vpop.xlane.xlu0 %359
  %361 = vmax.xlane.f32.xlu0 %v334
  %v362 = vpop.xlane.xlu0 %361
  %363 = vmax.xlane.f32.xlu0 %v335
  %v364 = vpop.xlane.xlu0 %363
  %365 = vmax.xlane.f32.xlu0 %v336
  %v366 = vpop.xlane.xlu0 %365
  %367 = vmax.xlane.f32.xlu0 %v337
  %v368 = vpop.xlane.xlu0 %367
  %369 = vmax.xlane.f32.xlu0 %v338
  %v370 = vpop.xlane.xlu0 %369
  %v371 = vsub.f32 %v323, %v340
  %v372 = vsub.f32 %v324, %v342
  %v373 = vsub.f32 %v325, %v344
  %v374 = vsub.f32 %v326, %v346
  %v375 = vsub.f32 %v327, %v348
  %v376 = vsub.f32 %v328, %v350
  %v377 = vsub.f32 %v329, %v352
  %v378 = vsub.f32 %v330, %v354
  %v379 = vsub.f32 %v331, %v356
  %v380 = vsub.f32 %v332, %v358
  %v381 = vsub.f32 %v333, %v360
  %v382 = vsub.f32 %v334, %v362
  %v383 = vsub.f32 %v335, %v364
  %v384 = vsub.f32 %v336, %v366
  %v385 = vsub.f32 %v337, %v368
  %v386 = vsub.f32 %v338, %v370
  %v387 = vmul.f32 %v371, 1.442695
  %v388 = vpow.pop %v387
  %v389 = vmul.f32 %v372, 1.442695
  %v390 = vpow.pop %v389
  %v391 = vmul.f32 %v373, 1.442695
  %v392 = vpow.pop %v391
  %v393 = vmul.f32 %v374, 1.442695
  %v394 = vpow.pop %v393
  %v395 = vmul.f32 %v375, 1.442695
  %v396 = vpow.pop %v395
  %v397 = vmul.f32 %v376, 1.442695
  %v398 = vpow.pop %v397
  %v399 = vmul.f32 %v377, 1.442695
  %v400 = vpow.pop %v399
  %v401 = vmul.f32 %v378, 1.442695
  %v402 = vpow.pop %v401
  %v403 = vmul.f32 %v379, 1.442695
  %v404 = vpow.pop %v403
  %v405 = vmul.f32 %v380, 1.442695
  %v406 = vpow.pop %v405
  %v407 = vmul.f32 %v381, 1.442695
  %v408 = vpow.pop %v407
  %v409 = vmul.f32 %v382, 1.442695
  %v410 = vpow.pop %v409
  %v411 = vmul.f32 %v383, 1.442695
  %v412 = vpow.pop %v411
  %v413 = vmul.f32 %v384, 1.442695
  %v414 = vpow.pop %v413
  %v415 = vmul.f32 %v385, 1.442695
  %v416 = vpow.pop %v415
  %v417 = vmul.f32 %v386, 1.442695
  %v418 = vpow.pop %v417
  %v419 = vsel %vm71, %v388, 0.0
  %v420 = vsel %vm72, %v390, 0.0
  %v421 = vsel %vm73, %v392, 0.0
  %v422 = vsel %vm74, %v394, 0.0
  %v423 = vsel %vm75, %v396, 0.0
  %v424 = vsel %vm76, %v398, 0.0
  %v425 = vsel %vm77, %v400, 0.0
  %v426 = vsel %vm78, %v402, 0.0
  %v427 = vsel %vm79, %v404, 0.0
  %v428 = vsel %vm80, %v406, 0.0
  %v429 = vsel %vm81, %v408, 0.0
  %v430 = vsel %vm82, %v410, 0.0
  %v431 = vsel %vm83, %v412, 0.0
  %v432 = vsel %vm84, %v414, 0.0
  %v433 = vsel %vm85, %v416, 0.0
  %v434 = vsel %vm86, %v418, 0.0
  %435 = vadd.xlane.f32.xlu0 %v419
  %v436 = vpop.xlane.xlu0 %435
  %437 = vadd.xlane.f32.xlu0 %v420
  %v438 = vpop.xlane.xlu0 %437
  %439 = vadd.xlane.f32.xlu0 %v421
  %v440 = vpop.xlane.xlu0 %439
  %441 = vadd.xlane.f32.xlu0 %v422
  %v442 = vpop.xlane.xlu0 %441
  %443 = vadd.xlane.f32.xlu0 %v423
  %v444 = vpop.xlane.xlu0 %443
  %445 = vadd.xlane.f32.xlu0 %v424
  %v446 = vpop.xlane.xlu0 %445
  %447 = vadd.xlane.f32.xlu0 %v425
  %v448 = vpop.xlane.xlu0 %447
  %449 = vadd.xlane.f32.xlu0 %v426
  %v450 = vpop.xlane.xlu0 %449
  %451 = vadd.xlane.f32.xlu0 %v427
  %v452 = vpop.xlane.xlu0 %451
  %453 = vadd.xlane.f32.xlu0 %v428
  %v454 = vpop.xlane.xlu0 %453
  %455 = vadd.xlane.f32.xlu0 %v429
  %v456 = vpop.xlane.xlu0 %455
  %457 = vadd.xlane.f32.xlu0 %v430
  %v458 = vpop.xlane.xlu0 %457
  %459 = vadd.xlane.f32.xlu0 %v431
  %v460 = vpop.xlane.xlu0 %459
  %461 = vadd.xlane.f32.xlu0 %v432
  %v462 = vpop.xlane.xlu0 %461
  %463 = vadd.xlane.f32.xlu0 %v433
  %v464 = vpop.xlane.xlu0 %463
  %465 = vadd.xlane.f32.xlu0 %v434
  %v466 = vpop.xlane.xlu0 %465
  %v467 = vmax.f32 %v436, 1.0
  %v468 = vmax.f32 %v438, 1.0
  %v469 = vmax.f32 %v440, 1.0
  %v470 = vmax.f32 %v442, 1.0
  %v471 = vmax.f32 %v444, 1.0
  %v472 = vmax.f32 %v446, 1.0
  %v473 = vmax.f32 %v448, 1.0
  %v474 = vmax.f32 %v450, 1.0
  %v475 = vmax.f32 %v452, 1.0
  %v476 = vmax.f32 %v454, 1.0
  %v477 = vmax.f32 %v456, 1.0
  %v478 = vmax.f32 %v458, 1.0
  %v479 = vmax.f32 %v460, 1.0
  %v480 = vmax.f32 %v462, 1.0
  %v481 = vmax.f32 %v464, 1.0
  %v482 = vmax.f32 %v466, 1.0
  %v483 = vpack.c.bf16 %v420, %v419
  %v484 = vpack.c.bf16 %v422, %v421
  %v485 = vpack.c.bf16 %v424, %v423
  %v486 = vpack.c.bf16 %v426, %v425
  %v487 = vpack.c.bf16 %v428, %v427
  %v488 = vpack.c.bf16 %v430, %v429
  %v489 = vpack.c.bf16 %v432, %v431
  %v490 = vpack.c.bf16 %v434, %v433
  %s491 = smul.u32 0, 16
  %s492 = smul.addr %s491, 4
  %s493 = scalar_lea.vmem %s4, %s492
  %v494 = vld [vmem:[%s493] sm:$0xf]
  %v495 = vld [vmem:[%s493 + $0x4] sm:$0xf]
  %v496 = vld [vmem:[%s493 + $0x8] sm:$0xf]
  %v497 = vld [vmem:[%s493 + $0xc] sm:$0xf]
  %v498 = vld [vmem:[%s493 + $0x10] sm:$0xf]
  %v499 = vld [vmem:[%s493 + $0x14] sm:$0xf]
  %v500 = vld [vmem:[%s493 + $0x18] sm:$0xf]
  %v501 = vld [vmem:[%s493 + $0x1c] sm:$0xf]
  %v502 = vld [vmem:[%s493 + $0x20] sm:$0xf]
  %v503 = vld [vmem:[%s493 + $0x24] sm:$0xf]
  %v504 = vld [vmem:[%s493 + $0x28] sm:$0xf]
  %v505 = vld [vmem:[%s493 + $0x2c] sm:$0xf]
  %v506 = vld [vmem:[%s493 + $0x30] sm:$0xf]
  %v507 = vld [vmem:[%s493 + $0x34] sm:$0xf]
  %v508 = vld [vmem:[%s493 + $0x38] sm:$0xf]
  %v509 = vld [vmem:[%s493 + $0x3c] sm:$0xf]
  %v526 = vunpack.c.l.b16 %v494
  %v527 = vunpack.c.l.b16 %v495
  %v528 = vunpack.c.l.b16 %v496
  %v529 = vunpack.c.l.b16 %v497
  %v530 = vunpack.c.l.b16 %v498
  %v531 = vunpack.c.l.b16 %v499
  %v532 = vunpack.c.l.b16 %v500
  %v533 = vunpack.c.l.b16 %v501
  %v534 = vunpack.c.l.b16 %v502
  %v535 = vunpack.c.l.b16 %v503
  %v536 = vunpack.c.l.b16 %v504
  %v537 = vunpack.c.l.b16 %v505
  %v538 = vunpack.c.l.b16 %v506
  %v539 = vunpack.c.l.b16 %v507
  %v540 = vunpack.c.l.b16 %v508
  %v541 = vunpack.c.l.b16 %v509
  %v542 = vpack.c.b16 %v527, %v526
  %v543 = vpack.c.b16 %v529, %v528
  %v544 = vpack.c.b16 %v531, %v530
  %v545 = vpack.c.b16 %v533, %v532
  %v546 = vpack.c.b16 %v535, %v534
  %v547 = vpack.c.b16 %v537, %v536
  %v548 = vpack.c.b16 %v539, %v538
  %v549 = vpack.c.b16 %v541, %v540
  %558 = vmatpush.bf16.msra.mxu0 %v549
  %559 = vmatpush.bf16.msra.mxu0 %v548
  %560 = vmatpush.bf16.msra.mxu0 %v547
  %561 = vmatpush.bf16.msra.mxu0 %v546
  %562 = vmatpush.bf16.msra.mxu0 %v545
  %563 = vmatpush.bf16.msra.mxu0 %v544
  %564 = vmatpush.bf16.msra.mxu0 %v543
  %565 = vmatpush.bf16.msra.mxu0 %v542
  %566 = vmatmul.bf16.gmra.mxu0 %v483
  %v567 = vpop.f32.mrf.mxu0
  %v568 = vadd.f32 0.0, %v567
  %v569 = vpop.f32.mrf.mxu0
  %v570 = vadd.f32 0.0, %v569
  %571 = vmatmul.bf16.gmra.mxu0 %v484
  %v572 = vpop.f32.mrf.mxu0
  %v573 = vadd.f32 0.0, %v572
  %v574 = vpop.f32.mrf.mxu0
  %v575 = vadd.f32 0.0, %v574
  %576 = vmatmul.bf16.gmra.mxu0 %v485
  %v577 = vpop.f32.mrf.mxu0
  %v578 = vadd.f32 0.0, %v577
  %v579 = vpop.f32.mrf.mxu0
  %v580 = vadd.f32 0.0, %v579
  %581 = vmatmul.bf16.gmra.mxu0 %v486
  %v582 = vpop.f32.mrf.mxu0
  %v583 = vadd.f32 0.0, %v582
  %v584 = vpop.f32.mrf.mxu0
  %v585 = vadd.f32 0.0, %v584
  %586 = vmatmul.bf16.gmra.mxu0 %v487
  %v587 = vpop.f32.mrf.mxu0
  %v588 = vadd.f32 0.0, %v587
  %v589 = vpop.f32.mrf.mxu0
  %v590 = vadd.f32 0.0, %v589
  %591 = vmatmul.bf16.gmra.mxu0 %v488
  %v592 = vpop.f32.mrf.mxu0
  %v593 = vadd.f32 0.0, %v592
  %v594 = vpop.f32.mrf.mxu0
  %v595 = vadd.f32 0.0, %v594
  %596 = vmatmul.bf16.gmra.mxu0 %v489
  %v597 = vpop.f32.mrf.mxu0
  %v598 = vadd.f32 0.0, %v597
  %v599 = vpop.f32.mrf.mxu0
  %v600 = vadd.f32 0.0, %v599
  %601 = vmatmul.bf16.gmra.mxu0 %v490
  %v602 = vpop.f32.mrf.mxu0
  %v603 = vadd.f32 0.0, %v602
  %v604 = vpop.f32.mrf.mxu0
  %v605 = vadd.f32 0.0, %v604
  %606 = vdwg.mxu0
  %v607 = vrcp.pop %v467
  %v608 = vrcp.pop %v468
  %v609 = vrcp.pop %v469
  %v610 = vrcp.pop %v470
  %v611 = vrcp.pop %v471
  %v612 = vrcp.pop %v472
  %v613 = vrcp.pop %v473
  %v614 = vrcp.pop %v474
  %v615 = vrcp.pop %v475
  %v616 = vrcp.pop %v476
  %v617 = vrcp.pop %v477
  %v618 = vrcp.pop %v478
  %v619 = vrcp.pop %v479
  %v620 = vrcp.pop %v480
  %v621 = vrcp.pop %v481
  %v622 = vrcp.pop %v482
  %v623 = vmul.f32 %v568, %v607
  %v624 = vmul.f32 %v570, %v608
  %v625 = vmul.f32 %v573, %v609
  %v626 = vmul.f32 %v575, %v610
  %v627 = vmul.f32 %v578, %v611
  %v628 = vmul.f32 %v580, %v612
  %v629 = vmul.f32 %v583, %v613
  %v630 = vmul.f32 %v585, %v614
  %v631 = vmul.f32 %v588, %v615
  %v632 = vmul.f32 %v590, %v616
  %v633 = vmul.f32 %v593, %v617
  %v634 = vmul.f32 %v595, %v618
  %v635 = vmul.f32 %v598, %v619
  %v636 = vmul.f32 %v600, %v620
  %v637 = vmul.f32 %v603, %v621
  %v638 = vmul.f32 %v605, %v622
  %v639 = vld [vmem:[%s5] sm:$0xf]
  %v640 = vld [vmem:[%s5 + $0x4] sm:$0xf]
  %v641 = vld [vmem:[%s5 + $0x8] sm:$0xf]
  %v642 = vld [vmem:[%s5 + $0xc] sm:$0xf]
  %v643 = vld [vmem:[%s5 + $0x10] sm:$0xf]
  %v644 = vld [vmem:[%s5 + $0x14] sm:$0xf]
  %v645 = vld [vmem:[%s5 + $0x18] sm:$0xf]
  %v646 = vld [vmem:[%s5 + $0x1c] sm:$0xf]
  %v647 = vld [vmem:[%s5 + $0x20] sm:$0xf]
  %v648 = vld [vmem:[%s5 + $0x24] sm:$0xf]
  %v649 = vld [vmem:[%s5 + $0x28] sm:$0xf]
  %v650 = vld [vmem:[%s5 + $0x2c] sm:$0xf]
  %v651 = vld [vmem:[%s5 + $0x30] sm:$0xf]
  %v652 = vld [vmem:[%s5 + $0x34] sm:$0xf]
  %v653 = vld [vmem:[%s5 + $0x38] sm:$0xf]
  %v654 = vld [vmem:[%s5 + $0x3c] sm:$0xf]
  %v655 = vunpack.c.l.bf16 %v639
  %v656 = vunpack.c.l.bf16 %v640
  %v657 = vunpack.c.l.bf16 %v641
  %v658 = vunpack.c.l.bf16 %v642
  %v659 = vunpack.c.l.bf16 %v643
  %v660 = vunpack.c.l.bf16 %v644
  %v661 = vunpack.c.l.bf16 %v645
  %v662 = vunpack.c.l.bf16 %v646
  %v663 = vunpack.c.l.bf16 %v647
  %v664 = vunpack.c.l.bf16 %v648
  %v665 = vunpack.c.l.bf16 %v649
  %v666 = vunpack.c.l.bf16 %v650
  %v667 = vunpack.c.l.bf16 %v651
  %v668 = vunpack.c.l.bf16 %v652
  %v669 = vunpack.c.l.bf16 %v653
  %v670 = vunpack.c.l.bf16 %v654
  %v671 = vadd.f32 %v623, %v655
  %v672 = vadd.f32 %v624, %v656
  %v673 = vadd.f32 %v625, %v657
  %v674 = vadd.f32 %v626, %v658
  %v675 = vadd.f32 %v627, %v659
  %v676 = vadd.f32 %v628, %v660
  %v677 = vadd.f32 %v629, %v661
  %v678 = vadd.f32 %v630, %v662
  %v679 = vadd.f32 %v631, %v663
  %v680 = vadd.f32 %v632, %v664
  %v681 = vadd.f32 %v633, %v665
  %v682 = vadd.f32 %v634, %v666
  %v683 = vadd.f32 %v635, %v667
  %v684 = vadd.f32 %v636, %v668
  %v685 = vadd.f32 %v637, %v669
  %v686 = vadd.f32 %v638, %v670
  %v687 = vld [vmem:[%s6] sm:$0x1]
  %v689 = vperm.slane %v687, 0
  %v691 = vadd.f32 %v671, %v689
  %v692 = vadd.f32 %v672, %v689
  %v693 = vadd.f32 %v673, %v689
  %v694 = vadd.f32 %v674, %v689
  %v695 = vadd.f32 %v675, %v689
  %v696 = vadd.f32 %v676, %v689
  %v697 = vadd.f32 %v677, %v689
  %v698 = vadd.f32 %v678, %v689
  %v699 = vadd.f32 %v679, %v689
  %v700 = vadd.f32 %v680, %v689
  %v701 = vadd.f32 %v681, %v689
  %v702 = vadd.f32 %v682, %v689
  %v703 = vadd.f32 %v683, %v689
  %v704 = vadd.f32 %v684, %v689
  %v705 = vadd.f32 %v685, %v689
  %v706 = vadd.f32 %v686, %v689
  %707 = vst [vmem:[%s7] sm:$0xff] %v691
  %708 = vst [vmem:[%s7 + $0x8] sm:$0xff] %v692
  %709 = vst [vmem:[%s7 + $0x10] sm:$0xff] %v693
  %710 = vst [vmem:[%s7 + $0x18] sm:$0xff] %v694
  %711 = vst [vmem:[%s7 + $0x20] sm:$0xff] %v695
  %712 = vst [vmem:[%s7 + $0x28] sm:$0xff] %v696
  %713 = vst [vmem:[%s7 + $0x30] sm:$0xff] %v697
  %714 = vst [vmem:[%s7 + $0x38] sm:$0xff] %v698
  %715 = vst [vmem:[%s7 + $0x40] sm:$0xff] %v699
  %716 = vst [vmem:[%s7 + $0x48] sm:$0xff] %v700
  %717 = vst [vmem:[%s7 + $0x50] sm:$0xff] %v701
  %718 = vst [vmem:[%s7 + $0x58] sm:$0xff] %v702
  %719 = vst [vmem:[%s7 + $0x60] sm:$0xff] %v703
  %720 = vst [vmem:[%s7 + $0x68] sm:$0xff] %v704
  %721 = vst [vmem:[%s7 + $0x70] sm:$0xff] %v705
  %722 = vst [vmem:[%s7 + $0x78] sm:$0xff] %v706
  // Predicated region
  $region26: #{_lambda_.15} parent=0 // pred_check
    _
  $region27: #{_lambda_.15} parent=0 // pred_check_branch
    %724 = sbr.rel (0) target = $region29
  $region28: #{_lambda_.15} parent=0 // pred_region
    _
  $region29: #{_lambda_.15} parent=0 // pred_fallthru
    _
  // Predicated region
  $region30: #{_lambda_.15} parent=0 // pred_check
    _
  $region31: #{_lambda_.15} parent=0 // pred_check_branch
    %726 = sbr.rel (0) target = $region33
  $region32: #{_lambda_.15} parent=0 // pred_region
    _
  $region33: #{_lambda_.15} parent=0 // pred_fallthru
    _

</llo_original>
